<compile_context>
chip_gen: v7x
topology: tpu7x:2x2x1
jax: 0.10.0
libtpu: 0.0.40
codegen_flags: <defaults>
</compile_context>

<pallas_src>
import jax
import jax.numpy as jnp
from jax.experimental import pallas as pl
from jax.experimental.pallas import tpu as pltpu


HIDDEN = 256          # LSTM hidden size
CNN_H = 2560          # efficientnet_b7 classifier in_features
NUM_CLASSES = 25
OUT_PAD = 128         # lane-dense classifier output width (cols >= NUM_CLASSES are zero/pad)


# ----------------------------------------------------------------------------
# Single fused kernel: composed conv matmul + interleaved 2-layer LSTM + masked
# mean + rnn clf0 + CNN stand-in projection + fusion classifier.
# ----------------------------------------------------------------------------

def fused_model_kernel(x_ref, gap_ref, lens_ref,
                       convM_ref, convb_ref,
                       wih0_ref, wcat_ref, whh1_ref, b0_ref, b1_ref,
                       clf0_w_ref, clf0_b_ref,
                       cnn_w_ref, cnn_b_ref,
                       cls0a_ref, cls0b_ref, cls0_b_ref,
                       cls1_w_ref, cls1_b_ref,
                       out_ref,
                       conv_scr):
    f32 = jnp.float32
    bf16 = jnp.bfloat16
    B, C3T = x_ref.shape
    T = C3T // 3
    H = whh1_ref.shape[0]
    G4 = 4 * H

    # ---- conv stack: 3 x Conv1d(3,3,5,pad=2) pre-composed into ONE banded matmul ----
    conv_scr[...] = (jnp.dot(x_ref[...], convM_ref[...], preferred_element_type=f32)
                     + convb_ref[...])

    # layer-0 input-projection weight rows: VPU broadcast-FMA path (no K=3 MXU matmul)
    w0_rows = [wih0_ref[c:c + 1, :] for c in range(3)]           # 3 x (1, 4H)
    b0 = b0_ref[...]
    b1 = b1_ref[...]

    # temporal mask, hoisted out of the loop: mask_all[b, t] = (t < len[b])
    lens = lens_ref[...]                                          # (B, 1) f32
    t_iota = jax.lax.broadcasted_iota(jnp.int32, (B, T), 1).astype(f32)
    mask_all = (t_iota < lens).astype(f32)                        # (B, T)

    # conv output rows, loaded once (flat buffer of the torch (B,3,T) conv output)
    conv_rows = [conv_scr[b:b + 1, :] for b in range(B)]          # B x (1, 3T)

    def cell(gates, c_prev):
        i = jax.nn.sigmoid(gates[:, 0 * H:1 * H])
        f = jax.nn.sigmoid(gates[:, 1 * H:2 * H])
        g = jnp.tanh(gates[:, 2 * H:3 * H])
        o = jax.nn.sigmoid(gates[:, 3 * H:4 * H])
        c_new = f * c_prev + i * g
        return o * jnp.tanh(c_new), c_new

    c0 = jnp.zeros((B, H), f32)
    c1 = jnp.zeros((B, H), f32)
    h1 = jnp.zeros((B, H), f32)
    acc = jnp.zeros((B, H), f32)
    z_prev = None        # h0_{t-1} @ [W_hh0 | W_ih1];  None <=> zero (h0_{-1} = 0)

    # Interleaved 2-layer recurrence, statically unrolled (T is small & static here).
    # TODO(synk): for T >~ 16 switch to lax.fori_loop(..., unroll=True) over time chunks.
    for t in range(T):
        # torch flat-reshape semantics: lstm_in[t, b, :] = conv_flat[3*(t*B+b) : +3]
        pieces = []
        for b in range(B):
            b_src, j = divmod(3 * (t * B + b), C3T)
            pieces.append(conv_rows[b_src][:, j:j + 3])           # (1, 3)
        x_t = jnp.concatenate(pieces, axis=0) if B > 1 else pieces[0]   # (B, 3)

        # layer-0 gates: 3 VPU FMAs for the 3-wide input + recurrent half of z_prev
        g0 = (b0
              + x_t[:, 0:1] * w0_rows[0]
              + x_t[:, 1:2] * w0_rows[1]
              + x_t[:, 2:3] * w0_rows[2])
        if z_prev is not None:
            g0 = g0 + z_prev[:, :G4]
        h0, c0 = cell(g0, c0)

        # one fused matmul: [h0 @ W_hh0 | h0 @ W_ih1]  (feeds layer-0 step t+1 and layer-1 step t)
        z = jnp.dot(h0.astype(bf16), wcat_ref[...], preferred_element_type=f32)

        g1 = b1 + z[:, G4:]
        if t > 0:
            g1 = g1 + jnp.dot(h1.astype(bf16), whh1_ref[...], preferred_element_type=f32)
        h1, c1 = cell(g1, c1)

        acc = acc + h1 * mask_all[:, t:t + 1]
        z_prev = z

    # pad_packed + mean(dim=0): masked temporal sum divided by max(stroke_lens)
    pooled = acc / jnp.max(lens)

    # rnn.clf[0..1]: Linear(256,256) + ReLU (Dropout / Identity tail = no-op in eval)
    rnn_feat = jnp.maximum(
        jnp.dot(pooled.astype(bf16), clf0_w_ref[...], preferred_element_type=f32)
        + clf0_b_ref[...], 0.0)                                   # (B, 256)

    # CNN branch stand-in: spatially pooled image (B,3) -> 2560 features via VPU FMAs
    gap = gap_ref[...]                                            # (B, 3)
    cnn_feat = (cnn_b_ref[...]
                + gap[:, 0:1] * cnn_w_ref[0:1, :]
                + gap[:, 1:2] * cnn_w_ref[1:2, :]
                + gap[:, 2:3] * cnn_w_ref[2:3, :])                # (B, 2560)

    # fusion classifier, concat-free: Linear(2816,256) split into cnn / rnn row blocks
    zc = jnp.maximum(
        jnp.dot(cnn_feat.astype(bf16), cls0a_ref[...], preferred_element_type=f32)
        + jnp.dot(rnn_feat.astype(bf16), cls0b_ref[...], preferred_element_type=f32)
        + cls0_b_ref[...], 0.0)                                   # (B, 256)
    logits = (jnp.dot(zc.astype(bf16), cls1_w_ref[...], preferred_element_type=f32)
              + cls1_b_ref[...])                                  # (B, OUT_PAD) lane-dense
    out_ref[...] = jax.nn.sigmoid(logits)


def fused_forward(x_flat, gap, lens, weights):
    B, C3T = x_flat.shape
    n_in = 3 + len(weights)
    return pl.pallas_call(
        fused_model_kernel,
        out_shape=jax.ShapeDtypeStruct((B, OUT_PAD), jnp.float32),
        in_specs=[pl.BlockSpec(memory_space=pltpu.MemorySpace.VMEM)] * n_in,
        out_specs=pl.BlockSpec(memory_space=pltpu.MemorySpace.VMEM),
        scratch_shapes=[pltpu.VMEM((B, C3T), jnp.float32)],       # conv output (tiny)
        compiler_params=pltpu.CompilerParams(vmem_limit_bytes=32 * 1024 * 1024),
    )(x_flat, gap, lens, *weights)


# ----------------------------------------------------------------------------
# Model forward (single pallas_call; only free reshapes + a tiny GAP in XLA)
# ----------------------------------------------------------------------------

def model_forward(p, image, stroke, stroke_lens):
    T, B, _ = stroke.shape
    # torch x.reshape((B,3,T)) is a flat reinterpretation of the (T,B,3) buffer (row-major).
    x_flat = stroke.reshape(B, 3 * T)
    # EfficientNet-B7 trunk stand-in: spatial GAP done in XLA so the kernel never pulls the
    # full-resolution image into VMEM (v7x 64 MiB safety); kernel only sees the (B,3) vector.
    gap = jnp.mean(image.reshape(B, 3, -1), axis=-1)
    lens = stroke_lens.astype(jnp.float32).reshape(B, 1)

    weights = (p["convM"], p["convb"],
               p["l0_wih_t"], p["l01_wcat_t"], p["l1_whh_t"], p["l0_b"], p["l1_b"],
               p["clf0_w_t"], p["clf0_b"],
               p["cnn_proj_w"], p["cnn_proj_b"],
               p["cls0a_w_t"], p["cls0b_w_t"], p["cls0_b"],
               p["cls1_w_t"], p["cls1_b"])
    out_pad = fused_forward(x_flat, gap, lens, weights)
    return out_pad[:, :NUM_CLASSES]


# ----------------------------------------------------------------------------
# Deterministic parameter init (band matrices composed here, NOT in the jitted path;
# weights pre-transposed, MXU weights in bf16)
# ----------------------------------------------------------------------------

def _uniform(key, shape, fan_in, dtype=jnp.float32):
    k = 1.0 / jnp.sqrt(jnp.float32(fan_in))
    return jax.random.uniform(key, shape, jnp.float32, -k, k).astype(dtype)


def _conv_band_matrix(w_l, T):
    """M (3T,3T) s.t. out_flat = x_flat @ M reproduces Conv1d(3,3,5,pad=2).
    w_l: (out_ch=3, in_ch=3, k=5); M[ci*T+s, co*T+t] = w_l[co,ci,s-t+2] on 5 diagonals."""
    rows = []
    for ci in range(3):
        cols = []
        for co in range(3):
            blk = jnp.zeros((T, T), jnp.float32)
            for k in range(5):
                blk = blk + w_l[co, ci, k] * jnp.eye(T, dtype=jnp.float32, k=2 - k)
            cols.append(blk)
        rows.append(jnp.concatenate(cols, axis=1))
    return jnp.concatenate(rows, axis=0)


def init_params(key, T):
    keys = jax.random.split(key, 40)
    ki = iter(keys)
    bf16 = jnp.bfloat16
    p = {}
    # conv stack: 3x Conv1d(3,3,5,pad=2) -> one composed affine map (exact; layers are linear)
    ms, bs = [], []
    for _ in range(3):
        w = _uniform(next(ki), (3, 3, 5), 15)
        b = _uniform(next(ki), (3,), 15)
        ms.append(_conv_band_matrix(w, T))
        bs.append(jnp.repeat(b, T))                              # (3T,) channel-major bias
    p["convM"] = ms[0] @ ms[1] @ ms[2]                           # (3T, 3T)
    p["convb"] = ((bs[0] @ ms[1] + bs[1]) @ ms[2] + bs[2]).reshape(1, 3 * T)
    # LSTM layer 0 (in=3) and layer 1 (in=256), hidden 256, gate order [i,f,g,o]
    p["l0_wih_t"] = _uniform(next(ki), (3, 4 * HIDDEN), HIDDEN)  # VPU path -> f32
    whh0 = _uniform(next(ki), (HIDDEN, 4 * HIDDEN), HIDDEN)
    wih1 = _uniform(next(ki), (HIDDEN, 4 * HIDDEN), HIDDEN)
    p["l01_wcat_t"] = jnp.concatenate([whh0, wih1], axis=1).astype(bf16)   # (256, 2048)
    p["l1_whh_t"] = _uniform(next(ki), (HIDDEN, 4 * HIDDEN), HIDDEN, bf16)
    p["l0_b"] = (_uniform(next(ki), (1, 4 * HIDDEN), HIDDEN)
                 + _uniform(next(ki), (1, 4 * HIDDEN), HIDDEN))  # b_ih + b_hh
    p["l1_b"] = (_uniform(next(ki), (1, 4 * HIDDEN), HIDDEN)
                 + _uniform(next(ki), (1, 4 * HIDDEN), HIDDEN))
    # rnn.clf[0]: Linear(256,256)
    p["clf0_w_t"] = _uniform(next(ki), (HIDDEN, HIDDEN), HIDDEN, bf16)
    p["clf0_b"] = _uniform(next(ki), (1, HIDDEN), HIDDEN)
    # efficientnet_b7 trunk stand-in: GAP + Linear(3, 2560) (VPU path -> f32)
    p["cnn_proj_w"] = _uniform(next(ki), (3, CNN_H), 3)
    p["cnn_proj_b"] = _uniform(next(ki), (1, CNN_H), 3)
    # fusion classifier Linear(2816,256) split into cnn (first 2560) / rnn (last 256) blocks
    p["cls0a_w_t"] = _uniform(next(ki), (CNN_H, HIDDEN), CNN_H + HIDDEN, bf16)
    p["cls0b_w_t"] = _uniform(next(ki), (HIDDEN, HIDDEN), CNN_H + HIDDEN, bf16)
    p["cls0_b"] = _uniform(next(ki), (1, HIDDEN), CNN_H + HIDDEN)
    # classifier Linear(256,25): stored lane-dense (columns >= 25 are zero)
    w = _uniform(next(ki), (HIDDEN, NUM_CLASSES), HIDDEN)
    b = _uniform(next(ki), (1, NUM_CLASSES), HIDDEN)
    p["cls1_w_t"] = jnp.pad(w, ((0, 0), (0, OUT_PAD - NUM_CLASSES))).astype(bf16)
    p["cls1_b"] = jnp.pad(b, ((0, 0), (0, OUT_PAD - NUM_CLASSES)))
    return p


# ----------------------------------------------------------------------------
# Main
# ----------------------------------------------------------------------------

if __name__ == "__main__":
    key = jax.random.PRNGKey(0)
    k_param, k_img, k_stroke = jax.random.split(key, 3)

    B, T = 2, 8
    image = jax.random.normal(k_img, (B, 3, 16, 16), jnp.float32)      # NCHW
    stroke = jax.random.normal(k_stroke, (T, B, 3), jnp.float32)       # time-major
    stroke_lens = jnp.array([8, 5], jnp.int32)

    params = init_params(k_param, T)

    forward = jax.jit(model_forward)
    out = forward(params, image, stroke, stroke_lens)
    out = jax.block_until_ready(out)

    assert out.shape == (B, NUM_CLASSES), out.shape
    assert bool(jnp.all(jnp.isfinite(out)))
    assert bool(jnp.all((out >= 0.0) & (out <= 1.0)))   # sigmoid output
    print("KERNEL_OK")
</pallas_src>

<mosaic_0001>
module attributes {stable_mosaic.version = 11 : i64} {
  func.func @fused_model_kernel(%arg0: memref<2x24xf32, #tpu.memory_space<vmem>>, %arg1: memref<2x3xf32, #tpu.memory_space<vmem>>, %arg2: memref<2x1xf32, #tpu.memory_space<vmem>>, %arg3: memref<24x24xf32, #tpu.memory_space<vmem>>, %arg4: memref<1x24xf32, #tpu.memory_space<vmem>>, %arg5: memref<3x1024xf32, #tpu.memory_space<vmem>>, %arg6: memref<256x2048xbf16, #tpu.memory_space<vmem>>, %arg7: memref<256x1024xbf16, #tpu.memory_space<vmem>>, %arg8: memref<1x1024xf32, #tpu.memory_space<vmem>>, %arg9: memref<1x1024xf32, #tpu.memory_space<vmem>>, %arg10: memref<256x256xbf16, #tpu.memory_space<vmem>>, %arg11: memref<1x256xf32, #tpu.memory_space<vmem>>, %arg12: memref<3x2560xf32, #tpu.memory_space<vmem>>, %arg13: memref<1x2560xf32, #tpu.memory_space<vmem>>, %arg14: memref<2560x256xbf16, #tpu.memory_space<vmem>>, %arg15: memref<256x256xbf16, #tpu.memory_space<vmem>>, %arg16: memref<1x256xf32, #tpu.memory_space<vmem>>, %arg17: memref<256x128xbf16, #tpu.memory_space<vmem>>, %arg18: memref<1x128xf32, #tpu.memory_space<vmem>>, %arg19: memref<2x128xf32, #tpu.memory_space<vmem>>, %arg20: memref<2x24xf32, #tpu.memory_space<vmem>>) attributes {dimension_semantics = [], scalar_prefetch = 0 : i64, scratch_operands = 1 : i64, tpu.core_type = #tpu.core_type<tc>} {
    %c0 = arith.constant 0 : index
    %c0_0 = arith.constant 0 : index
    %0 = vector.load %arg0[%c0, %c0_0] : memref<2x24xf32, #tpu.memory_space<vmem>>, vector<2x24xf32>
    %c0_1 = arith.constant 0 : index
    %c0_2 = arith.constant 0 : index
    %1 = vector.load %arg3[%c0_1, %c0_2] : memref<24x24xf32, #tpu.memory_space<vmem>>, vector<24x24xf32>
    %cst = arith.constant dense<0.000000e+00> : vector<2x24xf32>
    %2 = tpu.matmul %0, %1, %cst {dimension_numbers = #tpu.dot_dimension_numbers<[1], [0], [0], [1], [0, 0, 1, 1], [], []>} : vector<2x24xf32>, vector<24x24xf32>, vector<2x24xf32> -> vector<2x24xf32>
    %c0_3 = arith.constant 0 : index
    %c0_4 = arith.constant 0 : index
    %3 = vector.load %arg4[%c0_3, %c0_4] : memref<1x24xf32, #tpu.memory_space<vmem>>, vector<1x24xf32>
    %4 = vector.broadcast %3 : vector<1x24xf32> to vector<2x24xf32>
    %5 = arith.addf %2, %4 : vector<2x24xf32>
    %c0_5 = arith.constant 0 : index
    %c0_6 = arith.constant 0 : index
    %6 = vector.load %arg20[%c0_5, %c0_6] : memref<2x24xf32, #tpu.memory_space<vmem>>, vector<2x24xf32>
    tpu.vector_store %arg20[%c0_5, %c0_6], %5 {strides = array<i32>} : memref<2x24xf32, #tpu.memory_space<vmem>>, vector<2x24xf32>,
    %c0_7 = arith.constant 0 : index
    %c0_8 = arith.constant 0 : index
    %7 = vector.load %arg5[%c0_7, %c0_8] : memref<3x1024xf32, #tpu.memory_space<vmem>>, vector<1x1024xf32>
    %c1 = arith.constant 1 : index
    %c0_9 = arith.constant 0 : index
    %8 = vector.load %arg5[%c1, %c0_9] : memref<3x1024xf32, #tpu.memory_space<vmem>>, vector<1x1024xf32>
    %c2 = arith.constant 2 : index
    %c0_10 = arith.constant 0 : index
    %9 = vector.load %arg5[%c2, %c0_10] : memref<3x1024xf32, #tpu.memory_space<vmem>>, vector<1x1024xf32>
    %c0_11 = arith.constant 0 : index
    %c0_12 = arith.constant 0 : index
    %10 = vector.load %arg8[%c0_11, %c0_12] : memref<1x1024xf32, #tpu.memory_space<vmem>>, vector<1x1024xf32>
    %c0_13 = arith.constant 0 : index
    %c0_14 = arith.constant 0 : index
    %11 = vector.load %arg9[%c0_13, %c0_14] : memref<1x1024xf32, #tpu.memory_space<vmem>>, vector<1x1024xf32>
    %c0_15 = arith.constant 0 : index
    %c0_16 = arith.constant 0 : index
    %12 = vector.load %arg2[%c0_15, %c0_16] : memref<2x1xf32, #tpu.memory_space<vmem>>, vector<2x1xf32>
    %13 = tpu.iota {dimensions = array<i32: 1>} : vector<2x8xi32>
    %14 = arith.sitofp %13 : vector<2x8xi32> to vector<2x8xf32>
    %15 = vector.broadcast %12 : vector<2x1xf32> to vector<2x8xf32>
    %16 = arith.cmpf olt, %14, %15 : vector<2x8xf32>
    %17 = arith.extui %16 : vector<2x8xi1> to vector<2x8xi32>
    %18 = arith.sitofp %17 : vector<2x8xi32> to vector<2x8xf32>
    %c0_17 = arith.constant 0 : index
    %c0_18 = arith.constant 0 : index
    %19 = vector.load %arg20[%c0_17, %c0_18] : memref<2x24xf32, #tpu.memory_space<vmem>>, vector<1x24xf32>
    %c1_19 = arith.constant 1 : index
    %c0_20 = arith.constant 0 : index
    %20 = vector.load %arg20[%c1_19, %c0_20] : memref<2x24xf32, #tpu.memory_space<vmem>>, vector<1x24xf32>
    %cst_21 = arith.constant 0.000000e+00 : f32
    %21 = vector.broadcast %cst_21 : f32 to vector<2x256xf32>
    %cst_22 = arith.constant 0.000000e+00 : f32
    %22 = vector.broadcast %cst_22 : f32 to vector<2x256xf32>
    %cst_23 = arith.constant 0.000000e+00 : f32
    %23 = vector.broadcast %cst_23 : f32 to vector<2x256xf32>
    %24 = vector.extract_strided_slice %19 {offsets = [0, 0], sizes = [1, 3], strides = [1, 1]} : vector<1x24xf32> to vector<1x3xf32>
    %25 = vector.extract_strided_slice %19 {offsets = [0, 3], sizes = [1, 3], strides = [1, 1]} : vector<1x24xf32> to vector<1x3xf32>
    %26 = tpu.concatenate %24, %25 in 0 : vector<1x3xf32>, vector<1x3xf32> -> vector<2x3xf32>
    %27 = vector.extract_strided_slice %26 {offsets = [0, 0], sizes = [2, 1], strides = [1, 1]} : vector<2x3xf32> to vector<2x1xf32>
    %28 = vector.broadcast %27 : vector<2x1xf32> to vector<2x1024xf32>
    %29 = vector.broadcast %7 : vector<1x1024xf32> to vector<2x1024xf32>
    %30 = arith.mulf %28, %29 : vector<2x1024xf32>
    %31 = vector.broadcast %10 : vector<1x1024xf32> to vector<2x1024xf32>
    %32 = arith.addf %31, %30 : vector<2x1024xf32>
    %33 = vector.extract_strided_slice %26 {offsets = [0, 1], sizes = [2, 1], strides = [1, 1]} : vector<2x3xf32> to vector<2x1xf32>
    %34 = vector.broadcast %33 : vector<2x1xf32> to vector<2x1024xf32>
    %35 = vector.broadcast %8 : vector<1x1024xf32> to vector<2x1024xf32>
    %36 = arith.mulf %34, %35 : vector<2x1024xf32>
    %37 = arith.addf %32, %36 : vector<2x1024xf32>
    %38 = vector.extract_strided_slice %26 {offsets = [0, 2], sizes = [2, 1], strides = [1, 1]} : vector<2x3xf32> to vector<2x1xf32>
    %39 = vector.broadcast %38 : vector<2x1xf32> to vector<2x1024xf32>
    %40 = vector.broadcast %9 : vector<1x1024xf32> to vector<2x1024xf32>
    %41 = arith.mulf %39, %40 : vector<2x1024xf32>
    %42 = arith.addf %37, %41 : vector<2x1024xf32>
    %43 = vector.extract_strided_slice %42 {offsets = [0, 0], sizes = [2, 256], strides = [1, 1]} : vector<2x1024xf32> to vector<2x256xf32>
    %44 = arith.negf %43 : vector<2x256xf32>
    %45 = math.exp %44 : vector<2x256xf32>
    %cst_24 = arith.constant 1.000000e+00 : f32
    %46 = vector.broadcast %cst_24 : f32 to vector<2x256xf32>
    %47 = arith.addf %46, %45 : vector<2x256xf32>
    %48 = arith.divf %46, %47 : vector<2x256xf32>
    %49 = vector.extract_strided_slice %42 {offsets = [0, 256], sizes = [2, 256], strides = [1, 1]} : vector<2x1024xf32> to vector<2x256xf32>
    %50 = arith.negf %49 : vector<2x256xf32>
    %51 = math.exp %50 : vector<2x256xf32>
    %cst_25 = arith.constant 1.000000e+00 : f32
    %52 = vector.broadcast %cst_25 : f32 to vector<2x256xf32>
    %53 = arith.addf %52, %51 : vector<2x256xf32>
    %54 = arith.divf %52, %53 : vector<2x256xf32>
    %55 = vector.extract_strided_slice %42 {offsets = [0, 512], sizes = [2, 256], strides = [1, 1]} : vector<2x1024xf32> to vector<2x256xf32>
    %56 = math.tanh %55 : vector<2x256xf32>
    %57 = vector.extract_strided_slice %42 {offsets = [0, 768], sizes = [2, 256], strides = [1, 1]} : vector<2x1024xf32> to vector<2x256xf32>
    %58 = arith.negf %57 : vector<2x256xf32>
    %59 = math.exp %58 : vector<2x256xf32>
    %cst_26 = arith.constant 1.000000e+00 : f32
    %60 = vector.broadcast %cst_26 : f32 to vector<2x256xf32>
    %61 = arith.addf %60, %59 : vector<2x256xf32>
    %62 = arith.divf %60, %61 : vector<2x256xf32>
    %63 = arith.mulf %54, %21 : vector<2x256xf32>
    %64 = arith.mulf %48, %56 : vector<2x256xf32>
    %65 = arith.addf %63, %64 : vector<2x256xf32>
    %66 = math.tanh %65 : vector<2x256xf32>
    %67 = arith.mulf %62, %66 : vector<2x256xf32>
    %68 = arith.truncf %67 : vector<2x256xf32> to vector<2x256xbf16>
    %c0_27 = arith.constant 0 : index
    %c0_28 = arith.constant 0 : index
    %69 = vector.load %arg6[%c0_27, %c0_28] : memref<256x2048xbf16, #tpu.memory_space<vmem>>, vector<256x2048xbf16>
    %cst_29 = arith.constant dense<0.000000e+00> : vector<2x2048xf32>
    %70 = tpu.matmul %68, %69, %cst_29 {dimension_numbers = #tpu.dot_dimension_numbers<[1], [0], [0], [1], [0, 0, 1, 1], [], []>} : vector<2x256xbf16>, vector<256x2048xbf16>, vector<2x2048xf32> -> vector<2x2048xf32>
    %71 = vector.extract_strided_slice %70 {offsets = [0, 1024], sizes = [2, 1024], strides = [1, 1]} : vector<2x2048xf32> to vector<2x1024xf32>
    %72 = vector.broadcast %11 : vector<1x1024xf32> to vector<2x1024xf32>
    %73 = arith.addf %72, %71 : vector<2x1024xf32>
    %74 = vector.extract_strided_slice %73 {offsets = [0, 0], sizes = [2, 256], strides = [1, 1]} : vector<2x1024xf32> to vector<2x256xf32>
    %75 = arith.negf %74 : vector<2x256xf32>
    %76 = math.exp %75 : vector<2x256xf32>
    %cst_30 = arith.constant 1.000000e+00 : f32
    %77 = vector.broadcast %cst_30 : f32 to vector<2x256xf32>
    %78 = arith.addf %77, %76 : vector<2x256xf32>
    %79 = arith.divf %77, %78 : vector<2x256xf32>
    %80 = vector.extract_strided_slice %73 {offsets = [0, 256], sizes = [2, 256], strides = [1, 1]} : vector<2x1024xf32> to vector<2x256xf32>
    %81 = arith.negf %80 : vector<2x256xf32>
    %82 = math.exp %81 : vector<2x256xf32>
    %cst_31 = arith.constant 1.000000e+00 : f32
    %83 = vector.broadcast %cst_31 : f32 to vector<2x256xf32>
    %84 = arith.addf %83, %82 : vector<2x256xf32>
    %85 = arith.divf %83, %84 : vector<2x256xf32>
    %86 = vector.extract_strided_slice %73 {offsets = [0, 512], sizes = [2, 256], strides = [1, 1]} : vector<2x1024xf32> to vector<2x256xf32>
    %87 = math.tanh %86 : vector<2x256xf32>
    %88 = vector.extract_strided_slice %73 {offsets = [0, 768], sizes = [2, 256], strides = [1, 1]} : vector<2x1024xf32> to vector<2x256xf32>
    %89 = arith.negf %88 : vector<2x256xf32>
    %90 = math.exp %89 : vector<2x256xf32>
    %cst_32 = arith.constant 1.000000e+00 : f32
    %91 = vector.broadcast %cst_32 : f32 to vector<2x256xf32>
    %92 = arith.addf %91, %90 : vector<2x256xf32>
    %93 = arith.divf %91, %92 : vector<2x256xf32>
    %94 = arith.mulf %85, %22 : vector<2x256xf32>
    %95 = arith.mulf %79, %87 : vector<2x256xf32>
    %96 = arith.addf %94, %95 : vector<2x256xf32>
    %97 = math.tanh %96 : vector<2x256xf32>
    %98 = arith.mulf %93, %97 : vector<2x256xf32>
    %99 = vector.extract_strided_slice %18 {offsets = [0, 0], sizes = [2, 1], strides = [1, 1]} : vector<2x8xf32> to vector<2x1xf32>
    %100 = vector.broadcast %99 : vector<2x1xf32> to vector<2x256xf32>
    %101 = arith.mulf %98, %100 : vector<2x256xf32>
    %102 = arith.addf %23, %101 : vector<2x256xf32>
    %103 = vector.extract_strided_slice %19 {offsets = [0, 6], sizes = [1, 3], strides = [1, 1]} : vector<1x24xf32> to vector<1x3xf32>
    %104 = vector.extract_strided_slice %19 {offsets = [0, 9], sizes = [1, 3], strides = [1, 1]} : vector<1x24xf32> to vector<1x3xf32>
    %105 = tpu.concatenate %103, %104 in 0 : vector<1x3xf32>, vector<1x3xf32> -> vector<2x3xf32>
    %106 = vector.extract_strided_slice %105 {offsets = [0, 0], sizes = [2, 1], strides = [1, 1]} : vector<2x3xf32> to vector<2x1xf32>
    %107 = vector.broadcast %106 : vector<2x1xf32> to vector<2x1024xf32>
    %108 = vector.broadcast %7 : vector<1x1024xf32> to vector<2x1024xf32>
    %109 = arith.mulf %107, %108 : vector<2x1024xf32>
    %110 = vector.broadcast %10 : vector<1x1024xf32> to vector<2x1024xf32>
    %111 = arith.addf %110, %109 : vector<2x1024xf32>
    %112 = vector.extract_strided_slice %105 {offsets = [0, 1], sizes = [2, 1], strides = [1, 1]} : vector<2x3xf32> to vector<2x1xf32>
    %113 = vector.broadcast %112 : vector<2x1xf32> to vector<2x1024xf32>
    %114 = vector.broadcast %8 : vector<1x1024xf32> to vector<2x1024xf32>
    %115 = arith.mulf %113, %114 : vector<2x1024xf32>
    %116 = arith.addf %111, %115 : vector<2x1024xf32>
    %117 = vector.extract_strided_slice %105 {offsets = [0, 2], sizes = [2, 1], strides = [1, 1]} : vector<2x3xf32> to vector<2x1xf32>
    %118 = vector.broadcast %117 : vector<2x1xf32> to vector<2x1024xf32>
    %119 = vector.broadcast %9 : vector<1x1024xf32> to vector<2x1024xf32>
    %120 = arith.mulf %118, %119 : vector<2x1024xf32>
    %121 = arith.addf %116, %120 : vector<2x1024xf32>
    %122 = vector.extract_strided_slice %70 {offsets = [0, 0], sizes = [2, 1024], strides = [1, 1]} : vector<2x2048xf32> to vector<2x1024xf32>
    %123 = arith.addf %121, %122 : vector<2x1024xf32>
    %124 = vector.extract_strided_slice %123 {offsets = [0, 0], sizes = [2, 256], strides = [1, 1]} : vector<2x1024xf32> to vector<2x256xf32>
    %125 = arith.negf %124 : vector<2x256xf32>
    %126 = math.exp %125 : vector<2x256xf32>
    %cst_33 = arith.constant 1.000000e+00 : f32
    %127 = vector.broadcast %cst_33 : f32 to vector<2x256xf32>
    %128 = arith.addf %127, %126 : vector<2x256xf32>
    %129 = arith.divf %127, %128 : vector<2x256xf32>
    %130 = vector.extract_strided_slice %123 {offsets = [0, 256], sizes = [2, 256], strides = [1, 1]} : vector<2x1024xf32> to vector<2x256xf32>
    %131 = arith.negf %130 : vector<2x256xf32>
    %132 = math.exp %131 : vector<2x256xf32>
    %cst_34 = arith.constant 1.000000e+00 : f32
    %133 = vector.broadcast %cst_34 : f32 to vector<2x256xf32>
    %134 = arith.addf %133, %132 : vector<2x256xf32>
    %135 = arith.divf %133, %134 : vector<2x256xf32>
    %136 = vector.extract_strided_slice %123 {offsets = [0, 512], sizes = [2, 256], strides = [1, 1]} : vector<2x1024xf32> to vector<2x256xf32>
    %137 = math.tanh %136 : vector<2x256xf32>
    %138 = vector.extract_strided_slice %123 {offsets = [0, 768], sizes = [2, 256], strides = [1, 1]} : vector<2x1024xf32> to vector<2x256xf32>
    %139 = arith.negf %138 : vector<2x256xf32>
    %140 = math.exp %139 : vector<2x256xf32>
    %cst_35 = arith.constant 1.000000e+00 : f32
    %141 = vector.broadcast %cst_35 : f32 to vector<2x256xf32>
    %142 = arith.addf %141, %140 : vector<2x256xf32>
    %143 = arith.divf %141, %142 : vector<2x256xf32>
    %144 = arith.mulf %135, %65 : vector<2x256xf32>
    %145 = arith.mulf %129, %137 : vector<2x256xf32>
    %146 = arith.addf %144, %145 : vector<2x256xf32>
    %147 = math.tanh %146 : vector<2x256xf32>
    %148 = arith.mulf %143, %147 : vector<2x256xf32>
    %149 = arith.truncf %148 : vector<2x256xf32> to vector<2x256xbf16>
    %c0_36 = arith.constant 0 : index
    %c0_37 = arith.constant 0 : index
    %150 = vector.load %arg6[%c0_36, %c0_37] : memref<256x2048xbf16, #tpu.memory_space<vmem>>, vector<256x2048xbf16>
    %cst_38 = arith.constant dense<0.000000e+00> : vector<2x2048xf32>
    %151 = tpu.matmul %149, %150, %cst_38 {dimension_numbers = #tpu.dot_dimension_numbers<[1], [0], [0], [1], [0, 0, 1, 1], [], []>} : vector<2x256xbf16>, vector<256x2048xbf16>, vector<2x2048xf32> -> vector<2x2048xf32>
    %152 = vector.extract_strided_slice %151 {offsets = [0, 1024], sizes = [2, 1024], strides = [1, 1]} : vector<2x2048xf32> to vector<2x1024xf32>
    %153 = vector.broadcast %11 : vector<1x1024xf32> to vector<2x1024xf32>
    %154 = arith.addf %153, %152 : vector<2x1024xf32>
    %155 = arith.truncf %98 : vector<2x256xf32> to vector<2x256xbf16>
    %c0_39 = arith.constant 0 : index
    %c0_40 = arith.constant 0 : index
    %156 = vector.load %arg7[%c0_39, %c0_40] : memref<256x1024xbf16, #tpu.memory_space<vmem>>, vector<256x1024xbf16>
    %cst_41 = arith.constant dense<0.000000e+00> : vector<2x1024xf32>
    %157 = tpu.matmul %155, %156, %cst_41 {dimension_numbers = #tpu.dot_dimension_numbers<[1], [0], [0], [1], [0, 0, 1, 1], [], []>} : vector<2x256xbf16>, vector<256x1024xbf16>, vector<2x1024xf32> -> vector<2x1024xf32>
    %158 = arith.addf %154, %157 : vector<2x1024xf32>
    %159 = vector.extract_strided_slice %158 {offsets = [0, 0], sizes = [2, 256], strides = [1, 1]} : vector<2x1024xf32> to vector<2x256xf32>
    %160 = arith.negf %159 : vector<2x256xf32>
    %161 = math.exp %160 : vector<2x256xf32>
    %cst_42 = arith.constant 1.000000e+00 : f32
    %162 = vector.broadcast %cst_42 : f32 to vector<2x256xf32>
    %163 = arith.addf %162, %161 : vector<2x256xf32>
    %164 = arith.divf %162, %163 : vector<2x256xf32>
    %165 = vector.extract_strided_slice %158 {offsets = [0, 256], sizes = [2, 256], strides = [1, 1]} : vector<2x1024xf32> to vector<2x256xf32>
    %166 = arith.negf %165 : vector<2x256xf32>
    %167 = math.exp %166 : vector<2x256xf32>
    %cst_43 = arith.constant 1.000000e+00 : f32
    %168 = vector.broadcast %cst_43 : f32 to vector<2x256xf32>
    %169 = arith.addf %168, %167 : vector<2x256xf32>
    %170 = arith.divf %168, %169 : vector<2x256xf32>
    %171 = vector.extract_strided_slice %158 {offsets = [0, 512], sizes = [2, 256], strides = [1, 1]} : vector<2x1024xf32> to vector<2x256xf32>
    %172 = math.tanh %171 : vector<2x256xf32>
    %173 = vector.extract_strided_slice %158 {offsets = [0, 768], sizes = [2, 256], strides = [1, 1]} : vector<2x1024xf32> to vector<2x256xf32>
    %174 = arith.negf %173 : vector<2x256xf32>
    %175 = math.exp %174 : vector<2x256xf32>
    %cst_44 = arith.constant 1.000000e+00 : f32
    %176 = vector.broadcast %cst_44 : f32 to vector<2x256xf32>
    %177 = arith.addf %176, %175 : vector<2x256xf32>
    %178 = arith.divf %176, %177 : vector<2x256xf32>
    %179 = arith.mulf %170, %96 : vector<2x256xf32>
    %180 = arith.mulf %164, %172 : vector<2x256xf32>
    %181 = arith.addf %179, %180 : vector<2x256xf32>
    %182 = math.tanh %181 : vector<2x256xf32>
    %183 = arith.mulf %178, %182 : vector<2x256xf32>
    %184 = vector.extract_strided_slice %18 {offsets = [0, 1], sizes = [2, 1], strides = [1, 1]} : vector<2x8xf32> to vector<2x1xf32>
    %185 = vector.broadcast %184 : vector<2x1xf32> to vector<2x256xf32>
    %186 = arith.mulf %183, %185 : vector<2x256xf32>
    %187 = arith.addf %102, %186 : vector<2x256xf32>
    %188 = vector.extract_strided_slice %19 {offsets = [0, 12], sizes = [1, 3], strides = [1, 1]} : vector<1x24xf32> to vector<1x3xf32>
    %189 = vector.extract_strided_slice %19 {offsets = [0, 15], sizes = [1, 3], strides = [1, 1]} : vector<1x24xf32> to vector<1x3xf32>
    %190 = tpu.concatenate %188, %189 in 0 : vector<1x3xf32>, vector<1x3xf32> -> vector<2x3xf32>
    %191 = vector.extract_strided_slice %190 {offsets = [0, 0], sizes = [2, 1], strides = [1, 1]} : vector<2x3xf32> to vector<2x1xf32>
    %192 = vector.broadcast %191 : vector<2x1xf32> to vector<2x1024xf32>
    %193 = vector.broadcast %7 : vector<1x1024xf32> to vector<2x1024xf32>
    %194 = arith.mulf %192, %193 : vector<2x1024xf32>
    %195 = vector.broadcast %10 : vector<1x1024xf32> to vector<2x1024xf32>
    %196 = arith.addf %195, %194 : vector<2x1024xf32>
    %197 = vector.extract_strided_slice %190 {offsets = [0, 1], sizes = [2, 1], strides = [1, 1]} : vector<2x3xf32> to vector<2x1xf32>
    %198 = vector.broadcast %197 : vector<2x1xf32> to vector<2x1024xf32>
    %199 = vector.broadcast %8 : vector<1x1024xf32> to vector<2x1024xf32>
    %200 = arith.mulf %198, %199 : vector<2x1024xf32>
    %201 = arith.addf %196, %200 : vector<2x1024xf32>
    %202 = vector.extract_strided_slice %190 {offsets = [0, 2], sizes = [2, 1], strides = [1, 1]} : vector<2x3xf32> to vector<2x1xf32>
    %203 = vector.broadcast %202 : vector<2x1xf32> to vector<2x1024xf32>
    %204 = vector.broadcast %9 : vector<1x1024xf32> to vector<2x1024xf32>
    %205 = arith.mulf %203, %204 : vector<2x1024xf32>
    %206 = arith.addf %201, %205 : vector<2x1024xf32>
    %207 = vector.extract_strided_slice %151 {offsets = [0, 0], sizes = [2, 1024], strides = [1, 1]} : vector<2x2048xf32> to vector<2x1024xf32>
    %208 = arith.addf %206, %207 : vector<2x1024xf32>
    %209 = vector.extract_strided_slice %208 {offsets = [0, 0], sizes = [2, 256], strides = [1, 1]} : vector<2x1024xf32> to vector<2x256xf32>
    %210 = arith.negf %209 : vector<2x256xf32>
    %211 = math.exp %210 : vector<2x256xf32>
    %cst_45 = arith.constant 1.000000e+00 : f32
    %212 = vector.broadcast %cst_45 : f32 to vector<2x256xf32>
    %213 = arith.addf %212, %211 : vector<2x256xf32>
    %214 = arith.divf %212, %213 : vector<2x256xf32>
    %215 = vector.extract_strided_slice %208 {offsets = [0, 256], sizes = [2, 256], strides = [1, 1]} : vector<2x1024xf32> to vector<2x256xf32>
    %216 = arith.negf %215 : vector<2x256xf32>
    %217 = math.exp %216 : vector<2x256xf32>
    %cst_46 = arith.constant 1.000000e+00 : f32
    %218 = vector.broadcast %cst_46 : f32 to vector<2x256xf32>
    %219 = arith.addf %218, %217 : vector<2x256xf32>
    %220 = arith.divf %218, %219 : vector<2x256xf32>
    %221 = vector.extract_strided_slice %208 {offsets = [0, 512], sizes = [2, 256], strides = [1, 1]} : vector<2x1024xf32> to vector<2x256xf32>
    %222 = math.tanh %221 : vector<2x256xf32>
    %223 = vector.extract_strided_slice %208 {offsets = [0, 768], sizes = [2, 256], strides = [1, 1]} : vector<2x1024xf32> to vector<2x256xf32>
    %224 = arith.negf %223 : vector<2x256xf32>
    %225 = math.exp %224 : vector<2x256xf32>
    %cst_47 = arith.constant 1.000000e+00 : f32
    %226 = vector.broadcast %cst_47 : f32 to vector<2x256xf32>
    %227 = arith.addf %226, %225 : vector<2x256xf32>
    %228 = arith.divf %226, %227 : vector<2x256xf32>
    %229 = arith.mulf %220, %146 : vector<2x256xf32>
    %230 = arith.mulf %214, %222 : vector<2x256xf32>
    %231 = arith.addf %229, %230 : vector<2x256xf32>
    %232 = math.tanh %231 : vector<2x256xf32>
    %233 = arith.mulf %228, %232 : vector<2x256xf32>
    %234 = arith.truncf %233 : vector<2x256xf32> to vector<2x256xbf16>
    %c0_48 = arith.constant 0 : index
    %c0_49 = arith.constant 0 : index
    %235 = vector.load %arg6[%c0_48, %c0_49] : memref<256x2048xbf16, #tpu.memory_space<vmem>>, vector<256x2048xbf16>
    %cst_50 = arith.constant dense<0.000000e+00> : vector<2x2048xf32>
    %236 = tpu.matmul %234, %235, %cst_50 {dimension_numbers = #tpu.dot_dimension_numbers<[1], [0], [0], [1], [0, 0, 1, 1], [], []>} : vector<2x256xbf16>, vector<256x2048xbf16>, vector<2x2048xf32> -> vector<2x2048xf32>
    %237 = vector.extract_strided_slice %236 {offsets = [0, 1024], sizes = [2, 1024], strides = [1, 1]} : vector<2x2048xf32> to vector<2x1024xf32>
    %238 = vector.broadcast %11 : vector<1x1024xf32> to vector<2x1024xf32>
    %239 = arith.addf %238, %237 : vector<2x1024xf32>
    %240 = arith.truncf %183 : vector<2x256xf32> to vector<2x256xbf16>
    %c0_51 = arith.constant 0 : index
    %c0_52 = arith.constant 0 : index
    %241 = vector.load %arg7[%c0_51, %c0_52] : memref<256x1024xbf16, #tpu.memory_space<vmem>>, vector<256x1024xbf16>
    %cst_53 = arith.constant dense<0.000000e+00> : vector<2x1024xf32>
    %242 = tpu.matmul %240, %241, %cst_53 {dimension_numbers = #tpu.dot_dimension_numbers<[1], [0], [0], [1], [0, 0, 1, 1], [], []>} : vector<2x256xbf16>, vector<256x1024xbf16>, vector<2x1024xf32> -> vector<2x1024xf32>
    %243 = arith.addf %239, %242 : vector<2x1024xf32>
    %244 = vector.extract_strided_slice %243 {offsets = [0, 0], sizes = [2, 256], strides = [1, 1]} : vector<2x1024xf32> to vector<2x256xf32>
    %245 = arith.negf %244 : vector<2x256xf32>
    %246 = math.exp %245 : vector<2x256xf32>
    %cst_54 = arith.constant 1.000000e+00 : f32
    %247 = vector.broadcast %cst_54 : f32 to vector<2x256xf32>
    %248 = arith.addf %247, %246 : vector<2x256xf32>
    %249 = arith.divf %247, %248 : vector<2x256xf32>
    %250 = vector.extract_strided_slice %243 {offsets = [0, 256], sizes = [2, 256], strides = [1, 1]} : vector<2x1024xf32> to vector<2x256xf32>
    %251 = arith.negf %250 : vector<2x256xf32>
    %252 = math.exp %251 : vector<2x256xf32>
    %cst_55 = arith.constant 1.000000e+00 : f32
    %253 = vector.broadcast %cst_55 : f32 to vector<2x256xf32>
    %254 = arith.addf %253, %252 : vector<2x256xf32>
    %255 = arith.divf %253, %254 : vector<2x256xf32>
    %256 = vector.extract_strided_slice %243 {offsets = [0, 512], sizes = [2, 256], strides = [1, 1]} : vector<2x1024xf32> to vector<2x256xf32>
    %257 = math.tanh %256 : vector<2x256xf32>
    %258 = vector.extract_strided_slice %243 {offsets = [0, 768], sizes = [2, 256], strides = [1, 1]} : vector<2x1024xf32> to vector<2x256xf32>
    %259 = arith.negf %258 : vector<2x256xf32>
    %260 = math.exp %259 : vector<2x256xf32>
    %cst_56 = arith.constant 1.000000e+00 : f32
    %261 = vector.broadcast %cst_56 : f32 to vector<2x256xf32>
    %262 = arith.addf %261, %260 : vector<2x256xf32>
    %263 = arith.divf %261, %262 : vector<2x256xf32>
    %264 = arith.mulf %255, %181 : vector<2x256xf32>
    %265 = arith.mulf %249, %257 : vector<2x256xf32>
    %266 = arith.addf %264, %265 : vector<2x256xf32>
    %267 = math.tanh %266 : vector<2x256xf32>
    %268 = arith.mulf %263, %267 : vector<2x256xf32>
    %269 = vector.extract_strided_slice %18 {offsets = [0, 2], sizes = [2, 1], strides = [1, 1]} : vector<2x8xf32> to vector<2x1xf32>
    %270 = vector.broadcast %269 : vector<2x1xf32> to vector<2x256xf32>
    %271 = arith.mulf %268, %270 : vector<2x256xf32>
    %272 = arith.addf %187, %271 : vector<2x256xf32>
    %273 = vector.extract_strided_slice %19 {offsets = [0, 18], sizes = [1, 3], strides = [1, 1]} : vector<1x24xf32> to vector<1x3xf32>
    %274 = vector.extract_strided_slice %19 {offsets = [0, 21], sizes = [1, 3], strides = [1, 1]} : vector<1x24xf32> to vector<1x3xf32>
    %275 = tpu.concatenate %273, %274 in 0 : vector<1x3xf32>, vector<1x3xf32> -> vector<2x3xf32>
    %276 = vector.extract_strided_slice %275 {offsets = [0, 0], sizes = [2, 1], strides = [1, 1]} : vector<2x3xf32> to vector<2x1xf32>
    %277 = vector.broadcast %276 : vector<2x1xf32> to vector<2x1024xf32>
    %278 = vector.broadcast %7 : vector<1x1024xf32> to vector<2x1024xf32>
    %279 = arith.mulf %277, %278 : vector<2x1024xf32>
    %280 = vector.broadcast %10 : vector<1x1024xf32> to vector<2x1024xf32>
    %281 = arith.addf %280, %279 : vector<2x1024xf32>
    %282 = vector.extract_strided_slice %275 {offsets = [0, 1], sizes = [2, 1], strides = [1, 1]} : vector<2x3xf32> to vector<2x1xf32>
    %283 = vector.broadcast %282 : vector<2x1xf32> to vector<2x1024xf32>
    %284 = vector.broadcast %8 : vector<1x1024xf32> to vector<2x1024xf32>
    %285 = arith.mulf %283, %284 : vector<2x1024xf32>
    %286 = arith.addf %281, %285 : vector<2x1024xf32>
    %287 = vector.extract_strided_slice %275 {offsets = [0, 2], sizes = [2, 1], strides = [1, 1]} : vector<2x3xf32> to vector<2x1xf32>
    %288 = vector.broadcast %287 : vector<2x1xf32> to vector<2x1024xf32>
    %289 = vector.broadcast %9 : vector<1x1024xf32> to vector<2x1024xf32>
    %290 = arith.mulf %288, %289 : vector<2x1024xf32>
    %291 = arith.addf %286, %290 : vector<2x1024xf32>
    %292 = vector.extract_strided_slice %236 {offsets = [0, 0], sizes = [2, 1024], strides = [1, 1]} : vector<2x2048xf32> to vector<2x1024xf32>
    %293 = arith.addf %291, %292 : vector<2x1024xf32>
    %294 = vector.extract_strided_slice %293 {offsets = [0, 0], sizes = [2, 256], strides = [1, 1]} : vector<2x1024xf32> to vector<2x256xf32>
    %295 = arith.negf %294 : vector<2x256xf32>
    %296 = math.exp %295 : vector<2x256xf32>
    %cst_57 = arith.constant 1.000000e+00 : f32
    %297 = vector.broadcast %cst_57 : f32 to vector<2x256xf32>
    %298 = arith.addf %297, %296 : vector<2x256xf32>
    %299 = arith.divf %297, %298 : vector<2x256xf32>
    %300 = vector.extract_strided_slice %293 {offsets = [0, 256], sizes = [2, 256], strides = [1, 1]} : vector<2x1024xf32> to vector<2x256xf32>
    %301 = arith.negf %300 : vector<2x256xf32>
    %302 = math.exp %301 : vector<2x256xf32>
    %cst_58 = arith.constant 1.000000e+00 : f32
    %303 = vector.broadcast %cst_58 : f32 to vector<2x256xf32>
    %304 = arith.addf %303, %302 : vector<2x256xf32>
    %305 = arith.divf %303, %304 : vector<2x256xf32>
    %306 = vector.extract_strided_slice %293 {offsets = [0, 512], sizes = [2, 256], strides = [1, 1]} : vector<2x1024xf32> to vector<2x256xf32>
    %307 = math.tanh %306 : vector<2x256xf32>
    %308 = vector.extract_strided_slice %293 {offsets = [0, 768], sizes = [2, 256], strides = [1, 1]} : vector<2x1024xf32> to vector<2x256xf32>
    %309 = arith.negf %308 : vector<2x256xf32>
    %310 = math.exp %309 : vector<2x256xf32>
    %cst_59 = arith.constant 1.000000e+00 : f32
    %311 = vector.broadcast %cst_59 : f32 to vector<2x256xf32>
    %312 = arith.addf %311, %310 : vector<2x256xf32>
    %313 = arith.divf %311, %312 : vector<2x256xf32>
    %314 = arith.mulf %305, %231 : vector<2x256xf32>
    %315 = arith.mulf %299, %307 : vector<2x256xf32>
    %316 = arith.addf %314, %315 : vector<2x256xf32>
    %317 = math.tanh %316 : vector<2x256xf32>
    %318 = arith.mulf %313, %317 : vector<2x256xf32>
    %319 = arith.truncf %318 : vector<2x256xf32> to vector<2x256xbf16>
    %c0_60 = arith.constant 0 : index
    %c0_61 = arith.constant 0 : index
    %320 = vector.load %arg6[%c0_60, %c0_61] : memref<256x2048xbf16, #tpu.memory_space<vmem>>, vector<256x2048xbf16>
    %cst_62 = arith.constant dense<0.000000e+00> : vector<2x2048xf32>
    %321 = tpu.matmul %319, %320, %cst_62 {dimension_numbers = #tpu.dot_dimension_numbers<[1], [0], [0], [1], [0, 0, 1, 1], [], []>} : vector<2x256xbf16>, vector<256x2048xbf16>, vector<2x2048xf32> -> vector<2x2048xf32>
    %322 = vector.extract_strided_slice %321 {offsets = [0, 1024], sizes = [2, 1024], strides = [1, 1]} : vector<2x2048xf32> to vector<2x1024xf32>
    %323 = vector.broadcast %11 : vector<1x1024xf32> to vector<2x1024xf32>
    %324 = arith.addf %323, %322 : vector<2x1024xf32>
    %325 = arith.truncf %268 : vector<2x256xf32> to vector<2x256xbf16>
    %c0_63 = arith.constant 0 : index
    %c0_64 = arith.constant 0 : index
    %326 = vector.load %arg7[%c0_63, %c0_64] : memref<256x1024xbf16, #tpu.memory_space<vmem>>, vector<256x1024xbf16>
    %cst_65 = arith.constant dense<0.000000e+00> : vector<2x1024xf32>
    %327 = tpu.matmul %325, %326, %cst_65 {dimension_numbers = #tpu.dot_dimension_numbers<[1], [0], [0], [1], [0, 0, 1, 1], [], []>} : vector<2x256xbf16>, vector<256x1024xbf16>, vector<2x1024xf32> -> vector<2x1024xf32>
    %328 = arith.addf %324, %327 : vector<2x1024xf32>
    %329 = vector.extract_strided_slice %328 {offsets = [0, 0], sizes = [2, 256], strides = [1, 1]} : vector<2x1024xf32> to vector<2x256xf32>
    %330 = arith.negf %329 : vector<2x256xf32>
    %331 = math.exp %330 : vector<2x256xf32>
    %cst_66 = arith.constant 1.000000e+00 : f32
    %332 = vector.broadcast %cst_66 : f32 to vector<2x256xf32>
    %333 = arith.addf %332, %331 : vector<2x256xf32>
    %334 = arith.divf %332, %333 : vector<2x256xf32>
    %335 = vector.extract_strided_slice %328 {offsets = [0, 256], sizes = [2, 256], strides = [1, 1]} : vector<2x1024xf32> to vector<2x256xf32>
    %336 = arith.negf %335 : vector<2x256xf32>
    %337 = math.exp %336 : vector<2x256xf32>
    %cst_67 = arith.constant 1.000000e+00 : f32
    %338 = vector.broadcast %cst_67 : f32 to vector<2x256xf32>
    %339 = arith.addf %338, %337 : vector<2x256xf32>
    %340 = arith.divf %338, %339 : vector<2x256xf32>
    %341 = vector.extract_strided_slice %328 {offsets = [0, 512], sizes = [2, 256], strides = [1, 1]} : vector<2x1024xf32> to vector<2x256xf32>
    %342 = math.tanh %341 : vector<2x256xf32>
    %343 = vector.extract_strided_slice %328 {offsets = [0, 768], sizes = [2, 256], strides = [1, 1]} : vector<2x1024xf32> to vector<2x256xf32>
    %344 = arith.negf %343 : vector<2x256xf32>
    %345 = math.exp %344 : vector<2x256xf32>
    %cst_68 = arith.constant 1.000000e+00 : f32
    %346 = vector.broadcast %cst_68 : f32 to vector<2x256xf32>
    %347 = arith.addf %346, %345 : vector<2x256xf32>
    %348 = arith.divf %346, %347 : vector<2x256xf32>
    %349 = arith.mulf %340, %266 : vector<2x256xf32>
    %350 = arith.mulf %334, %342 : vector<2x256xf32>
    %351 = arith.addf %349, %350 : vector<2x256xf32>
    %352 = math.tanh %351 : vector<2x256xf32>
    %353 = arith.mulf %348, %352 : vector<2x256xf32>
    %354 = vector.extract_strided_slice %18 {offsets = [0, 3], sizes = [2, 1], strides = [1, 1]} : vector<2x8xf32> to vector<2x1xf32>
    %355 = vector.broadcast %354 : vector<2x1xf32> to vector<2x256xf32>
    %356 = arith.mulf %353, %355 : vector<2x256xf32>
    %357 = arith.addf %272, %356 : vector<2x256xf32>
    %358 = vector.extract_strided_slice %20 {offsets = [0, 0], sizes = [1, 3], strides = [1, 1]} : vector<1x24xf32> to vector<1x3xf32>
    %359 = vector.extract_strided_slice %20 {offsets = [0, 3], sizes = [1, 3], strides = [1, 1]} : vector<1x24xf32> to vector<1x3xf32>
    %360 = tpu.concatenate %358, %359 in 0 : vector<1x3xf32>, vector<1x3xf32> -> vector<2x3xf32>
    %361 = vector.extract_strided_slice %360 {offsets = [0, 0], sizes = [2, 1], strides = [1, 1]} : vector<2x3xf32> to vector<2x1xf32>
    %362 = vector.broadcast %361 : vector<2x1xf32> to vector<2x1024xf32>
    %363 = vector.broadcast %7 : vector<1x1024xf32> to vector<2x1024xf32>
    %364 = arith.mulf %362, %363 : vector<2x1024xf32>
    %365 = vector.broadcast %10 : vector<1x1024xf32> to vector<2x1024xf32>
    %366 = arith.addf %365, %364 : vector<2x1024xf32>
    %367 = vector.extract_strided_slice %360 {offsets = [0, 1], sizes = [2, 1], strides = [1, 1]} : vector<2x3xf32> to vector<2x1xf32>
    %368 = vector.broadcast %367 : vector<2x1xf32> to vector<2x1024xf32>
    %369 = vector.broadcast %8 : vector<1x1024xf32> to vector<2x1024xf32>
    %370 = arith.mulf %368, %369 : vector<2x1024xf32>
    %371 = arith.addf %366, %370 : vector<2x1024xf32>
    %372 = vector.extract_strided_slice %360 {offsets = [0, 2], sizes = [2, 1], strides = [1, 1]} : vector<2x3xf32> to vector<2x1xf32>
    %373 = vector.broadcast %372 : vector<2x1xf32> to vector<2x1024xf32>
    %374 = vector.broadcast %9 : vector<1x1024xf32> to vector<2x1024xf32>
    %375 = arith.mulf %373, %374 : vector<2x1024xf32>
    %376 = arith.addf %371, %375 : vector<2x1024xf32>
    %377 = vector.extract_strided_slice %321 {offsets = [0, 0], sizes = [2, 1024], strides = [1, 1]} : vector<2x2048xf32> to vector<2x1024xf32>
    %378 = arith.addf %376, %377 : vector<2x1024xf32>
    %379 = vector.extract_strided_slice %378 {offsets = [0, 0], sizes = [2, 256], strides = [1, 1]} : vector<2x1024xf32> to vector<2x256xf32>
    %380 = arith.negf %379 : vector<2x256xf32>
    %381 = math.exp %380 : vector<2x256xf32>
    %cst_69 = arith.constant 1.000000e+00 : f32
    %382 = vector.broadcast %cst_69 : f32 to vector<2x256xf32>
    %383 = arith.addf %382, %381 : vector<2x256xf32>
    %384 = arith.divf %382, %383 : vector<2x256xf32>
    %385 = vector.extract_strided_slice %378 {offsets = [0, 256], sizes = [2, 256], strides = [1, 1]} : vector<2x1024xf32> to vector<2x256xf32>
    %386 = arith.negf %385 : vector<2x256xf32>
    %387 = math.exp %386 : vector<2x256xf32>
    %cst_70 = arith.constant 1.000000e+00 : f32
    %388 = vector.broadcast %cst_70 : f32 to vector<2x256xf32>
    %389 = arith.addf %388, %387 : vector<2x256xf32>
    %390 = arith.divf %388, %389 : vector<2x256xf32>
    %391 = vector.extract_strided_slice %378 {offsets = [0, 512], sizes = [2, 256], strides = [1, 1]} : vector<2x1024xf32> to vector<2x256xf32>
    %392 = math.tanh %391 : vector<2x256xf32>
    %393 = vector.extract_strided_slice %378 {offsets = [0, 768], sizes = [2, 256], strides = [1, 1]} : vector<2x1024xf32> to vector<2x256xf32>
    %394 = arith.negf %393 : vector<2x256xf32>
    %395 = math.exp %394 : vector<2x256xf32>
    %cst_71 = arith.constant 1.000000e+00 : f32
    %396 = vector.broadcast %cst_71 : f32 to vector<2x256xf32>
    %397 = arith.addf %396, %395 : vector<2x256xf32>
    %398 = arith.divf %396, %397 : vector<2x256xf32>
    %399 = arith.mulf %390, %316 : vector<2x256xf32>
    %400 = arith.mulf %384, %392 : vector<2x256xf32>
    %401 = arith.addf %399, %400 : vector<2x256xf32>
    %402 = math.tanh %401 : vector<2x256xf32>
    %403 = arith.mulf %398, %402 : vector<2x256xf32>
    %404 = arith.truncf %403 : vector<2x256xf32> to vector<2x256xbf16>
    %c0_72 = arith.constant 0 : index
    %c0_73 = arith.constant 0 : index
    %405 = vector.load %arg6[%c0_72, %c0_73] : memref<256x2048xbf16, #tpu.memory_space<vmem>>, vector<256x2048xbf16>
    %cst_74 = arith.constant dense<0.000000e+00> : vector<2x2048xf32>
    %406 = tpu.matmul %404, %405, %cst_74 {dimension_numbers = #tpu.dot_dimension_numbers<[1], [0], [0], [1], [0, 0, 1, 1], [], []>} : vector<2x256xbf16>, vector<256x2048xbf16>, vector<2x2048xf32> -> vector<2x2048xf32>
    %407 = vector.extract_strided_slice %406 {offsets = [0, 1024], sizes = [2, 1024], strides = [1, 1]} : vector<2x2048xf32> to vector<2x1024xf32>
    %408 = vector.broadcast %11 : vector<1x1024xf32> to vector<2x1024xf32>
    %409 = arith.addf %408, %407 : vector<2x1024xf32>
    %410 = arith.truncf %353 : vector<2x256xf32> to vector<2x256xbf16>
    %c0_75 = arith.constant 0 : index
    %c0_76 = arith.constant 0 : index
    %411 = vector.load %arg7[%c0_75, %c0_76] : memref<256x1024xbf16, #tpu.memory_space<vmem>>, vector<256x1024xbf16>
    %cst_77 = arith.constant dense<0.000000e+00> : vector<2x1024xf32>
    %412 = tpu.matmul %410, %411, %cst_77 {dimension_numbers = #tpu.dot_dimension_numbers<[1], [0], [0], [1], [0, 0, 1, 1], [], []>} : vector<2x256xbf16>, vector<256x1024xbf16>, vector<2x1024xf32> -> vector<2x1024xf32>
    %413 = arith.addf %409, %412 : vector<2x1024xf32>
    %414 = vector.extract_strided_slice %413 {offsets = [0, 0], sizes = [2, 256], strides = [1, 1]} : vector<2x1024xf32> to vector<2x256xf32>
    %415 = arith.negf %414 : vector<2x256xf32>
    %416 = math.exp %415 : vector<2x256xf32>
    %cst_78 = arith.constant 1.000000e+00 : f32
    %417 = vector.broadcast %cst_78 : f32 to vector<2x256xf32>
    %418 = arith.addf %417, %416 : vector<2x256xf32>
    %419 = arith.divf %417, %418 : vector<2x256xf32>
    %420 = vector.extract_strided_slice %413 {offsets = [0, 256], sizes = [2, 256], strides = [1, 1]} : vector<2x1024xf32> to vector<2x256xf32>
    %421 = arith.negf %420 : vector<2x256xf32>
    %422 = math.exp %421 : vector<2x256xf32>
    %cst_79 = arith.constant 1.000000e+00 : f32
    %423 = vector.broadcast %cst_79 : f32 to vector<2x256xf32>
    %424 = arith.addf %423, %422 : vector<2x256xf32>
    %425 = arith.divf %423, %424 : vector<2x256xf32>
    %426 = vector.extract_strided_slice %413 {offsets = [0, 512], sizes = [2, 256], strides = [1, 1]} : vector<2x1024xf32> to vector<2x256xf32>
    %427 = math.tanh %426 : vector<2x256xf32>
    %428 = vector.extract_strided_slice %413 {offsets = [0, 768], sizes = [2, 256], strides = [1, 1]} : vector<2x1024xf32> to vector<2x256xf32>
    %429 = arith.negf %428 : vector<2x256xf32>
    %430 = math.exp %429 : vector<2x256xf32>
    %cst_80 = arith.constant 1.000000e+00 : f32
    %431 = vector.broadcast %cst_80 : f32 to vector<2x256xf32>
    %432 = arith.addf %431, %430 : vector<2x256xf32>
    %433 = arith.divf %431, %432 : vector<2x256xf32>
    %434 = arith.mulf %425, %351 : vector<2x256xf32>
    %435 = arith.mulf %419, %427 : vector<2x256xf32>
    %436 = arith.addf %434, %435 : vector<2x256xf32>
    %437 = math.tanh %436 : vector<2x256xf32>
    %438 = arith.mulf %433, %437 : vector<2x256xf32>
    %439 = vector.extract_strided_slice %18 {offsets = [0, 4], sizes = [2, 1], strides = [1, 1]} : vector<2x8xf32> to vector<2x1xf32>
    %440 = vector.broadcast %439 : vector<2x1xf32> to vector<2x256xf32>
    %441 = arith.mulf %438, %440 : vector<2x256xf32>
    %442 = arith.addf %357, %441 : vector<2x256xf32>
    %443 = vector.extract_strided_slice %20 {offsets = [0, 6], sizes = [1, 3], strides = [1, 1]} : vector<1x24xf32> to vector<1x3xf32>
    %444 = vector.extract_strided_slice %20 {offsets = [0, 9], sizes = [1, 3], strides = [1, 1]} : vector<1x24xf32> to vector<1x3xf32>
    %445 = tpu.concatenate %443, %444 in 0 : vector<1x3xf32>, vector<1x3xf32> -> vector<2x3xf32>
    %446 = vector.extract_strided_slice %445 {offsets = [0, 0], sizes = [2, 1], strides = [1, 1]} : vector<2x3xf32> to vector<2x1xf32>
    %447 = vector.broadcast %446 : vector<2x1xf32> to vector<2x1024xf32>
    %448 = vector.broadcast %7 : vector<1x1024xf32> to vector<2x1024xf32>
    %449 = arith.mulf %447, %448 : vector<2x1024xf32>
    %450 = vector.broadcast %10 : vector<1x1024xf32> to vector<2x1024xf32>
    %451 = arith.addf %450, %449 : vector<2x1024xf32>
    %452 = vector.extract_strided_slice %445 {offsets = [0, 1], sizes = [2, 1], strides = [1, 1]} : vector<2x3xf32> to vector<2x1xf32>
    %453 = vector.broadcast %452 : vector<2x1xf32> to vector<2x1024xf32>
    %454 = vector.broadcast %8 : vector<1x1024xf32> to vector<2x1024xf32>
    %455 = arith.mulf %453, %454 : vector<2x1024xf32>
    %456 = arith.addf %451, %455 : vector<2x1024xf32>
    %457 = vector.extract_strided_slice %445 {offsets = [0, 2], sizes = [2, 1], strides = [1, 1]} : vector<2x3xf32> to vector<2x1xf32>
    %458 = vector.broadcast %457 : vector<2x1xf32> to vector<2x1024xf32>
    %459 = vector.broadcast %9 : vector<1x1024xf32> to vector<2x1024xf32>
    %460 = arith.mulf %458, %459 : vector<2x1024xf32>
    %461 = arith.addf %456, %460 : vector<2x1024xf32>
    %462 = vector.extract_strided_slice %406 {offsets = [0, 0], sizes = [2, 1024], strides = [1, 1]} : vector<2x2048xf32> to vector<2x1024xf32>
    %463 = arith.addf %461, %462 : vector<2x1024xf32>
    %464 = vector.extract_strided_slice %463 {offsets = [0, 0], sizes = [2, 256], strides = [1, 1]} : vector<2x1024xf32> to vector<2x256xf32>
    %465 = arith.negf %464 : vector<2x256xf32>
    %466 = math.exp %465 : vector<2x256xf32>
    %cst_81 = arith.constant 1.000000e+00 : f32
    %467 = vector.broadcast %cst_81 : f32 to vector<2x256xf32>
    %468 = arith.addf %467, %466 : vector<2x256xf32>
    %469 = arith.divf %467, %468 : vector<2x256xf32>
    %470 = vector.extract_strided_slice %463 {offsets = [0, 256], sizes = [2, 256], strides = [1, 1]} : vector<2x1024xf32> to vector<2x256xf32>
    %471 = arith.negf %470 : vector<2x256xf32>
    %472 = math.exp %471 : vector<2x256xf32>
    %cst_82 = arith.constant 1.000000e+00 : f32
    %473 = vector.broadcast %cst_82 : f32 to vector<2x256xf32>
    %474 = arith.addf %473, %472 : vector<2x256xf32>
    %475 = arith.divf %473, %474 : vector<2x256xf32>
    %476 = vector.extract_strided_slice %463 {offsets = [0, 512], sizes = [2, 256], strides = [1, 1]} : vector<2x1024xf32> to vector<2x256xf32>
    %477 = math.tanh %476 : vector<2x256xf32>
    %478 = vector.extract_strided_slice %463 {offsets = [0, 768], sizes = [2, 256], strides = [1, 1]} : vector<2x1024xf32> to vector<2x256xf32>
    %479 = arith.negf %478 : vector<2x256xf32>
    %480 = math.exp %479 : vector<2x256xf32>
    %cst_83 = arith.constant 1.000000e+00 : f32
    %481 = vector.broadcast %cst_83 : f32 to vector<2x256xf32>
    %482 = arith.addf %481, %480 : vector<2x256xf32>
    %483 = arith.divf %481, %482 : vector<2x256xf32>
    %484 = arith.mulf %475, %401 : vector<2x256xf32>
    %485 = arith.mulf %469, %477 : vector<2x256xf32>
    %486 = arith.addf %484, %485 : vector<2x256xf32>
    %487 = math.tanh %486 : vector<2x256xf32>
    %488 = arith.mulf %483, %487 : vector<2x256xf32>
    %489 = arith.truncf %488 : vector<2x256xf32> to vector<2x256xbf16>
    %c0_84 = arith.constant 0 : index
    %c0_85 = arith.constant 0 : index
    %490 = vector.load %arg6[%c0_84, %c0_85] : memref<256x2048xbf16, #tpu.memory_space<vmem>>, vector<256x2048xbf16>
    %cst_86 = arith.constant dense<0.000000e+00> : vector<2x2048xf32>
    %491 = tpu.matmul %489, %490, %cst_86 {dimension_numbers = #tpu.dot_dimension_numbers<[1], [0], [0], [1], [0, 0, 1, 1], [], []>} : vector<2x256xbf16>, vector<256x2048xbf16>, vector<2x2048xf32> -> vector<2x2048xf32>
    %492 = vector.extract_strided_slice %491 {offsets = [0, 1024], sizes = [2, 1024], strides = [1, 1]} : vector<2x2048xf32> to vector<2x1024xf32>
    %493 = vector.broadcast %11 : vector<1x1024xf32> to vector<2x1024xf32>
    %494 = arith.addf %493, %492 : vector<2x1024xf32>
    %495 = arith.truncf %438 : vector<2x256xf32> to vector<2x256xbf16>
    %c0_87 = arith.constant 0 : index
    %c0_88 = arith.constant 0 : index
    %496 = vector.load %arg7[%c0_87, %c0_88] : memref<256x1024xbf16, #tpu.memory_space<vmem>>, vector<256x1024xbf16>
    %cst_89 = arith.constant dense<0.000000e+00> : vector<2x1024xf32>
    %497 = tpu.matmul %495, %496, %cst_89 {dimension_numbers = #tpu.dot_dimension_numbers<[1], [0], [0], [1], [0, 0, 1, 1], [], []>} : vector<2x256xbf16>, vector<256x1024xbf16>, vector<2x1024xf32> -> vector<2x1024xf32>
    %498 = arith.addf %494, %497 : vector<2x1024xf32>
    %499 = vector.extract_strided_slice %498 {offsets = [0, 0], sizes = [2, 256], strides = [1, 1]} : vector<2x1024xf32> to vector<2x256xf32>
    %500 = arith.negf %499 : vector<2x256xf32>
    %501 = math.exp %500 : vector<2x256xf32>
    %cst_90 = arith.constant 1.000000e+00 : f32
    %502 = vector.broadcast %cst_90 : f32 to vector<2x256xf32>
    %503 = arith.addf %502, %501 : vector<2x256xf32>
    %504 = arith.divf %502, %503 : vector<2x256xf32>
    %505 = vector.extract_strided_slice %498 {offsets = [0, 256], sizes = [2, 256], strides = [1, 1]} : vector<2x1024xf32> to vector<2x256xf32>
    %506 = arith.negf %505 : vector<2x256xf32>
    %507 = math.exp %506 : vector<2x256xf32>
    %cst_91 = arith.constant 1.000000e+00 : f32
    %508 = vector.broadcast %cst_91 : f32 to vector<2x256xf32>
    %509 = arith.addf %508, %507 : vector<2x256xf32>
    %510 = arith.divf %508, %509 : vector<2x256xf32>
    %511 = vector.extract_strided_slice %498 {offsets = [0, 512], sizes = [2, 256], strides = [1, 1]} : vector<2x1024xf32> to vector<2x256xf32>
    %512 = math.tanh %511 : vector<2x256xf32>
    %513 = vector.extract_strided_slice %498 {offsets = [0, 768], sizes = [2, 256], strides = [1, 1]} : vector<2x1024xf32> to vector<2x256xf32>
    %514 = arith.negf %513 : vector<2x256xf32>
    %515 = math.exp %514 : vector<2x256xf32>
    %cst_92 = arith.constant 1.000000e+00 : f32
    %516 = vector.broadcast %cst_92 : f32 to vector<2x256xf32>
    %517 = arith.addf %516, %515 : vector<2x256xf32>
    %518 = arith.divf %516, %517 : vector<2x256xf32>
    %519 = arith.mulf %510, %436 : vector<2x256xf32>
    %520 = arith.mulf %504, %512 : vector<2x256xf32>
    %521 = arith.addf %519, %520 : vector<2x256xf32>
    %522 = math.tanh %521 : vector<2x256xf32>
    %523 = arith.mulf %518, %522 : vector<2x256xf32>
    %524 = vector.extract_strided_slice %18 {offsets = [0, 5], sizes = [2, 1], strides = [1, 1]} : vector<2x8xf32> to vector<2x1xf32>
    %525 = vector.broadcast %524 : vector<2x1xf32> to vector<2x256xf32>
    %526 = arith.mulf %523, %525 : vector<2x256xf32>
    %527 = arith.addf %442, %526 : vector<2x256xf32>
    %528 = vector.extract_strided_slice %20 {offsets = [0, 12], sizes = [1, 3], strides = [1, 1]} : vector<1x24xf32> to vector<1x3xf32>
    %529 = vector.extract_strided_slice %20 {offsets = [0, 15], sizes = [1, 3], strides = [1, 1]} : vector<1x24xf32> to vector<1x3xf32>
    %530 = tpu.concatenate %528, %529 in 0 : vector<1x3xf32>, vector<1x3xf32> -> vector<2x3xf32>
    %531 = vector.extract_strided_slice %530 {offsets = [0, 0], sizes = [2, 1], strides = [1, 1]} : vector<2x3xf32> to vector<2x1xf32>
    %532 = vector.broadcast %531 : vector<2x1xf32> to vector<2x1024xf32>
    %533 = vector.broadcast %7 : vector<1x1024xf32> to vector<2x1024xf32>
    %534 = arith.mulf %532, %533 : vector<2x1024xf32>
    %535 = vector.broadcast %10 : vector<1x1024xf32> to vector<2x1024xf32>
    %536 = arith.addf %535, %534 : vector<2x1024xf32>
    %537 = vector.extract_strided_slice %530 {offsets = [0, 1], sizes = [2, 1], strides = [1, 1]} : vector<2x3xf32> to vector<2x1xf32>
    %538 = vector.broadcast %537 : vector<2x1xf32> to vector<2x1024xf32>
    %539 = vector.broadcast %8 : vector<1x1024xf32> to vector<2x1024xf32>
    %540 = arith.mulf %538, %539 : vector<2x1024xf32>
    %541 = arith.addf %536, %540 : vector<2x1024xf32>
    %542 = vector.extract_strided_slice %530 {offsets = [0, 2], sizes = [2, 1], strides = [1, 1]} : vector<2x3xf32> to vector<2x1xf32>
    %543 = vector.broadcast %542 : vector<2x1xf32> to vector<2x1024xf32>
    %544 = vector.broadcast %9 : vector<1x1024xf32> to vector<2x1024xf32>
    %545 = arith.mulf %543, %544 : vector<2x1024xf32>
    %546 = arith.addf %541, %545 : vector<2x1024xf32>
    %547 = vector.extract_strided_slice %491 {offsets = [0, 0], sizes = [2, 1024], strides = [1, 1]} : vector<2x2048xf32> to vector<2x1024xf32>
    %548 = arith.addf %546, %547 : vector<2x1024xf32>
    %549 = vector.extract_strided_slice %548 {offsets = [0, 0], sizes = [2, 256], strides = [1, 1]} : vector<2x1024xf32> to vector<2x256xf32>
    %550 = arith.negf %549 : vector<2x256xf32>
    %551 = math.exp %550 : vector<2x256xf32>
    %cst_93 = arith.constant 1.000000e+00 : f32
    %552 = vector.broadcast %cst_93 : f32 to vector<2x256xf32>
    %553 = arith.addf %552, %551 : vector<2x256xf32>
    %554 = arith.divf %552, %553 : vector<2x256xf32>
    %555 = vector.extract_strided_slice %548 {offsets = [0, 256], sizes = [2, 256], strides = [1, 1]} : vector<2x1024xf32> to vector<2x256xf32>
    %556 = arith.negf %555 : vector<2x256xf32>
    %557 = math.exp %556 : vector<2x256xf32>
    %cst_94 = arith.constant 1.000000e+00 : f32
    %558 = vector.broadcast %cst_94 : f32 to vector<2x256xf32>
    %559 = arith.addf %558, %557 : vector<2x256xf32>
    %560 = arith.divf %558, %559 : vector<2x256xf32>
    %561 = vector.extract_strided_slice %548 {offsets = [0, 512], sizes = [2, 256], strides = [1, 1]} : vector<2x1024xf32> to vector<2x256xf32>
    %562 = math.tanh %561 : vector<2x256xf32>
    %563 = vector.extract_strided_slice %548 {offsets = [0, 768], sizes = [2, 256], strides = [1, 1]} : vector<2x1024xf32> to vector<2x256xf32>
    %564 = arith.negf %563 : vector<2x256xf32>
    %565 = math.exp %564 : vector<2x256xf32>
    %cst_95 = arith.constant 1.000000e+00 : f32
    %566 = vector.broadcast %cst_95 : f32 to vector<2x256xf32>
    %567 = arith.addf %566, %565 : vector<2x256xf32>
    %568 = arith.divf %566, %567 : vector<2x256xf32>
    %569 = arith.mulf %560, %486 : vector<2x256xf32>
    %570 = arith.mulf %554, %562 : vector<2x256xf32>
    %571 = arith.addf %569, %570 : vector<2x256xf32>
    %572 = math.tanh %571 : vector<2x256xf32>
    %573 = arith.mulf %568, %572 : vector<2x256xf32>
    %574 = arith.truncf %573 : vector<2x256xf32> to vector<2x256xbf16>
    %c0_96 = arith.constant 0 : index
    %c0_97 = arith.constant 0 : index
    %575 = vector.load %arg6[%c0_96, %c0_97] : memref<256x2048xbf16, #tpu.memory_space<vmem>>, vector<256x2048xbf16>
    %cst_98 = arith.constant dense<0.000000e+00> : vector<2x2048xf32>
    %576 = tpu.matmul %574, %575, %cst_98 {dimension_numbers = #tpu.dot_dimension_numbers<[1], [0], [0], [1], [0, 0, 1, 1], [], []>} : vector<2x256xbf16>, vector<256x2048xbf16>, vector<2x2048xf32> -> vector<2x2048xf32>
    %577 = vector.extract_strided_slice %576 {offsets = [0, 1024], sizes = [2, 1024], strides = [1, 1]} : vector<2x2048xf32> to vector<2x1024xf32>
    %578 = vector.broadcast %11 : vector<1x1024xf32> to vector<2x1024xf32>
    %579 = arith.addf %578, %577 : vector<2x1024xf32>
    %580 = arith.truncf %523 : vector<2x256xf32> to vector<2x256xbf16>
    %c0_99 = arith.constant 0 : index
    %c0_100 = arith.constant 0 : index
    %581 = vector.load %arg7[%c0_99, %c0_100] : memref<256x1024xbf16, #tpu.memory_space<vmem>>, vector<256x1024xbf16>
    %cst_101 = arith.constant dense<0.000000e+00> : vector<2x1024xf32>
    %582 = tpu.matmul %580, %581, %cst_101 {dimension_numbers = #tpu.dot_dimension_numbers<[1], [0], [0], [1], [0, 0, 1, 1], [], []>} : vector<2x256xbf16>, vector<256x1024xbf16>, vector<2x1024xf32> -> vector<2x1024xf32>
    %583 = arith.addf %579, %582 : vector<2x1024xf32>
    %584 = vector.extract_strided_slice %583 {offsets = [0, 0], sizes = [2, 256], strides = [1, 1]} : vector<2x1024xf32> to vector<2x256xf32>
    %585 = arith.negf %584 : vector<2x256xf32>
    %586 = math.exp %585 : vector<2x256xf32>
    %cst_102 = arith.constant 1.000000e+00 : f32
    %587 = vector.broadcast %cst_102 : f32 to vector<2x256xf32>
    %588 = arith.addf %587, %586 : vector<2x256xf32>
    %589 = arith.divf %587, %588 : vector<2x256xf32>
    %590 = vector.extract_strided_slice %583 {offsets = [0, 256], sizes = [2, 256], strides = [1, 1]} : vector<2x1024xf32> to vector<2x256xf32>
    %591 = arith.negf %590 : vector<2x256xf32>
    %592 = math.exp %591 : vector<2x256xf32>
    %cst_103 = arith.constant 1.000000e+00 : f32
    %593 = vector.broadcast %cst_103 : f32 to vector<2x256xf32>
    %594 = arith.addf %593, %592 : vector<2x256xf32>
    %595 = arith.divf %593, %594 : vector<2x256xf32>
    %596 = vector.extract_strided_slice %583 {offsets = [0, 512], sizes = [2, 256], strides = [1, 1]} : vector<2x1024xf32> to vector<2x256xf32>
    %597 = math.tanh %596 : vector<2x256xf32>
    %598 = vector.extract_strided_slice %583 {offsets = [0, 768], sizes = [2, 256], strides = [1, 1]} : vector<2x1024xf32> to vector<2x256xf32>
    %599 = arith.negf %598 : vector<2x256xf32>
    %600 = math.exp %599 : vector<2x256xf32>
    %cst_104 = arith.constant 1.000000e+00 : f32
    %601 = vector.broadcast %cst_104 : f32 to vector<2x256xf32>
    %602 = arith.addf %601, %600 : vector<2x256xf32>
    %603 = arith.divf %601, %602 : vector<2x256xf32>
    %604 = arith.mulf %595, %521 : vector<2x256xf32>
    %605 = arith.mulf %589, %597 : vector<2x256xf32>
    %606 = arith.addf %604, %605 : vector<2x256xf32>
    %607 = math.tanh %606 : vector<2x256xf32>
    %608 = arith.mulf %603, %607 : vector<2x256xf32>
    %609 = vector.extract_strided_slice %18 {offsets = [0, 6], sizes = [2, 1], strides = [1, 1]} : vector<2x8xf32> to vector<2x1xf32>
    %610 = vector.broadcast %609 : vector<2x1xf32> to vector<2x256xf32>
    %611 = arith.mulf %608, %610 : vector<2x256xf32>
    %612 = arith.addf %527, %611 : vector<2x256xf32>
    %613 = vector.extract_strided_slice %20 {offsets = [0, 18], sizes = [1, 3], strides = [1, 1]} : vector<1x24xf32> to vector<1x3xf32>
    %614 = vector.extract_strided_slice %20 {offsets = [0, 21], sizes = [1, 3], strides = [1, 1]} : vector<1x24xf32> to vector<1x3xf32>
    %615 = tpu.concatenate %613, %614 in 0 : vector<1x3xf32>, vector<1x3xf32> -> vector<2x3xf32>
    %616 = vector.extract_strided_slice %615 {offsets = [0, 0], sizes = [2, 1], strides = [1, 1]} : vector<2x3xf32> to vector<2x1xf32>
    %617 = vector.broadcast %616 : vector<2x1xf32> to vector<2x1024xf32>
    %618 = vector.broadcast %7 : vector<1x1024xf32> to vector<2x1024xf32>
    %619 = arith.mulf %617, %618 : vector<2x1024xf32>
    %620 = vector.broadcast %10 : vector<1x1024xf32> to vector<2x1024xf32>
    %621 = arith.addf %620, %619 : vector<2x1024xf32>
    %622 = vector.extract_strided_slice %615 {offsets = [0, 1], sizes = [2, 1], strides = [1, 1]} : vector<2x3xf32> to vector<2x1xf32>
    %623 = vector.broadcast %622 : vector<2x1xf32> to vector<2x1024xf32>
    %624 = vector.broadcast %8 : vector<1x1024xf32> to vector<2x1024xf32>
    %625 = arith.mulf %623, %624 : vector<2x1024xf32>
    %626 = arith.addf %621, %625 : vector<2x1024xf32>
    %627 = vector.extract_strided_slice %615 {offsets = [0, 2], sizes = [2, 1], strides = [1, 1]} : vector<2x3xf32> to vector<2x1xf32>
    %628 = vector.broadcast %627 : vector<2x1xf32> to vector<2x1024xf32>
    %629 = vector.broadcast %9 : vector<1x1024xf32> to vector<2x1024xf32>
    %630 = arith.mulf %628, %629 : vector<2x1024xf32>
    %631 = arith.addf %626, %630 : vector<2x1024xf32>
    %632 = vector.extract_strided_slice %576 {offsets = [0, 0], sizes = [2, 1024], strides = [1, 1]} : vector<2x2048xf32> to vector<2x1024xf32>
    %633 = arith.addf %631, %632 : vector<2x1024xf32>
    %634 = vector.extract_strided_slice %633 {offsets = [0, 0], sizes = [2, 256], strides = [1, 1]} : vector<2x1024xf32> to vector<2x256xf32>
    %635 = arith.negf %634 : vector<2x256xf32>
    %636 = math.exp %635 : vector<2x256xf32>
    %cst_105 = arith.constant 1.000000e+00 : f32
    %637 = vector.broadcast %cst_105 : f32 to vector<2x256xf32>
    %638 = arith.addf %637, %636 : vector<2x256xf32>
    %639 = arith.divf %637, %638 : vector<2x256xf32>
    %640 = vector.extract_strided_slice %633 {offsets = [0, 256], sizes = [2, 256], strides = [1, 1]} : vector<2x1024xf32> to vector<2x256xf32>
    %641 = arith.negf %640 : vector<2x256xf32>
    %642 = math.exp %641 : vector<2x256xf32>
    %cst_106 = arith.constant 1.000000e+00 : f32
    %643 = vector.broadcast %cst_106 : f32 to vector<2x256xf32>
    %644 = arith.addf %643, %642 : vector<2x256xf32>
    %645 = arith.divf %643, %644 : vector<2x256xf32>
    %646 = vector.extract_strided_slice %633 {offsets = [0, 512], sizes = [2, 256], strides = [1, 1]} : vector<2x1024xf32> to vector<2x256xf32>
    %647 = math.tanh %646 : vector<2x256xf32>
    %648 = vector.extract_strided_slice %633 {offsets = [0, 768], sizes = [2, 256], strides = [1, 1]} : vector<2x1024xf32> to vector<2x256xf32>
    %649 = arith.negf %648 : vector<2x256xf32>
    %650 = math.exp %649 : vector<2x256xf32>
    %cst_107 = arith.constant 1.000000e+00 : f32
    %651 = vector.broadcast %cst_107 : f32 to vector<2x256xf32>
    %652 = arith.addf %651, %650 : vector<2x256xf32>
    %653 = arith.divf %651, %652 : vector<2x256xf32>
    %654 = arith.mulf %645, %571 : vector<2x256xf32>
    %655 = arith.mulf %639, %647 : vector<2x256xf32>
    %656 = arith.addf %654, %655 : vector<2x256xf32>
    %657 = math.tanh %656 : vector<2x256xf32>
    %658 = arith.mulf %653, %657 : vector<2x256xf32>
    %659 = arith.truncf %658 : vector<2x256xf32> to vector<2x256xbf16>
    %c0_108 = arith.constant 0 : index
    %c0_109 = arith.constant 0 : index
    %660 = vector.load %arg6[%c0_108, %c0_109] : memref<256x2048xbf16, #tpu.memory_space<vmem>>, vector<256x2048xbf16>
    %cst_110 = arith.constant dense<0.000000e+00> : vector<2x2048xf32>
    %661 = tpu.matmul %659, %660, %cst_110 {dimension_numbers = #tpu.dot_dimension_numbers<[1], [0], [0], [1], [0, 0, 1, 1], [], []>} : vector<2x256xbf16>, vector<256x2048xbf16>, vector<2x2048xf32> -> vector<2x2048xf32>
    %662 = vector.extract_strided_slice %661 {offsets = [0, 1024], sizes = [2, 1024], strides = [1, 1]} : vector<2x2048xf32> to vector<2x1024xf32>
    %663 = vector.broadcast %11 : vector<1x1024xf32> to vector<2x1024xf32>
    %664 = arith.addf %663, %662 : vector<2x1024xf32>
    %665 = arith.truncf %608 : vector<2x256xf32> to vector<2x256xbf16>
    %c0_111 = arith.constant 0 : index
    %c0_112 = arith.constant 0 : index
    %666 = vector.load %arg7[%c0_111, %c0_112] : memref<256x1024xbf16, #tpu.memory_space<vmem>>, vector<256x1024xbf16>
    %cst_113 = arith.constant dense<0.000000e+00> : vector<2x1024xf32>
    %667 = tpu.matmul %665, %666, %cst_113 {dimension_numbers = #tpu.dot_dimension_numbers<[1], [0], [0], [1], [0, 0, 1, 1], [], []>} : vector<2x256xbf16>, vector<256x1024xbf16>, vector<2x1024xf32> -> vector<2x1024xf32>
    %668 = arith.addf %664, %667 : vector<2x1024xf32>
    %669 = vector.extract_strided_slice %668 {offsets = [0, 0], sizes = [2, 256], strides = [1, 1]} : vector<2x1024xf32> to vector<2x256xf32>
    %670 = arith.negf %669 : vector<2x256xf32>
    %671 = math.exp %670 : vector<2x256xf32>
    %cst_114 = arith.constant 1.000000e+00 : f32
    %672 = vector.broadcast %cst_114 : f32 to vector<2x256xf32>
    %673 = arith.addf %672, %671 : vector<2x256xf32>
    %674 = arith.divf %672, %673 : vector<2x256xf32>
    %675 = vector.extract_strided_slice %668 {offsets = [0, 256], sizes = [2, 256], strides = [1, 1]} : vector<2x1024xf32> to vector<2x256xf32>
    %676 = arith.negf %675 : vector<2x256xf32>
    %677 = math.exp %676 : vector<2x256xf32>
    %cst_115 = arith.constant 1.000000e+00 : f32
    %678 = vector.broadcast %cst_115 : f32 to vector<2x256xf32>
    %679 = arith.addf %678, %677 : vector<2x256xf32>
    %680 = arith.divf %678, %679 : vector<2x256xf32>
    %681 = vector.extract_strided_slice %668 {offsets = [0, 512], sizes = [2, 256], strides = [1, 1]} : vector<2x1024xf32> to vector<2x256xf32>
    %682 = math.tanh %681 : vector<2x256xf32>
    %683 = vector.extract_strided_slice %668 {offsets = [0, 768], sizes = [2, 256], strides = [1, 1]} : vector<2x1024xf32> to vector<2x256xf32>
    %684 = arith.negf %683 : vector<2x256xf32>
    %685 = math.exp %684 : vector<2x256xf32>
    %cst_116 = arith.constant 1.000000e+00 : f32
    %686 = vector.broadcast %cst_116 : f32 to vector<2x256xf32>
    %687 = arith.addf %686, %685 : vector<2x256xf32>
    %688 = arith.divf %686, %687 : vector<2x256xf32>
    %689 = arith.mulf %680, %606 : vector<2x256xf32>
    %690 = arith.mulf %674, %682 : vector<2x256xf32>
    %691 = arith.addf %689, %690 : vector<2x256xf32>
    %692 = math.tanh %691 : vector<2x256xf32>
    %693 = arith.mulf %688, %692 : vector<2x256xf32>
    %694 = vector.extract_strided_slice %18 {offsets = [0, 7], sizes = [2, 1], strides = [1, 1]} : vector<2x8xf32> to vector<2x1xf32>
    %695 = vector.broadcast %694 : vector<2x1xf32> to vector<2x256xf32>
    %696 = arith.mulf %693, %695 : vector<2x256xf32>
    %697 = arith.addf %612, %696 : vector<2x256xf32>
    %698 = vector.shape_cast %12 : vector<2x1xf32> to vector<1x2x1xf32>
    %cst_117 = arith.constant dense<0xFF800000> : vector<1xf32>
    %699 = vector.multi_reduction <maximumf>, %698, %cst_117 [1, 2] : vector<1x2x1xf32> to vector<1xf32>
    %700 = vector.shape_cast %699 : vector<1xf32> to vector<1x1x1xf32>
    %701 = vector.extract %700[0, 0, 0] : f32 from vector<1x1x1xf32>
    %702 = vector.broadcast %701 : f32 to vector<2x256xf32>
    %703 = arith.divf %697, %702 : vector<2x256xf32>
    %704 = arith.truncf %703 : vector<2x256xf32> to vector<2x256xbf16>
    %c0_118 = arith.constant 0 : index
    %c0_119 = arith.constant 0 : index
    %705 = vector.load %arg10[%c0_118, %c0_119] : memref<256x256xbf16, #tpu.memory_space<vmem>>, vector<256x256xbf16>
    %cst_120 = arith.constant dense<0.000000e+00> : vector<2x256xf32>
    %706 = tpu.matmul %704, %705, %cst_120 {dimension_numbers = #tpu.dot_dimension_numbers<[1], [0], [0], [1], [0, 0, 1, 1], [], []>} : vector<2x256xbf16>, vector<256x256xbf16>, vector<2x256xf32> -> vector<2x256xf32>
    %c0_121 = arith.constant 0 : index
    %c0_122 = arith.constant 0 : index
    %707 = vector.load %arg11[%c0_121, %c0_122] : memref<1x256xf32, #tpu.memory_space<vmem>>, vector<1x256xf32>
    %708 = vector.broadcast %707 : vector<1x256xf32> to vector<2x256xf32>
    %709 = arith.addf %706, %708 : vector<2x256xf32>
    %cst_123 = arith.constant 0.000000e+00 : f32
    %710 = vector.broadcast %cst_123 : f32 to vector<2x256xf32>
    %711 = arith.maximumf %709, %710 : vector<2x256xf32>
    %c0_124 = arith.constant 0 : index
    %c0_125 = arith.constant 0 : index
    %712 = vector.load %arg1[%c0_124, %c0_125] : memref<2x3xf32, #tpu.memory_space<vmem>>, vector<2x3xf32>
    %c0_126 = arith.constant 0 : index
    %c0_127 = arith.constant 0 : index
    %713 = vector.load %arg13[%c0_126, %c0_127] : memref<1x2560xf32, #tpu.memory_space<vmem>>, vector<1x2560xf32>
    %714 = vector.extract_strided_slice %712 {offsets = [0, 0], sizes = [2, 1], strides = [1, 1]} : vector<2x3xf32> to vector<2x1xf32>
    %c0_128 = arith.constant 0 : index
    %c0_129 = arith.constant 0 : index
    %715 = vector.load %arg12[%c0_128, %c0_129] : memref<3x2560xf32, #tpu.memory_space<vmem>>, vector<1x2560xf32>
    %716 = vector.broadcast %714 : vector<2x1xf32> to vector<2x2560xf32>
    %717 = vector.broadcast %715 : vector<1x2560xf32> to vector<2x2560xf32>
    %718 = arith.mulf %716, %717 : vector<2x2560xf32>
    %719 = vector.broadcast %713 : vector<1x2560xf32> to vector<2x2560xf32>
    %720 = arith.addf %719, %718 : vector<2x2560xf32>
    %721 = vector.extract_strided_slice %712 {offsets = [0, 1], sizes = [2, 1], strides = [1, 1]} : vector<2x3xf32> to vector<2x1xf32>
    %c1_130 = arith.constant 1 : index
    %c0_131 = arith.constant 0 : index
    %722 = vector.load %arg12[%c1_130, %c0_131] : memref<3x2560xf32, #tpu.memory_space<vmem>>, vector<1x2560xf32>
    %723 = vector.broadcast %721 : vector<2x1xf32> to vector<2x2560xf32>
    %724 = vector.broadcast %722 : vector<1x2560xf32> to vector<2x2560xf32>
    %725 = arith.mulf %723, %724 : vector<2x2560xf32>
    %726 = arith.addf %720, %725 : vector<2x2560xf32>
    %727 = vector.extract_strided_slice %712 {offsets = [0, 2], sizes = [2, 1], strides = [1, 1]} : vector<2x3xf32> to vector<2x1xf32>
    %c2_132 = arith.constant 2 : index
    %c0_133 = arith.constant 0 : index
    %728 = vector.load %arg12[%c2_132, %c0_133] : memref<3x2560xf32, #tpu.memory_space<vmem>>, vector<1x2560xf32>
    %729 = vector.broadcast %727 : vector<2x1xf32> to vector<2x2560xf32>
    %730 = vector.broadcast %728 : vector<1x2560xf32> to vector<2x2560xf32>
    %731 = arith.mulf %729, %730 : vector<2x2560xf32>
    %732 = arith.addf %726, %731 : vector<2x2560xf32>
    %733 = arith.truncf %732 : vector<2x2560xf32> to vector<2x2560xbf16>
    %c0_134 = arith.constant 0 : index
    %c0_135 = arith.constant 0 : index
    %734 = vector.load %arg14[%c0_134, %c0_135] : memref<2560x256xbf16, #tpu.memory_space<vmem>>, vector<2560x256xbf16>
    %cst_136 = arith.constant dense<0.000000e+00> : vector<2x256xf32>
    %735 = tpu.matmul %733, %734, %cst_136 {dimension_numbers = #tpu.dot_dimension_numbers<[1], [0], [0], [1], [0, 0, 1, 1], [], []>} : vector<2x2560xbf16>, vector<2560x256xbf16>, vector<2x256xf32> -> vector<2x256xf32>
    %736 = arith.truncf %711 : vector<2x256xf32> to vector<2x256xbf16>
    %c0_137 = arith.constant 0 : index
    %c0_138 = arith.constant 0 : index
    %737 = vector.load %arg15[%c0_137, %c0_138] : memref<256x256xbf16, #tpu.memory_space<vmem>>, vector<256x256xbf16>
    %cst_139 = arith.constant dense<0.000000e+00> : vector<2x256xf32>
    %738 = tpu.matmul %736, %737, %cst_139 {dimension_numbers = #tpu.dot_dimension_numbers<[1], [0], [0], [1], [0, 0, 1, 1], [], []>} : vector<2x256xbf16>, vector<256x256xbf16>, vector<2x256xf32> -> vector<2x256xf32>
    %739 = arith.addf %735, %738 : vector<2x256xf32>
    %c0_140 = arith.constant 0 : index
    %c0_141 = arith.constant 0 : index
    %740 = vector.load %arg16[%c0_140, %c0_141] : memref<1x256xf32, #tpu.memory_space<vmem>>, vector<1x256xf32>
    %741 = vector.broadcast %740 : vector<1x256xf32> to vector<2x256xf32>
    %742 = arith.addf %739, %741 : vector<2x256xf32>
    %cst_142 = arith.constant 0.000000e+00 : f32
    %743 = vector.broadcast %cst_142 : f32 to vector<2x256xf32>
    %744 = arith.maximumf %742, %743 : vector<2x256xf32>
    %745 = arith.truncf %744 : vector<2x256xf32> to vector<2x256xbf16>
    %c0_143 = arith.constant 0 : index
    %c0_144 = arith.constant 0 : index
    %746 = vector.load %arg17[%c0_143, %c0_144] : memref<256x128xbf16, #tpu.memory_space<vmem>>, vector<256x128xbf16>
    %cst_145 = arith.constant dense<0.000000e+00> : vector<2x128xf32>
    %747 = tpu.matmul %745, %746, %cst_145 {dimension_numbers = #tpu.dot_dimension_numbers<[1], [0], [0], [1], [0, 0, 1, 1], [], []>} : vector<2x256xbf16>, vector<256x128xbf16>, vector<2x128xf32> -> vector<2x128xf32>
    %c0_146 = arith.constant 0 : index
    %c0_147 = arith.constant 0 : index
    %748 = vector.load %arg18[%c0_146, %c0_147] : memref<1x128xf32, #tpu.memory_space<vmem>>, vector<1x128xf32>
    %749 = vector.broadcast %748 : vector<1x128xf32> to vector<2x128xf32>
    %750 = arith.addf %747, %749 : vector<2x128xf32>
    %751 = arith.negf %750 : vector<2x128xf32>
    %752 = math.exp %751 : vector<2x128xf32>
    %cst_148 = arith.constant 1.000000e+00 : f32
    %753 = vector.broadcast %cst_148 : f32 to vector<2x128xf32>
    %754 = arith.addf %753, %752 : vector<2x128xf32>
    %755 = arith.divf %753, %754 : vector<2x128xf32>
    %c0_149 = arith.constant 0 : index
    %c0_150 = arith.constant 0 : index
    %756 = vector.load %arg19[%c0_149, %c0_150] : memref<2x128xf32, #tpu.memory_space<vmem>>, vector<2x128xf32>
    tpu.vector_store %arg19[%c0_149, %c0_150], %755 {strides = array<i32>} : memref<2x128xf32, #tpu.memory_space<vmem>>, vector<2x128xf32>,
    return
  }
}

</mosaic_0001>

<llo_original>
// kernel: model_forward.1
$region0: #{model_forward.1}
  #allocation0 [shape = 'u32[]', space=smem, size = 0x4, offset = 0x4, fixed_abs, tag = 'smem constant byte address 0x4 - core index']
  #allocation1 [shape = 'u32[144,128]{1,0:T(1,128)}', space=vmem, size = 0x12000, scoped, tag = 'internal scratch']
  #allocation2 [shape = 'f32[2,24]{1,0:T(2,128)}', space=vmem, size = 0x400, scoped, tag = 'scratch operand']
  %s0 = inlined_call_operand.vmem [shape: f32[2,24], index: 0, kind: input, shape index: {}]
  %s1 = inlined_call_operand.vmem [shape: f32[2,3], index: 1, kind: input, shape index: {}]
  %s2 = inlined_call_operand.vmem [shape: f32[2,1], index: 2, kind: input, shape index: {}]
  %s3 = inlined_call_operand.hbm [shape: f32[24,24], index: 3, kind: input, shape index: {}]
  %s4 = inlined_call_operand.hbm [shape: f32[1,24], index: 4, kind: input, shape index: {}]
  %s5 = inlined_call_operand.hbm [shape: f32[3,1024], index: 5, kind: input, shape index: {}]
  %s6 = inlined_call_operand.hbm [shape: bf16[256,2048], index: 6, kind: input, shape index: {}]
  %s7 = inlined_call_operand.hbm [shape: bf16[256,1024], index: 7, kind: input, shape index: {}]
  %s8 = inlined_call_operand.hbm [shape: f32[1,1024], index: 8, kind: input, shape index: {}]
  %s9 = inlined_call_operand.hbm [shape: f32[1,1024], index: 9, kind: input, shape index: {}]
  %s10 = inlined_call_operand.hbm [shape: bf16[256,256], index: 10, kind: input, shape index: {}]
  %s11 = inlined_call_operand.hbm [shape: f32[1,256], index: 11, kind: input, shape index: {}]
  %s12 = inlined_call_operand.hbm [shape: f32[3,2560], index: 12, kind: input, shape index: {}]
  %s13 = inlined_call_operand.hbm [shape: f32[1,2560], index: 13, kind: input, shape index: {}]
  %s14 = inlined_call_operand.hbm [shape: bf16[2560,256], index: 14, kind: input, shape index: {}]
  %s15 = inlined_call_operand.hbm [shape: bf16[256,256], index: 15, kind: input, shape index: {}]
  %s16 = inlined_call_operand.hbm [shape: f32[1,256], index: 16, kind: input, shape index: {}]
  %s17 = inlined_call_operand.hbm [shape: bf16[256,128], index: 17, kind: input, shape index: {}]
  %s18 = inlined_call_operand.hbm [shape: f32[1,128], index: 18, kind: input, shape index: {}]
  %s19 = inlined_call_operand.hbm [shape: f32[2,128], index: 19, kind: output, shape index: {}]
  %s20 = sld [smem:[#allocation0]]
  $region150: #{model_forward.1} parent=0
    _
  %s22 = ssub.s32 1, %s20
  %s23 = scalar_select 0, %s22, %s20
  $region1: #{model_forward.1} parent=0
    #allocation3 [shape = 'u8[12288]{0}', space=vmem, size = 0x3000, scoped, tag = 'input window, operand 3, single buffered']
    #allocation4 [shape = 's32[1]{0}', space=sflag, size = 0x4, scoped, tag = 'scoped memory for model_forward.1']
    #allocation5 [shape = 's32[1]{0}', space=sflag, size = 0x4, scoped, tag = 'scoped memory for model_forward.1']
    #allocation6 [shape = 'u8[512]{0}', space=vmem, size = 0x400, scoped, tag = 'input window, operand 4, single buffered']
    #allocation7 [shape = 's32[1]{0}', space=sflag, size = 0x4, scoped, tag = 'scoped memory for model_forward.1']
    #allocation8 [shape = 'u8[16384]{0}', space=vmem, size = 0x4000, scoped, tag = 'input window, operand 5, single buffered']
    #allocation9 [shape = 'u8[1048576]{0}', space=vmem, size = 0x100000, scoped, tag = 'input window, operand 6, single buffered']
    #allocation10 [shape = 's32[1]{0}', space=sflag, size = 0x4, scoped, tag = 'scoped memory for model_forward.1']
    #allocation11 [shape = 'u8[524288]{0}', space=vmem, size = 0x80000, scoped, tag = 'input window, operand 7, single buffered']
    #allocation12 [shape = 'u8[4096]{0}', space=vmem, size = 0x1000, scoped, tag = 'input window, operand 8, single buffered']
    #allocation13 [shape = 's32[1]{0}', space=sflag, size = 0x4, scoped, tag = 'scoped memory for model_forward.1']
    #allocation14 [shape = 'u8[4096]{0}', space=vmem, size = 0x1000, scoped, tag = 'input window, operand 9, single buffered']
    #allocation15 [shape = 'u8[131072]{0}', space=vmem, size = 0x20000, scoped, tag = 'input window, operand 10, single buffered']
    #allocation16 [shape = 's32[1]{0}', space=sflag, size = 0x4, scoped, tag = 'scoped memory for model_forward.1']
    #allocation17 [shape = 'u8[1024]{0}', space=vmem, size = 0x400, scoped, tag = 'input window, operand 11, single buffered']
    #allocation18 [shape = 'u8[40960]{0}', space=vmem, size = 0xa000, scoped, tag = 'input window, operand 12, single buffered']
    #allocation19 [shape = 's32[1]{0}', space=sflag, size = 0x4, scoped, tag = 'scoped memory for model_forward.1']
    #allocation20 [shape = 'u8[10240]{0}', space=vmem, size = 0x2800, scoped, tag = 'input window, operand 13, single buffered']
    #allocation21 [shape = 'u8[1310720]{0}', space=vmem, size = 0x140000, scoped, tag = 'input window, operand 14, single buffered']
    #allocation22 [shape = 's32[1]{0}', space=sflag, size = 0x4, scoped, tag = 'scoped memory for model_forward.1']
    #allocation23 [shape = 'u8[131072]{0}', space=vmem, size = 0x20000, scoped, tag = 'input window, operand 15, single buffered']
    #allocation24 [shape = 'u8[1024]{0}', space=vmem, size = 0x400, scoped, tag = 'input window, operand 16, single buffered']
    #allocation25 [shape = 's32[1]{0}', space=sflag, size = 0x4, scoped, tag = 'scoped memory for model_forward.1']
    #allocation26 [shape = 'u8[65536]{0}', space=vmem, size = 0x10000, scoped, tag = 'input window, operand 17, single buffered']
    #allocation27 [shape = 'u8[512]{0}', space=vmem, size = 0x400, scoped, tag = 'input window, operand 18, single buffered']
    #allocation28 [shape = 's32[1]{0}', space=sflag, size = 0x4, scoped, tag = 'scoped memory for model_forward.1']
    #allocation29 [shape = 'u8[1024]{0}', space=vmem, size = 0x400, scoped, tag = 'output window, operand 0, single buffered']
    %24 = vsyncpa [#allocation4], 0
    %25 = vsyncpa [#allocation7], 0
    %26 = vsyncpa [#allocation10], 0
    %27 = vsyncpa [#allocation13], 0
    %28 = vsyncpa [#allocation16], 0
    %29 = vsyncpa [#allocation19], 0
    %30 = vsyncpa [#allocation22], 0
    %31 = vsyncpa [#allocation25], 0
    %32 = vsyncpa [#allocation28], 0
    %33 = vsyncpa [#allocation5], 0
    // Predicated region
    $region2: #{model_forward.1} parent=1 // pred_check
      _
    $region3: #{model_forward.1} parent=1 // pred_check_branch
      %35 = sbr.rel (0) target = $region5
    $region4: #{model_forward.1} parent=1 // pred_region
      _
    $region5: #{model_forward.1} parent=1 // pred_fallthru
      _
    // Predicated region
    $region6: #{model_forward.1} parent=1 // pred_check
      _
    $region7: #{model_forward.1} parent=1 // pred_check_branch
      %37 = sbr.rel (0) target = $region9
    $region8: #{model_forward.1} parent=1 // pred_region
      _
    $region9: #{model_forward.1} parent=1 // pred_fallthru
      _
    // Predicated region
    $region10: #{model_forward.1} parent=1 // pred_check
      _
    $region11: #{model_forward.1} parent=1 // pred_check_branch
      %39 = sbr.rel (0) target = $region13
    $region12: #{model_forward.1} parent=1 // pred_region
      _
    $region13: #{model_forward.1} parent=1 // pred_fallthru
      _
    // Predicated region
    $region14: #{model_forward.1} parent=1 // pred_check
      _
    $region15: #{model_forward.1} parent=1 // pred_check_branch
      %41 = sbr.rel (0) target = $region17
    $region16: #{model_forward.1} parent=1 // pred_region
      %s43 = ssub.s32 384, 384
      %44 = vsyncadd [#allocation4], %s43
      %s45 = sshll.u32 [#allocation3], 4
      %s46 = int_to_ptr.vmem [resolvable:$true] %s45
      %51 = dma.hbm_to_vmem [thread:$0]  %s3, 384, %s46, [#allocation4], 128, 128, 8
    $region17: #{model_forward.1} parent=1 // pred_fallthru
      _
    // Predicated region
    $region18: #{model_forward.1} parent=1 // pred_check
      _
    $region19: #{model_forward.1} parent=1 // pred_check_branch
      %53 = sbr.rel (0) target = $region21
    $region20: #{model_forward.1} parent=1 // pred_region
      %s55 = ssub.s32 16, 16
      %56 = vsyncadd [#allocation7], %s55
      %s58 = sshll.u32 [#allocation6], 4
      %s59 = int_to_ptr.vmem [resolvable:$true] %s58
      %61 = dma.hbm_to_vmem [thread:$0]  %s4, 16, %s59, [#allocation7]
    $region21: #{model_forward.1} parent=1 // pred_fallthru
      _
    // Predicated region
    $region22: #{model_forward.1} parent=1 // pred_check
      _
    $region23: #{model_forward.1} parent=1 // pred_check_branch
      %63 = sbr.rel (0) target = $region25
    $region24: #{model_forward.1} parent=1 // pred_region
      %s65 = ssub.s32 512, 512
      %66 = vsyncadd [#allocation7], %s65
      %s68 = sshll.u32 [#allocation8], 4
      %s69 = int_to_ptr.vmem [resolvable:$true] %s68
      %71 = dma.hbm_to_vmem [thread:$0]  %s5, 512, %s69, [#allocation7]
    $region25: #{model_forward.1} parent=1 // pred_fallthru
      _
    // Predicated region
    $region26: #{model_forward.1} parent=1 // pred_check
      _
    $region27: #{model_forward.1} parent=1 // pred_check_branch
      %73 = sbr.rel (0) target = $region29
    $region28: #{model_forward.1} parent=1 // pred_region
      %s75 = ssub.s32 32768, 32768
      %76 = vsyncadd [#allocation10], %s75
      %s77 = sshll.u32 [#allocation9], 4
      %s78 = int_to_ptr.vmem [resolvable:$true] %s77
      %83 = dma.hbm_to_vmem [thread:$0]  %s6, 32768, %s78, [#allocation10], 1024, 1024, 64
    $region29: #{model_forward.1} parent=1 // pred_fallthru
      _
    // Predicated region
    $region30: #{model_forward.1} parent=1 // pred_check
      _
    $region31: #{model_forward.1} parent=1 // pred_check_branch
      %85 = sbr.rel (0) target = $region33
    $region32: #{model_forward.1} parent=1 // pred_region
      %s87 = ssub.s32 16384, 16384
      %88 = vsyncadd [#allocation10], %s87
      %s89 = sshll.u32 [#allocation11], 4
      %s90 = int_to_ptr.vmem [resolvable:$true] %s89
      %95 = dma.hbm_to_vmem [thread:$0]  %s7, 16384, %s90, [#allocation10], 512, 512, 32
    $region33: #{model_forward.1} parent=1 // pred_fallthru
      _
    // Predicated region
    $region34: #{model_forward.1} parent=1 // pred_check
      _
    $region35: #{model_forward.1} parent=1 // pred_check_branch
      %97 = sbr.rel (0) target = $region37
    $region36: #{model_forward.1} parent=1 // pred_region
      %s99 = ssub.s32 128, 128
      %100 = vsyncadd [#allocation13], %s99
      %s102 = sshll.u32 [#allocation12], 4
      %s103 = int_to_ptr.vmem [resolvable:$true] %s102
      %105 = dma.hbm_to_vmem [thread:$0]  %s8, 128, %s103, [#allocation13]
    $region37: #{model_forward.1} parent=1 // pred_fallthru
      _
    // Predicated region
    $region38: #{model_forward.1} parent=1 // pred_check
      _
    $region39: #{model_forward.1} parent=1 // pred_check_branch
      %107 = sbr.rel (0) target = $region41
    $region40: #{model_forward.1} parent=1 // pred_region
      %s109 = ssub.s32 128, 128
      %110 = vsyncadd [#allocation13], %s109
      %s112 = sshll.u32 [#allocation14], 4
      %s113 = int_to_ptr.vmem [resolvable:$true] %s112
      %115 = dma.hbm_to_vmem [thread:$0]  %s9, 128, %s113, [#allocation13]
    $region41: #{model_forward.1} parent=1 // pred_fallthru
      _
    // Predicated region
    $region42: #{model_forward.1} parent=1 // pred_check
      _
    $region43: #{model_forward.1} parent=1 // pred_check_branch
      %117 = sbr.rel (0) target = $region45
    $region44: #{model_forward.1} parent=1 // pred_region
      %s119 = ssub.s32 4096, 4096
      %120 = vsyncadd [#allocation16], %s119
      %s121 = sshll.u32 [#allocation15], 4
      %s122 = int_to_ptr.vmem [resolvable:$true] %s121
      %127 = dma.hbm_to_vmem [thread:$0]  %s10, 4096, %s122, [#allocation16], 128, 128, 8
    $region45: #{model_forward.1} parent=1 // pred_fallthru
      _
    // Predicated region
    $region46: #{model_forward.1} parent=1 // pred_check
      _
    $region47: #{model_forward.1} parent=1 // pred_check_branch
      %129 = sbr.rel (0) target = $region49
    $region48: #{model_forward.1} parent=1 // pred_region
      %s131 = ssub.s32 32, 32
      %132 = vsyncadd [#allocation16], %s131
      %s134 = sshll.u32 [#allocation17], 4
      %s135 = int_to_ptr.vmem [resolvable:$true] %s134
      %137 = dma.hbm_to_vmem [thread:$0]  %s11, 32, %s135, [#allocation16]
    $region49: #{model_forward.1} parent=1 // pred_fallthru
      _
    // Predicated region
    $region50: #{model_forward.1} parent=1 // pred_check
      _
    $region51: #{model_forward.1} parent=1 // pred_check_branch
      %139 = sbr.rel (0) target = $region53
    $region52: #{model_forward.1} parent=1 // pred_region
      %s141 = ssub.s32 1280, 1280
      %142 = vsyncadd [#allocation19], %s141
      %s144 = sshll.u32 [#allocation18], 4
      %s145 = int_to_ptr.vmem [resolvable:$true] %s144
      %147 = dma.hbm_to_vmem [thread:$0]  %s12, 1280, %s145, [#allocation19]
    $region53: #{model_forward.1} parent=1 // pred_fallthru
      _
    // Predicated region
    $region54: #{model_forward.1} parent=1 // pred_check
      _
    $region55: #{model_forward.1} parent=1 // pred_check_branch
      %149 = sbr.rel (0) target = $region57
    $region56: #{model_forward.1} parent=1 // pred_region
      %s151 = ssub.s32 320, 320
      %152 = vsyncadd [#allocation19], %s151
      %s154 = sshll.u32 [#allocation20], 4
      %s155 = int_to_ptr.vmem [resolvable:$true] %s154
      %157 = dma.hbm_to_vmem [thread:$0]  %s13, 320, %s155, [#allocation19]
    $region57: #{model_forward.1} parent=1 // pred_fallthru
      _
    // Predicated region
    $region58: #{model_forward.1} parent=1 // pred_check
      _
    $region59: #{model_forward.1} parent=1 // pred_check_branch
      %159 = sbr.rel (0) target = $region61
    $region60: #{model_forward.1} parent=1 // pred_region
      %s161 = ssub.s32 40960, 40960
      %162 = vsyncadd [#allocation22], %s161
      %s163 = sshll.u32 [#allocation21], 4
      %s164 = int_to_ptr.vmem [resolvable:$true] %s163
      %169 = dma.hbm_to_vmem [thread:$0]  %s14, 40960, %s164, [#allocation22], 128, 128, 8
    $region61: #{model_forward.1} parent=1 // pred_fallthru
      _
    // Predicated region
    $region62: #{model_forward.1} parent=1 // pred_check
      _
    $region63: #{model_forward.1} parent=1 // pred_check_branch
      %171 = sbr.rel (0) target = $region65
    $region64: #{model_forward.1} parent=1 // pred_region
      %s173 = ssub.s32 4096, 4096
      %174 = vsyncadd [#allocation22], %s173
      %s175 = sshll.u32 [#allocation23], 4
      %s176 = int_to_ptr.vmem [resolvable:$true] %s175
      %181 = dma.hbm_to_vmem [thread:$0]  %s15, 4096, %s176, [#allocation22], 128, 128, 8
    $region65: #{model_forward.1} parent=1 // pred_fallthru
      _
    // Predicated region
    $region66: #{model_forward.1} parent=1 // pred_check
      _
    $region67: #{model_forward.1} parent=1 // pred_check_branch
      %183 = sbr.rel (0) target = $region69
    $region68: #{model_forward.1} parent=1 // pred_region
      %s185 = ssub.s32 32, 32
      %186 = vsyncadd [#allocation25], %s185
      %s188 = sshll.u32 [#allocation24], 4
      %s189 = int_to_ptr.vmem [resolvable:$true] %s188
      %191 = dma.hbm_to_vmem [thread:$0]  %s16, 32, %s189, [#allocation25]
    $region69: #{model_forward.1} parent=1 // pred_fallthru
      _
    // Predicated region
    $region70: #{model_forward.1} parent=1 // pred_check
      _
    $region71: #{model_forward.1} parent=1 // pred_check_branch
      %193 = sbr.rel (0) target = $region73
    $region72: #{model_forward.1} parent=1 // pred_region
      %s195 = ssub.s32 2048, 2048
      %196 = vsyncadd [#allocation25], %s195
      %s197 = sshll.u32 [#allocation26], 4
      %s198 = int_to_ptr.vmem [resolvable:$true] %s197
      %203 = dma.hbm_to_vmem [thread:$0]  %s17, 2048, %s198, [#allocation25], 64, 64, 4
    $region73: #{model_forward.1} parent=1 // pred_fallthru
      _
    // Predicated region
    $region74: #{model_forward.1} parent=1 // pred_check
      _
    $region75: #{model_forward.1} parent=1 // pred_check_branch
      %205 = sbr.rel (0) target = $region77
    $region76: #{model_forward.1} parent=1 // pred_region
      %s207 = ssub.s32 16, 16
      %208 = vsyncadd [#allocation28], %s207
      %s210 = sshll.u32 [#allocation27], 4
      %s211 = int_to_ptr.vmem [resolvable:$true] %s210
      %213 = dma.hbm_to_vmem [thread:$0]  %s18, 16, %s211, [#allocation28]
    $region77: #{model_forward.1} parent=1 // pred_fallthru
      _
    // Predicated region
    $region78: #{model_forward.1} parent=1 // pred_check
      _
    $region79: #{model_forward.1} parent=1 // pred_check_branch
      %215 = sbr.rel (0) target = $region81
    $region80: #{model_forward.1} parent=1 // pred_region
      %216 = dma.done [#allocation4], 384
    $region81: #{model_forward.1} parent=1 // pred_fallthru
      _
    // Predicated region
    $region82: #{model_forward.1} parent=1 // pred_check
      _
    $region83: #{model_forward.1} parent=1 // pred_check_branch
      %218 = sbr.rel (0) target = $region85
    $region84: #{model_forward.1} parent=1 // pred_region
      %219 = dma.done [#allocation7], 16
    $region85: #{model_forward.1} parent=1 // pred_fallthru
      _
    // Predicated region
    $region86: #{model_forward.1} parent=1 // pred_check
      _
    $region87: #{model_forward.1} parent=1 // pred_check_branch
      %221 = sbr.rel (0) target = $region89
    $region88: #{model_forward.1} parent=1 // pred_region
      %222 = dma.done [#allocation7], 512
    $region89: #{model_forward.1} parent=1 // pred_fallthru
      _
    // Predicated region
    $region90: #{model_forward.1} parent=1 // pred_check
      _
    $region91: #{model_forward.1} parent=1 // pred_check_branch
      %224 = sbr.rel (0) target = $region93
    $region92: #{model_forward.1} parent=1 // pred_region
      %225 = dma.done [#allocation10], 32768
    $region93: #{model_forward.1} parent=1 // pred_fallthru
      _
    // Predicated region
    $region94: #{model_forward.1} parent=1 // pred_check
      _
    $region95: #{model_forward.1} parent=1 // pred_check_branch
      %227 = sbr.rel (0) target = $region97
    $region96: #{model_forward.1} parent=1 // pred_region
      %228 = dma.done [#allocation10], 16384
    $region97: #{model_forward.1} parent=1 // pred_fallthru
      _
    // Predicated region
    $region98: #{model_forward.1} parent=1 // pred_check
      _
    $region99: #{model_forward.1} parent=1 // pred_check_branch
      %230 = sbr.rel (0) target = $region101
    $region100: #{model_forward.1} parent=1 // pred_region
      %231 = dma.done [#allocation13], 128
    $region101: #{model_forward.1} parent=1 // pred_fallthru
      _
    // Predicated region
    $region102: #{model_forward.1} parent=1 // pred_check
      _
    $region103: #{model_forward.1} parent=1 // pred_check_branch
      %233 = sbr.rel (0) target = $region105
    $region104: #{model_forward.1} parent=1 // pred_region
      %234 = dma.done [#allocation13], 128
    $region105: #{model_forward.1} parent=1 // pred_fallthru
      _
    // Predicated region
    $region106: #{model_forward.1} parent=1 // pred_check
      _
    $region107: #{model_forward.1} parent=1 // pred_check_branch
      %236 = sbr.rel (0) target = $region109
    $region108: #{model_forward.1} parent=1 // pred_region
      %237 = dma.done [#allocation16], 4096
    $region109: #{model_forward.1} parent=1 // pred_fallthru
      _
    // Predicated region
    $region110: #{model_forward.1} parent=1 // pred_check
      _
    $region111: #{model_forward.1} parent=1 // pred_check_branch
      %239 = sbr.rel (0) target = $region113
    $region112: #{model_forward.1} parent=1 // pred_region
      %240 = dma.done [#allocation16], 32
    $region113: #{model_forward.1} parent=1 // pred_fallthru
      _
    // Predicated region
    $region114: #{model_forward.1} parent=1 // pred_check
      _
    $region115: #{model_forward.1} parent=1 // pred_check_branch
      %242 = sbr.rel (0) target = $region117
    $region116: #{model_forward.1} parent=1 // pred_region
      %243 = dma.done [#allocation19], 1280
    $region117: #{model_forward.1} parent=1 // pred_fallthru
      _
    // Predicated region
    $region118: #{model_forward.1} parent=1 // pred_check
      _
    $region119: #{model_forward.1} parent=1 // pred_check_branch
      %245 = sbr.rel (0) target = $region121
    $region120: #{model_forward.1} parent=1 // pred_region
      %246 = dma.done [#allocation19], 320
    $region121: #{model_forward.1} parent=1 // pred_fallthru
      _
    // Predicated region
    $region122: #{model_forward.1} parent=1 // pred_check
      _
    $region123: #{model_forward.1} parent=1 // pred_check_branch
      %248 = sbr.rel (0) target = $region125
    $region124: #{model_forward.1} parent=1 // pred_region
      %249 = dma.done [#allocation22], 40960
    $region125: #{model_forward.1} parent=1 // pred_fallthru
      _
    // Predicated region
    $region126: #{model_forward.1} parent=1 // pred_check
      _
    $region127: #{model_forward.1} parent=1 // pred_check_branch
      %251 = sbr.rel (0) target = $region129
    $region128: #{model_forward.1} parent=1 // pred_region
      %252 = dma.done [#allocation22], 4096
    $region129: #{model_forward.1} parent=1 // pred_fallthru
      _
    // Predicated region
    $region130: #{model_forward.1} parent=1 // pred_check
      _
    $region131: #{model_forward.1} parent=1 // pred_check_branch
      %254 = sbr.rel (0) target = $region133
    $region132: #{model_forward.1} parent=1 // pred_region
      %255 = dma.done [#allocation25], 32
    $region133: #{model_forward.1} parent=1 // pred_fallthru
      _
    // Predicated region
    $region134: #{model_forward.1} parent=1 // pred_check
      _
    $region135: #{model_forward.1} parent=1 // pred_check_branch
      %257 = sbr.rel (0) target = $region137
    $region136: #{model_forward.1} parent=1 // pred_region
      %258 = dma.done [#allocation25], 2048
    $region137: #{model_forward.1} parent=1 // pred_fallthru
      _
    // Predicated region
    $region138: #{model_forward.1} parent=1 // pred_check
      _
    $region139: #{model_forward.1} parent=1 // pred_check_branch
      %260 = sbr.rel (0) target = $region141
    $region140: #{model_forward.1} parent=1 // pred_region
      %261 = dma.done [#allocation28], 16
    $region141: #{model_forward.1} parent=1 // pred_fallthru
      _
    %v263 = vld [vmem:[%s0] sm:$0x3]
    %v264 = vld [vmem:[#allocation3] sm:$0xff]
    %v265 = vld [vmem:[#allocation3 + $0x8] sm:$0xff]
    %v266 = vld [vmem:[#allocation3 + $0x10] sm:$0xff]
    %v267 = vld [vmem:[#allocation6] sm:$0x1]
    %v269 = vlaneseq
    %v270 = vshrl.u32 %v269, 7
    %v271 = vsub.s32 0, %v270
    %v272 = vrot.slane %v267, %v271
    %vm274 = vcmask 195584
    %v276 = vsel %vm274, %v263, 0
    %278 = vmatprep.subr.mxu0 0.0
    %279 = vmatpush1.msra.mxu0 %v264
    %280 = vmatprep.subr.mxu0 0.0
    %281 = vmatpush1.msra.mxu0 %v265
    %282 = vmatprep.subr.mxu0 0.0
    %283 = vmatpush1.msra.mxu0 %v266
    %284 = vmatprep.subr.mxu0 0.0
    %285 = vmatpush1.msra.mxu0 0.0
    %286 = vmatprep.subr.mxu0 0.0
    %287 = vmatpush1.msra.mxu0 0.0
    %288 = vmatprep.subr.mxu0 0.0
    %289 = vmatpush1.msra.mxu0 0.0
    %290 = vmatprep.subr.mxu0 0.0
    %291 = vmatpush1.msra.mxu0 0.0
    %292 = vmatprep.subr.mxu0 0.0
    %293 = vmatpush1.msra.mxu0 0.0
    %294 = vmatprep.subr.mxu0 0.0
    %295 = vmatpush1.msra.mxu0 0.0
    %296 = vmatprep.subr.mxu0 0.0
    %297 = vmatpush1.msra.mxu0 0.0
    %298 = vmatprep.subr.mxu0 0.0
    %299 = vmatpush1.msra.mxu0 0.0
    %300 = vmatprep.subr.mxu0 0.0
    %301 = vmatpush1.msra.mxu0 0.0
    %302 = vmatprep.subr.mxu0 0.0
    %303 = vmatpush1.msra.mxu0 0.0
    %304 = vmatprep.subr.mxu0 0.0
    %305 = vmatpush1.msra.mxu0 0.0
    %306 = vmatprep.subr.mxu0 0.0
    %307 = vmatpush1.msra.mxu0 0.0
    %308 = vmatprep.subr.mxu0 0.0
    %309 = vmatpush1.msra.mxu0 0.0
    %310 = vmatprep.subr.mxu0 0.0
    %311 = vmatpush1.msra.mxu0 0.0
    %312 = vmatprep.subr.mxu0 0.0
    %313 = vmatpush1.msra.mxu0 0.0
    %314 = vmatprep.subr.mxu0 0.0
    %315 = vmatpush1.msra.mxu0 0.0
    %316 = vmatprep.subr.mxu0 0.0
    %317 = vmatpush1.msra.mxu0 0.0
    %318 = vmatprep.subr.mxu0 0.0
    %319 = vmatpush1.msra.mxu0 0.0
    %320 = vmatprep.subr.mxu0 0.0
    %321 = vmatpush1.msra.mxu0 0.0
    %322 = vmatprep.subr.mxu0 0.0
    %323 = vmatpush1.msra.mxu0 0.0
    %324 = vmatprep.subr.mxu0 0.0
    %325 = vmatpush1.msra.mxu0 0.0
    %326 = vmatprep.subr.mxu0 0.0
    %327 = vmatpush1.msra.mxu0 0.0
    %328 = vmatprep.subr.mxu0 0.0
    %329 = vmatpush1.msra.mxu0 0.0
    %330 = vmatprep.subr.mxu0 0.0
    %331 = vmatpush1.msra.mxu0 0.0
    %332 = vmatprep.subr.mxu0 0.0
    %333 = vmatpush1.msra.mxu0 0.0
    %334 = vmatprep.subr.mxu0 0.0
    %335 = vmatpush1.msra.mxu0 0.0
    %336 = vmatprep.subr.mxu0 0.0
    %337 = vmatpush1.msra.mxu0 0.0
    %338 = vmatprep.subr.mxu0 0.0
    %339 = vmatpush1.msra.mxu0 0.0
    %340 = vmatprep.subr.mxu0 0.0
    %341 = vmatpush1.msra.mxu0 0.0
    %342 = vmatprep.mubr.f32.mxu0 0.0
    %343 = vmatmul.mubr.f32.gmra.mrb[0].mxu0 %v276
    %v344 = vpop.f32.mrb[0].mxu0
    %v345 = vadd.f32 %v272, %v344
    %v346 = vpop.f32.mrb[0].mxu0
    %347 = vdwg.mxu0
    %vm348 = vcmask 189440
    %349 = vst.msk [vmem:[#allocation2] sm:$0x3] %vm348, %v345
    %v350 = vld [vmem:[#allocation8] ss:$4 sm:$0xff]
    %s351 = scalar_lea.vmem [#allocation8], 1
    %v352 = vld [vmem:[%s351] ss:$4 sm:$0xff]
    %s353 = scalar_lea.vmem [#allocation8], 2
    %v354 = vld [vmem:[%s353] ss:$4 sm:$0xff]
    %v355 = vld [vmem:[#allocation12] sm:$0xff]
    %v356 = vld [vmem:[#allocation14] sm:$0xff]
    %v357 = vld [vmem:[%s2] sm:$0x3]
    %v358 = vlaneseq
    %v359 = vand.u32 %v358, 127
    %v360 = vcvt.s32.f32 %v359
    %362 = vset.pattern.permute.xlu0 0
    %363 = vperm.xlu0 %362, %v357
    %v364 = vpop.permute.xlu0 %363
    %vm366 = vcmp.lt.f32.partialorder %v360, %v364
    %v367 = vsel %vm366, 1, 0
    %v368 = vcvt.s32.f32 %v367
    %v369 = vld [vmem:[#allocation2] sm:$0x1]
    %v370 = vld [vmem:[#allocation2 + $0x1] sm:$0x1]
    %v372 = vrot.slane %v369, 7
    %373 = vrot.lane.b32.xlu0 %v372, 125
    %v374 = vpop.permute.xlu0 %373
    %vm376 = vcmask 1040384
    %v377 = vsel %vm376, %v369, %v374
    %379 = vset.pattern.permute.xlu0 0
    %380 = vperm.xlu0 %379, %v377
    %v381 = vpop.permute.xlu0 %380
    %v384 = vlaneseq
    %v385 = vshrl.u32 %v384, 7
    %v386 = vsub.s32 0, %v385
    %v387 = vrot.slane %v350, %v386
    %v388 = vlaneseq
    %v389 = vshrl.u32 %v388, 7
    %v390 = vsub.s32 1, %v389
    %v391 = vrot.slane %v350, %v390
    %v392 = vlaneseq
    %v393 = vshrl.u32 %v392, 7
    %v394 = vsub.s32 2, %v393
    %v395 = vrot.slane %v350, %v394
    %v396 = vlaneseq
    %v397 = vshrl.u32 %v396, 7
    %v398 = vsub.s32 3, %v397
    %v399 = vrot.slane %v350, %v398
    %v400 = vlaneseq
    %v401 = vshrl.u32 %v400, 7
    %v402 = vsub.s32 4, %v401
    %v403 = vrot.slane %v350, %v402
    %v404 = vlaneseq
    %v405 = vshrl.u32 %v404, 7
    %v406 = vsub.s32 5, %v405
    %v407 = vrot.slane %v350, %v406
    %v408 = vlaneseq
    %v409 = vshrl.u32 %v408, 7
    %v410 = vsub.s32 6, %v409
    %v411 = vrot.slane %v350, %v410
    %v412 = vlaneseq
    %v413 = vshrl.u32 %v412, 7
    %v414 = vsub.s32 7, %v413
    %v415 = vrot.slane %v350, %v414
    %v424 = vmul.f32 %v381, %v387
    %v425 = vmul.f32 %v381, %v391
    %v426 = vmul.f32 %v381, %v395
    %v427 = vmul.f32 %v381, %v399
    %v428 = vmul.f32 %v381, %v403
    %v429 = vmul.f32 %v381, %v407
    %v430 = vmul.f32 %v381, %v411
    %v431 = vmul.f32 %v381, %v415
    %v433 = vlaneseq
    %v434 = vshrl.u32 %v433, 7
    %v435 = vsub.s32 0, %v434
    %v436 = vrot.slane %v355, %v435
    %v437 = vlaneseq
    %v438 = vshrl.u32 %v437, 7
    %v439 = vsub.s32 1, %v438
    %v440 = vrot.slane %v355, %v439
    %v441 = vlaneseq
    %v442 = vshrl.u32 %v441, 7
    %v443 = vsub.s32 2, %v442
    %v444 = vrot.slane %v355, %v443
    %v445 = vlaneseq
    %v446 = vshrl.u32 %v445, 7
    %v447 = vsub.s32 3, %v446
    %v448 = vrot.slane %v355, %v447
    %v449 = vlaneseq
    %v450 = vshrl.u32 %v449, 7
    %v451 = vsub.s32 4, %v450
    %v452 = vrot.slane %v355, %v451
    %v453 = vlaneseq
    %v454 = vshrl.u32 %v453, 7
    %v455 = vsub.s32 5, %v454
    %v456 = vrot.slane %v355, %v455
    %v457 = vlaneseq
    %v458 = vshrl.u32 %v457, 7
    %v459 = vsub.s32 6, %v458
    %v460 = vrot.slane %v355, %v459
    %v461 = vlaneseq
    %v462 = vshrl.u32 %v461, 7
    %v463 = vsub.s32 7, %v462
    %v464 = vrot.slane %v355, %v463
    %v473 = vadd.f32 %v436, %v424
    %v474 = vadd.f32 %v440, %v425
    %v475 = vadd.f32 %v444, %v426
    %v476 = vadd.f32 %v448, %v427
    %v477 = vadd.f32 %v452, %v428
    %v478 = vadd.f32 %v456, %v429
    %v479 = vadd.f32 %v460, %v430
    %v480 = vadd.f32 %v464, %v431
    %481 = vset.pattern.permute.xlu0 1
    %482 = vperm.xlu0 %481, %v377
    %v483 = vpop.permute.xlu0 %482
    %v486 = vlaneseq
    %v487 = vshrl.u32 %v486, 7
    %v488 = vsub.s32 0, %v487
    %v489 = vrot.slane %v352, %v488
    %v490 = vlaneseq
    %v491 = vshrl.u32 %v490, 7
    %v492 = vsub.s32 1, %v491
    %v493 = vrot.slane %v352, %v492
    %v494 = vlaneseq
    %v495 = vshrl.u32 %v494, 7
    %v496 = vsub.s32 2, %v495
    %v497 = vrot.slane %v352, %v496
    %v498 = vlaneseq
    %v499 = vshrl.u32 %v498, 7
    %v500 = vsub.s32 3, %v499
    %v501 = vrot.slane %v352, %v500
    %v502 = vlaneseq
    %v503 = vshrl.u32 %v502, 7
    %v504 = vsub.s32 4, %v503
    %v505 = vrot.slane %v352, %v504
    %v506 = vlaneseq
    %v507 = vshrl.u32 %v506, 7
    %v508 = vsub.s32 5, %v507
    %v509 = vrot.slane %v352, %v508
    %v510 = vlaneseq
    %v511 = vshrl.u32 %v510, 7
    %v512 = vsub.s32 6, %v511
    %v513 = vrot.slane %v352, %v512
    %v514 = vlaneseq
    %v515 = vshrl.u32 %v514, 7
    %v516 = vsub.s32 7, %v515
    %v517 = vrot.slane %v352, %v516
    %v526 = vmul.f32 %v483, %v489
    %v527 = vmul.f32 %v483, %v493
    %v528 = vmul.f32 %v483, %v497
    %v529 = vmul.f32 %v483, %v501
    %v530 = vmul.f32 %v483, %v505
    %v531 = vmul.f32 %v483, %v509
    %v532 = vmul.f32 %v483, %v513
    %v533 = vmul.f32 %v483, %v517
    %v534 = vadd.f32 %v473, %v526
    %v535 = vadd.f32 %v474, %v527
    %v536 = vadd.f32 %v475, %v528
    %v537 = vadd.f32 %v476, %v529
    %v538 = vadd.f32 %v477, %v530
    %v539 = vadd.f32 %v478, %v531
    %v540 = vadd.f32 %v479, %v532
    %v541 = vadd.f32 %v480, %v533
    %542 = vset.pattern.permute.xlu0 2
    %543 = vperm.xlu0 %542, %v377
    %v544 = vpop.permute.xlu0 %543
    %v547 = vlaneseq
    %v548 = vshrl.u32 %v547, 7
    %v549 = vsub.s32 0, %v548
    %v550 = vrot.slane %v354, %v549
    %v551 = vlaneseq
    %v552 = vshrl.u32 %v551, 7
    %v553 = vsub.s32 1, %v552
    %v554 = vrot.slane %v354, %v553
    %v555 = vlaneseq
    %v556 = vshrl.u32 %v555, 7
    %v557 = vsub.s32 2, %v556
    %v558 = vrot.slane %v354, %v557
    %v559 = vlaneseq
    %v560 = vshrl.u32 %v559, 7
    %v561 = vsub.s32 3, %v560
    %v562 = vrot.slane %v354, %v561
    %v563 = vlaneseq
    %v564 = vshrl.u32 %v563, 7
    %v565 = vsub.s32 4, %v564
    %v566 = vrot.slane %v354, %v565
    %v567 = vlaneseq
    %v568 = vshrl.u32 %v567, 7
    %v569 = vsub.s32 5, %v568
    %v570 = vrot.slane %v354, %v569
    %v571 = vlaneseq
    %v572 = vshrl.u32 %v571, 7
    %v573 = vsub.s32 6, %v572
    %v574 = vrot.slane %v354, %v573
    %v575 = vlaneseq
    %v576 = vshrl.u32 %v575, 7
    %v577 = vsub.s32 7, %v576
    %v578 = vrot.slane %v354, %v577
    %v587 = vmul.f32 %v544, %v550
    %v588 = vmul.f32 %v544, %v554
    %v589 = vmul.f32 %v544, %v558
    %v590 = vmul.f32 %v544, %v562
    %v591 = vmul.f32 %v544, %v566
    %v592 = vmul.f32 %v544, %v570
    %v593 = vmul.f32 %v544, %v574
    %v594 = vmul.f32 %v544, %v578
    %v595 = vadd.f32 %v534, %v587
    %v596 = vadd.f32 %v535, %v588
    %v597 = vadd.f32 %v536, %v589
    %v598 = vadd.f32 %v537, %v590
    %v599 = vadd.f32 %v538, %v591
    %v600 = vadd.f32 %v539, %v592
    %v601 = vadd.f32 %v540, %v593
    %v602 = vadd.f32 %v541, %v594
    %v603 = vxor.u32 %v595, 2147483648
    %v604 = vxor.u32 %v596, 2147483648
    %v605 = vmul.f32 %v603, 1.442695
    %v606 = vpow.pop %v605
    %v607 = vmul.f32 %v604, 1.442695
    %v608 = vpow.pop %v607
    %v609 = vadd.f32 %v606, 1.0
    %v610 = vadd.f32 %v608, 1.0
    %v611 = vrcp.pop %v609
    %v612 = vmul.f32 1.0, %v611
    %v613 = vrcp.pop %v610
    %v614 = vmul.f32 1.0, %v613
    %v615 = vxor.u32 %v597, 2147483648
    %v616 = vxor.u32 %v598, 2147483648
    %v617 = vmul.f32 %v615, 1.442695
    %v618 = vpow.pop %v617
    %v619 = vmul.f32 %v616, 1.442695
    %v620 = vpow.pop %v619
    %v621 = vadd.f32 %v618, 1.0
    %v622 = vadd.f32 %v620, 1.0
    %v623 = vrcp.pop %v621
    %v624 = vmul.f32 1.0, %v623
    %v625 = vrcp.pop %v622
    %v626 = vmul.f32 1.0, %v625
    %v627 = vtanh.pop %v599
    %v628 = vtanh.pop %v600
    %v629 = vxor.u32 %v601, 2147483648
    %v630 = vxor.u32 %v602, 2147483648
    %v631 = vmul.f32 %v629, 1.442695
    %v632 = vpow.pop %v631
    %v633 = vmul.f32 %v630, 1.442695
    %v634 = vpow.pop %v633
    %v635 = vadd.f32 %v632, 1.0
    %v636 = vadd.f32 %v634, 1.0
    %v637 = vrcp.pop %v635
    %v638 = vmul.f32 1.0, %v637
    %v639 = vrcp.pop %v636
    %v640 = vmul.f32 1.0, %v639
    %v641 = vmul.f32 %v624, 0.0
    %v642 = vmul.f32 %v626, 0.0
    %v643 = vmul.f32 %v612, %v627
    %v644 = vmul.f32 %v614, %v628
    %v645 = vadd.f32 %v641, %v643
    %v646 = vadd.f32 %v642, %v644
    %v647 = vtanh.pop %v645
    %v648 = vtanh.pop %v646
    %v649 = vmul.f32 %v638, %v647
    %v650 = vmul.f32 %v640, %v648
    %v651 = vpack.c.bf16 %v649, %v649
    %v652 = vpack.c.bf16 %v650, %v650
    %v653 = vld [vmem:[#allocation9] sm:$0xff]
    %v654 = vld [vmem:[#allocation9 + $0x8] sm:$0xff]
    %v655 = vld [vmem:[#allocation9 + $0x10] sm:$0xff]
    %v656 = vld [vmem:[#allocation9 + $0x18] sm:$0xff]
    %v657 = vld [vmem:[#allocation9 + $0x20] sm:$0xff]
    %v658 = vld [vmem:[#allocation9 + $0x28] sm:$0xff]
    %v659 = vld [vmem:[#allocation9 + $0x30] sm:$0xff]
    %v660 = vld [vmem:[#allocation9 + $0x38] sm:$0xff]
    %v661 = vld [vmem:[#allocation9 + $0x40] sm:$0xff]
    %v662 = vld [vmem:[#allocation9 + $0x48] sm:$0xff]
    %v663 = vld [vmem:[#allocation9 + $0x50] sm:$0xff]
    %v664 = vld [vmem:[#allocation9 + $0x58] sm:$0xff]
    %v665 = vld [vmem:[#allocation9 + $0x60] sm:$0xff]
    %v666 = vld [vmem:[#allocation9 + $0x68] sm:$0xff]
    %v667 = vld [vmem:[#allocation9 + $0x70] sm:$0xff]
    %v668 = vld [vmem:[#allocation9 + $0x78] sm:$0xff]
    %v669 = vld [vmem:[#allocation9 + $0x80] sm:$0xff]
    %v670 = vld [vmem:[#allocation9 + $0x88] sm:$0xff]
    %v671 = vld [vmem:[#allocation9 + $0x90] sm:$0xff]
    %v672 = vld [vmem:[#allocation9 + $0x98] sm:$0xff]
    %v673 = vld [vmem:[#allocation9 + $0xa0] sm:$0xff]
    %v674 = vld [vmem:[#allocation9 + $0xa8] sm:$0xff]
    %v675 = vld [vmem:[#allocation9 + $0xb0] sm:$0xff]
    %v676 = vld [vmem:[#allocation9 + $0xb8] sm:$0xff]
    %v677 = vld [vmem:[#allocation9 + $0xc0] sm:$0xff]
    %v678 = vld [vmem:[#allocation9 + $0xc8] sm:$0xff]
    %v679 = vld [vmem:[#allocation9 + $0xd0] sm:$0xff]
    %v680 = vld [vmem:[#allocation9 + $0xd8] sm:$0xff]
    %v681 = vld [vmem:[#allocation9 + $0xe0] sm:$0xff]
    %v682 = vld [vmem:[#allocation9 + $0xe8] sm:$0xff]
    %v683 = vld [vmem:[#allocation9 + $0xf0] sm:$0xff]
    %v684 = vld [vmem:[#allocation9 + $0xf8] sm:$0xff]
    %v685 = vld [vmem:[#allocation9 + $0x100] sm:$0xff]
    %v686 = vld [vmem:[#allocation9 + $0x108] sm:$0xff]
    %v687 = vld [vmem:[#allocation9 + $0x110] sm:$0xff]
    %v688 = vld [vmem:[#allocation9 + $0x118] sm:$0xff]
    %v689 = vld [vmem:[#allocation9 + $0x120] sm:$0xff]
    %v690 = vld [vmem:[#allocation9 + $0x128] sm:$0xff]
    %v691 = vld [vmem:[#allocation9 + $0x130] sm:$0xff]
    %v692 = vld [vmem:[#allocation9 + $0x138] sm:$0xff]
    %v693 = vld [vmem:[#allocation9 + $0x140] sm:$0xff]
    %v694 = vld [vmem:[#allocation9 + $0x148] sm:$0xff]
    %v695 = vld [vmem:[#allocation9 + $0x150] sm:$0xff]
    %v696 = vld [vmem:[#allocation9 + $0x158] sm:$0xff]
    %v697 = vld [vmem:[#allocation9 + $0x160] sm:$0xff]
    %v698 = vld [vmem:[#allocation9 + $0x168] sm:$0xff]
    %v699 = vld [vmem:[#allocation9 + $0x170] sm:$0xff]
    %v700 = vld [vmem:[#allocation9 + $0x178] sm:$0xff]
    %v701 = vld [vmem:[#allocation9 + $0x180] sm:$0xff]
    %v702 = vld [vmem:[#allocation9 + $0x188] sm:$0xff]
    %v703 = vld [vmem:[#allocation9 + $0x190] sm:$0xff]
    %v704 = vld [vmem:[#allocation9 + $0x198] sm:$0xff]
    %v705 = vld [vmem:[#allocation9 + $0x1a0] sm:$0xff]
    %v706 = vld [vmem:[#allocation9 + $0x1a8] sm:$0xff]
    %v707 = vld [vmem:[#allocation9 + $0x1b0] sm:$0xff]
    %v708 = vld [vmem:[#allocation9 + $0x1b8] sm:$0xff]
    %v709 = vld [vmem:[#allocation9 + $0x1c0] sm:$0xff]
    %v710 = vld [vmem:[#allocation9 + $0x1c8] sm:$0xff]
    %v711 = vld [vmem:[#allocation9 + $0x1d0] sm:$0xff]
    %v712 = vld [vmem:[#allocation9 + $0x1d8] sm:$0xff]
    %v713 = vld [vmem:[#allocation9 + $0x1e0] sm:$0xff]
    %v714 = vld [vmem:[#allocation9 + $0x1e8] sm:$0xff]
    %v715 = vld [vmem:[#allocation9 + $0x1f0] sm:$0xff]
    %v716 = vld [vmem:[#allocation9 + $0x1f8] sm:$0xff]
    %v717 = vld [vmem:[#allocation9 + $0x200] sm:$0xff]
    %v718 = vld [vmem:[#allocation9 + $0x208] sm:$0xff]
    %v719 = vld [vmem:[#allocation9 + $0x210] sm:$0xff]
    %v720 = vld [vmem:[#allocation9 + $0x218] sm:$0xff]
    %v721 = vld [vmem:[#allocation9 + $0x220] sm:$0xff]
    %v722 = vld [vmem:[#allocation9 + $0x228] sm:$0xff]
    %v723 = vld [vmem:[#allocation9 + $0x230] sm:$0xff]
    %v724 = vld [vmem:[#allocation9 + $0x238] sm:$0xff]
    %v725 = vld [vmem:[#allocation9 + $0x240] sm:$0xff]
    %v726 = vld [vmem:[#allocation9 + $0x248] sm:$0xff]
    %v727 = vld [vmem:[#allocation9 + $0x250] sm:$0xff]
    %v728 = vld [vmem:[#allocation9 + $0x258] sm:$0xff]
    %v729 = vld [vmem:[#allocation9 + $0x260] sm:$0xff]
    %v730 = vld [vmem:[#allocation9 + $0x268] sm:$0xff]
    %v731 = vld [vmem:[#allocation9 + $0x270] sm:$0xff]
    %v732 = vld [vmem:[#allocation9 + $0x278] sm:$0xff]
    %v733 = vld [vmem:[#allocation9 + $0x280] sm:$0xff]
    %v734 = vld [vmem:[#allocation9 + $0x288] sm:$0xff]
    %v735 = vld [vmem:[#allocation9 + $0x290] sm:$0xff]
    %v736 = vld [vmem:[#allocation9 + $0x298] sm:$0xff]
    %v737 = vld [vmem:[#allocation9 + $0x2a0] sm:$0xff]
    %v738 = vld [vmem:[#allocation9 + $0x2a8] sm:$0xff]
    %v739 = vld [vmem:[#allocation9 + $0x2b0] sm:$0xff]
    %v740 = vld [vmem:[#allocation9 + $0x2b8] sm:$0xff]
    %v741 = vld [vmem:[#allocation9 + $0x2c0] sm:$0xff]
    %v742 = vld [vmem:[#allocation9 + $0x2c8] sm:$0xff]
    %v743 = vld [vmem:[#allocation9 + $0x2d0] sm:$0xff]
    %v744 = vld [vmem:[#allocation9 + $0x2d8] sm:$0xff]
    %v745 = vld [vmem:[#allocation9 + $0x2e0] sm:$0xff]
    %v746 = vld [vmem:[#allocation9 + $0x2e8] sm:$0xff]
    %v747 = vld [vmem:[#allocation9 + $0x2f0] sm:$0xff]
    %v748 = vld [vmem:[#allocation9 + $0x2f8] sm:$0xff]
    %v749 = vld [vmem:[#allocation9 + $0x300] sm:$0xff]
    %v750 = vld [vmem:[#allocation9 + $0x308] sm:$0xff]
    %v751 = vld [vmem:[#allocation9 + $0x310] sm:$0xff]
    %v752 = vld [vmem:[#allocation9 + $0x318] sm:$0xff]
    %v753 = vld [vmem:[#allocation9 + $0x320] sm:$0xff]
    %v754 = vld [vmem:[#allocation9 + $0x328] sm:$0xff]
    %v755 = vld [vmem:[#allocation9 + $0x330] sm:$0xff]
    %v756 = vld [vmem:[#allocation9 + $0x338] sm:$0xff]
    %v757 = vld [vmem:[#allocation9 + $0x340] sm:$0xff]
    %v758 = vld [vmem:[#allocation9 + $0x348] sm:$0xff]
    %v759 = vld [vmem:[#allocation9 + $0x350] sm:$0xff]
    %v760 = vld [vmem:[#allocation9 + $0x358] sm:$0xff]
    %v761 = vld [vmem:[#allocation9 + $0x360] sm:$0xff]
    %v762 = vld [vmem:[#allocation9 + $0x368] sm:$0xff]
    %v763 = vld [vmem:[#allocation9 + $0x370] sm:$0xff]
    %v764 = vld [vmem:[#allocation9 + $0x378] sm:$0xff]
    %v765 = vld [vmem:[#allocation9 + $0x380] sm:$0xff]
    %v766 = vld [vmem:[#allocation9 + $0x388] sm:$0xff]
    %v767 = vld [vmem:[#allocation9 + $0x390] sm:$0xff]
    %v768 = vld [vmem:[#allocation9 + $0x398] sm:$0xff]
    %v769 = vld [vmem:[#allocation9 + $0x3a0] sm:$0xff]
    %v770 = vld [vmem:[#allocation9 + $0x3a8] sm:$0xff]
    %v771 = vld [vmem:[#allocation9 + $0x3b0] sm:$0xff]
    %v772 = vld [vmem:[#allocation9 + $0x3b8] sm:$0xff]
    %v773 = vld [vmem:[#allocation9 + $0x3c0] sm:$0xff]
    %v774 = vld [vmem:[#allocation9 + $0x3c8] sm:$0xff]
    %v775 = vld [vmem:[#allocation9 + $0x3d0] sm:$0xff]
    %v776 = vld [vmem:[#allocation9 + $0x3d8] sm:$0xff]
    %v777 = vld [vmem:[#allocation9 + $0x3e0] sm:$0xff]
    %v778 = vld [vmem:[#allocation9 + $0x3e8] sm:$0xff]
    %v779 = vld [vmem:[#allocation9 + $0x3f0] sm:$0xff]
    %v780 = vld [vmem:[#allocation9 + $0x3f8] sm:$0xff]
    %v781 = vld [vmem:[#allocation9 + $0x400] sm:$0xff]
    %v782 = vld [vmem:[#allocation9 + $0x408] sm:$0xff]
    %v783 = vld [vmem:[#allocation9 + $0x410] sm:$0xff]
    %v784 = vld [vmem:[#allocation9 + $0x418] sm:$0xff]
    %v785 = vld [vmem:[#allocation9 + $0x420] sm:$0xff]
    %v786 = vld [vmem:[#allocation9 + $0x428] sm:$0xff]
    %v787 = vld [vmem:[#allocation9 + $0x430] sm:$0xff]
    %v788 = vld [vmem:[#allocation9 + $0x438] sm:$0xff]
    %v789 = vld [vmem:[#allocation9 + $0x440] sm:$0xff]
    %v790 = vld [vmem:[#allocation9 + $0x448] sm:$0xff]
    %v791 = vld [vmem:[#allocation9 + $0x450] sm:$0xff]
    %v792 = vld [vmem:[#allocation9 + $0x458] sm:$0xff]
    %v793 = vld [vmem:[#allocation9 + $0x460] sm:$0xff]
    %v794 = vld [vmem:[#allocation9 + $0x468] sm:$0xff]
    %v795 = vld [vmem:[#allocation9 + $0x470] sm:$0xff]
    %v796 = vld [vmem:[#allocation9 + $0x478] sm:$0xff]
    %v797 = vld [vmem:[#allocation9 + $0x480] sm:$0xff]
    %v798 = vld [vmem:[#allocation9 + $0x488] sm:$0xff]
    %v799 = vld [vmem:[#allocation9 + $0x490] sm:$0xff]
    %v800 = vld [vmem:[#allocation9 + $0x498] sm:$0xff]
    %v801 = vld [vmem:[#allocation9 + $0x4a0] sm:$0xff]
    %v802 = vld [vmem:[#allocation9 + $0x4a8] sm:$0xff]
    %v803 = vld [vmem:[#allocation9 + $0x4b0] sm:$0xff]
    %v804 = vld [vmem:[#allocation9 + $0x4b8] sm:$0xff]
    %v805 = vld [vmem:[#allocation9 + $0x4c0] sm:$0xff]
    %v806 = vld [vmem:[#allocation9 + $0x4c8] sm:$0xff]
    %v807 = vld [vmem:[#allocation9 + $0x4d0] sm:$0xff]
    %v808 = vld [vmem:[#allocation9 + $0x4d8] sm:$0xff]
    %v809 = vld [vmem:[#allocation9 + $0x4e0] sm:$0xff]
    %v810 = vld [vmem:[#allocation9 + $0x4e8] sm:$0xff]
    %v811 = vld [vmem:[#allocation9 + $0x4f0] sm:$0xff]
    %v812 = vld [vmem:[#allocation9 + $0x4f8] sm:$0xff]
    %v813 = vld [vmem:[#allocation9 + $0x500] sm:$0xff]
    %v814 = vld [vmem:[#allocation9 + $0x508] sm:$0xff]
    %v815 = vld [vmem:[#allocation9 + $0x510] sm:$0xff]
    %v816 = vld [vmem:[#allocation9 + $0x518] sm:$0xff]
    %v817 = vld [vmem:[#allocation9 + $0x520] sm:$0xff]
    %v818 = vld [vmem:[#allocation9 + $0x528] sm:$0xff]
    %v819 = vld [vmem:[#allocation9 + $0x530] sm:$0xff]
    %v820 = vld [vmem:[#allocation9 + $0x538] sm:$0xff]
    %v821 = vld [vmem:[#allocation9 + $0x540] sm:$0xff]
    %v822 = vld [vmem:[#allocation9 + $0x548] sm:$0xff]
    %v823 = vld [vmem:[#allocation9 + $0x550] sm:$0xff]
    %v824 = vld [vmem:[#allocation9 + $0x558] sm:$0xff]
    %v825 = vld [vmem:[#allocation9 + $0x560] sm:$0xff]
    %v826 = vld [vmem:[#allocation9 + $0x568] sm:$0xff]
    %v827 = vld [vmem:[#allocation9 + $0x570] sm:$0xff]
    %v828 = vld [vmem:[#allocation9 + $0x578] sm:$0xff]
    %v829 = vld [vmem:[#allocation9 + $0x580] sm:$0xff]
    %v830 = vld [vmem:[#allocation9 + $0x588] sm:$0xff]
    %v831 = vld [vmem:[#allocation9 + $0x590] sm:$0xff]
    %v832 = vld [vmem:[#allocation9 + $0x598] sm:$0xff]
    %v833 = vld [vmem:[#allocation9 + $0x5a0] sm:$0xff]
    %v834 = vld [vmem:[#allocation9 + $0x5a8] sm:$0xff]
    %v835 = vld [vmem:[#allocation9 + $0x5b0] sm:$0xff]
    %v836 = vld [vmem:[#allocation9 + $0x5b8] sm:$0xff]
    %v837 = vld [vmem:[#allocation9 + $0x5c0] sm:$0xff]
    %v838 = vld [vmem:[#allocation9 + $0x5c8] sm:$0xff]
    %v839 = vld [vmem:[#allocation9 + $0x5d0] sm:$0xff]
    %v840 = vld [vmem:[#allocation9 + $0x5d8] sm:$0xff]
    %v841 = vld [vmem:[#allocation9 + $0x5e0] sm:$0xff]
    %v842 = vld [vmem:[#allocation9 + $0x5e8] sm:$0xff]
    %v843 = vld [vmem:[#allocation9 + $0x5f0] sm:$0xff]
    %v844 = vld [vmem:[#allocation9 + $0x5f8] sm:$0xff]
    %v845 = vld [vmem:[#allocation9 + $0x600] sm:$0xff]
    %v846 = vld [vmem:[#allocation9 + $0x608] sm:$0xff]
    %v847 = vld [vmem:[#allocation9 + $0x610] sm:$0xff]
    %v848 = vld [vmem:[#allocation9 + $0x618] sm:$0xff]
    %v849 = vld [vmem:[#allocation9 + $0x620] sm:$0xff]
    %v850 = vld [vmem:[#allocation9 + $0x628] sm:$0xff]
    %v851 = vld [vmem:[#allocation9 + $0x630] sm:$0xff]
    %v852 = vld [vmem:[#allocation9 + $0x638] sm:$0xff]
    %v853 = vld [vmem:[#allocation9 + $0x640] sm:$0xff]
    %v854 = vld [vmem:[#allocation9 + $0x648] sm:$0xff]
    %v855 = vld [vmem:[#allocation9 + $0x650] sm:$0xff]
    %v856 = vld [vmem:[#allocation9 + $0x658] sm:$0xff]
    %v857 = vld [vmem:[#allocation9 + $0x660] sm:$0xff]
    %v858 = vld [vmem:[#allocation9 + $0x668] sm:$0xff]
    %v859 = vld [vmem:[#allocation9 + $0x670] sm:$0xff]
    %v860 = vld [vmem:[#allocation9 + $0x678] sm:$0xff]
    %v861 = vld [vmem:[#allocation9 + $0x680] sm:$0xff]
    %v862 = vld [vmem:[#allocation9 + $0x688] sm:$0xff]
    %v863 = vld [vmem:[#allocation9 + $0x690] sm:$0xff]
    %v864 = vld [vmem:[#allocation9 + $0x698] sm:$0xff]
    %v865 = vld [vmem:[#allocation9 + $0x6a0] sm:$0xff]
    %v866 = vld [vmem:[#allocation9 + $0x6a8] sm:$0xff]
    %v867 = vld [vmem:[#allocation9 + $0x6b0] sm:$0xff]
    %v868 = vld [vmem:[#allocation9 + $0x6b8] sm:$0xff]
    %v869 = vld [vmem:[#allocation9 + $0x6c0] sm:$0xff]
    %v870 = vld [vmem:[#allocation9 + $0x6c8] sm:$0xff]
    %v871 = vld [vmem:[#allocation9 + $0x6d0] sm:$0xff]
    %v872 = vld [vmem:[#allocation9 + $0x6d8] sm:$0xff]
    %v873 = vld [vmem:[#allocation9 + $0x6e0] sm:$0xff]
    %v874 = vld [vmem:[#allocation9 + $0x6e8] sm:$0xff]
    %v875 = vld [vmem:[#allocation9 + $0x6f0] sm:$0xff]
    %v876 = vld [vmem:[#allocation9 + $0x6f8] sm:$0xff]
    %v877 = vld [vmem:[#allocation9 + $0x700] sm:$0xff]
    %v878 = vld [vmem:[#allocation9 + $0x708] sm:$0xff]
    %v879 = vld [vmem:[#allocation9 + $0x710] sm:$0xff]
    %v880 = vld [vmem:[#allocation9 + $0x718] sm:$0xff]
    %v881 = vld [vmem:[#allocation9 + $0x720] sm:$0xff]
    %v882 = vld [vmem:[#allocation9 + $0x728] sm:$0xff]
    %v883 = vld [vmem:[#allocation9 + $0x730] sm:$0xff]
    %v884 = vld [vmem:[#allocation9 + $0x738] sm:$0xff]
    %v885 = vld [vmem:[#allocation9 + $0x740] sm:$0xff]
    %v886 = vld [vmem:[#allocation9 + $0x748] sm:$0xff]
    %v887 = vld [vmem:[#allocation9 + $0x750] sm:$0xff]
    %v888 = vld [vmem:[#allocation9 + $0x758] sm:$0xff]
    %v889 = vld [vmem:[#allocation9 + $0x760] sm:$0xff]
    %v890 = vld [vmem:[#allocation9 + $0x768] sm:$0xff]
    %v891 = vld [vmem:[#allocation9 + $0x770] sm:$0xff]
    %v892 = vld [vmem:[#allocation9 + $0x778] sm:$0xff]
    %v893 = vld [vmem:[#allocation9 + $0x780] sm:$0xff]
    %v894 = vld [vmem:[#allocation9 + $0x788] sm:$0xff]
    %v895 = vld [vmem:[#allocation9 + $0x790] sm:$0xff]
    %v896 = vld [vmem:[#allocation9 + $0x798] sm:$0xff]
    %v897 = vld [vmem:[#allocation9 + $0x7a0] sm:$0xff]
    %v898 = vld [vmem:[#allocation9 + $0x7a8] sm:$0xff]
    %v899 = vld [vmem:[#allocation9 + $0x7b0] sm:$0xff]
    %v900 = vld [vmem:[#allocation9 + $0x7b8] sm:$0xff]
    %v901 = vld [vmem:[#allocation9 + $0x7c0] sm:$0xff]
    %v902 = vld [vmem:[#allocation9 + $0x7c8] sm:$0xff]
    %v903 = vld [vmem:[#allocation9 + $0x7d0] sm:$0xff]
    %v904 = vld [vmem:[#allocation9 + $0x7d8] sm:$0xff]
    %v905 = vld [vmem:[#allocation9 + $0x7e0] sm:$0xff]
    %v906 = vld [vmem:[#allocation9 + $0x7e8] sm:$0xff]
    %v907 = vld [vmem:[#allocation9 + $0x7f0] sm:$0xff]
    %v908 = vld [vmem:[#allocation9 + $0x7f8] sm:$0xff]
    %v1165 = vunpack.c.l.b16 %v653
    %v1166 = vunpack.c.h.b16 %v653
    %v1167 = vunpack.c.l.b16 %v654
    %v1168 = vunpack.c.h.b16 %v654
    %v1169 = vunpack.c.l.b16 %v655
    %v1170 = vunpack.c.h.b16 %v655
    %v1171 = vunpack.c.l.b16 %v656
    %v1172 = vunpack.c.h.b16 %v656
    %v1173 = vunpack.c.l.b16 %v657
    %v1174 = vunpack.c.h.b16 %v657
    %v1175 = vunpack.c.l.b16 %v658
    %v1176 = vunpack.c.h.b16 %v658
    %v1177 = vunpack.c.l.b16 %v659
    %v1178 = vunpack.c.h.b16 %v659
    %v1179 = vunpack.c.l.b16 %v660
    %v1180 = vunpack.c.h.b16 %v660
    %v1181 = vunpack.c.l.b16 %v661
    %v1182 = vunpack.c.h.b16 %v661
    %v1183 = vunpack.c.l.b16 %v662
    %v1184 = vunpack.c.h.b16 %v662
    %v1185 = vunpack.c.l.b16 %v663
    %v1186 = vunpack.c.h.b16 %v663
    %v1187 = vunpack.c.l.b16 %v664
    %v1188 = vunpack.c.h.b16 %v664
    %v1189 = vunpack.c.l.b16 %v665
    %v1190 = vunpack.c.h.b16 %v665
    %v1191 = vunpack.c.l.b16 %v666
    %v1192 = vunpack.c.h.b16 %v666
    %v1193 = vunpack.c.l.b16 %v667
    %v1194 = vunpack.c.h.b16 %v667
    %v1195 = vunpack.c.l.b16 %v668
    %v1196 = vunpack.c.h.b16 %v668
    %v1197 = vunpack.c.l.b16 %v669
    %v1198 = vunpack.c.h.b16 %v669
    %v1199 = vunpack.c.l.b16 %v670
    %v1200 = vunpack.c.h.b16 %v670
    %v1201 = vunpack.c.l.b16 %v671
    %v1202 = vunpack.c.h.b16 %v671
    %v1203 = vunpack.c.l.b16 %v672
    %v1204 = vunpack.c.h.b16 %v672
    %v1205 = vunpack.c.l.b16 %v673
    %v1206 = vunpack.c.h.b16 %v673
    %v1207 = vunpack.c.l.b16 %v674
    %v1208 = vunpack.c.h.b16 %v674
    %v1209 = vunpack.c.l.b16 %v675
    %v1210 = vunpack.c.h.b16 %v675
    %v1211 = vunpack.c.l.b16 %v676
    %v1212 = vunpack.c.h.b16 %v676
    %v1213 = vunpack.c.l.b16 %v677
    %v1214 = vunpack.c.h.b16 %v677
    %v1215 = vunpack.c.l.b16 %v678
    %v1216 = vunpack.c.h.b16 %v678
    %v1217 = vunpack.c.l.b16 %v679
    %v1218 = vunpack.c.h.b16 %v679
    %v1219 = vunpack.c.l.b16 %v680
    %v1220 = vunpack.c.h.b16 %v680
    %v1221 = vunpack.c.l.b16 %v681
    %v1222 = vunpack.c.h.b16 %v681
    %v1223 = vunpack.c.l.b16 %v682
    %v1224 = vunpack.c.h.b16 %v682
    %v1225 = vunpack.c.l.b16 %v683
    %v1226 = vunpack.c.h.b16 %v683
    %v1227 = vunpack.c.l.b16 %v684
    %v1228 = vunpack.c.h.b16 %v684
    %v1229 = vunpack.c.l.b16 %v685
    %v1230 = vunpack.c.h.b16 %v685
    %v1231 = vunpack.c.l.b16 %v686
    %v1232 = vunpack.c.h.b16 %v686
    %v1233 = vunpack.c.l.b16 %v687
    %v1234 = vunpack.c.h.b16 %v687
    %v1235 = vunpack.c.l.b16 %v688
    %v1236 = vunpack.c.h.b16 %v688
    %v1237 = vunpack.c.l.b16 %v689
    %v1238 = vunpack.c.h.b16 %v689
    %v1239 = vunpack.c.l.b16 %v690
    %v1240 = vunpack.c.h.b16 %v690
    %v1241 = vunpack.c.l.b16 %v691
    %v1242 = vunpack.c.h.b16 %v691
    %v1243 = vunpack.c.l.b16 %v692
    %v1244 = vunpack.c.h.b16 %v692
    %v1245 = vunpack.c.l.b16 %v693
    %v1246 = vunpack.c.h.b16 %v693
    %v1247 = vunpack.c.l.b16 %v694
    %v1248 = vunpack.c.h.b16 %v694
    %v1249 = vunpack.c.l.b16 %v695
    %v1250 = vunpack.c.h.b16 %v695
    %v1251 = vunpack.c.l.b16 %v696
    %v1252 = vunpack.c.h.b16 %v696
    %v1253 = vunpack.c.l.b16 %v697
    %v1254 = vunpack.c.h.b16 %v697
    %v1255 = vunpack.c.l.b16 %v698
    %v1256 = vunpack.c.h.b16 %v698
    %v1257 = vunpack.c.l.b16 %v699
    %v1258 = vunpack.c.h.b16 %v699
    %v1259 = vunpack.c.l.b16 %v700
    %v1260 = vunpack.c.h.b16 %v700
    %v1261 = vunpack.c.l.b16 %v701
    %v1262 = vunpack.c.h.b16 %v701
    %v1263 = vunpack.c.l.b16 %v702
    %v1264 = vunpack.c.h.b16 %v702
    %v1265 = vunpack.c.l.b16 %v703
    %v1266 = vunpack.c.h.b16 %v703
    %v1267 = vunpack.c.l.b16 %v704
    %v1268 = vunpack.c.h.b16 %v704
    %v1269 = vunpack.c.l.b16 %v705
    %v1270 = vunpack.c.h.b16 %v705
    %v1271 = vunpack.c.l.b16 %v706
    %v1272 = vunpack.c.h.b16 %v706
    %v1273 = vunpack.c.l.b16 %v707
    %v1274 = vunpack.c.h.b16 %v707
    %v1275 = vunpack.c.l.b16 %v708
    %v1276 = vunpack.c.h.b16 %v708
    %v1277 = vunpack.c.l.b16 %v709
    %v1278 = vunpack.c.h.b16 %v709
    %v1279 = vunpack.c.l.b16 %v710
    %v1280 = vunpack.c.h.b16 %v710
    %v1281 = vunpack.c.l.b16 %v711
    %v1282 = vunpack.c.h.b16 %v711
    %v1283 = vunpack.c.l.b16 %v712
    %v1284 = vunpack.c.h.b16 %v712
    %v1285 = vunpack.c.l.b16 %v713
    %v1286 = vunpack.c.h.b16 %v713
    %v1287 = vunpack.c.l.b16 %v714
    %v1288 = vunpack.c.h.b16 %v714
    %v1289 = vunpack.c.l.b16 %v715
    %v1290 = vunpack.c.h.b16 %v715
    %v1291 = vunpack.c.l.b16 %v716
    %v1292 = vunpack.c.h.b16 %v716
    %v1293 = vunpack.c.l.b16 %v717
    %v1294 = vunpack.c.h.b16 %v717
    %v1295 = vunpack.c.l.b16 %v718
    %v1296 = vunpack.c.h.b16 %v718
    %v1297 = vunpack.c.l.b16 %v719
    %v1298 = vunpack.c.h.b16 %v719
    %v1299 = vunpack.c.l.b16 %v720
    %v1300 = vunpack.c.h.b16 %v720
    %v1301 = vunpack.c.l.b16 %v721
    %v1302 = vunpack.c.h.b16 %v721
    %v1303 = vunpack.c.l.b16 %v722
    %v1304 = vunpack.c.h.b16 %v722
    %v1305 = vunpack.c.l.b16 %v723
    %v1306 = vunpack.c.h.b16 %v723
    %v1307 = vunpack.c.l.b16 %v724
    %v1308 = vunpack.c.h.b16 %v724
    %v1309 = vunpack.c.l.b16 %v725
    %v1310 = vunpack.c.h.b16 %v725
    %v1311 = vunpack.c.l.b16 %v726
    %v1312 = vunpack.c.h.b16 %v726
    %v1313 = vunpack.c.l.b16 %v727
    %v1314 = vunpack.c.h.b16 %v727
    %v1315 = vunpack.c.l.b16 %v728
    %v1316 = vunpack.c.h.b16 %v728
    %v1317 = vunpack.c.l.b16 %v729
    %v1318 = vunpack.c.h.b16 %v729
    %v1319 = vunpack.c.l.b16 %v730
    %v1320 = vunpack.c.h.b16 %v730
    %v1321 = vunpack.c.l.b16 %v731
    %v1322 = vunpack.c.h.b16 %v731
    %v1323 = vunpack.c.l.b16 %v732
    %v1324 = vunpack.c.h.b16 %v732
    %v1325 = vunpack.c.l.b16 %v733
    %v1326 = vunpack.c.h.b16 %v733
    %v1327 = vunpack.c.l.b16 %v734
    %v1328 = vunpack.c.h.b16 %v734
    %v1329 = vunpack.c.l.b16 %v735
    %v1330 = vunpack.c.h.b16 %v735
    %v1331 = vunpack.c.l.b16 %v736
    %v1332 = vunpack.c.h.b16 %v736
    %v1333 = vunpack.c.l.b16 %v737
    %v1334 = vunpack.c.h.b16 %v737
    %v1335 = vunpack.c.l.b16 %v738
    %v1336 = vunpack.c.h.b16 %v738
    %v1337 = vunpack.c.l.b16 %v739
    %v1338 = vunpack.c.h.b16 %v739
    %v1339 = vunpack.c.l.b16 %v740
    %v1340 = vunpack.c.h.b16 %v740
    %v1341 = vunpack.c.l.b16 %v741
    %v1342 = vunpack.c.h.b16 %v741
    %v1343 = vunpack.c.l.b16 %v742
    %v1344 = vunpack.c.h.b16 %v742
    %v1345 = vunpack.c.l.b16 %v743
    %v1346 = vunpack.c.h.b16 %v743
    %v1347 = vunpack.c.l.b16 %v744
    %v1348 = vunpack.c.h.b16 %v744
    %v1349 = vunpack.c.l.b16 %v745
    %v1350 = vunpack.c.h.b16 %v745
    %v1351 = vunpack.c.l.b16 %v746
    %v1352 = vunpack.c.h.b16 %v746
    %v1353 = vunpack.c.l.b16 %v747
    %v1354 = vunpack.c.h.b16 %v747
    %v1355 = vunpack.c.l.b16 %v748
    %v1356 = vunpack.c.h.b16 %v748
    %v1357 = vunpack.c.l.b16 %v749
    %v1358 = vunpack.c.h.b16 %v749
    %v1359 = vunpack.c.l.b16 %v750
    %v1360 = vunpack.c.h.b16 %v750
    %v1361 = vunpack.c.l.b16 %v751
    %v1362 = vunpack.c.h.b16 %v751
    %v1363 = vunpack.c.l.b16 %v752
    %v1364 = vunpack.c.h.b16 %v752
    %v1365 = vunpack.c.l.b16 %v753
    %v1366 = vunpack.c.h.b16 %v753
    %v1367 = vunpack.c.l.b16 %v754
    %v1368 = vunpack.c.h.b16 %v754
    %v1369 = vunpack.c.l.b16 %v755
    %v1370 = vunpack.c.h.b16 %v755
    %v1371 = vunpack.c.l.b16 %v756
    %v1372 = vunpack.c.h.b16 %v756
    %v1373 = vunpack.c.l.b16 %v757
    %v1374 = vunpack.c.h.b16 %v757
    %v1375 = vunpack.c.l.b16 %v758
    %v1376 = vunpack.c.h.b16 %v758
    %v1377 = vunpack.c.l.b16 %v759
    %v1378 = vunpack.c.h.b16 %v759
    %v1379 = vunpack.c.l.b16 %v760
    %v1380 = vunpack.c.h.b16 %v760
    %v1381 = vunpack.c.l.b16 %v761
    %v1382 = vunpack.c.h.b16 %v761
    %v1383 = vunpack.c.l.b16 %v762
    %v1384 = vunpack.c.h.b16 %v762
    %v1385 = vunpack.c.l.b16 %v763
    %v1386 = vunpack.c.h.b16 %v763
    %v1387 = vunpack.c.l.b16 %v764
    %v1388 = vunpack.c.h.b16 %v764
    %v1389 = vunpack.c.l.b16 %v765
    %v1390 = vunpack.c.h.b16 %v765
    %v1391 = vunpack.c.l.b16 %v766
    %v1392 = vunpack.c.h.b16 %v766
    %v1393 = vunpack.c.l.b16 %v767
    %v1394 = vunpack.c.h.b16 %v767
    %v1395 = vunpack.c.l.b16 %v768
    %v1396 = vunpack.c.h.b16 %v768
    %v1397 = vunpack.c.l.b16 %v769
    %v1398 = vunpack.c.h.b16 %v769
    %v1399 = vunpack.c.l.b16 %v770
    %v1400 = vunpack.c.h.b16 %v770
    %v1401 = vunpack.c.l.b16 %v771
    %v1402 = vunpack.c.h.b16 %v771
    %v1403 = vunpack.c.l.b16 %v772
    %v1404 = vunpack.c.h.b16 %v772
    %v1405 = vunpack.c.l.b16 %v773
    %v1406 = vunpack.c.h.b16 %v773
    %v1407 = vunpack.c.l.b16 %v774
    %v1408 = vunpack.c.h.b16 %v774
    %v1409 = vunpack.c.l.b16 %v775
    %v1410 = vunpack.c.h.b16 %v775
    %v1411 = vunpack.c.l.b16 %v776
    %v1412 = vunpack.c.h.b16 %v776
    %v1413 = vunpack.c.l.b16 %v777
    %v1414 = vunpack.c.h.b16 %v777
    %v1415 = vunpack.c.l.b16 %v778
    %v1416 = vunpack.c.h.b16 %v778
    %v1417 = vunpack.c.l.b16 %v779
    %v1418 = vunpack.c.h.b16 %v779
    %v1419 = vunpack.c.l.b16 %v780
    %v1420 = vunpack.c.h.b16 %v780
    %v1421 = vunpack.c.l.b16 %v781
    %v1422 = vunpack.c.h.b16 %v781
    %v1423 = vunpack.c.l.b16 %v782
    %v1424 = vunpack.c.h.b16 %v782
    %v1425 = vunpack.c.l.b16 %v783
    %v1426 = vunpack.c.h.b16 %v783
    %v1427 = vunpack.c.l.b16 %v784
    %v1428 = vunpack.c.h.b16 %v784
    %v1429 = vunpack.c.l.b16 %v785
    %v1430 = vunpack.c.h.b16 %v785
    %v1431 = vunpack.c.l.b16 %v786
    %v1432 = vunpack.c.h.b16 %v786
    %v1433 = vunpack.c.l.b16 %v787
    %v1434 = vunpack.c.h.b16 %v787
    %v1435 = vunpack.c.l.b16 %v788
    %v1436 = vunpack.c.h.b16 %v788
    %v1437 = vunpack.c.l.b16 %v789
    %v1438 = vunpack.c.h.b16 %v789
    %v1439 = vunpack.c.l.b16 %v790
    %v1440 = vunpack.c.h.b16 %v790
    %v1441 = vunpack.c.l.b16 %v791
    %v1442 = vunpack.c.h.b16 %v791
    %v1443 = vunpack.c.l.b16 %v792
    %v1444 = vunpack.c.h.b16 %v792
    %v1445 = vunpack.c.l.b16 %v793
    %v1446 = vunpack.c.h.b16 %v793
    %v1447 = vunpack.c.l.b16 %v794
    %v1448 = vunpack.c.h.b16 %v794
    %v1449 = vunpack.c.l.b16 %v795
    %v1450 = vunpack.c.h.b16 %v795
    %v1451 = vunpack.c.l.b16 %v796
    %v1452 = vunpack.c.h.b16 %v796
    %v1453 = vunpack.c.l.b16 %v797
    %v1454 = vunpack.c.h.b16 %v797
    %v1455 = vunpack.c.l.b16 %v798
    %v1456 = vunpack.c.h.b16 %v798
    %v1457 = vunpack.c.l.b16 %v799
    %v1458 = vunpack.c.h.b16 %v799
    %v1459 = vunpack.c.l.b16 %v800
    %v1460 = vunpack.c.h.b16 %v800
    %v1461 = vunpack.c.l.b16 %v801
    %v1462 = vunpack.c.h.b16 %v801
    %v1463 = vunpack.c.l.b16 %v802
    %v1464 = vunpack.c.h.b16 %v802
    %v1465 = vunpack.c.l.b16 %v803
    %v1466 = vunpack.c.h.b16 %v803
    %v1467 = vunpack.c.l.b16 %v804
    %v1468 = vunpack.c.h.b16 %v804
    %v1469 = vunpack.c.l.b16 %v805
    %v1470 = vunpack.c.h.b16 %v805
    %v1471 = vunpack.c.l.b16 %v806
    %v1472 = vunpack.c.h.b16 %v806
    %v1473 = vunpack.c.l.b16 %v807
    %v1474 = vunpack.c.h.b16 %v807
    %v1475 = vunpack.c.l.b16 %v808
    %v1476 = vunpack.c.h.b16 %v808
    %v1477 = vunpack.c.l.b16 %v809
    %v1478 = vunpack.c.h.b16 %v809
    %v1479 = vunpack.c.l.b16 %v810
    %v1480 = vunpack.c.h.b16 %v810
    %v1481 = vunpack.c.l.b16 %v811
    %v1482 = vunpack.c.h.b16 %v811
    %v1483 = vunpack.c.l.b16 %v812
    %v1484 = vunpack.c.h.b16 %v812
    %v1485 = vunpack.c.l.b16 %v813
    %v1486 = vunpack.c.h.b16 %v813
    %v1487 = vunpack.c.l.b16 %v814
    %v1488 = vunpack.c.h.b16 %v814
    %v1489 = vunpack.c.l.b16 %v815
    %v1490 = vunpack.c.h.b16 %v815
    %v1491 = vunpack.c.l.b16 %v816
    %v1492 = vunpack.c.h.b16 %v816
    %v1493 = vunpack.c.l.b16 %v817
    %v1494 = vunpack.c.h.b16 %v817
    %v1495 = vunpack.c.l.b16 %v818
    %v1496 = vunpack.c.h.b16 %v818
    %v1497 = vunpack.c.l.b16 %v819
    %v1498 = vunpack.c.h.b16 %v819
    %v1499 = vunpack.c.l.b16 %v820
    %v1500 = vunpack.c.h.b16 %v820
    %v1501 = vunpack.c.l.b16 %v821
    %v1502 = vunpack.c.h.b16 %v821
    %v1503 = vunpack.c.l.b16 %v822
    %v1504 = vunpack.c.h.b16 %v822
    %v1505 = vunpack.c.l.b16 %v823
    %v1506 = vunpack.c.h.b16 %v823
    %v1507 = vunpack.c.l.b16 %v824
    %v1508 = vunpack.c.h.b16 %v824
    %v1509 = vunpack.c.l.b16 %v825
    %v1510 = vunpack.c.h.b16 %v825
    %v1511 = vunpack.c.l.b16 %v826
    %v1512 = vunpack.c.h.b16 %v826
    %v1513 = vunpack.c.l.b16 %v827
    %v1514 = vunpack.c.h.b16 %v827
    %v1515 = vunpack.c.l.b16 %v828
    %v1516 = vunpack.c.h.b16 %v828
    %v1517 = vunpack.c.l.b16 %v829
    %v1518 = vunpack.c.h.b16 %v829
    %v1519 = vunpack.c.l.b16 %v830
    %v1520 = vunpack.c.h.b16 %v830
    %v1521 = vunpack.c.l.b16 %v831
    %v1522 = vunpack.c.h.b16 %v831
    %v1523 = vunpack.c.l.b16 %v832
    %v1524 = vunpack.c.h.b16 %v832
    %v1525 = vunpack.c.l.b16 %v833
    %v1526 = vunpack.c.h.b16 %v833
    %v1527 = vunpack.c.l.b16 %v834
    %v1528 = vunpack.c.h.b16 %v834
    %v1529 = vunpack.c.l.b16 %v835
    %v1530 = vunpack.c.h.b16 %v835
    %v1531 = vunpack.c.l.b16 %v836
    %v1532 = vunpack.c.h.b16 %v836
    %v1533 = vunpack.c.l.b16 %v837
    %v1534 = vunpack.c.h.b16 %v837
    %v1535 = vunpack.c.l.b16 %v838
    %v1536 = vunpack.c.h.b16 %v838
    %v1537 = vunpack.c.l.b16 %v839
    %v1538 = vunpack.c.h.b16 %v839
    %v1539 = vunpack.c.l.b16 %v840
    %v1540 = vunpack.c.h.b16 %v840
    %v1541 = vunpack.c.l.b16 %v841
    %v1542 = vunpack.c.h.b16 %v841
    %v1543 = vunpack.c.l.b16 %v842
    %v1544 = vunpack.c.h.b16 %v842
    %v1545 = vunpack.c.l.b16 %v843
    %v1546 = vunpack.c.h.b16 %v843
    %v1547 = vunpack.c.l.b16 %v844
    %v1548 = vunpack.c.h.b16 %v844
    %v1549 = vunpack.c.l.b16 %v845
    %v1550 = vunpack.c.h.b16 %v845
    %v1551 = vunpack.c.l.b16 %v846
    %v1552 = vunpack.c.h.b16 %v846
    %v1553 = vunpack.c.l.b16 %v847
    %v1554 = vunpack.c.h.b16 %v847
    %v1555 = vunpack.c.l.b16 %v848
    %v1556 = vunpack.c.h.b16 %v848
    %v1557 = vunpack.c.l.b16 %v849
    %v1558 = vunpack.c.h.b16 %v849
    %v1559 = vunpack.c.l.b16 %v850
    %v1560 = vunpack.c.h.b16 %v850
    %v1561 = vunpack.c.l.b16 %v851
    %v1562 = vunpack.c.h.b16 %v851
    %v1563 = vunpack.c.l.b16 %v852
    %v1564 = vunpack.c.h.b16 %v852
    %v1565 = vunpack.c.l.b16 %v853
    %v1566 = vunpack.c.h.b16 %v853
    %v1567 = vunpack.c.l.b16 %v854
    %v1568 = vunpack.c.h.b16 %v854
    %v1569 = vunpack.c.l.b16 %v855
    %v1570 = vunpack.c.h.b16 %v855
    %v1571 = vunpack.c.l.b16 %v856
    %v1572 = vunpack.c.h.b16 %v856
    %v1573 = vunpack.c.l.b16 %v857
    %v1574 = vunpack.c.h.b16 %v857
    %v1575 = vunpack.c.l.b16 %v858
    %v1576 = vunpack.c.h.b16 %v858
    %v1577 = vunpack.c.l.b16 %v859
    %v1578 = vunpack.c.h.b16 %v859
    %v1579 = vunpack.c.l.b16 %v860
    %v1580 = vunpack.c.h.b16 %v860
    %v1581 = vunpack.c.l.b16 %v861
    %v1582 = vunpack.c.h.b16 %v861
    %v1583 = vunpack.c.l.b16 %v862
    %v1584 = vunpack.c.h.b16 %v862
    %v1585 = vunpack.c.l.b16 %v863
    %v1586 = vunpack.c.h.b16 %v863
    %v1587 = vunpack.c.l.b16 %v864
    %v1588 = vunpack.c.h.b16 %v864
    %v1589 = vunpack.c.l.b16 %v865
    %v1590 = vunpack.c.h.b16 %v865
    %v1591 = vunpack.c.l.b16 %v866
    %v1592 = vunpack.c.h.b16 %v866
    %v1593 = vunpack.c.l.b16 %v867
    %v1594 = vunpack.c.h.b16 %v867
    %v1595 = vunpack.c.l.b16 %v868
    %v1596 = vunpack.c.h.b16 %v868
    %v1597 = vunpack.c.l.b16 %v869
    %v1598 = vunpack.c.h.b16 %v869
    %v1599 = vunpack.c.l.b16 %v870
    %v1600 = vunpack.c.h.b16 %v870
    %v1601 = vunpack.c.l.b16 %v871
    %v1602 = vunpack.c.h.b16 %v871
    %v1603 = vunpack.c.l.b16 %v872
    %v1604 = vunpack.c.h.b16 %v872
    %v1605 = vunpack.c.l.b16 %v873
    %v1606 = vunpack.c.h.b16 %v873
    %v1607 = vunpack.c.l.b16 %v874
    %v1608 = vunpack.c.h.b16 %v874
    %v1609 = vunpack.c.l.b16 %v875
    %v1610 = vunpack.c.h.b16 %v875
    %v1611 = vunpack.c.l.b16 %v876
    %v1612 = vunpack.c.h.b16 %v876
    %v1613 = vunpack.c.l.b16 %v877
    %v1614 = vunpack.c.h.b16 %v877
    %v1615 = vunpack.c.l.b16 %v878
    %v1616 = vunpack.c.h.b16 %v878
    %v1617 = vunpack.c.l.b16 %v879
    %v1618 = vunpack.c.h.b16 %v879
    %v1619 = vunpack.c.l.b16 %v880
    %v1620 = vunpack.c.h.b16 %v880
    %v1621 = vunpack.c.l.b16 %v881
    %v1622 = vunpack.c.h.b16 %v881
    %v1623 = vunpack.c.l.b16 %v882
    %v1624 = vunpack.c.h.b16 %v882
    %v1625 = vunpack.c.l.b16 %v883
    %v1626 = vunpack.c.h.b16 %v883
    %v1627 = vunpack.c.l.b16 %v884
    %v1628 = vunpack.c.h.b16 %v884
    %v1629 = vunpack.c.l.b16 %v885
    %v1630 = vunpack.c.h.b16 %v885
    %v1631 = vunpack.c.l.b16 %v886
    %v1632 = vunpack.c.h.b16 %v886
    %v1633 = vunpack.c.l.b16 %v887
    %v1634 = vunpack.c.h.b16 %v887
    %v1635 = vunpack.c.l.b16 %v888
    %v1636 = vunpack.c.h.b16 %v888
    %v1637 = vunpack.c.l.b16 %v889
    %v1638 = vunpack.c.h.b16 %v889
    %v1639 = vunpack.c.l.b16 %v890
    %v1640 = vunpack.c.h.b16 %v890
    %v1641 = vunpack.c.l.b16 %v891
    %v1642 = vunpack.c.h.b16 %v891
    %v1643 = vunpack.c.l.b16 %v892
    %v1644 = vunpack.c.h.b16 %v892
    %v1645 = vunpack.c.l.b16 %v893
    %v1646 = vunpack.c.h.b16 %v893
    %v1647 = vunpack.c.l.b16 %v894
    %v1648 = vunpack.c.h.b16 %v894
    %v1649 = vunpack.c.l.b16 %v895
    %v1650 = vunpack.c.h.b16 %v895
    %v1651 = vunpack.c.l.b16 %v896
    %v1652 = vunpack.c.h.b16 %v896
    %v1653 = vunpack.c.l.b16 %v897
    %v1654 = vunpack.c.h.b16 %v897
    %v1655 = vunpack.c.l.b16 %v898
    %v1656 = vunpack.c.h.b16 %v898
    %v1657 = vunpack.c.l.b16 %v899
    %v1658 = vunpack.c.h.b16 %v899
    %v1659 = vunpack.c.l.b16 %v900
    %v1660 = vunpack.c.h.b16 %v900
    %v1661 = vunpack.c.l.b16 %v901
    %v1662 = vunpack.c.h.b16 %v901
    %v1663 = vunpack.c.l.b16 %v902
    %v1664 = vunpack.c.h.b16 %v902
    %v1665 = vunpack.c.l.b16 %v903
    %v1666 = vunpack.c.h.b16 %v903
    %v1667 = vunpack.c.l.b16 %v904
    %v1668 = vunpack.c.h.b16 %v904
    %v1669 = vunpack.c.l.b16 %v905
    %v1670 = vunpack.c.h.b16 %v905
    %v1671 = vunpack.c.l.b16 %v906
    %v1672 = vunpack.c.h.b16 %v906
    %v1673 = vunpack.c.l.b16 %v907
    %v1674 = vunpack.c.h.b16 %v907
    %v1675 = vunpack.c.l.b16 %v908
    %v1676 = vunpack.c.h.b16 %v908
    %v1677 = vpack.c.b16 %v1181, %v1165
    %v1678 = vpack.c.b16 %v1182, %v1166
    %v1679 = vpack.c.b16 %v1183, %v1167
    %v1680 = vpack.c.b16 %v1184, %v1168
    %v1681 = vpack.c.b16 %v1185, %v1169
    %v1682 = vpack.c.b16 %v1186, %v1170
    %v1683 = vpack.c.b16 %v1187, %v1171
    %v1684 = vpack.c.b16 %v1188, %v1172
    %v1685 = vpack.c.b16 %v1189, %v1173
    %v1686 = vpack.c.b16 %v1190, %v1174
    %v1687 = vpack.c.b16 %v1191, %v1175
    %v1688 = vpack.c.b16 %v1192, %v1176
    %v1689 = vpack.c.b16 %v1193, %v1177
    %v1690 = vpack.c.b16 %v1194, %v1178
    %v1691 = vpack.c.b16 %v1195, %v1179
    %v1692 = vpack.c.b16 %v1196, %v1180
    %v1693 = vpack.c.b16 %v1213, %v1197
    %v1694 = vpack.c.b16 %v1214, %v1198
    %v1695 = vpack.c.b16 %v1215, %v1199
    %v1696 = vpack.c.b16 %v1216, %v1200
    %v1697 = vpack.c.b16 %v1217, %v1201
    %v1698 = vpack.c.b16 %v1218, %v1202
    %v1699 = vpack.c.b16 %v1219, %v1203
    %v1700 = vpack.c.b16 %v1220, %v1204
    %v1701 = vpack.c.b16 %v1221, %v1205
    %v1702 = vpack.c.b16 %v1222, %v1206
    %v1703 = vpack.c.b16 %v1223, %v1207
    %v1704 = vpack.c.b16 %v1224, %v1208
    %v1705 = vpack.c.b16 %v1225, %v1209
    %v1706 = vpack.c.b16 %v1226, %v1210
    %v1707 = vpack.c.b16 %v1227, %v1211
    %v1708 = vpack.c.b16 %v1228, %v1212
    %v1709 = vpack.c.b16 %v1245, %v1229
    %v1710 = vpack.c.b16 %v1246, %v1230
    %v1711 = vpack.c.b16 %v1247, %v1231
    %v1712 = vpack.c.b16 %v1248, %v1232
    %v1713 = vpack.c.b16 %v1249, %v1233
    %v1714 = vpack.c.b16 %v1250, %v1234
    %v1715 = vpack.c.b16 %v1251, %v1235
    %v1716 = vpack.c.b16 %v1252, %v1236
    %v1717 = vpack.c.b16 %v1253, %v1237
    %v1718 = vpack.c.b16 %v1254, %v1238
    %v1719 = vpack.c.b16 %v1255, %v1239
    %v1720 = vpack.c.b16 %v1256, %v1240
    %v1721 = vpack.c.b16 %v1257, %v1241
    %v1722 = vpack.c.b16 %v1258, %v1242
    %v1723 = vpack.c.b16 %v1259, %v1243
    %v1724 = vpack.c.b16 %v1260, %v1244
    %v1725 = vpack.c.b16 %v1277, %v1261
    %v1726 = vpack.c.b16 %v1278, %v1262
    %v1727 = vpack.c.b16 %v1279, %v1263
    %v1728 = vpack.c.b16 %v1280, %v1264
    %v1729 = vpack.c.b16 %v1281, %v1265
    %v1730 = vpack.c.b16 %v1282, %v1266
    %v1731 = vpack.c.b16 %v1283, %v1267
    %v1732 = vpack.c.b16 %v1284, %v1268
    %v1733 = vpack.c.b16 %v1285, %v1269
    %v1734 = vpack.c.b16 %v1286, %v1270
    %v1735 = vpack.c.b16 %v1287, %v1271
    %v1736 = vpack.c.b16 %v1288, %v1272
    %v1737 = vpack.c.b16 %v1289, %v1273
    %v1738 = vpack.c.b16 %v1290, %v1274
    %v1739 = vpack.c.b16 %v1291, %v1275
    %v1740 = vpack.c.b16 %v1292, %v1276
    %v1741 = vpack.c.b16 %v1309, %v1293
    %v1742 = vpack.c.b16 %v1310, %v1294
    %v1743 = vpack.c.b16 %v1311, %v1295
    %v1744 = vpack.c.b16 %v1312, %v1296
    %v1745 = vpack.c.b16 %v1313, %v1297
    %v1746 = vpack.c.b16 %v1314, %v1298
    %v1747 = vpack.c.b16 %v1315, %v1299
    %v1748 = vpack.c.b16 %v1316, %v1300
    %v1749 = vpack.c.b16 %v1317, %v1301
    %v1750 = vpack.c.b16 %v1318, %v1302
    %v1751 = vpack.c.b16 %v1319, %v1303
    %v1752 = vpack.c.b16 %v1320, %v1304
    %v1753 = vpack.c.b16 %v1321, %v1305
    %v1754 = vpack.c.b16 %v1322, %v1306
    %v1755 = vpack.c.b16 %v1323, %v1307
    %v1756 = vpack.c.b16 %v1324, %v1308
    %v1757 = vpack.c.b16 %v1341, %v1325
    %v1758 = vpack.c.b16 %v1342, %v1326
    %v1759 = vpack.c.b16 %v1343, %v1327
    %v1760 = vpack.c.b16 %v1344, %v1328
    %v1761 = vpack.c.b16 %v1345, %v1329
    %v1762 = vpack.c.b16 %v1346, %v1330
    %v1763 = vpack.c.b16 %v1347, %v1331
    %v1764 = vpack.c.b16 %v1348, %v1332
    %v1765 = vpack.c.b16 %v1349, %v1333
    %v1766 = vpack.c.b16 %v1350, %v1334
    %v1767 = vpack.c.b16 %v1351, %v1335
    %v1768 = vpack.c.b16 %v1352, %v1336
    %v1769 = vpack.c.b16 %v1353, %v1337
    %v1770 = vpack.c.b16 %v1354, %v1338
    %v1771 = vpack.c.b16 %v1355, %v1339
    %v1772 = vpack.c.b16 %v1356, %v1340
    %v1773 = vpack.c.b16 %v1373, %v1357
    %v1774 = vpack.c.b16 %v1374, %v1358
    %v1775 = vpack.c.b16 %v1375, %v1359
    %v1776 = vpack.c.b16 %v1376, %v1360
    %v1777 = vpack.c.b16 %v1377, %v1361
    %v1778 = vpack.c.b16 %v1378, %v1362
    %v1779 = vpack.c.b16 %v1379, %v1363
    %v1780 = vpack.c.b16 %v1380, %v1364
    %v1781 = vpack.c.b16 %v1381, %v1365
    %v1782 = vpack.c.b16 %v1382, %v1366
    %v1783 = vpack.c.b16 %v1383, %v1367
    %v1784 = vpack.c.b16 %v1384, %v1368
    %v1785 = vpack.c.b16 %v1385, %v1369
    %v1786 = vpack.c.b16 %v1386, %v1370
    %v1787 = vpack.c.b16 %v1387, %v1371
    %v1788 = vpack.c.b16 %v1388, %v1372
    %v1789 = vpack.c.b16 %v1405, %v1389
    %v1790 = vpack.c.b16 %v1406, %v1390
    %v1791 = vpack.c.b16 %v1407, %v1391
    %v1792 = vpack.c.b16 %v1408, %v1392
    %v1793 = vpack.c.b16 %v1409, %v1393
    %v1794 = vpack.c.b16 %v1410, %v1394
    %v1795 = vpack.c.b16 %v1411, %v1395
    %v1796 = vpack.c.b16 %v1412, %v1396
    %v1797 = vpack.c.b16 %v1413, %v1397
    %v1798 = vpack.c.b16 %v1414, %v1398
    %v1799 = vpack.c.b16 %v1415, %v1399
    %v1800 = vpack.c.b16 %v1416, %v1400
    %v1801 = vpack.c.b16 %v1417, %v1401
    %v1802 = vpack.c.b16 %v1418, %v1402
    %v1803 = vpack.c.b16 %v1419, %v1403
    %v1804 = vpack.c.b16 %v1420, %v1404
    %v1805 = vpack.c.b16 %v1437, %v1421
    %v1806 = vpack.c.b16 %v1438, %v1422
    %v1807 = vpack.c.b16 %v1439, %v1423
    %v1808 = vpack.c.b16 %v1440, %v1424
    %v1809 = vpack.c.b16 %v1441, %v1425
    %v1810 = vpack.c.b16 %v1442, %v1426
    %v1811 = vpack.c.b16 %v1443, %v1427
    %v1812 = vpack.c.b16 %v1444, %v1428
    %v1813 = vpack.c.b16 %v1445, %v1429
    %v1814 = vpack.c.b16 %v1446, %v1430
    %v1815 = vpack.c.b16 %v1447, %v1431
    %v1816 = vpack.c.b16 %v1448, %v1432
    %v1817 = vpack.c.b16 %v1449, %v1433
    %v1818 = vpack.c.b16 %v1450, %v1434
    %v1819 = vpack.c.b16 %v1451, %v1435
    %v1820 = vpack.c.b16 %v1452, %v1436
    %v1821 = vpack.c.b16 %v1469, %v1453
    %v1822 = vpack.c.b16 %v1470, %v1454
    %v1823 = vpack.c.b16 %v1471, %v1455
    %v1824 = vpack.c.b16 %v1472, %v1456
    %v1825 = vpack.c.b16 %v1473, %v1457
    %v1826 = vpack.c.b16 %v1474, %v1458
    %v1827 = vpack.c.b16 %v1475, %v1459
    %v1828 = vpack.c.b16 %v1476, %v1460
    %v1829 = vpack.c.b16 %v1477, %v1461
    %v1830 = vpack.c.b16 %v1478, %v1462
    %v1831 = vpack.c.b16 %v1479, %v1463
    %v1832 = vpack.c.b16 %v1480, %v1464
    %v1833 = vpack.c.b16 %v1481, %v1465
    %v1834 = vpack.c.b16 %v1482, %v1466
    %v1835 = vpack.c.b16 %v1483, %v1467
    %v1836 = vpack.c.b16 %v1484, %v1468
    %v1837 = vpack.c.b16 %v1501, %v1485
    %v1838 = vpack.c.b16 %v1502, %v1486
    %v1839 = vpack.c.b16 %v1503, %v1487
    %v1840 = vpack.c.b16 %v1504, %v1488
    %v1841 = vpack.c.b16 %v1505, %v1489
    %v1842 = vpack.c.b16 %v1506, %v1490
    %v1843 = vpack.c.b16 %v1507, %v1491
    %v1844 = vpack.c.b16 %v1508, %v1492
    %v1845 = vpack.c.b16 %v1509, %v1493
    %v1846 = vpack.c.b16 %v1510, %v1494
    %v1847 = vpack.c.b16 %v1511, %v1495
    %v1848 = vpack.c.b16 %v1512, %v1496
    %v1849 = vpack.c.b16 %v1513, %v1497
    %v1850 = vpack.c.b16 %v1514, %v1498
    %v1851 = vpack.c.b16 %v1515, %v1499
    %v1852 = vpack.c.b16 %v1516, %v1500
    %v1853 = vpack.c.b16 %v1533, %v1517
    %v1854 = vpack.c.b16 %v1534, %v1518
    %v1855 = vpack.c.b16 %v1535, %v1519
    %v1856 = vpack.c.b16 %v1536, %v1520
    %v1857 = vpack.c.b16 %v1537, %v1521
    %v1858 = vpack.c.b16 %v1538, %v1522
    %v1859 = vpack.c.b16 %v1539, %v1523
    %v1860 = vpack.c.b16 %v1540, %v1524
    %v1861 = vpack.c.b16 %v1541, %v1525
    %v1862 = vpack.c.b16 %v1542, %v1526
    %v1863 = vpack.c.b16 %v1543, %v1527
    %v1864 = vpack.c.b16 %v1544, %v1528
    %v1865 = vpack.c.b16 %v1545, %v1529
    %v1866 = vpack.c.b16 %v1546, %v1530
    %v1867 = vpack.c.b16 %v1547, %v1531
    %v1868 = vpack.c.b16 %v1548, %v1532
    %v1869 = vpack.c.b16 %v1565, %v1549
    %v1870 = vpack.c.b16 %v1566, %v1550
    %v1871 = vpack.c.b16 %v1567, %v1551
    %v1872 = vpack.c.b16 %v1568, %v1552
    %v1873 = vpack.c.b16 %v1569, %v1553
    %v1874 = vpack.c.b16 %v1570, %v1554
    %v1875 = vpack.c.b16 %v1571, %v1555
    %v1876 = vpack.c.b16 %v1572, %v1556
    %v1877 = vpack.c.b16 %v1573, %v1557
    %v1878 = vpack.c.b16 %v1574, %v1558
    %v1879 = vpack.c.b16 %v1575, %v1559
    %v1880 = vpack.c.b16 %v1576, %v1560
    %v1881 = vpack.c.b16 %v1577, %v1561
    %v1882 = vpack.c.b16 %v1578, %v1562
    %v1883 = vpack.c.b16 %v1579, %v1563
    %v1884 = vpack.c.b16 %v1580, %v1564
    %v1885 = vpack.c.b16 %v1597, %v1581
    %v1886 = vpack.c.b16 %v1598, %v1582
    %v1887 = vpack.c.b16 %v1599, %v1583
    %v1888 = vpack.c.b16 %v1600, %v1584
    %v1889 = vpack.c.b16 %v1601, %v1585
    %v1890 = vpack.c.b16 %v1602, %v1586
    %v1891 = vpack.c.b16 %v1603, %v1587
    %v1892 = vpack.c.b16 %v1604, %v1588
    %v1893 = vpack.c.b16 %v1605, %v1589
    %v1894 = vpack.c.b16 %v1606, %v1590
    %v1895 = vpack.c.b16 %v1607, %v1591
    %v1896 = vpack.c.b16 %v1608, %v1592
    %v1897 = vpack.c.b16 %v1609, %v1593
    %v1898 = vpack.c.b16 %v1610, %v1594
    %v1899 = vpack.c.b16 %v1611, %v1595
    %v1900 = vpack.c.b16 %v1612, %v1596
    %v1901 = vpack.c.b16 %v1629, %v1613
    %v1902 = vpack.c.b16 %v1630, %v1614
    %v1903 = vpack.c.b16 %v1631, %v1615
    %v1904 = vpack.c.b16 %v1632, %v1616
    %v1905 = vpack.c.b16 %v1633, %v1617
    %v1906 = vpack.c.b16 %v1634, %v1618
    %v1907 = vpack.c.b16 %v1635, %v1619
    %v1908 = vpack.c.b16 %v1636, %v1620
    %v1909 = vpack.c.b16 %v1637, %v1621
    %v1910 = vpack.c.b16 %v1638, %v1622
    %v1911 = vpack.c.b16 %v1639, %v1623
    %v1912 = vpack.c.b16 %v1640, %v1624
    %v1913 = vpack.c.b16 %v1641, %v1625
    %v1914 = vpack.c.b16 %v1642, %v1626
    %v1915 = vpack.c.b16 %v1643, %v1627
    %v1916 = vpack.c.b16 %v1644, %v1628
    %v1917 = vpack.c.b16 %v1661, %v1645
    %v1918 = vpack.c.b16 %v1662, %v1646
    %v1919 = vpack.c.b16 %v1663, %v1647
    %v1920 = vpack.c.b16 %v1664, %v1648
    %v1921 = vpack.c.b16 %v1665, %v1649
    %v1922 = vpack.c.b16 %v1666, %v1650
    %v1923 = vpack.c.b16 %v1667, %v1651
    %v1924 = vpack.c.b16 %v1668, %v1652
    %v1925 = vpack.c.b16 %v1669, %v1653
    %v1926 = vpack.c.b16 %v1670, %v1654
    %v1927 = vpack.c.b16 %v1671, %v1655
    %v1928 = vpack.c.b16 %v1672, %v1656
    %v1929 = vpack.c.b16 %v1673, %v1657
    %v1930 = vpack.c.b16 %v1674, %v1658
    %v1931 = vpack.c.b16 %v1675, %v1659
    %v1932 = vpack.c.b16 %v1676, %v1660
    %2189 = vmatprep.subr.bf16.mxu0 %v1678
    %2190 = vmatpush1.bf16.msra.mxu0 %v1677
    %2191 = vmatprep.subr.bf16.mxu0 %v1694
    %2192 = vmatpush1.bf16.msra.mxu0 %v1693
    %2193 = vmatprep.subr.bf16.mxu0 %v1710
    %2194 = vmatpush1.bf16.msra.mxu0 %v1709
    %2195 = vmatprep.subr.bf16.mxu0 %v1726
    %2196 = vmatpush1.bf16.msra.mxu0 %v1725
    %2197 = vmatprep.subr.bf16.mxu0 %v1742
    %2198 = vmatpush1.bf16.msra.mxu0 %v1741
    %2199 = vmatprep.subr.bf16.mxu0 %v1758
    %2200 = vmatpush1.bf16.msra.mxu0 %v1757
    %2201 = vmatprep.subr.bf16.mxu0 %v1774
    %2202 = vmatpush1.bf16.msra.mxu0 %v1773
    %2203 = vmatprep.subr.bf16.mxu0 %v1790
    %2204 = vmatpush1.bf16.msra.mxu0 %v1789
    %2205 = vmatprep.subr.bf16.mxu0 %v1806
    %2206 = vmatpush1.bf16.msra.mxu0 %v1805
    %2207 = vmatprep.subr.bf16.mxu0 %v1822
    %2208 = vmatpush1.bf16.msra.mxu0 %v1821
    %2209 = vmatprep.subr.bf16.mxu0 %v1838
    %2210 = vmatpush1.bf16.msra.mxu0 %v1837
    %2211 = vmatprep.subr.bf16.mxu0 %v1854
    %2212 = vmatpush1.bf16.msra.mxu0 %v1853
    %2213 = vmatprep.subr.bf16.mxu0 %v1870
    %2214 = vmatpush1.bf16.msra.mxu0 %v1869
    %2215 = vmatprep.subr.bf16.mxu0 %v1886
    %2216 = vmatpush1.bf16.msra.mxu0 %v1885
    %2217 = vmatprep.subr.bf16.mxu0 %v1902
    %2218 = vmatpush1.bf16.msra.mxu0 %v1901
    %2219 = vmatprep.subr.bf16.mxu0 %v1918
    %2220 = vmatpush1.bf16.msra.mxu0 %v1917
    %2221 = vmatprep.mubr.bf16.mxu0 %v652
    %2222 = vmatmul.mubr.bf16.gmra.mrb[0].mxu0 %v651
    %v2223 = vpop.f32.mrb[0].mxu0
    %v2224 = vadd.f32 0.0, %v2223
    %v2225 = vpop.f32.mrb[0].mxu0
    %v2226 = vadd.f32 0.0, %v2225
    %v2227 = vpop.f32.mrb[0].mxu0
    %v2228 = vpop.f32.mrb[0].mxu0
    %2229 = vdwg.mxu0
    %2230 = vmatprep.subr.bf16.mxu0 %v1680
    %2231 = vmatpush1.bf16.msra.mxu0 %v1679
    %2232 = vmatprep.subr.bf16.mxu0 %v1696
    %2233 = vmatpush1.bf16.msra.mxu0 %v1695
    %2234 = vmatprep.subr.bf16.mxu0 %v1712
    %2235 = vmatpush1.bf16.msra.mxu0 %v1711
    %2236 = vmatprep.subr.bf16.mxu0 %v1728
    %2237 = vmatpush1.bf16.msra.mxu0 %v1727
    %2238 = vmatprep.subr.bf16.mxu0 %v1744
    %2239 = vmatpush1.bf16.msra.mxu0 %v1743
    %2240 = vmatprep.subr.bf16.mxu0 %v1760
    %2241 = vmatpush1.bf16.msra.mxu0 %v1759
    %2242 = vmatprep.subr.bf16.mxu0 %v1776
    %2243 = vmatpush1.bf16.msra.mxu0 %v1775
    %2244 = vmatprep.subr.bf16.mxu0 %v1792
    %2245 = vmatpush1.bf16.msra.mxu0 %v1791
    %2246 = vmatprep.subr.bf16.mxu0 %v1808
    %2247 = vmatpush1.bf16.msra.mxu0 %v1807
    %2248 = vmatprep.subr.bf16.mxu0 %v1824
    %2249 = vmatpush1.bf16.msra.mxu0 %v1823
    %2250 = vmatprep.subr.bf16.mxu0 %v1840
    %2251 = vmatpush1.bf16.msra.mxu0 %v1839
    %2252 = vmatprep.subr.bf16.mxu0 %v1856
    %2253 = vmatpush1.bf16.msra.mxu0 %v1855
    %2254 = vmatprep.subr.bf16.mxu0 %v1872
    %2255 = vmatpush1.bf16.msra.mxu0 %v1871
    %2256 = vmatprep.subr.bf16.mxu0 %v1888
    %2257 = vmatpush1.bf16.msra.mxu0 %v1887
    %2258 = vmatprep.subr.bf16.mxu0 %v1904
    %2259 = vmatpush1.bf16.msra.mxu0 %v1903
    %2260 = vmatprep.subr.bf16.mxu0 %v1920
    %2261 = vmatpush1.bf16.msra.mxu0 %v1919
    %2262 = vmatprep.mubr.bf16.mxu0 %v652
    %2263 = vmatmul.mubr.bf16.gmra.mrb[0].mxu0 %v651
    %v2264 = vpop.f32.mrb[0].mxu0
    %v2265 = vadd.f32 0.0, %v2264
    %v2266 = vpop.f32.mrb[0].mxu0
    %v2267 = vadd.f32 0.0, %v2266
    %v2268 = vpop.f32.mrb[0].mxu0
    %v2269 = vpop.f32.mrb[0].mxu0
    %2270 = vdwg.mxu0
    %2271 = vmatprep.subr.bf16.mxu0 %v1682
    %2272 = vmatpush1.bf16.msra.mxu0 %v1681
    %2273 = vmatprep.subr.bf16.mxu0 %v1698
    %2274 = vmatpush1.bf16.msra.mxu0 %v1697
    %2275 = vmatprep.subr.bf16.mxu0 %v1714
    %2276 = vmatpush1.bf16.msra.mxu0 %v1713
    %2277 = vmatprep.subr.bf16.mxu0 %v1730
    %2278 = vmatpush1.bf16.msra.mxu0 %v1729
    %2279 = vmatprep.subr.bf16.mxu0 %v1746
    %2280 = vmatpush1.bf16.msra.mxu0 %v1745
    %2281 = vmatprep.subr.bf16.mxu0 %v1762
    %2282 = vmatpush1.bf16.msra.mxu0 %v1761
    %2283 = vmatprep.subr.bf16.mxu0 %v1778
    %2284 = vmatpush1.bf16.msra.mxu0 %v1777
    %2285 = vmatprep.subr.bf16.mxu0 %v1794
    %2286 = vmatpush1.bf16.msra.mxu0 %v1793
    %2287 = vmatprep.subr.bf16.mxu0 %v1810
    %2288 = vmatpush1.bf16.msra.mxu0 %v1809
    %2289 = vmatprep.subr.bf16.mxu0 %v1826
    %2290 = vmatpush1.bf16.msra.mxu0 %v1825
    %2291 = vmatprep.subr.bf16.mxu0 %v1842
    %2292 = vmatpush1.bf16.msra.mxu0 %v1841
    %2293 = vmatprep.subr.bf16.mxu0 %v1858
    %2294 = vmatpush1.bf16.msra.mxu0 %v1857
    %2295 = vmatprep.subr.bf16.mxu0 %v1874
    %2296 = vmatpush1.bf16.msra.mxu0 %v1873
    %2297 = vmatprep.subr.bf16.mxu0 %v1890
    %2298 = vmatpush1.bf16.msra.mxu0 %v1889
    %2299 = vmatprep.subr.bf16.mxu0 %v1906
    %2300 = vmatpush1.bf16.msra.mxu0 %v1905
    %2301 = vmatprep.subr.bf16.mxu0 %v1922
    %2302 = vmatpush1.bf16.msra.mxu0 %v1921
    %2303 = vmatprep.mubr.bf16.mxu0 %v652
    %2304 = vmatmul.mubr.bf16.gmra.mrb[0].mxu0 %v651
    %v2305 = vpop.f32.mrb[0].mxu0
    %v2306 = vadd.f32 0.0, %v2305
    %v2307 = vpop.f32.mrb[0].mxu0
    %v2308 = vadd.f32 0.0, %v2307
    %v2309 = vpop.f32.mrb[0].mxu0
    %v2310 = vpop.f32.mrb[0].mxu0
    %2311 = vdwg.mxu0
    %2312 = vmatprep.subr.bf16.mxu0 %v1684
    %2313 = vmatpush1.bf16.msra.mxu0 %v1683
    %2314 = vmatprep.subr.bf16.mxu0 %v1700
    %2315 = vmatpush1.bf16.msra.mxu0 %v1699
    %2316 = vmatprep.subr.bf16.mxu0 %v1716
    %2317 = vmatpush1.bf16.msra.mxu0 %v1715
    %2318 = vmatprep.subr.bf16.mxu0 %v1732
    %2319 = vmatpush1.bf16.msra.mxu0 %v1731
    %2320 = vmatprep.subr.bf16.mxu0 %v1748
    %2321 = vmatpush1.bf16.msra.mxu0 %v1747
    %2322 = vmatprep.subr.bf16.mxu0 %v1764
    %2323 = vmatpush1.bf16.msra.mxu0 %v1763
    %2324 = vmatprep.subr.bf16.mxu0 %v1780
    %2325 = vmatpush1.bf16.msra.mxu0 %v1779
    %2326 = vmatprep.subr.bf16.mxu0 %v1796
    %2327 = vmatpush1.bf16.msra.mxu0 %v1795
    %2328 = vmatprep.subr.bf16.mxu0 %v1812
    %2329 = vmatpush1.bf16.msra.mxu0 %v1811
    %2330 = vmatprep.subr.bf16.mxu0 %v1828
    %2331 = vmatpush1.bf16.msra.mxu0 %v1827
    %2332 = vmatprep.subr.bf16.mxu0 %v1844
    %2333 = vmatpush1.bf16.msra.mxu0 %v1843
    %2334 = vmatprep.subr.bf16.mxu0 %v1860
    %2335 = vmatpush1.bf16.msra.mxu0 %v1859
    %2336 = vmatprep.subr.bf16.mxu0 %v1876
    %2337 = vmatpush1.bf16.msra.mxu0 %v1875
    %2338 = vmatprep.subr.bf16.mxu0 %v1892
    %2339 = vmatpush1.bf16.msra.mxu0 %v1891
    %2340 = vmatprep.subr.bf16.mxu0 %v1908
    %2341 = vmatpush1.bf16.msra.mxu0 %v1907
    %2342 = vmatprep.subr.bf16.mxu0 %v1924
    %2343 = vmatpush1.bf16.msra.mxu0 %v1923
    %2344 = vmatprep.mubr.bf16.mxu0 %v652
    %2345 = vmatmul.mubr.bf16.gmra.mrb[0].mxu0 %v651
    %v2346 = vpop.f32.mrb[0].mxu0
    %v2347 = vadd.f32 0.0, %v2346
    %v2348 = vpop.f32.mrb[0].mxu0
    %v2349 = vadd.f32 0.0, %v2348
    %v2350 = vpop.f32.mrb[0].mxu0
    %v2351 = vpop.f32.mrb[0].mxu0
    %2352 = vdwg.mxu0
    %2353 = vmatprep.subr.bf16.mxu0 %v1686
    %2354 = vmatpush1.bf16.msra.mxu0 %v1685
    %2355 = vmatprep.subr.bf16.mxu0 %v1702
    %2356 = vmatpush1.bf16.msra.mxu0 %v1701
    %2357 = vmatprep.subr.bf16.mxu0 %v1718
    %2358 = vmatpush1.bf16.msra.mxu0 %v1717
    %2359 = vmatprep.subr.bf16.mxu0 %v1734
    %2360 = vmatpush1.bf16.msra.mxu0 %v1733
    %2361 = vmatprep.subr.bf16.mxu0 %v1750
    %2362 = vmatpush1.bf16.msra.mxu0 %v1749
    %2363 = vmatprep.subr.bf16.mxu0 %v1766
    %2364 = vmatpush1.bf16.msra.mxu0 %v1765
    %2365 = vmatprep.subr.bf16.mxu0 %v1782
    %2366 = vmatpush1.bf16.msra.mxu0 %v1781
    %2367 = vmatprep.subr.bf16.mxu0 %v1798
    %2368 = vmatpush1.bf16.msra.mxu0 %v1797
    %2369 = vmatprep.subr.bf16.mxu0 %v1814
    %2370 = vmatpush1.bf16.msra.mxu0 %v1813
    %2371 = vmatprep.subr.bf16.mxu0 %v1830
    %2372 = vmatpush1.bf16.msra.mxu0 %v1829
    %2373 = vmatprep.subr.bf16.mxu0 %v1846
    %2374 = vmatpush1.bf16.msra.mxu0 %v1845
    %2375 = vmatprep.subr.bf16.mxu0 %v1862
    %2376 = vmatpush1.bf16.msra.mxu0 %v1861
    %2377 = vmatprep.subr.bf16.mxu0 %v1878
    %2378 = vmatpush1.bf16.msra.mxu0 %v1877
    %2379 = vmatprep.subr.bf16.mxu0 %v1894
    %2380 = vmatpush1.bf16.msra.mxu0 %v1893
    %2381 = vmatprep.subr.bf16.mxu0 %v1910
    %2382 = vmatpush1.bf16.msra.mxu0 %v1909
    %2383 = vmatprep.subr.bf16.mxu0 %v1926
    %2384 = vmatpush1.bf16.msra.mxu0 %v1925
    %2385 = vmatprep.mubr.bf16.mxu0 %v652
    %2386 = vmatmul.mubr.bf16.gmra.mrb[0].mxu0 %v651
    %v2387 = vpop.f32.mrb[0].mxu0
    %v2388 = vadd.f32 0.0, %v2387
    %v2389 = vpop.f32.mrb[0].mxu0
    %v2390 = vadd.f32 0.0, %v2389
    %v2391 = vpop.f32.mrb[0].mxu0
    %v2392 = vpop.f32.mrb[0].mxu0
    %2393 = vdwg.mxu0
    %2394 = vmatprep.subr.bf16.mxu0 %v1688
    %2395 = vmatpush1.bf16.msra.mxu0 %v1687
    %2396 = vmatprep.subr.bf16.mxu0 %v1704
    %2397 = vmatpush1.bf16.msra.mxu0 %v1703
    %2398 = vmatprep.subr.bf16.mxu0 %v1720
    %2399 = vmatpush1.bf16.msra.mxu0 %v1719
    %2400 = vmatprep.subr.bf16.mxu0 %v1736
    %2401 = vmatpush1.bf16.msra.mxu0 %v1735
    %2402 = vmatprep.subr.bf16.mxu0 %v1752
    %2403 = vmatpush1.bf16.msra.mxu0 %v1751
    %2404 = vmatprep.subr.bf16.mxu0 %v1768
    %2405 = vmatpush1.bf16.msra.mxu0 %v1767
    %2406 = vmatprep.subr.bf16.mxu0 %v1784
    %2407 = vmatpush1.bf16.msra.mxu0 %v1783
    %2408 = vmatprep.subr.bf16.mxu0 %v1800
    %2409 = vmatpush1.bf16.msra.mxu0 %v1799
    %2410 = vmatprep.subr.bf16.mxu0 %v1816
    %2411 = vmatpush1.bf16.msra.mxu0 %v1815
    %2412 = vmatprep.subr.bf16.mxu0 %v1832
    %2413 = vmatpush1.bf16.msra.mxu0 %v1831
    %2414 = vmatprep.subr.bf16.mxu0 %v1848
    %2415 = vmatpush1.bf16.msra.mxu0 %v1847
    %2416 = vmatprep.subr.bf16.mxu0 %v1864
    %2417 = vmatpush1.bf16.msra.mxu0 %v1863
    %2418 = vmatprep.subr.bf16.mxu0 %v1880
    %2419 = vmatpush1.bf16.msra.mxu0 %v1879
    %2420 = vmatprep.subr.bf16.mxu0 %v1896
    %2421 = vmatpush1.bf16.msra.mxu0 %v1895
    %2422 = vmatprep.subr.bf16.mxu0 %v1912
    %2423 = vmatpush1.bf16.msra.mxu0 %v1911
    %2424 = vmatprep.subr.bf16.mxu0 %v1928
    %2425 = vmatpush1.bf16.msra.mxu0 %v1927
    %2426 = vmatprep.mubr.bf16.mxu0 %v652
    %2427 = vmatmul.mubr.bf16.gmra.mrb[0].mxu0 %v651
    %v2428 = vpop.f32.mrb[0].mxu0
    %v2429 = vadd.f32 0.0, %v2428
    %v2430 = vpop.f32.mrb[0].mxu0
    %v2431 = vadd.f32 0.0, %v2430
    %v2432 = vpop.f32.mrb[0].mxu0
    %v2433 = vpop.f32.mrb[0].mxu0
    %2434 = vdwg.mxu0
    %2435 = vmatprep.subr.bf16.mxu0 %v1690
    %2436 = vmatpush1.bf16.msra.mxu0 %v1689
    %2437 = vmatprep.subr.bf16.mxu0 %v1706
    %2438 = vmatpush1.bf16.msra.mxu0 %v1705
    %2439 = vmatprep.subr.bf16.mxu0 %v1722
    %2440 = vmatpush1.bf16.msra.mxu0 %v1721
    %2441 = vmatprep.subr.bf16.mxu0 %v1738
    %2442 = vmatpush1.bf16.msra.mxu0 %v1737
    %2443 = vmatprep.subr.bf16.mxu0 %v1754
    %2444 = vmatpush1.bf16.msra.mxu0 %v1753
    %2445 = vmatprep.subr.bf16.mxu0 %v1770
    %2446 = vmatpush1.bf16.msra.mxu0 %v1769
    %2447 = vmatprep.subr.bf16.mxu0 %v1786
    %2448 = vmatpush1.bf16.msra.mxu0 %v1785
    %2449 = vmatprep.subr.bf16.mxu0 %v1802
    %2450 = vmatpush1.bf16.msra.mxu0 %v1801
    %2451 = vmatprep.subr.bf16.mxu0 %v1818
    %2452 = vmatpush1.bf16.msra.mxu0 %v1817
    %2453 = vmatprep.subr.bf16.mxu0 %v1834
    %2454 = vmatpush1.bf16.msra.mxu0 %v1833
    %2455 = vmatprep.subr.bf16.mxu0 %v1850
    %2456 = vmatpush1.bf16.msra.mxu0 %v1849
    %2457 = vmatprep.subr.bf16.mxu0 %v1866
    %2458 = vmatpush1.bf16.msra.mxu0 %v1865
    %2459 = vmatprep.subr.bf16.mxu0 %v1882
    %2460 = vmatpush1.bf16.msra.mxu0 %v1881
    %2461 = vmatprep.subr.bf16.mxu0 %v1898
    %2462 = vmatpush1.bf16.msra.mxu0 %v1897
    %2463 = vmatprep.subr.bf16.mxu0 %v1914
    %2464 = vmatpush1.bf16.msra.mxu0 %v1913
    %2465 = vmatprep.subr.bf16.mxu0 %v1930
    %2466 = vmatpush1.bf16.msra.mxu0 %v1929
    %2467 = vmatprep.mubr.bf16.mxu0 %v652
    %2468 = vmatmul.mubr.bf16.gmra.mrb[0].mxu0 %v651
    %v2469 = vpop.f32.mrb[0].mxu0
    %v2470 = vadd.f32 0.0, %v2469
    %v2471 = vpop.f32.mrb[0].mxu0
    %v2472 = vadd.f32 0.0, %v2471
    %v2473 = vpop.f32.mrb[0].mxu0
    %v2474 = vpop.f32.mrb[0].mxu0
    %2475 = vdwg.mxu0
    %2476 = vmatprep.subr.bf16.mxu0 %v1692
    %2477 = vmatpush1.bf16.msra.mxu0 %v1691
    %2478 = vmatprep.subr.bf16.mxu0 %v1708
    %2479 = vmatpush1.bf16.msra.mxu0 %v1707
    %2480 = vmatprep.subr.bf16.mxu0 %v1724
    %2481 = vmatpush1.bf16.msra.mxu0 %v1723
    %2482 = vmatprep.subr.bf16.mxu0 %v1740
    %2483 = vmatpush1.bf16.msra.mxu0 %v1739
    %2484 = vmatprep.subr.bf16.mxu0 %v1756
    %2485 = vmatpush1.bf16.msra.mxu0 %v1755
    %2486 = vmatprep.subr.bf16.mxu0 %v1772
    %2487 = vmatpush1.bf16.msra.mxu0 %v1771
    %2488 = vmatprep.subr.bf16.mxu0 %v1788
    %2489 = vmatpush1.bf16.msra.mxu0 %v1787
    %2490 = vmatprep.subr.bf16.mxu0 %v1804
    %2491 = vmatpush1.bf16.msra.mxu0 %v1803
    %2492 = vmatprep.subr.bf16.mxu0 %v1820
    %2493 = vmatpush1.bf16.msra.mxu0 %v1819
    %2494 = vmatprep.subr.bf16.mxu0 %v1836
    %2495 = vmatpush1.bf16.msra.mxu0 %v1835
    %2496 = vmatprep.subr.bf16.mxu0 %v1852
    %2497 = vmatpush1.bf16.msra.mxu0 %v1851
    %2498 = vmatprep.subr.bf16.mxu0 %v1868
    %2499 = vmatpush1.bf16.msra.mxu0 %v1867
    %2500 = vmatprep.subr.bf16.mxu0 %v1884
    %2501 = vmatpush1.bf16.msra.mxu0 %v1883
    %2502 = vmatprep.subr.bf16.mxu0 %v1900
    %2503 = vmatpush1.bf16.msra.mxu0 %v1899
    %2504 = vmatprep.subr.bf16.mxu0 %v1916
    %2505 = vmatpush1.bf16.msra.mxu0 %v1915
    %2506 = vmatprep.subr.bf16.mxu0 %v1932
    %2507 = vmatpush1.bf16.msra.mxu0 %v1931
    %2508 = vmatprep.mubr.bf16.mxu0 %v652
    %2509 = vmatmul.mubr.bf16.gmra.mrb[0].mxu0 %v651
    %v2510 = vpop.f32.mrb[0].mxu0
    %v2511 = vadd.f32 0.0, %v2510
    %v2512 = vpop.f32.mrb[0].mxu0
    %v2513 = vadd.f32 0.0, %v2512
    %v2514 = vpop.f32.mrb[0].mxu0
    %v2515 = vpop.f32.mrb[0].mxu0
    %2516 = vdwg.mxu0
    %v2518 = vlaneseq
    %v2519 = vshrl.u32 %v2518, 7
    %v2520 = vsub.s32 0, %v2519
    %v2521 = vrot.slane %v356, %v2520
    %v2522 = vlaneseq
    %v2523 = vshrl.u32 %v2522, 7
    %v2524 = vsub.s32 1, %v2523
    %v2525 = vrot.slane %v356, %v2524
    %v2526 = vlaneseq
    %v2527 = vshrl.u32 %v2526, 7
    %v2528 = vsub.s32 2, %v2527
    %v2529 = vrot.slane %v356, %v2528
    %v2530 = vlaneseq
    %v2531 = vshrl.u32 %v2530, 7
    %v2532 = vsub.s32 3, %v2531
    %v2533 = vrot.slane %v356, %v2532
    %v2534 = vlaneseq
    %v2535 = vshrl.u32 %v2534, 7
    %v2536 = vsub.s32 4, %v2535
    %v2537 = vrot.slane %v356, %v2536
    %v2538 = vlaneseq
    %v2539 = vshrl.u32 %v2538, 7
    %v2540 = vsub.s32 5, %v2539
    %v2541 = vrot.slane %v356, %v2540
    %v2542 = vlaneseq
    %v2543 = vshrl.u32 %v2542, 7
    %v2544 = vsub.s32 6, %v2543
    %v2545 = vrot.slane %v356, %v2544
    %v2546 = vlaneseq
    %v2547 = vshrl.u32 %v2546, 7
    %v2548 = vsub.s32 7, %v2547
    %v2549 = vrot.slane %v356, %v2548
    %v2558 = vadd.f32 %v2521, %v2388
    %v2559 = vadd.f32 %v2525, %v2390
    %v2560 = vadd.f32 %v2529, %v2429
    %v2561 = vadd.f32 %v2533, %v2431
    %v2562 = vadd.f32 %v2537, %v2470
    %v2563 = vadd.f32 %v2541, %v2472
    %v2564 = vadd.f32 %v2545, %v2511
    %v2565 = vadd.f32 %v2549, %v2513
    %v2566 = vxor.u32 %v2558, 2147483648
    %v2567 = vxor.u32 %v2559, 2147483648
    %v2568 = vmul.f32 %v2566, 1.442695
    %v2569 = vpow.pop %v2568
    %v2570 = vmul.f32 %v2567, 1.442695
    %v2571 = vpow.pop %v2570
    %v2572 = vadd.f32 %v2569, 1.0
    %v2573 = vadd.f32 %v2571, 1.0
    %v2574 = vrcp.pop %v2572
    %v2575 = vmul.f32 1.0, %v2574
    %v2576 = vrcp.pop %v2573
    %v2577 = vmul.f32 1.0, %v2576
    %v2578 = vxor.u32 %v2560, 2147483648
    %v2579 = vxor.u32 %v2561, 2147483648
    %v2580 = vmul.f32 %v2578, 1.442695
    %v2581 = vpow.pop %v2580
    %v2582 = vmul.f32 %v2579, 1.442695
    %v2583 = vpow.pop %v2582
    %v2584 = vadd.f32 %v2581, 1.0
    %v2585 = vadd.f32 %v2583, 1.0
    %v2586 = vrcp.pop %v2584
    %v2587 = vmul.f32 1.0, %v2586
    %v2588 = vrcp.pop %v2585
    %v2589 = vmul.f32 1.0, %v2588
    %v2590 = vtanh.pop %v2562
    %v2591 = vtanh.pop %v2563
    %v2592 = vxor.u32 %v2564, 2147483648
    %v2593 = vxor.u32 %v2565, 2147483648
    %v2594 = vmul.f32 %v2592, 1.442695
    %v2595 = vpow.pop %v2594
    %v2596 = vmul.f32 %v2593, 1.442695
    %v2597 = vpow.pop %v2596
    %v2598 = vadd.f32 %v2595, 1.0
    %v2599 = vadd.f32 %v2597, 1.0
    %v2600 = vrcp.pop %v2598
    %v2601 = vmul.f32 1.0, %v2600
    %v2602 = vrcp.pop %v2599
    %v2603 = vmul.f32 1.0, %v2602
    %v2604 = vmul.f32 %v2587, 0.0
    %v2605 = vmul.f32 %v2589, 0.0
    %v2606 = vmul.f32 %v2575, %v2590
    %v2607 = vmul.f32 %v2577, %v2591
    %v2608 = vadd.f32 %v2604, %v2606
    %v2609 = vadd.f32 %v2605, %v2607
    %v2610 = vtanh.pop %v2608
    %v2611 = vtanh.pop %v2609
    %v2612 = vmul.f32 %v2601, %v2610
    %v2613 = vmul.f32 %v2603, %v2611
    %2615 = vset.pattern.permute.xlu0 0
    %2616 = vperm.xlu0 %2615, %v368
    %v2617 = vpop.permute.xlu0 %2616
    %v2619 = vmul.f32 %v2612, %v2617
    %v2620 = vmul.f32 %v2613, %v2617
    %v2621 = vadd.f32 %v2619, 0.0
    %v2622 = vadd.f32 %v2620, 0.0
    %2623 = vset.pattern.permute.xlu0 6
    %2624 = vperm.xlu0 %2623, %v377
    %v2625 = vpop.permute.xlu0 %2624
    %v2627 = vmul.f32 %v2625, %v387
    %v2628 = vmul.f32 %v2625, %v391
    %v2629 = vmul.f32 %v2625, %v395
    %v2630 = vmul.f32 %v2625, %v399
    %v2631 = vmul.f32 %v2625, %v403
    %v2632 = vmul.f32 %v2625, %v407
    %v2633 = vmul.f32 %v2625, %v411
    %v2634 = vmul.f32 %v2625, %v415
    %v2635 = vadd.f32 %v436, %v2627
    %v2636 = vadd.f32 %v440, %v2628
    %v2637 = vadd.f32 %v444, %v2629
    %v2638 = vadd.f32 %v448, %v2630
    %v2639 = vadd.f32 %v452, %v2631
    %v2640 = vadd.f32 %v456, %v2632
    %v2641 = vadd.f32 %v460, %v2633
    %v2642 = vadd.f32 %v464, %v2634
    %2643 = vset.pattern.permute.xlu0 7
    %2644 = vperm.xlu0 %2643, %v377
    %v2645 = vpop.permute.xlu0 %2644
    %v2647 = vmul.f32 %v2645, %v489
    %v2648 = vmul.f32 %v2645, %v493
    %v2649 = vmul.f32 %v2645, %v497
    %v2650 = vmul.f32 %v2645, %v501
    %v2651 = vmul.f32 %v2645, %v505
    %v2652 = vmul.f32 %v2645, %v509
    %v2653 = vmul.f32 %v2645, %v513
    %v2654 = vmul.f32 %v2645, %v517
    %v2655 = vadd.f32 %v2635, %v2647
    %v2656 = vadd.f32 %v2636, %v2648
    %v2657 = vadd.f32 %v2637, %v2649
    %v2658 = vadd.f32 %v2638, %v2650
    %v2659 = vadd.f32 %v2639, %v2651
    %v2660 = vadd.f32 %v2640, %v2652
    %v2661 = vadd.f32 %v2641, %v2653
    %v2662 = vadd.f32 %v2642, %v2654
    %2663 = vset.pattern.permute.xlu0 8
    %2664 = vperm.xlu0 %2663, %v377
    %v2665 = vpop.permute.xlu0 %2664
    %v2667 = vmul.f32 %v2665, %v550
    %v2668 = vmul.f32 %v2665, %v554
    %v2669 = vmul.f32 %v2665, %v558
    %v2670 = vmul.f32 %v2665, %v562
    %v2671 = vmul.f32 %v2665, %v566
    %v2672 = vmul.f32 %v2665, %v570
    %v2673 = vmul.f32 %v2665, %v574
    %v2674 = vmul.f32 %v2665, %v578
    %v2675 = vadd.f32 %v2655, %v2667
    %v2676 = vadd.f32 %v2656, %v2668
    %v2677 = vadd.f32 %v2657, %v2669
    %v2678 = vadd.f32 %v2658, %v2670
    %v2679 = vadd.f32 %v2659, %v2671
    %v2680 = vadd.f32 %v2660, %v2672
    %v2681 = vadd.f32 %v2661, %v2673
    %v2682 = vadd.f32 %v2662, %v2674
    %v2683 = vadd.f32 %v2675, %v2224
    %v2684 = vadd.f32 %v2676, %v2226
    %v2685 = vadd.f32 %v2677, %v2265
    %v2686 = vadd.f32 %v2678, %v2267
    %v2687 = vadd.f32 %v2679, %v2306
    %v2688 = vadd.f32 %v2680, %v2308
    %v2689 = vadd.f32 %v2681, %v2347
    %v2690 = vadd.f32 %v2682, %v2349
    %v2691 = vxor.u32 %v2683, 2147483648
    %v2692 = vxor.u32 %v2684, 2147483648
    %v2693 = vmul.f32 %v2691, 1.442695
    %v2694 = vpow.pop %v2693
    %v2695 = vmul.f32 %v2692, 1.442695
    %v2696 = vpow.pop %v2695
    %v2697 = vadd.f32 %v2694, 1.0
    %v2698 = vadd.f32 %v2696, 1.0
    %v2699 = vrcp.pop %v2697
    %v2700 = vmul.f32 1.0, %v2699
    %v2701 = vrcp.pop %v2698
    %v2702 = vmul.f32 1.0, %v2701
    %v2703 = vxor.u32 %v2685, 2147483648
    %v2704 = vxor.u32 %v2686, 2147483648
    %v2705 = vmul.f32 %v2703, 1.442695
    %v2706 = vpow.pop %v2705
    %v2707 = vmul.f32 %v2704, 1.442695
    %v2708 = vpow.pop %v2707
    %v2709 = vadd.f32 %v2706, 1.0
    %v2710 = vadd.f32 %v2708, 1.0
    %v2711 = vrcp.pop %v2709
    %v2712 = vmul.f32 1.0, %v2711
    %v2713 = vrcp.pop %v2710
    %v2714 = vmul.f32 1.0, %v2713
    %v2715 = vtanh.pop %v2687
    %v2716 = vtanh.pop %v2688
    %v2717 = vxor.u32 %v2689, 2147483648
    %v2718 = vxor.u32 %v2690, 2147483648
    %v2719 = vmul.f32 %v2717, 1.442695
    %v2720 = vpow.pop %v2719
    %v2721 = vmul.f32 %v2718, 1.442695
    %v2722 = vpow.pop %v2721
    %v2723 = vadd.f32 %v2720, 1.0
    %v2724 = vadd.f32 %v2722, 1.0
    %v2725 = vrcp.pop %v2723
    %v2726 = vmul.f32 1.0, %v2725
    %v2727 = vrcp.pop %v2724
    %v2728 = vmul.f32 1.0, %v2727
    %v2729 = vmul.f32 %v2712, %v645
    %v2730 = vmul.f32 %v2714, %v646
    %v2731 = vmul.f32 %v2700, %v2715
    %v2732 = vmul.f32 %v2702, %v2716
    %v2733 = vadd.f32 %v2729, %v2731
    %v2734 = vadd.f32 %v2730, %v2732
    %v2735 = vtanh.pop %v2733
    %v2736 = vtanh.pop %v2734
    %v2737 = vmul.f32 %v2726, %v2735
    %v2738 = vmul.f32 %v2728, %v2736
    %v2739 = vpack.c.bf16 %v2737, %v2737
    %v2740 = vpack.c.bf16 %v2738, %v2738
    %2741 = vmatprep.subr.bf16.mxu0 %v1678
    %2742 = vmatpush1.bf16.msra.mxu0 %v1677
    %2743 = vmatprep.subr.bf16.mxu0 %v1694
    %2744 = vmatpush1.bf16.msra.mxu0 %v1693
    %2745 = vmatprep.subr.bf16.mxu0 %v1710
    %2746 = vmatpush1.bf16.msra.mxu0 %v1709
    %2747 = vmatprep.subr.bf16.mxu0 %v1726
    %2748 = vmatpush1.bf16.msra.mxu0 %v1725
    %2749 = vmatprep.subr.bf16.mxu0 %v1742
    %2750 = vmatpush1.bf16.msra.mxu0 %v1741
    %2751 = vmatprep.subr.bf16.mxu0 %v1758
    %2752 = vmatpush1.bf16.msra.mxu0 %v1757
    %2753 = vmatprep.subr.bf16.mxu0 %v1774
    %2754 = vmatpush1.bf16.msra.mxu0 %v1773
    %2755 = vmatprep.subr.bf16.mxu0 %v1790
    %2756 = vmatpush1.bf16.msra.mxu0 %v1789
    %2757 = vmatprep.subr.bf16.mxu0 %v1806
    %2758 = vmatpush1.bf16.msra.mxu0 %v1805
    %2759 = vmatprep.subr.bf16.mxu0 %v1822
    %2760 = vmatpush1.bf16.msra.mxu0 %v1821
    %2761 = vmatprep.subr.bf16.mxu0 %v1838
    %2762 = vmatpush1.bf16.msra.mxu0 %v1837
    %2763 = vmatprep.subr.bf16.mxu0 %v1854
    %2764 = vmatpush1.bf16.msra.mxu0 %v1853
    %2765 = vmatprep.subr.bf16.mxu0 %v1870
    %2766 = vmatpush1.bf16.msra.mxu0 %v1869
    %2767 = vmatprep.subr.bf16.mxu0 %v1886
    %2768 = vmatpush1.bf16.msra.mxu0 %v1885
    %2769 = vmatprep.subr.bf16.mxu0 %v1902
    %2770 = vmatpush1.bf16.msra.mxu0 %v1901
    %2771 = vmatprep.subr.bf16.mxu0 %v1918
    %2772 = vmatpush1.bf16.msra.mxu0 %v1917
    %2773 = vmatprep.mubr.bf16.mxu0 %v2740
    %2774 = vmatmul.mubr.bf16.gmra.mrb[0].mxu0 %v2739
    %v2775 = vpop.f32.mrb[0].mxu0
    %v2776 = vadd.f32 0.0, %v2775
    %v2777 = vpop.f32.mrb[0].mxu0
    %v2778 = vadd.f32 0.0, %v2777
    %v2779 = vpop.f32.mrb[0].mxu0
    %v2780 = vpop.f32.mrb[0].mxu0
    %2781 = vdwg.mxu0
    %2782 = vmatprep.subr.bf16.mxu0 %v1680
    %2783 = vmatpush1.bf16.msra.mxu0 %v1679
    %2784 = vmatprep.subr.bf16.mxu0 %v1696
    %2785 = vmatpush1.bf16.msra.mxu0 %v1695
    %2786 = vmatprep.subr.bf16.mxu0 %v1712
    %2787 = vmatpush1.bf16.msra.mxu0 %v1711
    %2788 = vmatprep.subr.bf16.mxu0 %v1728
    %2789 = vmatpush1.bf16.msra.mxu0 %v1727
    %2790 = vmatprep.subr.bf16.mxu0 %v1744
    %2791 = vmatpush1.bf16.msra.mxu0 %v1743
    %2792 = vmatprep.subr.bf16.mxu0 %v1760
    %2793 = vmatpush1.bf16.msra.mxu0 %v1759
    %2794 = vmatprep.subr.bf16.mxu0 %v1776
    %2795 = vmatpush1.bf16.msra.mxu0 %v1775
    %2796 = vmatprep.subr.bf16.mxu0 %v1792
    %2797 = vmatpush1.bf16.msra.mxu0 %v1791
    %2798 = vmatprep.subr.bf16.mxu0 %v1808
    %2799 = vmatpush1.bf16.msra.mxu0 %v1807
    %2800 = vmatprep.subr.bf16.mxu0 %v1824
    %2801 = vmatpush1.bf16.msra.mxu0 %v1823
    %2802 = vmatprep.subr.bf16.mxu0 %v1840
    %2803 = vmatpush1.bf16.msra.mxu0 %v1839
    %2804 = vmatprep.subr.bf16.mxu0 %v1856
    %2805 = vmatpush1.bf16.msra.mxu0 %v1855
    %2806 = vmatprep.subr.bf16.mxu0 %v1872
    %2807 = vmatpush1.bf16.msra.mxu0 %v1871
    %2808 = vmatprep.subr.bf16.mxu0 %v1888
    %2809 = vmatpush1.bf16.msra.mxu0 %v1887
    %2810 = vmatprep.subr.bf16.mxu0 %v1904
    %2811 = vmatpush1.bf16.msra.mxu0 %v1903
    %2812 = vmatprep.subr.bf16.mxu0 %v1920
    %2813 = vmatpush1.bf16.msra.mxu0 %v1919
    %2814 = vmatprep.mubr.bf16.mxu0 %v2740
    %2815 = vmatmul.mubr.bf16.gmra.mrb[0].mxu0 %v2739
    %v2816 = vpop.f32.mrb[0].mxu0
    %v2817 = vadd.f32 0.0, %v2816
    %v2818 = vpop.f32.mrb[0].mxu0
    %v2819 = vadd.f32 0.0, %v2818
    %v2820 = vpop.f32.mrb[0].mxu0
    %v2821 = vpop.f32.mrb[0].mxu0
    %2822 = vdwg.mxu0
    %2823 = vmatprep.subr.bf16.mxu0 %v1682
    %2824 = vmatpush1.bf16.msra.mxu0 %v1681
    %2825 = vmatprep.subr.bf16.mxu0 %v1698
    %2826 = vmatpush1.bf16.msra.mxu0 %v1697
    %2827 = vmatprep.subr.bf16.mxu0 %v1714
    %2828 = vmatpush1.bf16.msra.mxu0 %v1713
    %2829 = vmatprep.subr.bf16.mxu0 %v1730
    %2830 = vmatpush1.bf16.msra.mxu0 %v1729
    %2831 = vmatprep.subr.bf16.mxu0 %v1746
    %2832 = vmatpush1.bf16.msra.mxu0 %v1745
    %2833 = vmatprep.subr.bf16.mxu0 %v1762
    %2834 = vmatpush1.bf16.msra.mxu0 %v1761
    %2835 = vmatprep.subr.bf16.mxu0 %v1778
    %2836 = vmatpush1.bf16.msra.mxu0 %v1777
    %2837 = vmatprep.subr.bf16.mxu0 %v1794
    %2838 = vmatpush1.bf16.msra.mxu0 %v1793
    %2839 = vmatprep.subr.bf16.mxu0 %v1810
    %2840 = vmatpush1.bf16.msra.mxu0 %v1809
    %2841 = vmatprep.subr.bf16.mxu0 %v1826
    %2842 = vmatpush1.bf16.msra.mxu0 %v1825
    %2843 = vmatprep.subr.bf16.mxu0 %v1842
    %2844 = vmatpush1.bf16.msra.mxu0 %v1841
    %2845 = vmatprep.subr.bf16.mxu0 %v1858
    %2846 = vmatpush1.bf16.msra.mxu0 %v1857
    %2847 = vmatprep.subr.bf16.mxu0 %v1874
    %2848 = vmatpush1.bf16.msra.mxu0 %v1873
    %2849 = vmatprep.subr.bf16.mxu0 %v1890
    %2850 = vmatpush1.bf16.msra.mxu0 %v1889
    %2851 = vmatprep.subr.bf16.mxu0 %v1906
    %2852 = vmatpush1.bf16.msra.mxu0 %v1905
    %2853 = vmatprep.subr.bf16.mxu0 %v1922
    %2854 = vmatpush1.bf16.msra.mxu0 %v1921
    %2855 = vmatprep.mubr.bf16.mxu0 %v2740
    %2856 = vmatmul.mubr.bf16.gmra.mrb[0].mxu0 %v2739
    %v2857 = vpop.f32.mrb[0].mxu0
    %v2858 = vadd.f32 0.0, %v2857
    %v2859 = vpop.f32.mrb[0].mxu0
    %v2860 = vadd.f32 0.0, %v2859
    %v2861 = vpop.f32.mrb[0].mxu0
    %v2862 = vpop.f32.mrb[0].mxu0
    %2863 = vdwg.mxu0
    %2864 = vmatprep.subr.bf16.mxu0 %v1684
    %2865 = vmatpush1.bf16.msra.mxu0 %v1683
    %2866 = vmatprep.subr.bf16.mxu0 %v1700
    %2867 = vmatpush1.bf16.msra.mxu0 %v1699
    %2868 = vmatprep.subr.bf16.mxu0 %v1716
    %2869 = vmatpush1.bf16.msra.mxu0 %v1715
    %2870 = vmatprep.subr.bf16.mxu0 %v1732
    %2871 = vmatpush1.bf16.msra.mxu0 %v1731
    %2872 = vmatprep.subr.bf16.mxu0 %v1748
    %2873 = vmatpush1.bf16.msra.mxu0 %v1747
    %2874 = vmatprep.subr.bf16.mxu0 %v1764
    %2875 = vmatpush1.bf16.msra.mxu0 %v1763
    %2876 = vmatprep.subr.bf16.mxu0 %v1780
    %2877 = vmatpush1.bf16.msra.mxu0 %v1779
    %2878 = vmatprep.subr.bf16.mxu0 %v1796
    %2879 = vmatpush1.bf16.msra.mxu0 %v1795
    %2880 = vmatprep.subr.bf16.mxu0 %v1812
    %2881 = vmatpush1.bf16.msra.mxu0 %v1811
    %2882 = vmatprep.subr.bf16.mxu0 %v1828
    %2883 = vmatpush1.bf16.msra.mxu0 %v1827
    %2884 = vmatprep.subr.bf16.mxu0 %v1844
    %2885 = vmatpush1.bf16.msra.mxu0 %v1843
    %2886 = vmatprep.subr.bf16.mxu0 %v1860
    %2887 = vmatpush1.bf16.msra.mxu0 %v1859
    %2888 = vmatprep.subr.bf16.mxu0 %v1876
    %2889 = vmatpush1.bf16.msra.mxu0 %v1875
    %2890 = vmatprep.subr.bf16.mxu0 %v1892
    %2891 = vmatpush1.bf16.msra.mxu0 %v1891
    %2892 = vmatprep.subr.bf16.mxu0 %v1908
    %2893 = vmatpush1.bf16.msra.mxu0 %v1907
    %2894 = vmatprep.subr.bf16.mxu0 %v1924
    %2895 = vmatpush1.bf16.msra.mxu0 %v1923
    %2896 = vmatprep.mubr.bf16.mxu0 %v2740
    %2897 = vmatmul.mubr.bf16.gmra.mrb[0].mxu0 %v2739
    %v2898 = vpop.f32.mrb[0].mxu0
    %v2899 = vadd.f32 0.0, %v2898
    %v2900 = vpop.f32.mrb[0].mxu0
    %v2901 = vadd.f32 0.0, %v2900
    %v2902 = vpop.f32.mrb[0].mxu0
    %v2903 = vpop.f32.mrb[0].mxu0
    %2904 = vdwg.mxu0
    %2905 = vmatprep.subr.bf16.mxu0 %v1686
    %2906 = vmatpush1.bf16.msra.mxu0 %v1685
    %2907 = vmatprep.subr.bf16.mxu0 %v1702
    %2908 = vmatpush1.bf16.msra.mxu0 %v1701
    %2909 = vmatprep.subr.bf16.mxu0 %v1718
    %2910 = vmatpush1.bf16.msra.mxu0 %v1717
    %2911 = vmatprep.subr.bf16.mxu0 %v1734
    %2912 = vmatpush1.bf16.msra.mxu0 %v1733
    %2913 = vmatprep.subr.bf16.mxu0 %v1750
    %2914 = vmatpush1.bf16.msra.mxu0 %v1749
    %2915 = vmatprep.subr.bf16.mxu0 %v1766
    %2916 = vmatpush1.bf16.msra.mxu0 %v1765
    %2917 = vmatprep.subr.bf16.mxu0 %v1782
    %2918 = vmatpush1.bf16.msra.mxu0 %v1781
    %2919 = vmatprep.subr.bf16.mxu0 %v1798
    %2920 = vmatpush1.bf16.msra.mxu0 %v1797
    %2921 = vmatprep.subr.bf16.mxu0 %v1814
    %2922 = vmatpush1.bf16.msra.mxu0 %v1813
    %2923 = vmatprep.subr.bf16.mxu0 %v1830
    %2924 = vmatpush1.bf16.msra.mxu0 %v1829
    %2925 = vmatprep.subr.bf16.mxu0 %v1846
    %2926 = vmatpush1.bf16.msra.mxu0 %v1845
    %2927 = vmatprep.subr.bf16.mxu0 %v1862
    %2928 = vmatpush1.bf16.msra.mxu0 %v1861
    %2929 = vmatprep.subr.bf16.mxu0 %v1878
    %2930 = vmatpush1.bf16.msra.mxu0 %v1877
    %2931 = vmatprep.subr.bf16.mxu0 %v1894
    %2932 = vmatpush1.bf16.msra.mxu0 %v1893
    %2933 = vmatprep.subr.bf16.mxu0 %v1910
    %2934 = vmatpush1.bf16.msra.mxu0 %v1909
    %2935 = vmatprep.subr.bf16.mxu0 %v1926
    %2936 = vmatpush1.bf16.msra.mxu0 %v1925
    %2937 = vmatprep.mubr.bf16.mxu0 %v2740
    %2938 = vmatmul.mubr.bf16.gmra.mrb[0].mxu0 %v2739
    %v2939 = vpop.f32.mrb[0].mxu0
    %v2940 = vadd.f32 0.0, %v2939
    %v2941 = vpop.f32.mrb[0].mxu0
    %v2942 = vadd.f32 0.0, %v2941
    %v2943 = vpop.f32.mrb[0].mxu0
    %v2944 = vpop.f32.mrb[0].mxu0
    %2945 = vdwg.mxu0
    %2946 = vmatprep.subr.bf16.mxu0 %v1688
    %2947 = vmatpush1.bf16.msra.mxu0 %v1687
    %2948 = vmatprep.subr.bf16.mxu0 %v1704
    %2949 = vmatpush1.bf16.msra.mxu0 %v1703
    %2950 = vmatprep.subr.bf16.mxu0 %v1720
    %2951 = vmatpush1.bf16.msra.mxu0 %v1719
    %2952 = vmatprep.subr.bf16.mxu0 %v1736
    %2953 = vmatpush1.bf16.msra.mxu0 %v1735
    %2954 = vmatprep.subr.bf16.mxu0 %v1752
    %2955 = vmatpush1.bf16.msra.mxu0 %v1751
    %2956 = vmatprep.subr.bf16.mxu0 %v1768
    %2957 = vmatpush1.bf16.msra.mxu0 %v1767
    %2958 = vmatprep.subr.bf16.mxu0 %v1784
    %2959 = vmatpush1.bf16.msra.mxu0 %v1783
    %2960 = vmatprep.subr.bf16.mxu0 %v1800
    %2961 = vmatpush1.bf16.msra.mxu0 %v1799
    %2962 = vmatprep.subr.bf16.mxu0 %v1816
    %2963 = vmatpush1.bf16.msra.mxu0 %v1815
    %2964 = vmatprep.subr.bf16.mxu0 %v1832
    %2965 = vmatpush1.bf16.msra.mxu0 %v1831
    %2966 = vmatprep.subr.bf16.mxu0 %v1848
    %2967 = vmatpush1.bf16.msra.mxu0 %v1847
    %2968 = vmatprep.subr.bf16.mxu0 %v1864
    %2969 = vmatpush1.bf16.msra.mxu0 %v1863
    %2970 = vmatprep.subr.bf16.mxu0 %v1880
    %2971 = vmatpush1.bf16.msra.mxu0 %v1879
    %2972 = vmatprep.subr.bf16.mxu0 %v1896
    %2973 = vmatpush1.bf16.msra.mxu0 %v1895
    %2974 = vmatprep.subr.bf16.mxu0 %v1912
    %2975 = vmatpush1.bf16.msra.mxu0 %v1911
    %2976 = vmatprep.subr.bf16.mxu0 %v1928
    %2977 = vmatpush1.bf16.msra.mxu0 %v1927
    %2978 = vmatprep.mubr.bf16.mxu0 %v2740
    %2979 = vmatmul.mubr.bf16.gmra.mrb[0].mxu0 %v2739
    %v2980 = vpop.f32.mrb[0].mxu0
    %v2981 = vadd.f32 0.0, %v2980
    %v2982 = vpop.f32.mrb[0].mxu0
    %v2983 = vadd.f32 0.0, %v2982
    %v2984 = vpop.f32.mrb[0].mxu0
    %v2985 = vpop.f32.mrb[0].mxu0
    %2986 = vdwg.mxu0
    %2987 = vmatprep.subr.bf16.mxu0 %v1690
    %2988 = vmatpush1.bf16.msra.mxu0 %v1689
    %2989 = vmatprep.subr.bf16.mxu0 %v1706
    %2990 = vmatpush1.bf16.msra.mxu0 %v1705
    %2991 = vmatprep.subr.bf16.mxu0 %v1722
    %2992 = vmatpush1.bf16.msra.mxu0 %v1721
    %2993 = vmatprep.subr.bf16.mxu0 %v1738
    %2994 = vmatpush1.bf16.msra.mxu0 %v1737
    %2995 = vmatprep.subr.bf16.mxu0 %v1754
    %2996 = vmatpush1.bf16.msra.mxu0 %v1753
    %2997 = vmatprep.subr.bf16.mxu0 %v1770
    %2998 = vmatpush1.bf16.msra.mxu0 %v1769
    %2999 = vmatprep.subr.bf16.mxu0 %v1786
    %3000 = vmatpush1.bf16.msra.mxu0 %v1785
    %3001 = vmatprep.subr.bf16.mxu0 %v1802
    %3002 = vmatpush1.bf16.msra.mxu0 %v1801
    %3003 = vmatprep.subr.bf16.mxu0 %v1818
    %3004 = vmatpush1.bf16.msra.mxu0 %v1817
    %3005 = vmatprep.subr.bf16.mxu0 %v1834
    %3006 = vmatpush1.bf16.msra.mxu0 %v1833
    %3007 = vmatprep.subr.bf16.mxu0 %v1850
    %3008 = vmatpush1.bf16.msra.mxu0 %v1849
    %3009 = vmatprep.subr.bf16.mxu0 %v1866
    %3010 = vmatpush1.bf16.msra.mxu0 %v1865
    %3011 = vmatprep.subr.bf16.mxu0 %v1882
    %3012 = vmatpush1.bf16.msra.mxu0 %v1881
    %3013 = vmatprep.subr.bf16.mxu0 %v1898
    %3014 = vmatpush1.bf16.msra.mxu0 %v1897
    %3015 = vmatprep.subr.bf16.mxu0 %v1914
    %3016 = vmatpush1.bf16.msra.mxu0 %v1913
    %3017 = vmatprep.subr.bf16.mxu0 %v1930
    %3018 = vmatpush1.bf16.msra.mxu0 %v1929
    %3019 = vmatprep.mubr.bf16.mxu0 %v2740
    %3020 = vmatmul.mubr.bf16.gmra.mrb[0].mxu0 %v2739
    %v3021 = vpop.f32.mrb[0].mxu0
    %v3022 = vadd.f32 0.0, %v3021
    %v3023 = vpop.f32.mrb[0].mxu0
    %v3024 = vadd.f32 0.0, %v3023
    %v3025 = vpop.f32.mrb[0].mxu0
    %v3026 = vpop.f32.mrb[0].mxu0
    %3027 = vdwg.mxu0
    %3028 = vmatprep.subr.bf16.mxu0 %v1692
    %3029 = vmatpush1.bf16.msra.mxu0 %v1691
    %3030 = vmatprep.subr.bf16.mxu0 %v1708
    %3031 = vmatpush1.bf16.msra.mxu0 %v1707
    %3032 = vmatprep.subr.bf16.mxu0 %v1724
    %3033 = vmatpush1.bf16.msra.mxu0 %v1723
    %3034 = vmatprep.subr.bf16.mxu0 %v1740
    %3035 = vmatpush1.bf16.msra.mxu0 %v1739
    %3036 = vmatprep.subr.bf16.mxu0 %v1756
    %3037 = vmatpush1.bf16.msra.mxu0 %v1755
    %3038 = vmatprep.subr.bf16.mxu0 %v1772
    %3039 = vmatpush1.bf16.msra.mxu0 %v1771
    %3040 = vmatprep.subr.bf16.mxu0 %v1788
    %3041 = vmatpush1.bf16.msra.mxu0 %v1787
    %3042 = vmatprep.subr.bf16.mxu0 %v1804
    %3043 = vmatpush1.bf16.msra.mxu0 %v1803
    %3044 = vmatprep.subr.bf16.mxu0 %v1820
    %3045 = vmatpush1.bf16.msra.mxu0 %v1819
    %3046 = vmatprep.subr.bf16.mxu0 %v1836
    %3047 = vmatpush1.bf16.msra.mxu0 %v1835
    %3048 = vmatprep.subr.bf16.mxu0 %v1852
    %3049 = vmatpush1.bf16.msra.mxu0 %v1851
    %3050 = vmatprep.subr.bf16.mxu0 %v1868
    %3051 = vmatpush1.bf16.msra.mxu0 %v1867
    %3052 = vmatprep.subr.bf16.mxu0 %v1884
    %3053 = vmatpush1.bf16.msra.mxu0 %v1883
    %3054 = vmatprep.subr.bf16.mxu0 %v1900
    %3055 = vmatpush1.bf16.msra.mxu0 %v1899
    %3056 = vmatprep.subr.bf16.mxu0 %v1916
    %3057 = vmatpush1.bf16.msra.mxu0 %v1915
    %3058 = vmatprep.subr.bf16.mxu0 %v1932
    %3059 = vmatpush1.bf16.msra.mxu0 %v1931
    %3060 = vmatprep.mubr.bf16.mxu0 %v2740
    %3061 = vmatmul.mubr.bf16.gmra.mrb[0].mxu0 %v2739
    %v3062 = vpop.f32.mrb[0].mxu0
    %v3063 = vadd.f32 0.0, %v3062
    %v3064 = vpop.f32.mrb[0].mxu0
    %v3065 = vadd.f32 0.0, %v3064
    %v3066 = vpop.f32.mrb[0].mxu0
    %v3067 = vpop.f32.mrb[0].mxu0
    %3068 = vdwg.mxu0
    %v3069 = vadd.f32 %v2521, %v2940
    %v3070 = vadd.f32 %v2525, %v2942
    %v3071 = vadd.f32 %v2529, %v2981
    %v3072 = vadd.f32 %v2533, %v2983
    %v3073 = vadd.f32 %v2537, %v3022
    %v3074 = vadd.f32 %v2541, %v3024
    %v3075 = vadd.f32 %v2545, %v3063
    %v3076 = vadd.f32 %v2549, %v3065
    %v3077 = vpack.c.bf16 %v2612, %v2612
    %v3078 = vpack.c.bf16 %v2613, %v2613
    %v3079 = vld [vmem:[#allocation11] sm:$0xff]
    %v3080 = vld [vmem:[#allocation11 + $0x8] sm:$0xff]
    %v3081 = vld [vmem:[#allocation11 + $0x10] sm:$0xff]
    %v3082 = vld [vmem:[#allocation11 + $0x18] sm:$0xff]
    %v3083 = vld [vmem:[#allocation11 + $0x20] sm:$0xff]
    %v3084 = vld [vmem:[#allocation11 + $0x28] sm:$0xff]
    %v3085 = vld [vmem:[#allocation11 + $0x30] sm:$0xff]
    %v3086 = vld [vmem:[#allocation11 + $0x38] sm:$0xff]
    %v3087 = vld [vmem:[#allocation11 + $0x40] sm:$0xff]
    %v3088 = vld [vmem:[#allocation11 + $0x48] sm:$0xff]
    %v3089 = vld [vmem:[#allocation11 + $0x50] sm:$0xff]
    %v3090 = vld [vmem:[#allocation11 + $0x58] sm:$0xff]
    %v3091 = vld [vmem:[#allocation11 + $0x60] sm:$0xff]
    %v3092 = vld [vmem:[#allocation11 + $0x68] sm:$0xff]
    %v3093 = vld [vmem:[#allocation11 + $0x70] sm:$0xff]
    %v3094 = vld [vmem:[#allocation11 + $0x78] sm:$0xff]
    %v3095 = vld [vmem:[#allocation11 + $0x80] sm:$0xff]
    %v3096 = vld [vmem:[#allocation11 + $0x88] sm:$0xff]
    %v3097 = vld [vmem:[#allocation11 + $0x90] sm:$0xff]
    %v3098 = vld [vmem:[#allocation11 + $0x98] sm:$0xff]
    %v3099 = vld [vmem:[#allocation11 + $0xa0] sm:$0xff]
    %v3100 = vld [vmem:[#allocation11 + $0xa8] sm:$0xff]
    %v3101 = vld [vmem:[#allocation11 + $0xb0] sm:$0xff]
    %v3102 = vld [vmem:[#allocation11 + $0xb8] sm:$0xff]
    %v3103 = vld [vmem:[#allocation11 + $0xc0] sm:$0xff]
    %v3104 = vld [vmem:[#allocation11 + $0xc8] sm:$0xff]
    %v3105 = vld [vmem:[#allocation11 + $0xd0] sm:$0xff]
    %v3106 = vld [vmem:[#allocation11 + $0xd8] sm:$0xff]
    %v3107 = vld [vmem:[#allocation11 + $0xe0] sm:$0xff]
    %v3108 = vld [vmem:[#allocation11 + $0xe8] sm:$0xff]
    %v3109 = vld [vmem:[#allocation11 + $0xf0] sm:$0xff]
    %v3110 = vld [vmem:[#allocation11 + $0xf8] sm:$0xff]
    %v3111 = vld [vmem:[#allocation11 + $0x100] sm:$0xff]
    %v3112 = vld [vmem:[#allocation11 + $0x108] sm:$0xff]
    %v3113 = vld [vmem:[#allocation11 + $0x110] sm:$0xff]
    %v3114 = vld [vmem:[#allocation11 + $0x118] sm:$0xff]
    %v3115 = vld [vmem:[#allocation11 + $0x120] sm:$0xff]
    %v3116 = vld [vmem:[#allocation11 + $0x128] sm:$0xff]
    %v3117 = vld [vmem:[#allocation11 + $0x130] sm:$0xff]
    %v3118 = vld [vmem:[#allocation11 + $0x138] sm:$0xff]
    %v3119 = vld [vmem:[#allocation11 + $0x140] sm:$0xff]
    %v3120 = vld [vmem:[#allocation11 + $0x148] sm:$0xff]
    %v3121 = vld [vmem:[#allocation11 + $0x150] sm:$0xff]
    %v3122 = vld [vmem:[#allocation11 + $0x158] sm:$0xff]
    %v3123 = vld [vmem:[#allocation11 + $0x160] sm:$0xff]
    %v3124 = vld [vmem:[#allocation11 + $0x168] sm:$0xff]
    %v3125 = vld [vmem:[#allocation11 + $0x170] sm:$0xff]
    %v3126 = vld [vmem:[#allocation11 + $0x178] sm:$0xff]
    %v3127 = vld [vmem:[#allocation11 + $0x180] sm:$0xff]
    %v3128 = vld [vmem:[#allocation11 + $0x188] sm:$0xff]
    %v3129 = vld [vmem:[#allocation11 + $0x190] sm:$0xff]
    %v3130 = vld [vmem:[#allocation11 + $0x198] sm:$0xff]
    %v3131 = vld [vmem:[#allocation11 + $0x1a0] sm:$0xff]
    %v3132 = vld [vmem:[#allocation11 + $0x1a8] sm:$0xff]
    %v3133 = vld [vmem:[#allocation11 + $0x1b0] sm:$0xff]
    %v3134 = vld [vmem:[#allocation11 + $0x1b8] sm:$0xff]
    %v3135 = vld [vmem:[#allocation11 + $0x1c0] sm:$0xff]
    %v3136 = vld [vmem:[#allocation11 + $0x1c8] sm:$0xff]
    %v3137 = vld [vmem:[#allocation11 + $0x1d0] sm:$0xff]
    %v3138 = vld [vmem:[#allocation11 + $0x1d8] sm:$0xff]
    %v3139 = vld [vmem:[#allocation11 + $0x1e0] sm:$0xff]
    %v3140 = vld [vmem:[#allocation11 + $0x1e8] sm:$0xff]
    %v3141 = vld [vmem:[#allocation11 + $0x1f0] sm:$0xff]
    %v3142 = vld [vmem:[#allocation11 + $0x1f8] sm:$0xff]
    %v3143 = vld [vmem:[#allocation11 + $0x200] sm:$0xff]
    %v3144 = vld [vmem:[#allocation11 + $0x208] sm:$0xff]
    %v3145 = vld [vmem:[#allocation11 + $0x210] sm:$0xff]
    %v3146 = vld [vmem:[#allocation11 + $0x218] sm:$0xff]
    %v3147 = vld [vmem:[#allocation11 + $0x220] sm:$0xff]
    %v3148 = vld [vmem:[#allocation11 + $0x228] sm:$0xff]
    %v3149 = vld [vmem:[#allocation11 + $0x230] sm:$0xff]
    %v3150 = vld [vmem:[#allocation11 + $0x238] sm:$0xff]
    %v3151 = vld [vmem:[#allocation11 + $0x240] sm:$0xff]
    %v3152 = vld [vmem:[#allocation11 + $0x248] sm:$0xff]
    %v3153 = vld [vmem:[#allocation11 + $0x250] sm:$0xff]
    %v3154 = vld [vmem:[#allocation11 + $0x258] sm:$0xff]
    %v3155 = vld [vmem:[#allocation11 + $0x260] sm:$0xff]
    %v3156 = vld [vmem:[#allocation11 + $0x268] sm:$0xff]
    %v3157 = vld [vmem:[#allocation11 + $0x270] sm:$0xff]
    %v3158 = vld [vmem:[#allocation11 + $0x278] sm:$0xff]
    %v3159 = vld [vmem:[#allocation11 + $0x280] sm:$0xff]
    %v3160 = vld [vmem:[#allocation11 + $0x288] sm:$0xff]
    %v3161 = vld [vmem:[#allocation11 + $0x290] sm:$0xff]
    %v3162 = vld [vmem:[#allocation11 + $0x298] sm:$0xff]
    %v3163 = vld [vmem:[#allocation11 + $0x2a0] sm:$0xff]
    %v3164 = vld [vmem:[#allocation11 + $0x2a8] sm:$0xff]
    %v3165 = vld [vmem:[#allocation11 + $0x2b0] sm:$0xff]
    %v3166 = vld [vmem:[#allocation11 + $0x2b8] sm:$0xff]
    %v3167 = vld [vmem:[#allocation11 + $0x2c0] sm:$0xff]
    %v3168 = vld [vmem:[#allocation11 + $0x2c8] sm:$0xff]
    %v3169 = vld [vmem:[#allocation11 + $0x2d0] sm:$0xff]
    %v3170 = vld [vmem:[#allocation11 + $0x2d8] sm:$0xff]
    %v3171 = vld [vmem:[#allocation11 + $0x2e0] sm:$0xff]
    %v3172 = vld [vmem:[#allocation11 + $0x2e8] sm:$0xff]
    %v3173 = vld [vmem:[#allocation11 + $0x2f0] sm:$0xff]
    %v3174 = vld [vmem:[#allocation11 + $0x2f8] sm:$0xff]
    %v3175 = vld [vmem:[#allocation11 + $0x300] sm:$0xff]
    %v3176 = vld [vmem:[#allocation11 + $0x308] sm:$0xff]
    %v3177 = vld [vmem:[#allocation11 + $0x310] sm:$0xff]
    %v3178 = vld [vmem:[#allocation11 + $0x318] sm:$0xff]
    %v3179 = vld [vmem:[#allocation11 + $0x320] sm:$0xff]
    %v3180 = vld [vmem:[#allocation11 + $0x328] sm:$0xff]
    %v3181 = vld [vmem:[#allocation11 + $0x330] sm:$0xff]
    %v3182 = vld [vmem:[#allocation11 + $0x338] sm:$0xff]
    %v3183 = vld [vmem:[#allocation11 + $0x340] sm:$0xff]
    %v3184 = vld [vmem:[#allocation11 + $0x348] sm:$0xff]
    %v3185 = vld [vmem:[#allocation11 + $0x350] sm:$0xff]
    %v3186 = vld [vmem:[#allocation11 + $0x358] sm:$0xff]
    %v3187 = vld [vmem:[#allocation11 + $0x360] sm:$0xff]
    %v3188 = vld [vmem:[#allocation11 + $0x368] sm:$0xff]
    %v3189 = vld [vmem:[#allocation11 + $0x370] sm:$0xff]
    %v3190 = vld [vmem:[#allocation11 + $0x378] sm:$0xff]
    %v3191 = vld [vmem:[#allocation11 + $0x380] sm:$0xff]
    %v3192 = vld [vmem:[#allocation11 + $0x388] sm:$0xff]
    %v3193 = vld [vmem:[#allocation11 + $0x390] sm:$0xff]
    %v3194 = vld [vmem:[#allocation11 + $0x398] sm:$0xff]
    %v3195 = vld [vmem:[#allocation11 + $0x3a0] sm:$0xff]
    %v3196 = vld [vmem:[#allocation11 + $0x3a8] sm:$0xff]
    %v3197 = vld [vmem:[#allocation11 + $0x3b0] sm:$0xff]
    %v3198 = vld [vmem:[#allocation11 + $0x3b8] sm:$0xff]
    %v3199 = vld [vmem:[#allocation11 + $0x3c0] sm:$0xff]
    %v3200 = vld [vmem:[#allocation11 + $0x3c8] sm:$0xff]
    %v3201 = vld [vmem:[#allocation11 + $0x3d0] sm:$0xff]
    %v3202 = vld [vmem:[#allocation11 + $0x3d8] sm:$0xff]
    %v3203 = vld [vmem:[#allocation11 + $0x3e0] sm:$0xff]
    %v3204 = vld [vmem:[#allocation11 + $0x3e8] sm:$0xff]
    %v3205 = vld [vmem:[#allocation11 + $0x3f0] sm:$0xff]
    %v3206 = vld [vmem:[#allocation11 + $0x3f8] sm:$0xff]
    %v3335 = vunpack.c.l.b16 %v3079
    %v3336 = vunpack.c.h.b16 %v3079
    %v3337 = vunpack.c.l.b16 %v3080
    %v3338 = vunpack.c.h.b16 %v3080
    %v3339 = vunpack.c.l.b16 %v3081
    %v3340 = vunpack.c.h.b16 %v3081
    %v3341 = vunpack.c.l.b16 %v3082
    %v3342 = vunpack.c.h.b16 %v3082
    %v3343 = vunpack.c.l.b16 %v3083
    %v3344 = vunpack.c.h.b16 %v3083
    %v3345 = vunpack.c.l.b16 %v3084
    %v3346 = vunpack.c.h.b16 %v3084
    %v3347 = vunpack.c.l.b16 %v3085
    %v3348 = vunpack.c.h.b16 %v3085
    %v3349 = vunpack.c.l.b16 %v3086
    %v3350 = vunpack.c.h.b16 %v3086
    %v3351 = vunpack.c.l.b16 %v3087
    %v3352 = vunpack.c.h.b16 %v3087
    %v3353 = vunpack.c.l.b16 %v3088
    %v3354 = vunpack.c.h.b16 %v3088
    %v3355 = vunpack.c.l.b16 %v3089
    %v3356 = vunpack.c.h.b16 %v3089
    %v3357 = vunpack.c.l.b16 %v3090
    %v3358 = vunpack.c.h.b16 %v3090
    %v3359 = vunpack.c.l.b16 %v3091
    %v3360 = vunpack.c.h.b16 %v3091
    %v3361 = vunpack.c.l.b16 %v3092
    %v3362 = vunpack.c.h.b16 %v3092
    %v3363 = vunpack.c.l.b16 %v3093
    %v3364 = vunpack.c.h.b16 %v3093
    %v3365 = vunpack.c.l.b16 %v3094
    %v3366 = vunpack.c.h.b16 %v3094
    %v3367 = vunpack.c.l.b16 %v3095
    %v3368 = vunpack.c.h.b16 %v3095
    %v3369 = vunpack.c.l.b16 %v3096
    %v3370 = vunpack.c.h.b16 %v3096
    %v3371 = vunpack.c.l.b16 %v3097
    %v3372 = vunpack.c.h.b16 %v3097
    %v3373 = vunpack.c.l.b16 %v3098
    %v3374 = vunpack.c.h.b16 %v3098
    %v3375 = vunpack.c.l.b16 %v3099
    %v3376 = vunpack.c.h.b16 %v3099
    %v3377 = vunpack.c.l.b16 %v3100
    %v3378 = vunpack.c.h.b16 %v3100
    %v3379 = vunpack.c.l.b16 %v3101
    %v3380 = vunpack.c.h.b16 %v3101
    %v3381 = vunpack.c.l.b16 %v3102
    %v3382 = vunpack.c.h.b16 %v3102
    %v3383 = vunpack.c.l.b16 %v3103
    %v3384 = vunpack.c.h.b16 %v3103
    %v3385 = vunpack.c.l.b16 %v3104
    %v3386 = vunpack.c.h.b16 %v3104
    %v3387 = vunpack.c.l.b16 %v3105
    %v3388 = vunpack.c.h.b16 %v3105
    %v3389 = vunpack.c.l.b16 %v3106
    %v3390 = vunpack.c.h.b16 %v3106
    %v3391 = vunpack.c.l.b16 %v3107
    %v3392 = vunpack.c.h.b16 %v3107
    %v3393 = vunpack.c.l.b16 %v3108
    %v3394 = vunpack.c.h.b16 %v3108
    %v3395 = vunpack.c.l.b16 %v3109
    %v3396 = vunpack.c.h.b16 %v3109
    %v3397 = vunpack.c.l.b16 %v3110
    %v3398 = vunpack.c.h.b16 %v3110
    %v3399 = vunpack.c.l.b16 %v3111
    %v3400 = vunpack.c.h.b16 %v3111
    %v3401 = vunpack.c.l.b16 %v3112
    %v3402 = vunpack.c.h.b16 %v3112
    %v3403 = vunpack.c.l.b16 %v3113
    %v3404 = vunpack.c.h.b16 %v3113
    %v3405 = vunpack.c.l.b16 %v3114
    %v3406 = vunpack.c.h.b16 %v3114
    %v3407 = vunpack.c.l.b16 %v3115
    %v3408 = vunpack.c.h.b16 %v3115
    %v3409 = vunpack.c.l.b16 %v3116
    %v3410 = vunpack.c.h.b16 %v3116
    %v3411 = vunpack.c.l.b16 %v3117
    %v3412 = vunpack.c.h.b16 %v3117
    %v3413 = vunpack.c.l.b16 %v3118
    %v3414 = vunpack.c.h.b16 %v3118
    %v3415 = vunpack.c.l.b16 %v3119
    %v3416 = vunpack.c.h.b16 %v3119
    %v3417 = vunpack.c.l.b16 %v3120
    %v3418 = vunpack.c.h.b16 %v3120
    %v3419 = vunpack.c.l.b16 %v3121
    %v3420 = vunpack.c.h.b16 %v3121
    %v3421 = vunpack.c.l.b16 %v3122
    %v3422 = vunpack.c.h.b16 %v3122
    %v3423 = vunpack.c.l.b16 %v3123
    %v3424 = vunpack.c.h.b16 %v3123
    %v3425 = vunpack.c.l.b16 %v3124
    %v3426 = vunpack.c.h.b16 %v3124
    %v3427 = vunpack.c.l.b16 %v3125
    %v3428 = vunpack.c.h.b16 %v3125
    %v3429 = vunpack.c.l.b16 %v3126
    %v3430 = vunpack.c.h.b16 %v3126
    %v3431 = vunpack.c.l.b16 %v3127
    %v3432 = vunpack.c.h.b16 %v3127
    %v3433 = vunpack.c.l.b16 %v3128
    %v3434 = vunpack.c.h.b16 %v3128
    %v3435 = vunpack.c.l.b16 %v3129
    %v3436 = vunpack.c.h.b16 %v3129
    %v3437 = vunpack.c.l.b16 %v3130
    %v3438 = vunpack.c.h.b16 %v3130
    %v3439 = vunpack.c.l.b16 %v3131
    %v3440 = vunpack.c.h.b16 %v3131
    %v3441 = vunpack.c.l.b16 %v3132
    %v3442 = vunpack.c.h.b16 %v3132
    %v3443 = vunpack.c.l.b16 %v3133
    %v3444 = vunpack.c.h.b16 %v3133
    %v3445 = vunpack.c.l.b16 %v3134
    %v3446 = vunpack.c.h.b16 %v3134
    %v3447 = vunpack.c.l.b16 %v3135
    %v3448 = vunpack.c.h.b16 %v3135
    %v3449 = vunpack.c.l.b16 %v3136
    %v3450 = vunpack.c.h.b16 %v3136
    %v3451 = vunpack.c.l.b16 %v3137
    %v3452 = vunpack.c.h.b16 %v3137
    %v3453 = vunpack.c.l.b16 %v3138
    %v3454 = vunpack.c.h.b16 %v3138
    %v3455 = vunpack.c.l.b16 %v3139
    %v3456 = vunpack.c.h.b16 %v3139
    %v3457 = vunpack.c.l.b16 %v3140
    %v3458 = vunpack.c.h.b16 %v3140
    %v3459 = vunpack.c.l.b16 %v3141
    %v3460 = vunpack.c.h.b16 %v3141
    %v3461 = vunpack.c.l.b16 %v3142
    %v3462 = vunpack.c.h.b16 %v3142
    %v3463 = vunpack.c.l.b16 %v3143
    %v3464 = vunpack.c.h.b16 %v3143
    %v3465 = vunpack.c.l.b16 %v3144
    %v3466 = vunpack.c.h.b16 %v3144
    %v3467 = vunpack.c.l.b16 %v3145
    %v3468 = vunpack.c.h.b16 %v3145
    %v3469 = vunpack.c.l.b16 %v3146
    %v3470 = vunpack.c.h.b16 %v3146
    %v3471 = vunpack.c.l.b16 %v3147
    %v3472 = vunpack.c.h.b16 %v3147
    %v3473 = vunpack.c.l.b16 %v3148
    %v3474 = vunpack.c.h.b16 %v3148
    %v3475 = vunpack.c.l.b16 %v3149
    %v3476 = vunpack.c.h.b16 %v3149
    %v3477 = vunpack.c.l.b16 %v3150
    %v3478 = vunpack.c.h.b16 %v3150
    %v3479 = vunpack.c.l.b16 %v3151
    %v3480 = vunpack.c.h.b16 %v3151
    %v3481 = vunpack.c.l.b16 %v3152
    %v3482 = vunpack.c.h.b16 %v3152
    %v3483 = vunpack.c.l.b16 %v3153
    %v3484 = vunpack.c.h.b16 %v3153
    %v3485 = vunpack.c.l.b16 %v3154
    %v3486 = vunpack.c.h.b16 %v3154
    %v3487 = vunpack.c.l.b16 %v3155
    %v3488 = vunpack.c.h.b16 %v3155
    %v3489 = vunpack.c.l.b16 %v3156
    %v3490 = vunpack.c.h.b16 %v3156
    %v3491 = vunpack.c.l.b16 %v3157
    %v3492 = vunpack.c.h.b16 %v3157
    %v3493 = vunpack.c.l.b16 %v3158
    %v3494 = vunpack.c.h.b16 %v3158
    %v3495 = vunpack.c.l.b16 %v3159
    %v3496 = vunpack.c.h.b16 %v3159
    %v3497 = vunpack.c.l.b16 %v3160
    %v3498 = vunpack.c.h.b16 %v3160
    %v3499 = vunpack.c.l.b16 %v3161
    %v3500 = vunpack.c.h.b16 %v3161
    %v3501 = vunpack.c.l.b16 %v3162
    %v3502 = vunpack.c.h.b16 %v3162
    %v3503 = vunpack.c.l.b16 %v3163
    %v3504 = vunpack.c.h.b16 %v3163
    %v3505 = vunpack.c.l.b16 %v3164
    %v3506 = vunpack.c.h.b16 %v3164
    %v3507 = vunpack.c.l.b16 %v3165
    %v3508 = vunpack.c.h.b16 %v3165
    %v3509 = vunpack.c.l.b16 %v3166
    %v3510 = vunpack.c.h.b16 %v3166
    %v3511 = vunpack.c.l.b16 %v3167
    %v3512 = vunpack.c.h.b16 %v3167
    %v3513 = vunpack.c.l.b16 %v3168
    %v3514 = vunpack.c.h.b16 %v3168
    %v3515 = vunpack.c.l.b16 %v3169
    %v3516 = vunpack.c.h.b16 %v3169
    %v3517 = vunpack.c.l.b16 %v3170
    %v3518 = vunpack.c.h.b16 %v3170
    %v3519 = vunpack.c.l.b16 %v3171
    %v3520 = vunpack.c.h.b16 %v3171
    %v3521 = vunpack.c.l.b16 %v3172
    %v3522 = vunpack.c.h.b16 %v3172
    %v3523 = vunpack.c.l.b16 %v3173
    %v3524 = vunpack.c.h.b16 %v3173
    %v3525 = vunpack.c.l.b16 %v3174
    %v3526 = vunpack.c.h.b16 %v3174
    %v3527 = vunpack.c.l.b16 %v3175
    %v3528 = vunpack.c.h.b16 %v3175
    %v3529 = vunpack.c.l.b16 %v3176
    %v3530 = vunpack.c.h.b16 %v3176
    %v3531 = vunpack.c.l.b16 %v3177
    %v3532 = vunpack.c.h.b16 %v3177
    %v3533 = vunpack.c.l.b16 %v3178
    %v3534 = vunpack.c.h.b16 %v3178
    %v3535 = vunpack.c.l.b16 %v3179
    %v3536 = vunpack.c.h.b16 %v3179
    %v3537 = vunpack.c.l.b16 %v3180
    %v3538 = vunpack.c.h.b16 %v3180
    %v3539 = vunpack.c.l.b16 %v3181
    %v3540 = vunpack.c.h.b16 %v3181
    %v3541 = vunpack.c.l.b16 %v3182
    %v3542 = vunpack.c.h.b16 %v3182
    %v3543 = vunpack.c.l.b16 %v3183
    %v3544 = vunpack.c.h.b16 %v3183
    %v3545 = vunpack.c.l.b16 %v3184
    %v3546 = vunpack.c.h.b16 %v3184
    %v3547 = vunpack.c.l.b16 %v3185
    %v3548 = vunpack.c.h.b16 %v3185
    %v3549 = vunpack.c.l.b16 %v3186
    %v3550 = vunpack.c.h.b16 %v3186
    %v3551 = vunpack.c.l.b16 %v3187
    %v3552 = vunpack.c.h.b16 %v3187
    %v3553 = vunpack.c.l.b16 %v3188
    %v3554 = vunpack.c.h.b16 %v3188
    %v3555 = vunpack.c.l.b16 %v3189
    %v3556 = vunpack.c.h.b16 %v3189
    %v3557 = vunpack.c.l.b16 %v3190
    %v3558 = vunpack.c.h.b16 %v3190
    %v3559 = vunpack.c.l.b16 %v3191
    %v3560 = vunpack.c.h.b16 %v3191
    %v3561 = vunpack.c.l.b16 %v3192
    %v3562 = vunpack.c.h.b16 %v3192
    %v3563 = vunpack.c.l.b16 %v3193
    %v3564 = vunpack.c.h.b16 %v3193
    %v3565 = vunpack.c.l.b16 %v3194
    %v3566 = vunpack.c.h.b16 %v3194
    %v3567 = vunpack.c.l.b16 %v3195
    %v3568 = vunpack.c.h.b16 %v3195
    %v3569 = vunpack.c.l.b16 %v3196
    %v3570 = vunpack.c.h.b16 %v3196
    %v3571 = vunpack.c.l.b16 %v3197
    %v3572 = vunpack.c.h.b16 %v3197
    %v3573 = vunpack.c.l.b16 %v3198
    %v3574 = vunpack.c.h.b16 %v3198
    %v3575 = vunpack.c.l.b16 %v3199
    %v3576 = vunpack.c.h.b16 %v3199
    %v3577 = vunpack.c.l.b16 %v3200
    %v3578 = vunpack.c.h.b16 %v3200
    %v3579 = vunpack.c.l.b16 %v3201
    %v3580 = vunpack.c.h.b16 %v3201
    %v3581 = vunpack.c.l.b16 %v3202
    %v3582 = vunpack.c.h.b16 %v3202
    %v3583 = vunpack.c.l.b16 %v3203
    %v3584 = vunpack.c.h.b16 %v3203
    %v3585 = vunpack.c.l.b16 %v3204
    %v3586 = vunpack.c.h.b16 %v3204
    %v3587 = vunpack.c.l.b16 %v3205
    %v3588 = vunpack.c.h.b16 %v3205
    %v3589 = vunpack.c.l.b16 %v3206
    %v3590 = vunpack.c.h.b16 %v3206
    %v3591 = vpack.c.b16 %v3343, %v3335
    %v3592 = vpack.c.b16 %v3344, %v3336
    %v3593 = vpack.c.b16 %v3345, %v3337
    %v3594 = vpack.c.b16 %v3346, %v3338
    %v3595 = vpack.c.b16 %v3347, %v3339
    %v3596 = vpack.c.b16 %v3348, %v3340
    %v3597 = vpack.c.b16 %v3349, %v3341
    %v3598 = vpack.c.b16 %v3350, %v3342
    %v3599 = vpack.c.b16 %v3359, %v3351
    %v3600 = vpack.c.b16 %v3360, %v3352
    %v3601 = vpack.c.b16 %v3361, %v3353
    %v3602 = vpack.c.b16 %v3362, %v3354
    %v3603 = vpack.c.b16 %v3363, %v3355
    %v3604 = vpack.c.b16 %v3364, %v3356
    %v3605 = vpack.c.b16 %v3365, %v3357
    %v3606 = vpack.c.b16 %v3366, %v3358
    %v3607 = vpack.c.b16 %v3375, %v3367
    %v3608 = vpack.c.b16 %v3376, %v3368
    %v3609 = vpack.c.b16 %v3377, %v3369
    %v3610 = vpack.c.b16 %v3378, %v3370
    %v3611 = vpack.c.b16 %v3379, %v3371
    %v3612 = vpack.c.b16 %v3380, %v3372
    %v3613 = vpack.c.b16 %v3381, %v3373
    %v3614 = vpack.c.b16 %v3382, %v3374
    %v3615 = vpack.c.b16 %v3391, %v3383
    %v3616 = vpack.c.b16 %v3392, %v3384
    %v3617 = vpack.c.b16 %v3393, %v3385
    %v3618 = vpack.c.b16 %v3394, %v3386
    %v3619 = vpack.c.b16 %v3395, %v3387
    %v3620 = vpack.c.b16 %v3396, %v3388
    %v3621 = vpack.c.b16 %v3397, %v3389
    %v3622 = vpack.c.b16 %v3398, %v3390
    %v3623 = vpack.c.b16 %v3407, %v3399
    %v3624 = vpack.c.b16 %v3408, %v3400
    %v3625 = vpack.c.b16 %v3409, %v3401
    %v3626 = vpack.c.b16 %v3410, %v3402
    %v3627 = vpack.c.b16 %v3411, %v3403
    %v3628 = vpack.c.b16 %v3412, %v3404
    %v3629 = vpack.c.b16 %v3413, %v3405
    %v3630 = vpack.c.b16 %v3414, %v3406
    %v3631 = vpack.c.b16 %v3423, %v3415
    %v3632 = vpack.c.b16 %v3424, %v3416
    %v3633 = vpack.c.b16 %v3425, %v3417
    %v3634 = vpack.c.b16 %v3426, %v3418
    %v3635 = vpack.c.b16 %v3427, %v3419
    %v3636 = vpack.c.b16 %v3428, %v3420
    %v3637 = vpack.c.b16 %v3429, %v3421
    %v3638 = vpack.c.b16 %v3430, %v3422
    %v3639 = vpack.c.b16 %v3439, %v3431
    %v3640 = vpack.c.b16 %v3440, %v3432
    %v3641 = vpack.c.b16 %v3441, %v3433
    %v3642 = vpack.c.b16 %v3442, %v3434
    %v3643 = vpack.c.b16 %v3443, %v3435
    %v3644 = vpack.c.b16 %v3444, %v3436
    %v3645 = vpack.c.b16 %v3445, %v3437
    %v3646 = vpack.c.b16 %v3446, %v3438
    %v3647 = vpack.c.b16 %v3455, %v3447
    %v3648 = vpack.c.b16 %v3456, %v3448
    %v3649 = vpack.c.b16 %v3457, %v3449
    %v3650 = vpack.c.b16 %v3458, %v3450
    %v3651 = vpack.c.b16 %v3459, %v3451
    %v3652 = vpack.c.b16 %v3460, %v3452
    %v3653 = vpack.c.b16 %v3461, %v3453
    %v3654 = vpack.c.b16 %v3462, %v3454
    %v3655 = vpack.c.b16 %v3471, %v3463
    %v3656 = vpack.c.b16 %v3472, %v3464
    %v3657 = vpack.c.b16 %v3473, %v3465
    %v3658 = vpack.c.b16 %v3474, %v3466
    %v3659 = vpack.c.b16 %v3475, %v3467
    %v3660 = vpack.c.b16 %v3476, %v3468
    %v3661 = vpack.c.b16 %v3477, %v3469
    %v3662 = vpack.c.b16 %v3478, %v3470
    %v3663 = vpack.c.b16 %v3487, %v3479
    %v3664 = vpack.c.b16 %v3488, %v3480
    %v3665 = vpack.c.b16 %v3489, %v3481
    %v3666 = vpack.c.b16 %v3490, %v3482
    %v3667 = vpack.c.b16 %v3491, %v3483
    %v3668 = vpack.c.b16 %v3492, %v3484
    %v3669 = vpack.c.b16 %v3493, %v3485
    %v3670 = vpack.c.b16 %v3494, %v3486
    %v3671 = vpack.c.b16 %v3503, %v3495
    %v3672 = vpack.c.b16 %v3504, %v3496
    %v3673 = vpack.c.b16 %v3505, %v3497
    %v3674 = vpack.c.b16 %v3506, %v3498
    %v3675 = vpack.c.b16 %v3507, %v3499
    %v3676 = vpack.c.b16 %v3508, %v3500
    %v3677 = vpack.c.b16 %v3509, %v3501
    %v3678 = vpack.c.b16 %v3510, %v3502
    %v3679 = vpack.c.b16 %v3519, %v3511
    %v3680 = vpack.c.b16 %v3520, %v3512
    %v3681 = vpack.c.b16 %v3521, %v3513
    %v3682 = vpack.c.b16 %v3522, %v3514
    %v3683 = vpack.c.b16 %v3523, %v3515
    %v3684 = vpack.c.b16 %v3524, %v3516
    %v3685 = vpack.c.b16 %v3525, %v3517
    %v3686 = vpack.c.b16 %v3526, %v3518
    %v3687 = vpack.c.b16 %v3535, %v3527
    %v3688 = vpack.c.b16 %v3536, %v3528
    %v3689 = vpack.c.b16 %v3537, %v3529
    %v3690 = vpack.c.b16 %v3538, %v3530
    %v3691 = vpack.c.b16 %v3539, %v3531
    %v3692 = vpack.c.b16 %v3540, %v3532
    %v3693 = vpack.c.b16 %v3541, %v3533
    %v3694 = vpack.c.b16 %v3542, %v3534
    %v3695 = vpack.c.b16 %v3551, %v3543
    %v3696 = vpack.c.b16 %v3552, %v3544
    %v3697 = vpack.c.b16 %v3553, %v3545
    %v3698 = vpack.c.b16 %v3554, %v3546
    %v3699 = vpack.c.b16 %v3555, %v3547
    %v3700 = vpack.c.b16 %v3556, %v3548
    %v3701 = vpack.c.b16 %v3557, %v3549
    %v3702 = vpack.c.b16 %v3558, %v3550
    %v3703 = vpack.c.b16 %v3567, %v3559
    %v3704 = vpack.c.b16 %v3568, %v3560
    %v3705 = vpack.c.b16 %v3569, %v3561
    %v3706 = vpack.c.b16 %v3570, %v3562
    %v3707 = vpack.c.b16 %v3571, %v3563
    %v3708 = vpack.c.b16 %v3572, %v3564
    %v3709 = vpack.c.b16 %v3573, %v3565
    %v3710 = vpack.c.b16 %v3574, %v3566
    %v3711 = vpack.c.b16 %v3583, %v3575
    %v3712 = vpack.c.b16 %v3584, %v3576
    %v3713 = vpack.c.b16 %v3585, %v3577
    %v3714 = vpack.c.b16 %v3586, %v3578
    %v3715 = vpack.c.b16 %v3587, %v3579
    %v3716 = vpack.c.b16 %v3588, %v3580
    %v3717 = vpack.c.b16 %v3589, %v3581
    %v3718 = vpack.c.b16 %v3590, %v3582
    %3847 = vmatprep.subr.bf16.mxu0 %v3592
    %3848 = vmatpush1.bf16.msra.mxu0 %v3591
    %3849 = vmatprep.subr.bf16.mxu0 %v3600
    %3850 = vmatpush1.bf16.msra.mxu0 %v3599
    %3851 = vmatprep.subr.bf16.mxu0 %v3608
    %3852 = vmatpush1.bf16.msra.mxu0 %v3607
    %3853 = vmatprep.subr.bf16.mxu0 %v3616
    %3854 = vmatpush1.bf16.msra.mxu0 %v3615
    %3855 = vmatprep.subr.bf16.mxu0 %v3624
    %3856 = vmatpush1.bf16.msra.mxu0 %v3623
    %3857 = vmatprep.subr.bf16.mxu0 %v3632
    %3858 = vmatpush1.bf16.msra.mxu0 %v3631
    %3859 = vmatprep.subr.bf16.mxu0 %v3640
    %3860 = vmatpush1.bf16.msra.mxu0 %v3639
    %3861 = vmatprep.subr.bf16.mxu0 %v3648
    %3862 = vmatpush1.bf16.msra.mxu0 %v3647
    %3863 = vmatprep.subr.bf16.mxu0 %v3656
    %3864 = vmatpush1.bf16.msra.mxu0 %v3655
    %3865 = vmatprep.subr.bf16.mxu0 %v3664
    %3866 = vmatpush1.bf16.msra.mxu0 %v3663
    %3867 = vmatprep.subr.bf16.mxu0 %v3672
    %3868 = vmatpush1.bf16.msra.mxu0 %v3671
    %3869 = vmatprep.subr.bf16.mxu0 %v3680
    %3870 = vmatpush1.bf16.msra.mxu0 %v3679
    %3871 = vmatprep.subr.bf16.mxu0 %v3688
    %3872 = vmatpush1.bf16.msra.mxu0 %v3687
    %3873 = vmatprep.subr.bf16.mxu0 %v3696
    %3874 = vmatpush1.bf16.msra.mxu0 %v3695
    %3875 = vmatprep.subr.bf16.mxu0 %v3704
    %3876 = vmatpush1.bf16.msra.mxu0 %v3703
    %3877 = vmatprep.subr.bf16.mxu0 %v3712
    %3878 = vmatpush1.bf16.msra.mxu0 %v3711
    %3879 = vmatprep.mubr.bf16.mxu0 %v3078
    %3880 = vmatmul.mubr.bf16.gmra.mrb[0].mxu0 %v3077
    %v3881 = vpop.f32.mrb[0].mxu0
    %v3882 = vadd.f32 0.0, %v3881
    %v3883 = vpop.f32.mrb[0].mxu0
    %v3884 = vadd.f32 0.0, %v3883
    %v3885 = vpop.f32.mrb[0].mxu0
    %v3886 = vpop.f32.mrb[0].mxu0
    %3887 = vdwg.mxu0
    %3888 = vmatprep.subr.bf16.mxu0 %v3594
    %3889 = vmatpush1.bf16.msra.mxu0 %v3593
    %3890 = vmatprep.subr.bf16.mxu0 %v3602
    %3891 = vmatpush1.bf16.msra.mxu0 %v3601
    %3892 = vmatprep.subr.bf16.mxu0 %v3610
    %3893 = vmatpush1.bf16.msra.mxu0 %v3609
    %3894 = vmatprep.subr.bf16.mxu0 %v3618
    %3895 = vmatpush1.bf16.msra.mxu0 %v3617
    %3896 = vmatprep.subr.bf16.mxu0 %v3626
    %3897 = vmatpush1.bf16.msra.mxu0 %v3625
    %3898 = vmatprep.subr.bf16.mxu0 %v3634
    %3899 = vmatpush1.bf16.msra.mxu0 %v3633
    %3900 = vmatprep.subr.bf16.mxu0 %v3642
    %3901 = vmatpush1.bf16.msra.mxu0 %v3641
    %3902 = vmatprep.subr.bf16.mxu0 %v3650
    %3903 = vmatpush1.bf16.msra.mxu0 %v3649
    %3904 = vmatprep.subr.bf16.mxu0 %v3658
    %3905 = vmatpush1.bf16.msra.mxu0 %v3657
    %3906 = vmatprep.subr.bf16.mxu0 %v3666
    %3907 = vmatpush1.bf16.msra.mxu0 %v3665
    %3908 = vmatprep.subr.bf16.mxu0 %v3674
    %3909 = vmatpush1.bf16.msra.mxu0 %v3673
    %3910 = vmatprep.subr.bf16.mxu0 %v3682
    %3911 = vmatpush1.bf16.msra.mxu0 %v3681
    %3912 = vmatprep.subr.bf16.mxu0 %v3690
    %3913 = vmatpush1.bf16.msra.mxu0 %v3689
    %3914 = vmatprep.subr.bf16.mxu0 %v3698
    %3915 = vmatpush1.bf16.msra.mxu0 %v3697
    %3916 = vmatprep.subr.bf16.mxu0 %v3706
    %3917 = vmatpush1.bf16.msra.mxu0 %v3705
    %3918 = vmatprep.subr.bf16.mxu0 %v3714
    %3919 = vmatpush1.bf16.msra.mxu0 %v3713
    %3920 = vmatprep.mubr.bf16.mxu0 %v3078
    %3921 = vmatmul.mubr.bf16.gmra.mrb[0].mxu0 %v3077
    %v3922 = vpop.f32.mrb[0].mxu0
    %v3923 = vadd.f32 0.0, %v3922
    %v3924 = vpop.f32.mrb[0].mxu0
    %v3925 = vadd.f32 0.0, %v3924
    %v3926 = vpop.f32.mrb[0].mxu0
    %v3927 = vpop.f32.mrb[0].mxu0
    %3928 = vdwg.mxu0
    %3929 = vmatprep.subr.bf16.mxu0 %v3596
    %3930 = vmatpush1.bf16.msra.mxu0 %v3595
    %3931 = vmatprep.subr.bf16.mxu0 %v3604
    %3932 = vmatpush1.bf16.msra.mxu0 %v3603
    %3933 = vmatprep.subr.bf16.mxu0 %v3612
    %3934 = vmatpush1.bf16.msra.mxu0 %v3611
    %3935 = vmatprep.subr.bf16.mxu0 %v3620
    %3936 = vmatpush1.bf16.msra.mxu0 %v3619
    %3937 = vmatprep.subr.bf16.mxu0 %v3628
    %3938 = vmatpush1.bf16.msra.mxu0 %v3627
    %3939 = vmatprep.subr.bf16.mxu0 %v3636
    %3940 = vmatpush1.bf16.msra.mxu0 %v3635
    %3941 = vmatprep.subr.bf16.mxu0 %v3644
    %3942 = vmatpush1.bf16.msra.mxu0 %v3643
    %3943 = vmatprep.subr.bf16.mxu0 %v3652
    %3944 = vmatpush1.bf16.msra.mxu0 %v3651
    %3945 = vmatprep.subr.bf16.mxu0 %v3660
    %3946 = vmatpush1.bf16.msra.mxu0 %v3659
    %3947 = vmatprep.subr.bf16.mxu0 %v3668
    %3948 = vmatpush1.bf16.msra.mxu0 %v3667
    %3949 = vmatprep.subr.bf16.mxu0 %v3676
    %3950 = vmatpush1.bf16.msra.mxu0 %v3675
    %3951 = vmatprep.subr.bf16.mxu0 %v3684
    %3952 = vmatpush1.bf16.msra.mxu0 %v3683
    %3953 = vmatprep.subr.bf16.mxu0 %v3692
    %3954 = vmatpush1.bf16.msra.mxu0 %v3691
    %3955 = vmatprep.subr.bf16.mxu0 %v3700
    %3956 = vmatpush1.bf16.msra.mxu0 %v3699
    %3957 = vmatprep.subr.bf16.mxu0 %v3708
    %3958 = vmatpush1.bf16.msra.mxu0 %v3707
    %3959 = vmatprep.subr.bf16.mxu0 %v3716
    %3960 = vmatpush1.bf16.msra.mxu0 %v3715
    %3961 = vmatprep.mubr.bf16.mxu0 %v3078
    %3962 = vmatmul.mubr.bf16.gmra.mrb[0].mxu0 %v3077
    %v3963 = vpop.f32.mrb[0].mxu0
    %v3964 = vadd.f32 0.0, %v3963
    %v3965 = vpop.f32.mrb[0].mxu0
    %v3966 = vadd.f32 0.0, %v3965
    %v3967 = vpop.f32.mrb[0].mxu0
    %v3968 = vpop.f32.mrb[0].mxu0
    %3969 = vdwg.mxu0
    %3970 = vmatprep.subr.bf16.mxu0 %v3598
    %3971 = vmatpush1.bf16.msra.mxu0 %v3597
    %3972 = vmatprep.subr.bf16.mxu0 %v3606
    %3973 = vmatpush1.bf16.msra.mxu0 %v3605
    %3974 = vmatprep.subr.bf16.mxu0 %v3614
    %3975 = vmatpush1.bf16.msra.mxu0 %v3613
    %3976 = vmatprep.subr.bf16.mxu0 %v3622
    %3977 = vmatpush1.bf16.msra.mxu0 %v3621
    %3978 = vmatprep.subr.bf16.mxu0 %v3630
    %3979 = vmatpush1.bf16.msra.mxu0 %v3629
    %3980 = vmatprep.subr.bf16.mxu0 %v3638
    %3981 = vmatpush1.bf16.msra.mxu0 %v3637
    %3982 = vmatprep.subr.bf16.mxu0 %v3646
    %3983 = vmatpush1.bf16.msra.mxu0 %v3645
    %3984 = vmatprep.subr.bf16.mxu0 %v3654
    %3985 = vmatpush1.bf16.msra.mxu0 %v3653
    %3986 = vmatprep.subr.bf16.mxu0 %v3662
    %3987 = vmatpush1.bf16.msra.mxu0 %v3661
    %3988 = vmatprep.subr.bf16.mxu0 %v3670
    %3989 = vmatpush1.bf16.msra.mxu0 %v3669
    %3990 = vmatprep.subr.bf16.mxu0 %v3678
    %3991 = vmatpush1.bf16.msra.mxu0 %v3677
    %3992 = vmatprep.subr.bf16.mxu0 %v3686
    %3993 = vmatpush1.bf16.msra.mxu0 %v3685
    %3994 = vmatprep.subr.bf16.mxu0 %v3694
    %3995 = vmatpush1.bf16.msra.mxu0 %v3693
    %3996 = vmatprep.subr.bf16.mxu0 %v3702
    %3997 = vmatpush1.bf16.msra.mxu0 %v3701
    %3998 = vmatprep.subr.bf16.mxu0 %v3710
    %3999 = vmatpush1.bf16.msra.mxu0 %v3709
    %4000 = vmatprep.subr.bf16.mxu0 %v3718
    %4001 = vmatpush1.bf16.msra.mxu0 %v3717
    %4002 = vmatprep.mubr.bf16.mxu0 %v3078
    %4003 = vmatmul.mubr.bf16.gmra.mrb[0].mxu0 %v3077
    %v4004 = vpop.f32.mrb[0].mxu0
    %v4005 = vadd.f32 0.0, %v4004
    %v4006 = vpop.f32.mrb[0].mxu0
    %v4007 = vadd.f32 0.0, %v4006
    %v4008 = vpop.f32.mrb[0].mxu0
    %v4009 = vpop.f32.mrb[0].mxu0
    %4010 = vdwg.mxu0
    %v4011 = vadd.f32 %v3069, %v3882
    %v4012 = vadd.f32 %v3070, %v3884
    %v4013 = vadd.f32 %v3071, %v3923
    %v4014 = vadd.f32 %v3072, %v3925
    %v4015 = vadd.f32 %v3073, %v3964
    %v4016 = vadd.f32 %v3074, %v3966
    %v4017 = vadd.f32 %v3075, %v4005
    %v4018 = vadd.f32 %v3076, %v4007
    %v4019 = vxor.u32 %v4011, 2147483648
    %v4020 = vxor.u32 %v4012, 2147483648
    %v4021 = vmul.f32 %v4019, 1.442695
    %v4022 = vpow.pop %v4021
    %v4023 = vmul.f32 %v4020, 1.442695
    %v4024 = vpow.pop %v4023
    %v4025 = vadd.f32 %v4022, 1.0
    %v4026 = vadd.f32 %v4024, 1.0
    %v4027 = vrcp.pop %v4025
    %v4028 = vmul.f32 1.0, %v4027
    %v4029 = vrcp.pop %v4026
    %v4030 = vmul.f32 1.0, %v4029
    %v4031 = vxor.u32 %v4013, 2147483648
    %v4032 = vxor.u32 %v4014, 2147483648
    %v4033 = vmul.f32 %v4031, 1.442695
    %v4034 = vpow.pop %v4033
    %v4035 = vmul.f32 %v4032, 1.442695
    %v4036 = vpow.pop %v4035
    %v4037 = vadd.f32 %v4034, 1.0
    %v4038 = vadd.f32 %v4036, 1.0
    %v4039 = vrcp.pop %v4037
    %v4040 = vmul.f32 1.0, %v4039
    %v4041 = vrcp.pop %v4038
    %v4042 = vmul.f32 1.0, %v4041
    %v4043 = vtanh.pop %v4015
    %v4044 = vtanh.pop %v4016
    %v4045 = vxor.u32 %v4017, 2147483648
    %v4046 = vxor.u32 %v4018, 2147483648
    %v4047 = vmul.f32 %v4045, 1.442695
    %v4048 = vpow.pop %v4047
    %v4049 = vmul.f32 %v4046, 1.442695
    %v4050 = vpow.pop %v4049
    %v4051 = vadd.f32 %v4048, 1.0
    %v4052 = vadd.f32 %v4050, 1.0
    %v4053 = vrcp.pop %v4051
    %v4054 = vmul.f32 1.0, %v4053
    %v4055 = vrcp.pop %v4052
    %v4056 = vmul.f32 1.0, %v4055
    %v4057 = vmul.f32 %v4040, %v2608
    %v4058 = vmul.f32 %v4042, %v2609
    %v4059 = vmul.f32 %v4028, %v4043
    %v4060 = vmul.f32 %v4030, %v4044
    %v4061 = vadd.f32 %v4057, %v4059
    %v4062 = vadd.f32 %v4058, %v4060
    %v4063 = vtanh.pop %v4061
    %v4064 = vtanh.pop %v4062
    %v4065 = vmul.f32 %v4054, %v4063
    %v4066 = vmul.f32 %v4056, %v4064
    %4067 = vset.pattern.permute.xlu0 1
    %4068 = vperm.xlu0 %4067, %v368
    %v4069 = vpop.permute.xlu0 %4068
    %v4071 = vmul.f32 %v4065, %v4069
    %v4072 = vmul.f32 %v4066, %v4069
    %v4073 = vadd.f32 %v2621, %v4071
    %v4074 = vadd.f32 %v2622, %v4072
    %4075 = vset.pattern.permute.xlu0 12
    %4076 = vperm.xlu0 %4075, %v377
    %v4077 = vpop.permute.xlu0 %4076
    %v4079 = vmul.f32 %v4077, %v387
    %v4080 = vmul.f32 %v4077, %v391
    %v4081 = vmul.f32 %v4077, %v395
    %v4082 = vmul.f32 %v4077, %v399
    %v4083 = vmul.f32 %v4077, %v403
    %v4084 = vmul.f32 %v4077, %v407
    %v4085 = vmul.f32 %v4077, %v411
    %v4086 = vmul.f32 %v4077, %v415
    %v4087 = vadd.f32 %v436, %v4079
    %v4088 = vadd.f32 %v440, %v4080
    %v4089 = vadd.f32 %v444, %v4081
    %v4090 = vadd.f32 %v448, %v4082
    %v4091 = vadd.f32 %v452, %v4083
    %v4092 = vadd.f32 %v456, %v4084
    %v4093 = vadd.f32 %v460, %v4085
    %v4094 = vadd.f32 %v464, %v4086
    %4095 = vset.pattern.permute.xlu0 13
    %4096 = vperm.xlu0 %4095, %v377
    %v4097 = vpop.permute.xlu0 %4096
    %v4099 = vmul.f32 %v4097, %v489
    %v4100 = vmul.f32 %v4097, %v493
    %v4101 = vmul.f32 %v4097, %v497
    %v4102 = vmul.f32 %v4097, %v501
    %v4103 = vmul.f32 %v4097, %v505
    %v4104 = vmul.f32 %v4097, %v509
    %v4105 = vmul.f32 %v4097, %v513
    %v4106 = vmul.f32 %v4097, %v517
    %v4107 = vadd.f32 %v4087, %v4099
    %v4108 = vadd.f32 %v4088, %v4100
    %v4109 = vadd.f32 %v4089, %v4101
    %v4110 = vadd.f32 %v4090, %v4102
    %v4111 = vadd.f32 %v4091, %v4103
    %v4112 = vadd.f32 %v4092, %v4104
    %v4113 = vadd.f32 %v4093, %v4105
    %v4114 = vadd.f32 %v4094, %v4106
    %4115 = vset.pattern.permute.xlu0 14
    %4116 = vperm.xlu0 %4115, %v377
    %v4117 = vpop.permute.xlu0 %4116
    %v4119 = vmul.f32 %v4117, %v550
    %v4120 = vmul.f32 %v4117, %v554
    %v4121 = vmul.f32 %v4117, %v558
    %v4122 = vmul.f32 %v4117, %v562
    %v4123 = vmul.f32 %v4117, %v566
    %v4124 = vmul.f32 %v4117, %v570
    %v4125 = vmul.f32 %v4117, %v574
    %v4126 = vmul.f32 %v4117, %v578
    %v4127 = vadd.f32 %v4107, %v4119
    %v4128 = vadd.f32 %v4108, %v4120
    %v4129 = vadd.f32 %v4109, %v4121
    %v4130 = vadd.f32 %v4110, %v4122
    %v4131 = vadd.f32 %v4111, %v4123
    %v4132 = vadd.f32 %v4112, %v4124
    %v4133 = vadd.f32 %v4113, %v4125
    %v4134 = vadd.f32 %v4114, %v4126
    %v4135 = vadd.f32 %v4127, %v2776
    %v4136 = vadd.f32 %v4128, %v2778
    %v4137 = vadd.f32 %v4129, %v2817
    %v4138 = vadd.f32 %v4130, %v2819
    %v4139 = vadd.f32 %v4131, %v2858
    %v4140 = vadd.f32 %v4132, %v2860
    %v4141 = vadd.f32 %v4133, %v2899
    %v4142 = vadd.f32 %v4134, %v2901
    %v4143 = vxor.u32 %v4135, 2147483648
    %v4144 = vxor.u32 %v4136, 2147483648
    %v4145 = vmul.f32 %v4143, 1.442695
    %v4146 = vpow.pop %v4145
    %v4147 = vmul.f32 %v4144, 1.442695
    %v4148 = vpow.pop %v4147
    %v4149 = vadd.f32 %v4146, 1.0
    %v4150 = vadd.f32 %v4148, 1.0
    %v4151 = vrcp.pop %v4149
    %v4152 = vmul.f32 1.0, %v4151
    %v4153 = vrcp.pop %v4150
    %v4154 = vmul.f32 1.0, %v4153
    %v4155 = vxor.u32 %v4137, 2147483648
    %v4156 = vxor.u32 %v4138, 2147483648
    %v4157 = vmul.f32 %v4155, 1.442695
    %v4158 = vpow.pop %v4157
    %v4159 = vmul.f32 %v4156, 1.442695
    %v4160 = vpow.pop %v4159
    %v4161 = vadd.f32 %v4158, 1.0
    %v4162 = vadd.f32 %v4160, 1.0
    %v4163 = vrcp.pop %v4161
    %v4164 = vmul.f32 1.0, %v4163
    %v4165 = vrcp.pop %v4162
    %v4166 = vmul.f32 1.0, %v4165
    %v4167 = vtanh.pop %v4139
    %v4168 = vtanh.pop %v4140
    %v4169 = vxor.u32 %v4141, 2147483648
    %v4170 = vxor.u32 %v4142, 2147483648
    %v4171 = vmul.f32 %v4169, 1.442695
    %v4172 = vpow.pop %v4171
    %v4173 = vmul.f32 %v4170, 1.442695
    %v4174 = vpow.pop %v4173
    %v4175 = vadd.f32 %v4172, 1.0
    %v4176 = vadd.f32 %v4174, 1.0
    %v4177 = vrcp.pop %v4175
    %v4178 = vmul.f32 1.0, %v4177
    %v4179 = vrcp.pop %v4176
    %v4180 = vmul.f32 1.0, %v4179
    %v4181 = vmul.f32 %v4164, %v2733
    %v4182 = vmul.f32 %v4166, %v2734
    %v4183 = vmul.f32 %v4152, %v4167
    %v4184 = vmul.f32 %v4154, %v4168
    %v4185 = vadd.f32 %v4181, %v4183
    %v4186 = vadd.f32 %v4182, %v4184
    %v4187 = vtanh.pop %v4185
    %v4188 = vtanh.pop %v4186
    %v4189 = vmul.f32 %v4178, %v4187
    %v4190 = vmul.f32 %v4180, %v4188
    %v4191 = vpack.c.bf16 %v4189, %v4189
    %v4192 = vpack.c.bf16 %v4190, %v4190
    %4193 = vmatprep.subr.bf16.mxu0 %v1678
    %4194 = vmatpush1.bf16.msra.mxu0 %v1677
    %4195 = vmatprep.subr.bf16.mxu0 %v1694
    %4196 = vmatpush1.bf16.msra.mxu0 %v1693
    %4197 = vmatprep.subr.bf16.mxu0 %v1710
    %4198 = vmatpush1.bf16.msra.mxu0 %v1709
    %4199 = vmatprep.subr.bf16.mxu0 %v1726
    %4200 = vmatpush1.bf16.msra.mxu0 %v1725
    %4201 = vmatprep.subr.bf16.mxu0 %v1742
    %4202 = vmatpush1.bf16.msra.mxu0 %v1741
    %4203 = vmatprep.subr.bf16.mxu0 %v1758
    %4204 = vmatpush1.bf16.msra.mxu0 %v1757
    %4205 = vmatprep.subr.bf16.mxu0 %v1774
    %4206 = vmatpush1.bf16.msra.mxu0 %v1773
    %4207 = vmatprep.subr.bf16.mxu0 %v1790
    %4208 = vmatpush1.bf16.msra.mxu0 %v1789
    %4209 = vmatprep.subr.bf16.mxu0 %v1806
    %4210 = vmatpush1.bf16.msra.mxu0 %v1805
    %4211 = vmatprep.subr.bf16.mxu0 %v1822
    %4212 = vmatpush1.bf16.msra.mxu0 %v1821
    %4213 = vmatprep.subr.bf16.mxu0 %v1838
    %4214 = vmatpush1.bf16.msra.mxu0 %v1837
    %4215 = vmatprep.subr.bf16.mxu0 %v1854
    %4216 = vmatpush1.bf16.msra.mxu0 %v1853
    %4217 = vmatprep.subr.bf16.mxu0 %v1870
    %4218 = vmatpush1.bf16.msra.mxu0 %v1869
    %4219 = vmatprep.subr.bf16.mxu0 %v1886
    %4220 = vmatpush1.bf16.msra.mxu0 %v1885
    %4221 = vmatprep.subr.bf16.mxu0 %v1902
    %4222 = vmatpush1.bf16.msra.mxu0 %v1901
    %4223 = vmatprep.subr.bf16.mxu0 %v1918
    %4224 = vmatpush1.bf16.msra.mxu0 %v1917
    %4225 = vmatprep.mubr.bf16.mxu0 %v4192
    %4226 = vmatmul.mubr.bf16.gmra.mrb[0].mxu0 %v4191
    %v4227 = vpop.f32.mrb[0].mxu0
    %v4228 = vadd.f32 0.0, %v4227
    %v4229 = vpop.f32.mrb[0].mxu0
    %v4230 = vadd.f32 0.0, %v4229
    %v4231 = vpop.f32.mrb[0].mxu0
    %v4232 = vpop.f32.mrb[0].mxu0
    %4233 = vdwg.mxu0
    %4234 = vmatprep.subr.bf16.mxu0 %v1680
    %4235 = vmatpush1.bf16.msra.mxu0 %v1679
    %4236 = vmatprep.subr.bf16.mxu0 %v1696
    %4237 = vmatpush1.bf16.msra.mxu0 %v1695
    %4238 = vmatprep.subr.bf16.mxu0 %v1712
    %4239 = vmatpush1.bf16.msra.mxu0 %v1711
    %4240 = vmatprep.subr.bf16.mxu0 %v1728
    %4241 = vmatpush1.bf16.msra.mxu0 %v1727
    %4242 = vmatprep.subr.bf16.mxu0 %v1744
    %4243 = vmatpush1.bf16.msra.mxu0 %v1743
    %4244 = vmatprep.subr.bf16.mxu0 %v1760
    %4245 = vmatpush1.bf16.msra.mxu0 %v1759
    %4246 = vmatprep.subr.bf16.mxu0 %v1776
    %4247 = vmatpush1.bf16.msra.mxu0 %v1775
    %4248 = vmatprep.subr.bf16.mxu0 %v1792
    %4249 = vmatpush1.bf16.msra.mxu0 %v1791
    %4250 = vmatprep.subr.bf16.mxu0 %v1808
    %4251 = vmatpush1.bf16.msra.mxu0 %v1807
    %4252 = vmatprep.subr.bf16.mxu0 %v1824
    %4253 = vmatpush1.bf16.msra.mxu0 %v1823
    %4254 = vmatprep.subr.bf16.mxu0 %v1840
    %4255 = vmatpush1.bf16.msra.mxu0 %v1839
    %4256 = vmatprep.subr.bf16.mxu0 %v1856
    %4257 = vmatpush1.bf16.msra.mxu0 %v1855
    %4258 = vmatprep.subr.bf16.mxu0 %v1872
    %4259 = vmatpush1.bf16.msra.mxu0 %v1871
    %4260 = vmatprep.subr.bf16.mxu0 %v1888
    %4261 = vmatpush1.bf16.msra.mxu0 %v1887
    %4262 = vmatprep.subr.bf16.mxu0 %v1904
    %4263 = vmatpush1.bf16.msra.mxu0 %v1903
    %4264 = vmatprep.subr.bf16.mxu0 %v1920
    %4265 = vmatpush1.bf16.msra.mxu0 %v1919
    %4266 = vmatprep.mubr.bf16.mxu0 %v4192
    %4267 = vmatmul.mubr.bf16.gmra.mrb[0].mxu0 %v4191
    %v4268 = vpop.f32.mrb[0].mxu0
    %v4269 = vadd.f32 0.0, %v4268
    %v4270 = vpop.f32.mrb[0].mxu0
    %v4271 = vadd.f32 0.0, %v4270
    %v4272 = vpop.f32.mrb[0].mxu0
    %v4273 = vpop.f32.mrb[0].mxu0
    %4274 = vdwg.mxu0
    %4275 = vmatprep.subr.bf16.mxu0 %v1682
    %4276 = vmatpush1.bf16.msra.mxu0 %v1681
    %4277 = vmatprep.subr.bf16.mxu0 %v1698
    %4278 = vmatpush1.bf16.msra.mxu0 %v1697
    %4279 = vmatprep.subr.bf16.mxu0 %v1714
    %4280 = vmatpush1.bf16.msra.mxu0 %v1713
    %4281 = vmatprep.subr.bf16.mxu0 %v1730
    %4282 = vmatpush1.bf16.msra.mxu0 %v1729
    %4283 = vmatprep.subr.bf16.mxu0 %v1746
    %4284 = vmatpush1.bf16.msra.mxu0 %v1745
    %4285 = vmatprep.subr.bf16.mxu0 %v1762
    %4286 = vmatpush1.bf16.msra.mxu0 %v1761
    %4287 = vmatprep.subr.bf16.mxu0 %v1778
    %4288 = vmatpush1.bf16.msra.mxu0 %v1777
    %4289 = vmatprep.subr.bf16.mxu0 %v1794
    %4290 = vmatpush1.bf16.msra.mxu0 %v1793
    %4291 = vmatprep.subr.bf16.mxu0 %v1810
    %4292 = vmatpush1.bf16.msra.mxu0 %v1809
    %4293 = vmatprep.subr.bf16.mxu0 %v1826
    %4294 = vmatpush1.bf16.msra.mxu0 %v1825
    %4295 = vmatprep.subr.bf16.mxu0 %v1842
    %4296 = vmatpush1.bf16.msra.mxu0 %v1841
    %4297 = vmatprep.subr.bf16.mxu0 %v1858
    %4298 = vmatpush1.bf16.msra.mxu0 %v1857
    %4299 = vmatprep.subr.bf16.mxu0 %v1874
    %4300 = vmatpush1.bf16.msra.mxu0 %v1873
    %4301 = vmatprep.subr.bf16.mxu0 %v1890
    %4302 = vmatpush1.bf16.msra.mxu0 %v1889
    %4303 = vmatprep.subr.bf16.mxu0 %v1906
    %4304 = vmatpush1.bf16.msra.mxu0 %v1905
    %4305 = vmatprep.subr.bf16.mxu0 %v1922
    %4306 = vmatpush1.bf16.msra.mxu0 %v1921
    %4307 = vmatprep.mubr.bf16.mxu0 %v4192
    %4308 = vmatmul.mubr.bf16.gmra.mrb[0].mxu0 %v4191
    %v4309 = vpop.f32.mrb[0].mxu0
    %v4310 = vadd.f32 0.0, %v4309
    %v4311 = vpop.f32.mrb[0].mxu0
    %v4312 = vadd.f32 0.0, %v4311
    %v4313 = vpop.f32.mrb[0].mxu0
    %v4314 = vpop.f32.mrb[0].mxu0
    %4315 = vdwg.mxu0
    %4316 = vmatprep.subr.bf16.mxu0 %v1684
    %4317 = vmatpush1.bf16.msra.mxu0 %v1683
    %4318 = vmatprep.subr.bf16.mxu0 %v1700
    %4319 = vmatpush1.bf16.msra.mxu0 %v1699
    %4320 = vmatprep.subr.bf16.mxu0 %v1716
    %4321 = vmatpush1.bf16.msra.mxu0 %v1715
    %4322 = vmatprep.subr.bf16.mxu0 %v1732
    %4323 = vmatpush1.bf16.msra.mxu0 %v1731
    %4324 = vmatprep.subr.bf16.mxu0 %v1748
    %4325 = vmatpush1.bf16.msra.mxu0 %v1747
    %4326 = vmatprep.subr.bf16.mxu0 %v1764
    %4327 = vmatpush1.bf16.msra.mxu0 %v1763
    %4328 = vmatprep.subr.bf16.mxu0 %v1780
    %4329 = vmatpush1.bf16.msra.mxu0 %v1779
    %4330 = vmatprep.subr.bf16.mxu0 %v1796
    %4331 = vmatpush1.bf16.msra.mxu0 %v1795
    %4332 = vmatprep.subr.bf16.mxu0 %v1812
    %4333 = vmatpush1.bf16.msra.mxu0 %v1811
    %4334 = vmatprep.subr.bf16.mxu0 %v1828
    %4335 = vmatpush1.bf16.msra.mxu0 %v1827
    %4336 = vmatprep.subr.bf16.mxu0 %v1844
    %4337 = vmatpush1.bf16.msra.mxu0 %v1843
    %4338 = vmatprep.subr.bf16.mxu0 %v1860
    %4339 = vmatpush1.bf16.msra.mxu0 %v1859
    %4340 = vmatprep.subr.bf16.mxu0 %v1876
    %4341 = vmatpush1.bf16.msra.mxu0 %v1875
    %4342 = vmatprep.subr.bf16.mxu0 %v1892
    %4343 = vmatpush1.bf16.msra.mxu0 %v1891
    %4344 = vmatprep.subr.bf16.mxu0 %v1908
    %4345 = vmatpush1.bf16.msra.mxu0 %v1907
    %4346 = vmatprep.subr.bf16.mxu0 %v1924
    %4347 = vmatpush1.bf16.msra.mxu0 %v1923
    %4348 = vmatprep.mubr.bf16.mxu0 %v4192
    %4349 = vmatmul.mubr.bf16.gmra.mrb[0].mxu0 %v4191
    %v4350 = vpop.f32.mrb[0].mxu0
    %v4351 = vadd.f32 0.0, %v4350
    %v4352 = vpop.f32.mrb[0].mxu0
    %v4353 = vadd.f32 0.0, %v4352
    %v4354 = vpop.f32.mrb[0].mxu0
    %v4355 = vpop.f32.mrb[0].mxu0
    %4356 = vdwg.mxu0
    %4357 = vmatprep.subr.bf16.mxu0 %v1686
    %4358 = vmatpush1.bf16.msra.mxu0 %v1685
    %4359 = vmatprep.subr.bf16.mxu0 %v1702
    %4360 = vmatpush1.bf16.msra.mxu0 %v1701
    %4361 = vmatprep.subr.bf16.mxu0 %v1718
    %4362 = vmatpush1.bf16.msra.mxu0 %v1717
    %4363 = vmatprep.subr.bf16.mxu0 %v1734
    %4364 = vmatpush1.bf16.msra.mxu0 %v1733
    %4365 = vmatprep.subr.bf16.mxu0 %v1750
    %4366 = vmatpush1.bf16.msra.mxu0 %v1749
    %4367 = vmatprep.subr.bf16.mxu0 %v1766
    %4368 = vmatpush1.bf16.msra.mxu0 %v1765
    %4369 = vmatprep.subr.bf16.mxu0 %v1782
    %4370 = vmatpush1.bf16.msra.mxu0 %v1781
    %4371 = vmatprep.subr.bf16.mxu0 %v1798
    %4372 = vmatpush1.bf16.msra.mxu0 %v1797
    %4373 = vmatprep.subr.bf16.mxu0 %v1814
    %4374 = vmatpush1.bf16.msra.mxu0 %v1813
    %4375 = vmatprep.subr.bf16.mxu0 %v1830
    %4376 = vmatpush1.bf16.msra.mxu0 %v1829
    %4377 = vmatprep.subr.bf16.mxu0 %v1846
    %4378 = vmatpush1.bf16.msra.mxu0 %v1845
    %4379 = vmatprep.subr.bf16.mxu0 %v1862
    %4380 = vmatpush1.bf16.msra.mxu0 %v1861
    %4381 = vmatprep.subr.bf16.mxu0 %v1878
    %4382 = vmatpush1.bf16.msra.mxu0 %v1877
    %4383 = vmatprep.subr.bf16.mxu0 %v1894
    %4384 = vmatpush1.bf16.msra.mxu0 %v1893
    %4385 = vmatprep.subr.bf16.mxu0 %v1910
    %4386 = vmatpush1.bf16.msra.mxu0 %v1909
    %4387 = vmatprep.subr.bf16.mxu0 %v1926
    %4388 = vmatpush1.bf16.msra.mxu0 %v1925
    %4389 = vmatprep.mubr.bf16.mxu0 %v4192
    %4390 = vmatmul.mubr.bf16.gmra.mrb[0].mxu0 %v4191
    %v4391 = vpop.f32.mrb[0].mxu0
    %v4392 = vadd.f32 0.0, %v4391
    %v4393 = vpop.f32.mrb[0].mxu0
    %v4394 = vadd.f32 0.0, %v4393
    %v4395 = vpop.f32.mrb[0].mxu0
    %v4396 = vpop.f32.mrb[0].mxu0
    %4397 = vdwg.mxu0
    %4398 = vmatprep.subr.bf16.mxu0 %v1688
    %4399 = vmatpush1.bf16.msra.mxu0 %v1687
    %4400 = vmatprep.subr.bf16.mxu0 %v1704
    %4401 = vmatpush1.bf16.msra.mxu0 %v1703
    %4402 = vmatprep.subr.bf16.mxu0 %v1720
    %4403 = vmatpush1.bf16.msra.mxu0 %v1719
    %4404 = vmatprep.subr.bf16.mxu0 %v1736
    %4405 = vmatpush1.bf16.msra.mxu0 %v1735
    %4406 = vmatprep.subr.bf16.mxu0 %v1752
    %4407 = vmatpush1.bf16.msra.mxu0 %v1751
    %4408 = vmatprep.subr.bf16.mxu0 %v1768
    %4409 = vmatpush1.bf16.msra.mxu0 %v1767
    %4410 = vmatprep.subr.bf16.mxu0 %v1784
    %4411 = vmatpush1.bf16.msra.mxu0 %v1783
    %4412 = vmatprep.subr.bf16.mxu0 %v1800
    %4413 = vmatpush1.bf16.msra.mxu0 %v1799
    %4414 = vmatprep.subr.bf16.mxu0 %v1816
    %4415 = vmatpush1.bf16.msra.mxu0 %v1815
    %4416 = vmatprep.subr.bf16.mxu0 %v1832
    %4417 = vmatpush1.bf16.msra.mxu0 %v1831
    %4418 = vmatprep.subr.bf16.mxu0 %v1848
    %4419 = vmatpush1.bf16.msra.mxu0 %v1847
    %4420 = vmatprep.subr.bf16.mxu0 %v1864
    %4421 = vmatpush1.bf16.msra.mxu0 %v1863
    %4422 = vmatprep.subr.bf16.mxu0 %v1880
    %4423 = vmatpush1.bf16.msra.mxu0 %v1879
    %4424 = vmatprep.subr.bf16.mxu0 %v1896
    %4425 = vmatpush1.bf16.msra.mxu0 %v1895
    %4426 = vmatprep.subr.bf16.mxu0 %v1912
    %4427 = vmatpush1.bf16.msra.mxu0 %v1911
    %4428 = vmatprep.subr.bf16.mxu0 %v1928
    %4429 = vmatpush1.bf16.msra.mxu0 %v1927
    %4430 = vmatprep.mubr.bf16.mxu0 %v4192
    %4431 = vmatmul.mubr.bf16.gmra.mrb[0].mxu0 %v4191
    %v4432 = vpop.f32.mrb[0].mxu0
    %v4433 = vadd.f32 0.0, %v4432
    %v4434 = vpop.f32.mrb[0].mxu0
    %v4435 = vadd.f32 0.0, %v4434
    %v4436 = vpop.f32.mrb[0].mxu0
    %v4437 = vpop.f32.mrb[0].mxu0
    %4438 = vdwg.mxu0
    %4439 = vmatprep.subr.bf16.mxu0 %v1690
    %4440 = vmatpush1.bf16.msra.mxu0 %v1689
    %4441 = vmatprep.subr.bf16.mxu0 %v1706
    %4442 = vmatpush1.bf16.msra.mxu0 %v1705
    %4443 = vmatprep.subr.bf16.mxu0 %v1722
    %4444 = vmatpush1.bf16.msra.mxu0 %v1721
    %4445 = vmatprep.subr.bf16.mxu0 %v1738
    %4446 = vmatpush1.bf16.msra.mxu0 %v1737
    %4447 = vmatprep.subr.bf16.mxu0 %v1754
    %4448 = vmatpush1.bf16.msra.mxu0 %v1753
    %4449 = vmatprep.subr.bf16.mxu0 %v1770
    %4450 = vmatpush1.bf16.msra.mxu0 %v1769
    %4451 = vmatprep.subr.bf16.mxu0 %v1786
    %4452 = vmatpush1.bf16.msra.mxu0 %v1785
    %4453 = vmatprep.subr.bf16.mxu0 %v1802
    %4454 = vmatpush1.bf16.msra.mxu0 %v1801
    %4455 = vmatprep.subr.bf16.mxu0 %v1818
    %4456 = vmatpush1.bf16.msra.mxu0 %v1817
    %4457 = vmatprep.subr.bf16.mxu0 %v1834
    %4458 = vmatpush1.bf16.msra.mxu0 %v1833
    %4459 = vmatprep.subr.bf16.mxu0 %v1850
    %4460 = vmatpush1.bf16.msra.mxu0 %v1849
    %4461 = vmatprep.subr.bf16.mxu0 %v1866
    %4462 = vmatpush1.bf16.msra.mxu0 %v1865
    %4463 = vmatprep.subr.bf16.mxu0 %v1882
    %4464 = vmatpush1.bf16.msra.mxu0 %v1881
    %4465 = vmatprep.subr.bf16.mxu0 %v1898
    %4466 = vmatpush1.bf16.msra.mxu0 %v1897
    %4467 = vmatprep.subr.bf16.mxu0 %v1914
    %4468 = vmatpush1.bf16.msra.mxu0 %v1913
    %4469 = vmatprep.subr.bf16.mxu0 %v1930
    %4470 = vmatpush1.bf16.msra.mxu0 %v1929
    %4471 = vmatprep.mubr.bf16.mxu0 %v4192
    %4472 = vmatmul.mubr.bf16.gmra.mrb[0].mxu0 %v4191
    %v4473 = vpop.f32.mrb[0].mxu0
    %v4474 = vadd.f32 0.0, %v4473
    %v4475 = vpop.f32.mrb[0].mxu0
    %v4476 = vadd.f32 0.0, %v4475
    %v4477 = vpop.f32.mrb[0].mxu0
    %v4478 = vpop.f32.mrb[0].mxu0
    %4479 = vdwg.mxu0
    %4480 = vmatprep.subr.bf16.mxu0 %v1692
    %4481 = vmatpush1.bf16.msra.mxu0 %v1691
    %4482 = vmatprep.subr.bf16.mxu0 %v1708
    %4483 = vmatpush1.bf16.msra.mxu0 %v1707
    %4484 = vmatprep.subr.bf16.mxu0 %v1724
    %4485 = vmatpush1.bf16.msra.mxu0 %v1723
    %4486 = vmatprep.subr.bf16.mxu0 %v1740
    %4487 = vmatpush1.bf16.msra.mxu0 %v1739
    %4488 = vmatprep.subr.bf16.mxu0 %v1756
    %4489 = vmatpush1.bf16.msra.mxu0 %v1755
    %4490 = vmatprep.subr.bf16.mxu0 %v1772
    %4491 = vmatpush1.bf16.msra.mxu0 %v1771
    %4492 = vmatprep.subr.bf16.mxu0 %v1788
    %4493 = vmatpush1.bf16.msra.mxu0 %v1787
    %4494 = vmatprep.subr.bf16.mxu0 %v1804
    %4495 = vmatpush1.bf16.msra.mxu0 %v1803
    %4496 = vmatprep.subr.bf16.mxu0 %v1820
    %4497 = vmatpush1.bf16.msra.mxu0 %v1819
    %4498 = vmatprep.subr.bf16.mxu0 %v1836
    %4499 = vmatpush1.bf16.msra.mxu0 %v1835
    %4500 = vmatprep.subr.bf16.mxu0 %v1852
    %4501 = vmatpush1.bf16.msra.mxu0 %v1851
    %4502 = vmatprep.subr.bf16.mxu0 %v1868
    %4503 = vmatpush1.bf16.msra.mxu0 %v1867
    %4504 = vmatprep.subr.bf16.mxu0 %v1884
    %4505 = vmatpush1.bf16.msra.mxu0 %v1883
    %4506 = vmatprep.subr.bf16.mxu0 %v1900
    %4507 = vmatpush1.bf16.msra.mxu0 %v1899
    %4508 = vmatprep.subr.bf16.mxu0 %v1916
    %4509 = vmatpush1.bf16.msra.mxu0 %v1915
    %4510 = vmatprep.subr.bf16.mxu0 %v1932
    %4511 = vmatpush1.bf16.msra.mxu0 %v1931
    %4512 = vmatprep.mubr.bf16.mxu0 %v4192
    %4513 = vmatmul.mubr.bf16.gmra.mrb[0].mxu0 %v4191
    %v4514 = vpop.f32.mrb[0].mxu0
    %v4515 = vadd.f32 0.0, %v4514
    %v4516 = vpop.f32.mrb[0].mxu0
    %v4517 = vadd.f32 0.0, %v4516
    %v4518 = vpop.f32.mrb[0].mxu0
    %v4519 = vpop.f32.mrb[0].mxu0
    %4520 = vdwg.mxu0
    %v4521 = vadd.f32 %v2521, %v4392
    %v4522 = vadd.f32 %v2525, %v4394
    %v4523 = vadd.f32 %v2529, %v4433
    %v4524 = vadd.f32 %v2533, %v4435
    %v4525 = vadd.f32 %v2537, %v4474
    %v4526 = vadd.f32 %v2541, %v4476
    %v4527 = vadd.f32 %v2545, %v4515
    %v4528 = vadd.f32 %v2549, %v4517
    %v4529 = vpack.c.bf16 %v4065, %v4065
    %v4530 = vpack.c.bf16 %v4066, %v4066
    %4531 = vmatprep.subr.bf16.mxu0 %v3592
    %4532 = vmatpush1.bf16.msra.mxu0 %v3591
    %4533 = vmatprep.subr.bf16.mxu0 %v3600
    %4534 = vmatpush1.bf16.msra.mxu0 %v3599
    %4535 = vmatprep.subr.bf16.mxu0 %v3608
    %4536 = vmatpush1.bf16.msra.mxu0 %v3607
    %4537 = vmatprep.subr.bf16.mxu0 %v3616
    %4538 = vmatpush1.bf16.msra.mxu0 %v3615
    %4539 = vmatprep.subr.bf16.mxu0 %v3624
    %4540 = vmatpush1.bf16.msra.mxu0 %v3623
    %4541 = vmatprep.subr.bf16.mxu0 %v3632
    %4542 = vmatpush1.bf16.msra.mxu0 %v3631
    %4543 = vmatprep.subr.bf16.mxu0 %v3640
    %4544 = vmatpush1.bf16.msra.mxu0 %v3639
    %4545 = vmatprep.subr.bf16.mxu0 %v3648
    %4546 = vmatpush1.bf16.msra.mxu0 %v3647
    %4547 = vmatprep.subr.bf16.mxu0 %v3656
    %4548 = vmatpush1.bf16.msra.mxu0 %v3655
    %4549 = vmatprep.subr.bf16.mxu0 %v3664
    %4550 = vmatpush1.bf16.msra.mxu0 %v3663
    %4551 = vmatprep.subr.bf16.mxu0 %v3672
    %4552 = vmatpush1.bf16.msra.mxu0 %v3671
    %4553 = vmatprep.subr.bf16.mxu0 %v3680
    %4554 = vmatpush1.bf16.msra.mxu0 %v3679
    %4555 = vmatprep.subr.bf16.mxu0 %v3688
    %4556 = vmatpush1.bf16.msra.mxu0 %v3687
    %4557 = vmatprep.subr.bf16.mxu0 %v3696
    %4558 = vmatpush1.bf16.msra.mxu0 %v3695
    %4559 = vmatprep.subr.bf16.mxu0 %v3704
    %4560 = vmatpush1.bf16.msra.mxu0 %v3703
    %4561 = vmatprep.subr.bf16.mxu0 %v3712
    %4562 = vmatpush1.bf16.msra.mxu0 %v3711
    %4563 = vmatprep.mubr.bf16.mxu0 %v4530
    %4564 = vmatmul.mubr.bf16.gmra.mrb[0].mxu0 %v4529
    %v4565 = vpop.f32.mrb[0].mxu0
    %v4566 = vadd.f32 0.0, %v4565
    %v4567 = vpop.f32.mrb[0].mxu0
    %v4568 = vadd.f32 0.0, %v4567
    %v4569 = vpop.f32.mrb[0].mxu0
    %v4570 = vpop.f32.mrb[0].mxu0
    %4571 = vdwg.mxu0
    %4572 = vmatprep.subr.bf16.mxu0 %v3594
    %4573 = vmatpush1.bf16.msra.mxu0 %v3593
    %4574 = vmatprep.subr.bf16.mxu0 %v3602
    %4575 = vmatpush1.bf16.msra.mxu0 %v3601
    %4576 = vmatprep.subr.bf16.mxu0 %v3610
    %4577 = vmatpush1.bf16.msra.mxu0 %v3609
    %4578 = vmatprep.subr.bf16.mxu0 %v3618
    %4579 = vmatpush1.bf16.msra.mxu0 %v3617
    %4580 = vmatprep.subr.bf16.mxu0 %v3626
    %4581 = vmatpush1.bf16.msra.mxu0 %v3625
    %4582 = vmatprep.subr.bf16.mxu0 %v3634
    %4583 = vmatpush1.bf16.msra.mxu0 %v3633
    %4584 = vmatprep.subr.bf16.mxu0 %v3642
    %4585 = vmatpush1.bf16.msra.mxu0 %v3641
    %4586 = vmatprep.subr.bf16.mxu0 %v3650
    %4587 = vmatpush1.bf16.msra.mxu0 %v3649
    %4588 = vmatprep.subr.bf16.mxu0 %v3658
    %4589 = vmatpush1.bf16.msra.mxu0 %v3657
    %4590 = vmatprep.subr.bf16.mxu0 %v3666
    %4591 = vmatpush1.bf16.msra.mxu0 %v3665
    %4592 = vmatprep.subr.bf16.mxu0 %v3674
    %4593 = vmatpush1.bf16.msra.mxu0 %v3673
    %4594 = vmatprep.subr.bf16.mxu0 %v3682
    %4595 = vmatpush1.bf16.msra.mxu0 %v3681
    %4596 = vmatprep.subr.bf16.mxu0 %v3690
    %4597 = vmatpush1.bf16.msra.mxu0 %v3689
    %4598 = vmatprep.subr.bf16.mxu0 %v3698
    %4599 = vmatpush1.bf16.msra.mxu0 %v3697
    %4600 = vmatprep.subr.bf16.mxu0 %v3706
    %4601 = vmatpush1.bf16.msra.mxu0 %v3705
    %4602 = vmatprep.subr.bf16.mxu0 %v3714
    %4603 = vmatpush1.bf16.msra.mxu0 %v3713
    %4604 = vmatprep.mubr.bf16.mxu0 %v4530
    %4605 = vmatmul.mubr.bf16.gmra.mrb[0].mxu0 %v4529
    %v4606 = vpop.f32.mrb[0].mxu0
    %v4607 = vadd.f32 0.0, %v4606
    %v4608 = vpop.f32.mrb[0].mxu0
    %v4609 = vadd.f32 0.0, %v4608
    %v4610 = vpop.f32.mrb[0].mxu0
    %v4611 = vpop.f32.mrb[0].mxu0
    %4612 = vdwg.mxu0
    %4613 = vmatprep.subr.bf16.mxu0 %v3596
    %4614 = vmatpush1.bf16.msra.mxu0 %v3595
    %4615 = vmatprep.subr.bf16.mxu0 %v3604
    %4616 = vmatpush1.bf16.msra.mxu0 %v3603
    %4617 = vmatprep.subr.bf16.mxu0 %v3612
    %4618 = vmatpush1.bf16.msra.mxu0 %v3611
    %4619 = vmatprep.subr.bf16.mxu0 %v3620
    %4620 = vmatpush1.bf16.msra.mxu0 %v3619
    %4621 = vmatprep.subr.bf16.mxu0 %v3628
    %4622 = vmatpush1.bf16.msra.mxu0 %v3627
    %4623 = vmatprep.subr.bf16.mxu0 %v3636
    %4624 = vmatpush1.bf16.msra.mxu0 %v3635
    %4625 = vmatprep.subr.bf16.mxu0 %v3644
    %4626 = vmatpush1.bf16.msra.mxu0 %v3643
    %4627 = vmatprep.subr.bf16.mxu0 %v3652
    %4628 = vmatpush1.bf16.msra.mxu0 %v3651
    %4629 = vmatprep.subr.bf16.mxu0 %v3660
    %4630 = vmatpush1.bf16.msra.mxu0 %v3659
    %4631 = vmatprep.subr.bf16.mxu0 %v3668
    %4632 = vmatpush1.bf16.msra.mxu0 %v3667
    %4633 = vmatprep.subr.bf16.mxu0 %v3676
    %4634 = vmatpush1.bf16.msra.mxu0 %v3675
    %4635 = vmatprep.subr.bf16.mxu0 %v3684
    %4636 = vmatpush1.bf16.msra.mxu0 %v3683
    %4637 = vmatprep.subr.bf16.mxu0 %v3692
    %4638 = vmatpush1.bf16.msra.mxu0 %v3691
    %4639 = vmatprep.subr.bf16.mxu0 %v3700
    %4640 = vmatpush1.bf16.msra.mxu0 %v3699
    %4641 = vmatprep.subr.bf16.mxu0 %v3708
    %4642 = vmatpush1.bf16.msra.mxu0 %v3707
    %4643 = vmatprep.subr.bf16.mxu0 %v3716
    %4644 = vmatpush1.bf16.msra.mxu0 %v3715
    %4645 = vmatprep.mubr.bf16.mxu0 %v4530
    %4646 = vmatmul.mubr.bf16.gmra.mrb[0].mxu0 %v4529
    %v4647 = vpop.f32.mrb[0].mxu0
    %v4648 = vadd.f32 0.0, %v4647
    %v4649 = vpop.f32.mrb[0].mxu0
    %v4650 = vadd.f32 0.0, %v4649
    %v4651 = vpop.f32.mrb[0].mxu0
    %v4652 = vpop.f32.mrb[0].mxu0
    %4653 = vdwg.mxu0
    %4654 = vmatprep.subr.bf16.mxu0 %v3598
    %4655 = vmatpush1.bf16.msra.mxu0 %v3597
    %4656 = vmatprep.subr.bf16.mxu0 %v3606
    %4657 = vmatpush1.bf16.msra.mxu0 %v3605
    %4658 = vmatprep.subr.bf16.mxu0 %v3614
    %4659 = vmatpush1.bf16.msra.mxu0 %v3613
    %4660 = vmatprep.subr.bf16.mxu0 %v3622
    %4661 = vmatpush1.bf16.msra.mxu0 %v3621
    %4662 = vmatprep.subr.bf16.mxu0 %v3630
    %4663 = vmatpush1.bf16.msra.mxu0 %v3629
    %4664 = vmatprep.subr.bf16.mxu0 %v3638
    %4665 = vmatpush1.bf16.msra.mxu0 %v3637
    %4666 = vmatprep.subr.bf16.mxu0 %v3646
    %4667 = vmatpush1.bf16.msra.mxu0 %v3645
    %4668 = vmatprep.subr.bf16.mxu0 %v3654
    %4669 = vmatpush1.bf16.msra.mxu0 %v3653
    %4670 = vmatprep.subr.bf16.mxu0 %v3662
    %4671 = vmatpush1.bf16.msra.mxu0 %v3661
    %4672 = vmatprep.subr.bf16.mxu0 %v3670
    %4673 = vmatpush1.bf16.msra.mxu0 %v3669
    %4674 = vmatprep.subr.bf16.mxu0 %v3678
    %4675 = vmatpush1.bf16.msra.mxu0 %v3677
    %4676 = vmatprep.subr.bf16.mxu0 %v3686
    %4677 = vmatpush1.bf16.msra.mxu0 %v3685
    %4678 = vmatprep.subr.bf16.mxu0 %v3694
    %4679 = vmatpush1.bf16.msra.mxu0 %v3693
    %4680 = vmatprep.subr.bf16.mxu0 %v3702
    %4681 = vmatpush1.bf16.msra.mxu0 %v3701
    %4682 = vmatprep.subr.bf16.mxu0 %v3710
    %4683 = vmatpush1.bf16.msra.mxu0 %v3709
    %4684 = vmatprep.subr.bf16.mxu0 %v3718
    %4685 = vmatpush1.bf16.msra.mxu0 %v3717
    %4686 = vmatprep.mubr.bf16.mxu0 %v4530
    %4687 = vmatmul.mubr.bf16.gmra.mrb[0].mxu0 %v4529
    %v4688 = vpop.f32.mrb[0].mxu0
    %v4689 = vadd.f32 0.0, %v4688
    %v4690 = vpop.f32.mrb[0].mxu0
    %v4691 = vadd.f32 0.0, %v4690
    %v4692 = vpop.f32.mrb[0].mxu0
    %v4693 = vpop.f32.mrb[0].mxu0
    %4694 = vdwg.mxu0
    %v4695 = vadd.f32 %v4521, %v4566
    %v4696 = vadd.f32 %v4522, %v4568
    %v4697 = vadd.f32 %v4523, %v4607
    %v4698 = vadd.f32 %v4524, %v4609
    %v4699 = vadd.f32 %v4525, %v4648
    %v4700 = vadd.f32 %v4526, %v4650
    %v4701 = vadd.f32 %v4527, %v4689
    %v4702 = vadd.f32 %v4528, %v4691
    %v4703 = vxor.u32 %v4695, 2147483648
    %v4704 = vxor.u32 %v4696, 2147483648
    %v4705 = vmul.f32 %v4703, 1.442695
    %v4706 = vpow.pop %v4705
    %v4707 = vmul.f32 %v4704, 1.442695
    %v4708 = vpow.pop %v4707
    %v4709 = vadd.f32 %v4706, 1.0
    %v4710 = vadd.f32 %v4708, 1.0
    %v4711 = vrcp.pop %v4709
    %v4712 = vmul.f32 1.0, %v4711
    %v4713 = vrcp.pop %v4710
    %v4714 = vmul.f32 1.0, %v4713
    %v4715 = vxor.u32 %v4697, 2147483648
    %v4716 = vxor.u32 %v4698, 2147483648
    %v4717 = vmul.f32 %v4715, 1.442695
    %v4718 = vpow.pop %v4717
    %v4719 = vmul.f32 %v4716, 1.442695
    %v4720 = vpow.pop %v4719
    %v4721 = vadd.f32 %v4718, 1.0
    %v4722 = vadd.f32 %v4720, 1.0
    %v4723 = vrcp.pop %v4721
    %v4724 = vmul.f32 1.0, %v4723
    %v4725 = vrcp.pop %v4722
    %v4726 = vmul.f32 1.0, %v4725
    %v4727 = vtanh.pop %v4699
    %v4728 = vtanh.pop %v4700
    %v4729 = vxor.u32 %v4701, 2147483648
    %v4730 = vxor.u32 %v4702, 2147483648
    %v4731 = vmul.f32 %v4729, 1.442695
    %v4732 = vpow.pop %v4731
    %v4733 = vmul.f32 %v4730, 1.442695
    %v4734 = vpow.pop %v4733
    %v4735 = vadd.f32 %v4732, 1.0
    %v4736 = vadd.f32 %v4734, 1.0
    %v4737 = vrcp.pop %v4735
    %v4738 = vmul.f32 1.0, %v4737
    %v4739 = vrcp.pop %v4736
    %v4740 = vmul.f32 1.0, %v4739
    %v4741 = vmul.f32 %v4724, %v4061
    %v4742 = vmul.f32 %v4726, %v4062
    %v4743 = vmul.f32 %v4712, %v4727
    %v4744 = vmul.f32 %v4714, %v4728
    %v4745 = vadd.f32 %v4741, %v4743
    %v4746 = vadd.f32 %v4742, %v4744
    %v4747 = vtanh.pop %v4745
    %v4748 = vtanh.pop %v4746
    %v4749 = vmul.f32 %v4738, %v4747
    %v4750 = vmul.f32 %v4740, %v4748
    %4751 = vset.pattern.permute.xlu0 2
    %4752 = vperm.xlu0 %4751, %v368
    %v4753 = vpop.permute.xlu0 %4752
    %v4755 = vmul.f32 %v4749, %v4753
    %v4756 = vmul.f32 %v4750, %v4753
    %v4757 = vadd.f32 %v4073, %v4755
    %v4758 = vadd.f32 %v4074, %v4756
    %4759 = vset.pattern.permute.xlu0 18
    %4760 = vperm.xlu0 %4759, %v377
    %v4761 = vpop.permute.xlu0 %4760
    %v4763 = vmul.f32 %v4761, %v387
    %v4764 = vmul.f32 %v4761, %v391
    %v4765 = vmul.f32 %v4761, %v395
    %v4766 = vmul.f32 %v4761, %v399
    %v4767 = vmul.f32 %v4761, %v403
    %v4768 = vmul.f32 %v4761, %v407
    %v4769 = vmul.f32 %v4761, %v411
    %v4770 = vmul.f32 %v4761, %v415
    %v4771 = vadd.f32 %v436, %v4763
    %v4772 = vadd.f32 %v440, %v4764
    %v4773 = vadd.f32 %v444, %v4765
    %v4774 = vadd.f32 %v448, %v4766
    %v4775 = vadd.f32 %v452, %v4767
    %v4776 = vadd.f32 %v456, %v4768
    %v4777 = vadd.f32 %v460, %v4769
    %v4778 = vadd.f32 %v464, %v4770
    %4779 = vset.pattern.permute.xlu0 19
    %4780 = vperm.xlu0 %4779, %v377
    %v4781 = vpop.permute.xlu0 %4780
    %v4783 = vmul.f32 %v4781, %v489
    %v4784 = vmul.f32 %v4781, %v493
    %v4785 = vmul.f32 %v4781, %v497
    %v4786 = vmul.f32 %v4781, %v501
    %v4787 = vmul.f32 %v4781, %v505
    %v4788 = vmul.f32 %v4781, %v509
    %v4789 = vmul.f32 %v4781, %v513
    %v4790 = vmul.f32 %v4781, %v517
    %v4791 = vadd.f32 %v4771, %v4783
    %v4792 = vadd.f32 %v4772, %v4784
    %v4793 = vadd.f32 %v4773, %v4785
    %v4794 = vadd.f32 %v4774, %v4786
    %v4795 = vadd.f32 %v4775, %v4787
    %v4796 = vadd.f32 %v4776, %v4788
    %v4797 = vadd.f32 %v4777, %v4789
    %v4798 = vadd.f32 %v4778, %v4790
    %4799 = vset.pattern.permute.xlu0 20
    %4800 = vperm.xlu0 %4799, %v377
    %v4801 = vpop.permute.xlu0 %4800
    %v4803 = vmul.f32 %v4801, %v550
    %v4804 = vmul.f32 %v4801, %v554
    %v4805 = vmul.f32 %v4801, %v558
    %v4806 = vmul.f32 %v4801, %v562
    %v4807 = vmul.f32 %v4801, %v566
    %v4808 = vmul.f32 %v4801, %v570
    %v4809 = vmul.f32 %v4801, %v574
    %v4810 = vmul.f32 %v4801, %v578
    %v4811 = vadd.f32 %v4791, %v4803
    %v4812 = vadd.f32 %v4792, %v4804
    %v4813 = vadd.f32 %v4793, %v4805
    %v4814 = vadd.f32 %v4794, %v4806
    %v4815 = vadd.f32 %v4795, %v4807
    %v4816 = vadd.f32 %v4796, %v4808
    %v4817 = vadd.f32 %v4797, %v4809
    %v4818 = vadd.f32 %v4798, %v4810
    %v4819 = vadd.f32 %v4811, %v4228
    %v4820 = vadd.f32 %v4812, %v4230
    %v4821 = vadd.f32 %v4813, %v4269
    %v4822 = vadd.f32 %v4814, %v4271
    %v4823 = vadd.f32 %v4815, %v4310
    %v4824 = vadd.f32 %v4816, %v4312
    %v4825 = vadd.f32 %v4817, %v4351
    %v4826 = vadd.f32 %v4818, %v4353
    %v4827 = vxor.u32 %v4819, 2147483648
    %v4828 = vxor.u32 %v4820, 2147483648
    %v4829 = vmul.f32 %v4827, 1.442695
    %v4830 = vpow.pop %v4829
    %v4831 = vmul.f32 %v4828, 1.442695
    %v4832 = vpow.pop %v4831
    %v4833 = vadd.f32 %v4830, 1.0
    %v4834 = vadd.f32 %v4832, 1.0
    %v4835 = vrcp.pop %v4833
    %v4836 = vmul.f32 1.0, %v4835
    %v4837 = vrcp.pop %v4834
    %v4838 = vmul.f32 1.0, %v4837
    %v4839 = vxor.u32 %v4821, 2147483648
    %v4840 = vxor.u32 %v4822, 2147483648
    %v4841 = vmul.f32 %v4839, 1.442695
    %v4842 = vpow.pop %v4841
    %v4843 = vmul.f32 %v4840, 1.442695
    %v4844 = vpow.pop %v4843
    %v4845 = vadd.f32 %v4842, 1.0
    %v4846 = vadd.f32 %v4844, 1.0
    %v4847 = vrcp.pop %v4845
    %v4848 = vmul.f32 1.0, %v4847
    %v4849 = vrcp.pop %v4846
    %v4850 = vmul.f32 1.0, %v4849
    %v4851 = vtanh.pop %v4823
    %v4852 = vtanh.pop %v4824
    %v4853 = vxor.u32 %v4825, 2147483648
    %v4854 = vxor.u32 %v4826, 2147483648
    %v4855 = vmul.f32 %v4853, 1.442695
    %v4856 = vpow.pop %v4855
    %v4857 = vmul.f32 %v4854, 1.442695
    %v4858 = vpow.pop %v4857
    %v4859 = vadd.f32 %v4856, 1.0
    %v4860 = vadd.f32 %v4858, 1.0
    %v4861 = vrcp.pop %v4859
    %v4862 = vmul.f32 1.0, %v4861
    %v4863 = vrcp.pop %v4860
    %v4864 = vmul.f32 1.0, %v4863
    %v4865 = vmul.f32 %v4848, %v4185
    %v4866 = vmul.f32 %v4850, %v4186
    %v4867 = vmul.f32 %v4836, %v4851
    %v4868 = vmul.f32 %v4838, %v4852
    %v4869 = vadd.f32 %v4865, %v4867
    %v4870 = vadd.f32 %v4866, %v4868
    %v4871 = vtanh.pop %v4869
    %v4872 = vtanh.pop %v4870
    %v4873 = vmul.f32 %v4862, %v4871
    %v4874 = vmul.f32 %v4864, %v4872
    %v4875 = vpack.c.bf16 %v4873, %v4873
    %v4876 = vpack.c.bf16 %v4874, %v4874
    %4877 = vmatprep.subr.bf16.mxu0 %v1678
    %4878 = vmatpush1.bf16.msra.mxu0 %v1677
    %4879 = vmatprep.subr.bf16.mxu0 %v1694
    %4880 = vmatpush1.bf16.msra.mxu0 %v1693
    %4881 = vmatprep.subr.bf16.mxu0 %v1710
    %4882 = vmatpush1.bf16.msra.mxu0 %v1709
    %4883 = vmatprep.subr.bf16.mxu0 %v1726
    %4884 = vmatpush1.bf16.msra.mxu0 %v1725
    %4885 = vmatprep.subr.bf16.mxu0 %v1742
    %4886 = vmatpush1.bf16.msra.mxu0 %v1741
    %4887 = vmatprep.subr.bf16.mxu0 %v1758
    %4888 = vmatpush1.bf16.msra.mxu0 %v1757
    %4889 = vmatprep.subr.bf16.mxu0 %v1774
    %4890 = vmatpush1.bf16.msra.mxu0 %v1773
    %4891 = vmatprep.subr.bf16.mxu0 %v1790
    %4892 = vmatpush1.bf16.msra.mxu0 %v1789
    %4893 = vmatprep.subr.bf16.mxu0 %v1806
    %4894 = vmatpush1.bf16.msra.mxu0 %v1805
    %4895 = vmatprep.subr.bf16.mxu0 %v1822
    %4896 = vmatpush1.bf16.msra.mxu0 %v1821
    %4897 = vmatprep.subr.bf16.mxu0 %v1838
    %4898 = vmatpush1.bf16.msra.mxu0 %v1837
    %4899 = vmatprep.subr.bf16.mxu0 %v1854
    %4900 = vmatpush1.bf16.msra.mxu0 %v1853
    %4901 = vmatprep.subr.bf16.mxu0 %v1870
    %4902 = vmatpush1.bf16.msra.mxu0 %v1869
    %4903 = vmatprep.subr.bf16.mxu0 %v1886
    %4904 = vmatpush1.bf16.msra.mxu0 %v1885
    %4905 = vmatprep.subr.bf16.mxu0 %v1902
    %4906 = vmatpush1.bf16.msra.mxu0 %v1901
    %4907 = vmatprep.subr.bf16.mxu0 %v1918
    %4908 = vmatpush1.bf16.msra.mxu0 %v1917
    %4909 = vmatprep.mubr.bf16.mxu0 %v4876
    %4910 = vmatmul.mubr.bf16.gmra.mrb[0].mxu0 %v4875
    %v4911 = vpop.f32.mrb[0].mxu0
    %v4912 = vadd.f32 0.0, %v4911
    %v4913 = vpop.f32.mrb[0].mxu0
    %v4914 = vadd.f32 0.0, %v4913
    %v4915 = vpop.f32.mrb[0].mxu0
    %v4916 = vpop.f32.mrb[0].mxu0
    %4917 = vdwg.mxu0
    %4918 = vmatprep.subr.bf16.mxu0 %v1680
    %4919 = vmatpush1.bf16.msra.mxu0 %v1679
    %4920 = vmatprep.subr.bf16.mxu0 %v1696
    %4921 = vmatpush1.bf16.msra.mxu0 %v1695
    %4922 = vmatprep.subr.bf16.mxu0 %v1712
    %4923 = vmatpush1.bf16.msra.mxu0 %v1711
    %4924 = vmatprep.subr.bf16.mxu0 %v1728
    %4925 = vmatpush1.bf16.msra.mxu0 %v1727
    %4926 = vmatprep.subr.bf16.mxu0 %v1744
    %4927 = vmatpush1.bf16.msra.mxu0 %v1743
    %4928 = vmatprep.subr.bf16.mxu0 %v1760
    %4929 = vmatpush1.bf16.msra.mxu0 %v1759
    %4930 = vmatprep.subr.bf16.mxu0 %v1776
    %4931 = vmatpush1.bf16.msra.mxu0 %v1775
    %4932 = vmatprep.subr.bf16.mxu0 %v1792
    %4933 = vmatpush1.bf16.msra.mxu0 %v1791
    %4934 = vmatprep.subr.bf16.mxu0 %v1808
    %4935 = vmatpush1.bf16.msra.mxu0 %v1807
    %4936 = vmatprep.subr.bf16.mxu0 %v1824
    %4937 = vmatpush1.bf16.msra.mxu0 %v1823
    %4938 = vmatprep.subr.bf16.mxu0 %v1840
    %4939 = vmatpush1.bf16.msra.mxu0 %v1839
    %4940 = vmatprep.subr.bf16.mxu0 %v1856
    %4941 = vmatpush1.bf16.msra.mxu0 %v1855
    %4942 = vmatprep.subr.bf16.mxu0 %v1872
    %4943 = vmatpush1.bf16.msra.mxu0 %v1871
    %4944 = vmatprep.subr.bf16.mxu0 %v1888
    %4945 = vmatpush1.bf16.msra.mxu0 %v1887
    %4946 = vmatprep.subr.bf16.mxu0 %v1904
    %4947 = vmatpush1.bf16.msra.mxu0 %v1903
    %4948 = vmatprep.subr.bf16.mxu0 %v1920
    %4949 = vmatpush1.bf16.msra.mxu0 %v1919
    %4950 = vmatprep.mubr.bf16.mxu0 %v4876
    %4951 = vmatmul.mubr.bf16.gmra.mrb[0].mxu0 %v4875
    %v4952 = vpop.f32.mrb[0].mxu0
    %v4953 = vadd.f32 0.0, %v4952
    %v4954 = vpop.f32.mrb[0].mxu0
    %v4955 = vadd.f32 0.0, %v4954
    %v4956 = vpop.f32.mrb[0].mxu0
    %v4957 = vpop.f32.mrb[0].mxu0
    %4958 = vdwg.mxu0
    %4959 = vmatprep.subr.bf16.mxu0 %v1682
    %4960 = vmatpush1.bf16.msra.mxu0 %v1681
    %4961 = vmatprep.subr.bf16.mxu0 %v1698
    %4962 = vmatpush1.bf16.msra.mxu0 %v1697
    %4963 = vmatprep.subr.bf16.mxu0 %v1714
    %4964 = vmatpush1.bf16.msra.mxu0 %v1713
    %4965 = vmatprep.subr.bf16.mxu0 %v1730
    %4966 = vmatpush1.bf16.msra.mxu0 %v1729
    %4967 = vmatprep.subr.bf16.mxu0 %v1746
    %4968 = vmatpush1.bf16.msra.mxu0 %v1745
    %4969 = vmatprep.subr.bf16.mxu0 %v1762
    %4970 = vmatpush1.bf16.msra.mxu0 %v1761
    %4971 = vmatprep.subr.bf16.mxu0 %v1778
    %4972 = vmatpush1.bf16.msra.mxu0 %v1777
    %4973 = vmatprep.subr.bf16.mxu0 %v1794
    %4974 = vmatpush1.bf16.msra.mxu0 %v1793
    %4975 = vmatprep.subr.bf16.mxu0 %v1810
    %4976 = vmatpush1.bf16.msra.mxu0 %v1809
    %4977 = vmatprep.subr.bf16.mxu0 %v1826
    %4978 = vmatpush1.bf16.msra.mxu0 %v1825
    %4979 = vmatprep.subr.bf16.mxu0 %v1842
    %4980 = vmatpush1.bf16.msra.mxu0 %v1841
    %4981 = vmatprep.subr.bf16.mxu0 %v1858
    %4982 = vmatpush1.bf16.msra.mxu0 %v1857
    %4983 = vmatprep.subr.bf16.mxu0 %v1874
    %4984 = vmatpush1.bf16.msra.mxu0 %v1873
    %4985 = vmatprep.subr.bf16.mxu0 %v1890
    %4986 = vmatpush1.bf16.msra.mxu0 %v1889
    %4987 = vmatprep.subr.bf16.mxu0 %v1906
    %4988 = vmatpush1.bf16.msra.mxu0 %v1905
    %4989 = vmatprep.subr.bf16.mxu0 %v1922
    %4990 = vmatpush1.bf16.msra.mxu0 %v1921
    %4991 = vmatprep.mubr.bf16.mxu0 %v4876
    %4992 = vmatmul.mubr.bf16.gmra.mrb[0].mxu0 %v4875
    %v4993 = vpop.f32.mrb[0].mxu0
    %v4994 = vadd.f32 0.0, %v4993
    %v4995 = vpop.f32.mrb[0].mxu0
    %v4996 = vadd.f32 0.0, %v4995
    %v4997 = vpop.f32.mrb[0].mxu0
    %v4998 = vpop.f32.mrb[0].mxu0
    %4999 = vdwg.mxu0
    %5000 = vmatprep.subr.bf16.mxu0 %v1684
    %5001 = vmatpush1.bf16.msra.mxu0 %v1683
    %5002 = vmatprep.subr.bf16.mxu0 %v1700
    %5003 = vmatpush1.bf16.msra.mxu0 %v1699
    %5004 = vmatprep.subr.bf16.mxu0 %v1716
    %5005 = vmatpush1.bf16.msra.mxu0 %v1715
    %5006 = vmatprep.subr.bf16.mxu0 %v1732
    %5007 = vmatpush1.bf16.msra.mxu0 %v1731
    %5008 = vmatprep.subr.bf16.mxu0 %v1748
    %5009 = vmatpush1.bf16.msra.mxu0 %v1747
    %5010 = vmatprep.subr.bf16.mxu0 %v1764
    %5011 = vmatpush1.bf16.msra.mxu0 %v1763
    %5012 = vmatprep.subr.bf16.mxu0 %v1780
    %5013 = vmatpush1.bf16.msra.mxu0 %v1779
    %5014 = vmatprep.subr.bf16.mxu0 %v1796
    %5015 = vmatpush1.bf16.msra.mxu0 %v1795
    %5016 = vmatprep.subr.bf16.mxu0 %v1812
    %5017 = vmatpush1.bf16.msra.mxu0 %v1811
    %5018 = vmatprep.subr.bf16.mxu0 %v1828
    %5019 = vmatpush1.bf16.msra.mxu0 %v1827
    %5020 = vmatprep.subr.bf16.mxu0 %v1844
    %5021 = vmatpush1.bf16.msra.mxu0 %v1843
    %5022 = vmatprep.subr.bf16.mxu0 %v1860
    %5023 = vmatpush1.bf16.msra.mxu0 %v1859
    %5024 = vmatprep.subr.bf16.mxu0 %v1876
    %5025 = vmatpush1.bf16.msra.mxu0 %v1875
    %5026 = vmatprep.subr.bf16.mxu0 %v1892
    %5027 = vmatpush1.bf16.msra.mxu0 %v1891
    %5028 = vmatprep.subr.bf16.mxu0 %v1908
    %5029 = vmatpush1.bf16.msra.mxu0 %v1907
    %5030 = vmatprep.subr.bf16.mxu0 %v1924
    %5031 = vmatpush1.bf16.msra.mxu0 %v1923
    %5032 = vmatprep.mubr.bf16.mxu0 %v4876
    %5033 = vmatmul.mubr.bf16.gmra.mrb[0].mxu0 %v4875
    %v5034 = vpop.f32.mrb[0].mxu0
    %v5035 = vadd.f32 0.0, %v5034
    %v5036 = vpop.f32.mrb[0].mxu0
    %v5037 = vadd.f32 0.0, %v5036
    %v5038 = vpop.f32.mrb[0].mxu0
    %v5039 = vpop.f32.mrb[0].mxu0
    %5040 = vdwg.mxu0
    %5041 = vmatprep.subr.bf16.mxu0 %v1686
    %5042 = vmatpush1.bf16.msra.mxu0 %v1685
    %5043 = vmatprep.subr.bf16.mxu0 %v1702
    %5044 = vmatpush1.bf16.msra.mxu0 %v1701
    %5045 = vmatprep.subr.bf16.mxu0 %v1718
    %5046 = vmatpush1.bf16.msra.mxu0 %v1717
    %5047 = vmatprep.subr.bf16.mxu0 %v1734
    %5048 = vmatpush1.bf16.msra.mxu0 %v1733
    %5049 = vmatprep.subr.bf16.mxu0 %v1750
    %5050 = vmatpush1.bf16.msra.mxu0 %v1749
    %5051 = vmatprep.subr.bf16.mxu0 %v1766
    %5052 = vmatpush1.bf16.msra.mxu0 %v1765
    %5053 = vmatprep.subr.bf16.mxu0 %v1782
    %5054 = vmatpush1.bf16.msra.mxu0 %v1781
    %5055 = vmatprep.subr.bf16.mxu0 %v1798
    %5056 = vmatpush1.bf16.msra.mxu0 %v1797
    %5057 = vmatprep.subr.bf16.mxu0 %v1814
    %5058 = vmatpush1.bf16.msra.mxu0 %v1813
    %5059 = vmatprep.subr.bf16.mxu0 %v1830
    %5060 = vmatpush1.bf16.msra.mxu0 %v1829
    %5061 = vmatprep.subr.bf16.mxu0 %v1846
    %5062 = vmatpush1.bf16.msra.mxu0 %v1845
    %5063 = vmatprep.subr.bf16.mxu0 %v1862
    %5064 = vmatpush1.bf16.msra.mxu0 %v1861
    %5065 = vmatprep.subr.bf16.mxu0 %v1878
    %5066 = vmatpush1.bf16.msra.mxu0 %v1877
    %5067 = vmatprep.subr.bf16.mxu0 %v1894
    %5068 = vmatpush1.bf16.msra.mxu0 %v1893
    %5069 = vmatprep.subr.bf16.mxu0 %v1910
    %5070 = vmatpush1.bf16.msra.mxu0 %v1909
    %5071 = vmatprep.subr.bf16.mxu0 %v1926
    %5072 = vmatpush1.bf16.msra.mxu0 %v1925
    %5073 = vmatprep.mubr.bf16.mxu0 %v4876
    %5074 = vmatmul.mubr.bf16.gmra.mrb[0].mxu0 %v4875
    %v5075 = vpop.f32.mrb[0].mxu0
    %v5076 = vadd.f32 0.0, %v5075
    %v5077 = vpop.f32.mrb[0].mxu0
    %v5078 = vadd.f32 0.0, %v5077
    %v5079 = vpop.f32.mrb[0].mxu0
    %v5080 = vpop.f32.mrb[0].mxu0
    %5081 = vdwg.mxu0
    %5082 = vmatprep.subr.bf16.mxu0 %v1688
    %5083 = vmatpush1.bf16.msra.mxu0 %v1687
    %5084 = vmatprep.subr.bf16.mxu0 %v1704
    %5085 = vmatpush1.bf16.msra.mxu0 %v1703
    %5086 = vmatprep.subr.bf16.mxu0 %v1720
    %5087 = vmatpush1.bf16.msra.mxu0 %v1719
    %5088 = vmatprep.subr.bf16.mxu0 %v1736
    %5089 = vmatpush1.bf16.msra.mxu0 %v1735
    %5090 = vmatprep.subr.bf16.mxu0 %v1752
    %5091 = vmatpush1.bf16.msra.mxu0 %v1751
    %5092 = vmatprep.subr.bf16.mxu0 %v1768
    %5093 = vmatpush1.bf16.msra.mxu0 %v1767
    %5094 = vmatprep.subr.bf16.mxu0 %v1784
    %5095 = vmatpush1.bf16.msra.mxu0 %v1783
    %5096 = vmatprep.subr.bf16.mxu0 %v1800
    %5097 = vmatpush1.bf16.msra.mxu0 %v1799
    %5098 = vmatprep.subr.bf16.mxu0 %v1816
    %5099 = vmatpush1.bf16.msra.mxu0 %v1815
    %5100 = vmatprep.subr.bf16.mxu0 %v1832
    %5101 = vmatpush1.bf16.msra.mxu0 %v1831
    %5102 = vmatprep.subr.bf16.mxu0 %v1848
    %5103 = vmatpush1.bf16.msra.mxu0 %v1847
    %5104 = vmatprep.subr.bf16.mxu0 %v1864
    %5105 = vmatpush1.bf16.msra.mxu0 %v1863
    %5106 = vmatprep.subr.bf16.mxu0 %v1880
    %5107 = vmatpush1.bf16.msra.mxu0 %v1879
    %5108 = vmatprep.subr.bf16.mxu0 %v1896
    %5109 = vmatpush1.bf16.msra.mxu0 %v1895
    %5110 = vmatprep.subr.bf16.mxu0 %v1912
    %5111 = vmatpush1.bf16.msra.mxu0 %v1911
    %5112 = vmatprep.subr.bf16.mxu0 %v1928
    %5113 = vmatpush1.bf16.msra.mxu0 %v1927
    %5114 = vmatprep.mubr.bf16.mxu0 %v4876
    %5115 = vmatmul.mubr.bf16.gmra.mrb[0].mxu0 %v4875
    %v5116 = vpop.f32.mrb[0].mxu0
    %v5117 = vadd.f32 0.0, %v5116
    %v5118 = vpop.f32.mrb[0].mxu0
    %v5119 = vadd.f32 0.0, %v5118
    %v5120 = vpop.f32.mrb[0].mxu0
    %v5121 = vpop.f32.mrb[0].mxu0
    %5122 = vdwg.mxu0
    %5123 = vmatprep.subr.bf16.mxu0 %v1690
    %5124 = vmatpush1.bf16.msra.mxu0 %v1689
    %5125 = vmatprep.subr.bf16.mxu0 %v1706
    %5126 = vmatpush1.bf16.msra.mxu0 %v1705
    %5127 = vmatprep.subr.bf16.mxu0 %v1722
    %5128 = vmatpush1.bf16.msra.mxu0 %v1721
    %5129 = vmatprep.subr.bf16.mxu0 %v1738
    %5130 = vmatpush1.bf16.msra.mxu0 %v1737
    %5131 = vmatprep.subr.bf16.mxu0 %v1754
    %5132 = vmatpush1.bf16.msra.mxu0 %v1753
    %5133 = vmatprep.subr.bf16.mxu0 %v1770
    %5134 = vmatpush1.bf16.msra.mxu0 %v1769
    %5135 = vmatprep.subr.bf16.mxu0 %v1786
    %5136 = vmatpush1.bf16.msra.mxu0 %v1785
    %5137 = vmatprep.subr.bf16.mxu0 %v1802
    %5138 = vmatpush1.bf16.msra.mxu0 %v1801
    %5139 = vmatprep.subr.bf16.mxu0 %v1818
    %5140 = vmatpush1.bf16.msra.mxu0 %v1817
    %5141 = vmatprep.subr.bf16.mxu0 %v1834
    %5142 = vmatpush1.bf16.msra.mxu0 %v1833
    %5143 = vmatprep.subr.bf16.mxu0 %v1850
    %5144 = vmatpush1.bf16.msra.mxu0 %v1849
    %5145 = vmatprep.subr.bf16.mxu0 %v1866
    %5146 = vmatpush1.bf16.msra.mxu0 %v1865
    %5147 = vmatprep.subr.bf16.mxu0 %v1882
    %5148 = vmatpush1.bf16.msra.mxu0 %v1881
    %5149 = vmatprep.subr.bf16.mxu0 %v1898
    %5150 = vmatpush1.bf16.msra.mxu0 %v1897
    %5151 = vmatprep.subr.bf16.mxu0 %v1914
    %5152 = vmatpush1.bf16.msra.mxu0 %v1913
    %5153 = vmatprep.subr.bf16.mxu0 %v1930
    %5154 = vmatpush1.bf16.msra.mxu0 %v1929
    %5155 = vmatprep.mubr.bf16.mxu0 %v4876
    %5156 = vmatmul.mubr.bf16.gmra.mrb[0].mxu0 %v4875
    %v5157 = vpop.f32.mrb[0].mxu0
    %v5158 = vadd.f32 0.0, %v5157
    %v5159 = vpop.f32.mrb[0].mxu0
    %v5160 = vadd.f32 0.0, %v5159
    %v5161 = vpop.f32.mrb[0].mxu0
    %v5162 = vpop.f32.mrb[0].mxu0
    %5163 = vdwg.mxu0
    %5164 = vmatprep.subr.bf16.mxu0 %v1692
    %5165 = vmatpush1.bf16.msra.mxu0 %v1691
    %5166 = vmatprep.subr.bf16.mxu0 %v1708
    %5167 = vmatpush1.bf16.msra.mxu0 %v1707
    %5168 = vmatprep.subr.bf16.mxu0 %v1724
    %5169 = vmatpush1.bf16.msra.mxu0 %v1723
    %5170 = vmatprep.subr.bf16.mxu0 %v1740
    %5171 = vmatpush1.bf16.msra.mxu0 %v1739
    %5172 = vmatprep.subr.bf16.mxu0 %v1756
    %5173 = vmatpush1.bf16.msra.mxu0 %v1755
    %5174 = vmatprep.subr.bf16.mxu0 %v1772
    %5175 = vmatpush1.bf16.msra.mxu0 %v1771
    %5176 = vmatprep.subr.bf16.mxu0 %v1788
    %5177 = vmatpush1.bf16.msra.mxu0 %v1787
    %5178 = vmatprep.subr.bf16.mxu0 %v1804
    %5179 = vmatpush1.bf16.msra.mxu0 %v1803
    %5180 = vmatprep.subr.bf16.mxu0 %v1820
    %5181 = vmatpush1.bf16.msra.mxu0 %v1819
    %5182 = vmatprep.subr.bf16.mxu0 %v1836
    %5183 = vmatpush1.bf16.msra.mxu0 %v1835
    %5184 = vmatprep.subr.bf16.mxu0 %v1852
    %5185 = vmatpush1.bf16.msra.mxu0 %v1851
    %5186 = vmatprep.subr.bf16.mxu0 %v1868
    %5187 = vmatpush1.bf16.msra.mxu0 %v1867
    %5188 = vmatprep.subr.bf16.mxu0 %v1884
    %5189 = vmatpush1.bf16.msra.mxu0 %v1883
    %5190 = vmatprep.subr.bf16.mxu0 %v1900
    %5191 = vmatpush1.bf16.msra.mxu0 %v1899
    %5192 = vmatprep.subr.bf16.mxu0 %v1916
    %5193 = vmatpush1.bf16.msra.mxu0 %v1915
    %5194 = vmatprep.subr.bf16.mxu0 %v1932
    %5195 = vmatpush1.bf16.msra.mxu0 %v1931
    %5196 = vmatprep.mubr.bf16.mxu0 %v4876
    %5197 = vmatmul.mubr.bf16.gmra.mrb[0].mxu0 %v4875
    %v5198 = vpop.f32.mrb[0].mxu0
    %v5199 = vadd.f32 0.0, %v5198
    %v5200 = vpop.f32.mrb[0].mxu0
    %v5201 = vadd.f32 0.0, %v5200
    %v5202 = vpop.f32.mrb[0].mxu0
    %v5203 = vpop.f32.mrb[0].mxu0
    %5204 = vdwg.mxu0
    %v5205 = vadd.f32 %v2521, %v5076
    %v5206 = vadd.f32 %v2525, %v5078
    %v5207 = vadd.f32 %v2529, %v5117
    %v5208 = vadd.f32 %v2533, %v5119
    %v5209 = vadd.f32 %v2537, %v5158
    %v5210 = vadd.f32 %v2541, %v5160
    %v5211 = vadd.f32 %v2545, %v5199
    %v5212 = vadd.f32 %v2549, %v5201
    %v5213 = vpack.c.bf16 %v4749, %v4749
    %v5214 = vpack.c.bf16 %v4750, %v4750
    %5215 = vmatprep.subr.bf16.mxu0 %v3592
    %5216 = vmatpush1.bf16.msra.mxu0 %v3591
    %5217 = vmatprep.subr.bf16.mxu0 %v3600
    %5218 = vmatpush1.bf16.msra.mxu0 %v3599
    %5219 = vmatprep.subr.bf16.mxu0 %v3608
    %5220 = vmatpush1.bf16.msra.mxu0 %v3607
    %5221 = vmatprep.subr.bf16.mxu0 %v3616
    %5222 = vmatpush1.bf16.msra.mxu0 %v3615
    %5223 = vmatprep.subr.bf16.mxu0 %v3624
    %5224 = vmatpush1.bf16.msra.mxu0 %v3623
    %5225 = vmatprep.subr.bf16.mxu0 %v3632
    %5226 = vmatpush1.bf16.msra.mxu0 %v3631
    %5227 = vmatprep.subr.bf16.mxu0 %v3640
    %5228 = vmatpush1.bf16.msra.mxu0 %v3639
    %5229 = vmatprep.subr.bf16.mxu0 %v3648
    %5230 = vmatpush1.bf16.msra.mxu0 %v3647
    %5231 = vmatprep.subr.bf16.mxu0 %v3656
    %5232 = vmatpush1.bf16.msra.mxu0 %v3655
    %5233 = vmatprep.subr.bf16.mxu0 %v3664
    %5234 = vmatpush1.bf16.msra.mxu0 %v3663
    %5235 = vmatprep.subr.bf16.mxu0 %v3672
    %5236 = vmatpush1.bf16.msra.mxu0 %v3671
    %5237 = vmatprep.subr.bf16.mxu0 %v3680
    %5238 = vmatpush1.bf16.msra.mxu0 %v3679
    %5239 = vmatprep.subr.bf16.mxu0 %v3688
    %5240 = vmatpush1.bf16.msra.mxu0 %v3687
    %5241 = vmatprep.subr.bf16.mxu0 %v3696
    %5242 = vmatpush1.bf16.msra.mxu0 %v3695
    %5243 = vmatprep.subr.bf16.mxu0 %v3704
    %5244 = vmatpush1.bf16.msra.mxu0 %v3703
    %5245 = vmatprep.subr.bf16.mxu0 %v3712
    %5246 = vmatpush1.bf16.msra.mxu0 %v3711
    %5247 = vmatprep.mubr.bf16.mxu0 %v5214
    %5248 = vmatmul.mubr.bf16.gmra.mrb[0].mxu0 %v5213
    %v5249 = vpop.f32.mrb[0].mxu0
    %v5250 = vadd.f32 0.0, %v5249
    %v5251 = vpop.f32.mrb[0].mxu0
    %v5252 = vadd.f32 0.0, %v5251
    %v5253 = vpop.f32.mrb[0].mxu0
    %v5254 = vpop.f32.mrb[0].mxu0
    %5255 = vdwg.mxu0
    %5256 = vmatprep.subr.bf16.mxu0 %v3594
    %5257 = vmatpush1.bf16.msra.mxu0 %v3593
    %5258 = vmatprep.subr.bf16.mxu0 %v3602
    %5259 = vmatpush1.bf16.msra.mxu0 %v3601
    %5260 = vmatprep.subr.bf16.mxu0 %v3610
    %5261 = vmatpush1.bf16.msra.mxu0 %v3609
    %5262 = vmatprep.subr.bf16.mxu0 %v3618
    %5263 = vmatpush1.bf16.msra.mxu0 %v3617
    %5264 = vmatprep.subr.bf16.mxu0 %v3626
    %5265 = vmatpush1.bf16.msra.mxu0 %v3625
    %5266 = vmatprep.subr.bf16.mxu0 %v3634
    %5267 = vmatpush1.bf16.msra.mxu0 %v3633
    %5268 = vmatprep.subr.bf16.mxu0 %v3642
    %5269 = vmatpush1.bf16.msra.mxu0 %v3641
    %5270 = vmatprep.subr.bf16.mxu0 %v3650
    %5271 = vmatpush1.bf16.msra.mxu0 %v3649
    %5272 = vmatprep.subr.bf16.mxu0 %v3658
    %5273 = vmatpush1.bf16.msra.mxu0 %v3657
    %5274 = vmatprep.subr.bf16.mxu0 %v3666
    %5275 = vmatpush1.bf16.msra.mxu0 %v3665
    %5276 = vmatprep.subr.bf16.mxu0 %v3674
    %5277 = vmatpush1.bf16.msra.mxu0 %v3673
    %5278 = vmatprep.subr.bf16.mxu0 %v3682
    %5279 = vmatpush1.bf16.msra.mxu0 %v3681
    %5280 = vmatprep.subr.bf16.mxu0 %v3690
    %5281 = vmatpush1.bf16.msra.mxu0 %v3689
    %5282 = vmatprep.subr.bf16.mxu0 %v3698
    %5283 = vmatpush1.bf16.msra.mxu0 %v3697
    %5284 = vmatprep.subr.bf16.mxu0 %v3706
    %5285 = vmatpush1.bf16.msra.mxu0 %v3705
    %5286 = vmatprep.subr.bf16.mxu0 %v3714
    %5287 = vmatpush1.bf16.msra.mxu0 %v3713
    %5288 = vmatprep.mubr.bf16.mxu0 %v5214
    %5289 = vmatmul.mubr.bf16.gmra.mrb[0].mxu0 %v5213
    %v5290 = vpop.f32.mrb[0].mxu0
    %v5291 = vadd.f32 0.0, %v5290
    %v5292 = vpop.f32.mrb[0].mxu0
    %v5293 = vadd.f32 0.0, %v5292
    %v5294 = vpop.f32.mrb[0].mxu0
    %v5295 = vpop.f32.mrb[0].mxu0
    %5296 = vdwg.mxu0
    %5297 = vmatprep.subr.bf16.mxu0 %v3596
    %5298 = vmatpush1.bf16.msra.mxu0 %v3595
    %5299 = vmatprep.subr.bf16.mxu0 %v3604
    %5300 = vmatpush1.bf16.msra.mxu0 %v3603
    %5301 = vmatprep.subr.bf16.mxu0 %v3612
    %5302 = vmatpush1.bf16.msra.mxu0 %v3611
    %5303 = vmatprep.subr.bf16.mxu0 %v3620
    %5304 = vmatpush1.bf16.msra.mxu0 %v3619
    %5305 = vmatprep.subr.bf16.mxu0 %v3628
    %5306 = vmatpush1.bf16.msra.mxu0 %v3627
    %5307 = vmatprep.subr.bf16.mxu0 %v3636
    %5308 = vmatpush1.bf16.msra.mxu0 %v3635
    %5309 = vmatprep.subr.bf16.mxu0 %v3644
    %5310 = vmatpush1.bf16.msra.mxu0 %v3643
    %5311 = vmatprep.subr.bf16.mxu0 %v3652
    %5312 = vmatpush1.bf16.msra.mxu0 %v3651
    %5313 = vmatprep.subr.bf16.mxu0 %v3660
    %5314 = vmatpush1.bf16.msra.mxu0 %v3659
    %5315 = vmatprep.subr.bf16.mxu0 %v3668
    %5316 = vmatpush1.bf16.msra.mxu0 %v3667
    %5317 = vmatprep.subr.bf16.mxu0 %v3676
    %5318 = vmatpush1.bf16.msra.mxu0 %v3675
    %5319 = vmatprep.subr.bf16.mxu0 %v3684
    %5320 = vmatpush1.bf16.msra.mxu0 %v3683
    %5321 = vmatprep.subr.bf16.mxu0 %v3692
    %5322 = vmatpush1.bf16.msra.mxu0 %v3691
    %5323 = vmatprep.subr.bf16.mxu0 %v3700
    %5324 = vmatpush1.bf16.msra.mxu0 %v3699
    %5325 = vmatprep.subr.bf16.mxu0 %v3708
    %5326 = vmatpush1.bf16.msra.mxu0 %v3707
    %5327 = vmatprep.subr.bf16.mxu0 %v3716
    %5328 = vmatpush1.bf16.msra.mxu0 %v3715
    %5329 = vmatprep.mubr.bf16.mxu0 %v5214
    %5330 = vmatmul.mubr.bf16.gmra.mrb[0].mxu0 %v5213
    %v5331 = vpop.f32.mrb[0].mxu0
    %v5332 = vadd.f32 0.0, %v5331
    %v5333 = vpop.f32.mrb[0].mxu0
    %v5334 = vadd.f32 0.0, %v5333
    %v5335 = vpop.f32.mrb[0].mxu0
    %v5336 = vpop.f32.mrb[0].mxu0
    %5337 = vdwg.mxu0
    %5338 = vmatprep.subr.bf16.mxu0 %v3598
    %5339 = vmatpush1.bf16.msra.mxu0 %v3597
    %5340 = vmatprep.subr.bf16.mxu0 %v3606
    %5341 = vmatpush1.bf16.msra.mxu0 %v3605
    %5342 = vmatprep.subr.bf16.mxu0 %v3614
    %5343 = vmatpush1.bf16.msra.mxu0 %v3613
    %5344 = vmatprep.subr.bf16.mxu0 %v3622
    %5345 = vmatpush1.bf16.msra.mxu0 %v3621
    %5346 = vmatprep.subr.bf16.mxu0 %v3630
    %5347 = vmatpush1.bf16.msra.mxu0 %v3629
    %5348 = vmatprep.subr.bf16.mxu0 %v3638
    %5349 = vmatpush1.bf16.msra.mxu0 %v3637
    %5350 = vmatprep.subr.bf16.mxu0 %v3646
    %5351 = vmatpush1.bf16.msra.mxu0 %v3645
    %5352 = vmatprep.subr.bf16.mxu0 %v3654
    %5353 = vmatpush1.bf16.msra.mxu0 %v3653
    %5354 = vmatprep.subr.bf16.mxu0 %v3662
    %5355 = vmatpush1.bf16.msra.mxu0 %v3661
    %5356 = vmatprep.subr.bf16.mxu0 %v3670
    %5357 = vmatpush1.bf16.msra.mxu0 %v3669
    %5358 = vmatprep.subr.bf16.mxu0 %v3678
    %5359 = vmatpush1.bf16.msra.mxu0 %v3677
    %5360 = vmatprep.subr.bf16.mxu0 %v3686
    %5361 = vmatpush1.bf16.msra.mxu0 %v3685
    %5362 = vmatprep.subr.bf16.mxu0 %v3694
    %5363 = vmatpush1.bf16.msra.mxu0 %v3693
    %5364 = vmatprep.subr.bf16.mxu0 %v3702
    %5365 = vmatpush1.bf16.msra.mxu0 %v3701
    %5366 = vmatprep.subr.bf16.mxu0 %v3710
    %5367 = vmatpush1.bf16.msra.mxu0 %v3709
    %5368 = vmatprep.subr.bf16.mxu0 %v3718
    %5369 = vmatpush1.bf16.msra.mxu0 %v3717
    %5370 = vmatprep.mubr.bf16.mxu0 %v5214
    %5371 = vmatmul.mubr.bf16.gmra.mrb[0].mxu0 %v5213
    %v5372 = vpop.f32.mrb[0].mxu0
    %v5373 = vadd.f32 0.0, %v5372
    %v5374 = vpop.f32.mrb[0].mxu0
    %v5375 = vadd.f32 0.0, %v5374
    %v5376 = vpop.f32.mrb[0].mxu0
    %v5377 = vpop.f32.mrb[0].mxu0
    %5378 = vdwg.mxu0
    %v5379 = vadd.f32 %v5205, %v5250
    %v5380 = vadd.f32 %v5206, %v5252
    %v5381 = vadd.f32 %v5207, %v5291
    %v5382 = vadd.f32 %v5208, %v5293
    %v5383 = vadd.f32 %v5209, %v5332
    %v5384 = vadd.f32 %v5210, %v5334
    %v5385 = vadd.f32 %v5211, %v5373
    %v5386 = vadd.f32 %v5212, %v5375
    %v5387 = vxor.u32 %v5379, 2147483648
    %v5388 = vxor.u32 %v5380, 2147483648
    %v5389 = vmul.f32 %v5387, 1.442695
    %v5390 = vpow.pop %v5389
    %v5391 = vmul.f32 %v5388, 1.442695
    %v5392 = vpow.pop %v5391
    %v5393 = vadd.f32 %v5390, 1.0
    %v5394 = vadd.f32 %v5392, 1.0
    %v5395 = vrcp.pop %v5393
    %v5396 = vmul.f32 1.0, %v5395
    %v5397 = vrcp.pop %v5394
    %v5398 = vmul.f32 1.0, %v5397
    %v5399 = vxor.u32 %v5381, 2147483648
    %v5400 = vxor.u32 %v5382, 2147483648
    %v5401 = vmul.f32 %v5399, 1.442695
    %v5402 = vpow.pop %v5401
    %v5403 = vmul.f32 %v5400, 1.442695
    %v5404 = vpow.pop %v5403
    %v5405 = vadd.f32 %v5402, 1.0
    %v5406 = vadd.f32 %v5404, 1.0
    %v5407 = vrcp.pop %v5405
    %v5408 = vmul.f32 1.0, %v5407
    %v5409 = vrcp.pop %v5406
    %v5410 = vmul.f32 1.0, %v5409
    %v5411 = vtanh.pop %v5383
    %v5412 = vtanh.pop %v5384
    %v5413 = vxor.u32 %v5385, 2147483648
    %v5414 = vxor.u32 %v5386, 2147483648
    %v5415 = vmul.f32 %v5413, 1.442695
    %v5416 = vpow.pop %v5415
    %v5417 = vmul.f32 %v5414, 1.442695
    %v5418 = vpow.pop %v5417
    %v5419 = vadd.f32 %v5416, 1.0
    %v5420 = vadd.f32 %v5418, 1.0
    %v5421 = vrcp.pop %v5419
    %v5422 = vmul.f32 1.0, %v5421
    %v5423 = vrcp.pop %v5420
    %v5424 = vmul.f32 1.0, %v5423
    %v5425 = vmul.f32 %v5408, %v4745
    %v5426 = vmul.f32 %v5410, %v4746
    %v5427 = vmul.f32 %v5396, %v5411
    %v5428 = vmul.f32 %v5398, %v5412
    %v5429 = vadd.f32 %v5425, %v5427
    %v5430 = vadd.f32 %v5426, %v5428
    %v5431 = vtanh.pop %v5429
    %v5432 = vtanh.pop %v5430
    %v5433 = vmul.f32 %v5422, %v5431
    %v5434 = vmul.f32 %v5424, %v5432
    %5435 = vset.pattern.permute.xlu0 3
    %5436 = vperm.xlu0 %5435, %v368
    %v5437 = vpop.permute.xlu0 %5436
    %v5439 = vmul.f32 %v5433, %v5437
    %v5440 = vmul.f32 %v5434, %v5437
    %v5441 = vadd.f32 %v4757, %v5439
    %v5442 = vadd.f32 %v4758, %v5440
    %v5444 = vrot.slane %v370, 7
    %5445 = vrot.lane.b32.xlu0 %v5444, 125
    %v5446 = vpop.permute.xlu0 %5445
    %v5448 = vsel %vm376, %v370, %v5446
    %5450 = vset.pattern.permute.xlu0 0
    %5451 = vperm.xlu0 %5450, %v5448
    %v5452 = vpop.permute.xlu0 %5451
    %v5454 = vmul.f32 %v5452, %v387
    %v5455 = vmul.f32 %v5452, %v391
    %v5456 = vmul.f32 %v5452, %v395
    %v5457 = vmul.f32 %v5452, %v399
    %v5458 = vmul.f32 %v5452, %v403
    %v5459 = vmul.f32 %v5452, %v407
    %v5460 = vmul.f32 %v5452, %v411
    %v5461 = vmul.f32 %v5452, %v415
    %v5462 = vadd.f32 %v436, %v5454
    %v5463 = vadd.f32 %v440, %v5455
    %v5464 = vadd.f32 %v444, %v5456
    %v5465 = vadd.f32 %v448, %v5457
    %v5466 = vadd.f32 %v452, %v5458
    %v5467 = vadd.f32 %v456, %v5459
    %v5468 = vadd.f32 %v460, %v5460
    %v5469 = vadd.f32 %v464, %v5461
    %5470 = vset.pattern.permute.xlu0 1
    %5471 = vperm.xlu0 %5470, %v5448
    %v5472 = vpop.permute.xlu0 %5471
    %v5474 = vmul.f32 %v5472, %v489
    %v5475 = vmul.f32 %v5472, %v493
    %v5476 = vmul.f32 %v5472, %v497
    %v5477 = vmul.f32 %v5472, %v501
    %v5478 = vmul.f32 %v5472, %v505
    %v5479 = vmul.f32 %v5472, %v509
    %v5480 = vmul.f32 %v5472, %v513
    %v5481 = vmul.f32 %v5472, %v517
    %v5482 = vadd.f32 %v5462, %v5474
    %v5483 = vadd.f32 %v5463, %v5475
    %v5484 = vadd.f32 %v5464, %v5476
    %v5485 = vadd.f32 %v5465, %v5477
    %v5486 = vadd.f32 %v5466, %v5478
    %v5487 = vadd.f32 %v5467, %v5479
    %v5488 = vadd.f32 %v5468, %v5480
    %v5489 = vadd.f32 %v5469, %v5481
    %5490 = vset.pattern.permute.xlu0 2
    %5491 = vperm.xlu0 %5490, %v5448
    %v5492 = vpop.permute.xlu0 %5491
    %v5494 = vmul.f32 %v5492, %v550
    %v5495 = vmul.f32 %v5492, %v554
    %v5496 = vmul.f32 %v5492, %v558
    %v5497 = vmul.f32 %v5492, %v562
    %v5498 = vmul.f32 %v5492, %v566
    %v5499 = vmul.f32 %v5492, %v570
    %v5500 = vmul.f32 %v5492, %v574
    %v5501 = vmul.f32 %v5492, %v578
    %v5502 = vadd.f32 %v5482, %v5494
    %v5503 = vadd.f32 %v5483, %v5495
    %v5504 = vadd.f32 %v5484, %v5496
    %v5505 = vadd.f32 %v5485, %v5497
    %v5506 = vadd.f32 %v5486, %v5498
    %v5507 = vadd.f32 %v5487, %v5499
    %v5508 = vadd.f32 %v5488, %v5500
    %v5509 = vadd.f32 %v5489, %v5501
    %v5510 = vadd.f32 %v5502, %v4912
    %v5511 = vadd.f32 %v5503, %v4914
    %v5512 = vadd.f32 %v5504, %v4953
    %v5513 = vadd.f32 %v5505, %v4955
    %v5514 = vadd.f32 %v5506, %v4994
    %v5515 = vadd.f32 %v5507, %v4996
    %v5516 = vadd.f32 %v5508, %v5035
    %v5517 = vadd.f32 %v5509, %v5037
    %v5518 = vxor.u32 %v5510, 2147483648
    %v5519 = vxor.u32 %v5511, 2147483648
    %v5520 = vmul.f32 %v5518, 1.442695
    %v5521 = vpow.pop %v5520
    %v5522 = vmul.f32 %v5519, 1.442695
    %v5523 = vpow.pop %v5522
    %v5524 = vadd.f32 %v5521, 1.0
    %v5525 = vadd.f32 %v5523, 1.0
    %v5526 = vrcp.pop %v5524
    %v5527 = vmul.f32 1.0, %v5526
    %v5528 = vrcp.pop %v5525
    %v5529 = vmul.f32 1.0, %v5528
    %v5530 = vxor.u32 %v5512, 2147483648
    %v5531 = vxor.u32 %v5513, 2147483648
    %v5532 = vmul.f32 %v5530, 1.442695
    %v5533 = vpow.pop %v5532
    %v5534 = vmul.f32 %v5531, 1.442695
    %v5535 = vpow.pop %v5534
    %v5536 = vadd.f32 %v5533, 1.0
    %v5537 = vadd.f32 %v5535, 1.0
    %v5538 = vrcp.pop %v5536
    %v5539 = vmul.f32 1.0, %v5538
    %v5540 = vrcp.pop %v5537
    %v5541 = vmul.f32 1.0, %v5540
    %v5542 = vtanh.pop %v5514
    %v5543 = vtanh.pop %v5515
    %v5544 = vxor.u32 %v5516, 2147483648
    %v5545 = vxor.u32 %v5517, 2147483648
    %v5546 = vmul.f32 %v5544, 1.442695
    %v5547 = vpow.pop %v5546
    %v5548 = vmul.f32 %v5545, 1.442695
    %v5549 = vpow.pop %v5548
    %v5550 = vadd.f32 %v5547, 1.0
    %v5551 = vadd.f32 %v5549, 1.0
    %v5552 = vrcp.pop %v5550
    %v5553 = vmul.f32 1.0, %v5552
    %v5554 = vrcp.pop %v5551
    %v5555 = vmul.f32 1.0, %v5554
    %v5556 = vmul.f32 %v5539, %v4869
    %v5557 = vmul.f32 %v5541, %v4870
    %v5558 = vmul.f32 %v5527, %v5542
    %v5559 = vmul.f32 %v5529, %v5543
    %v5560 = vadd.f32 %v5556, %v5558
    %v5561 = vadd.f32 %v5557, %v5559
    %v5562 = vtanh.pop %v5560
    %v5563 = vtanh.pop %v5561
    %v5564 = vmul.f32 %v5553, %v5562
    %v5565 = vmul.f32 %v5555, %v5563
    %v5566 = vpack.c.bf16 %v5564, %v5564
    %v5567 = vpack.c.bf16 %v5565, %v5565
    %5568 = vmatprep.subr.bf16.mxu0 %v1678
    %5569 = vmatpush1.bf16.msra.mxu0 %v1677
    %5570 = vmatprep.subr.bf16.mxu0 %v1694
    %5571 = vmatpush1.bf16.msra.mxu0 %v1693
    %5572 = vmatprep.subr.bf16.mxu0 %v1710
    %5573 = vmatpush1.bf16.msra.mxu0 %v1709
    %5574 = vmatprep.subr.bf16.mxu0 %v1726
    %5575 = vmatpush1.bf16.msra.mxu0 %v1725
    %5576 = vmatprep.subr.bf16.mxu0 %v1742
    %5577 = vmatpush1.bf16.msra.mxu0 %v1741
    %5578 = vmatprep.subr.bf16.mxu0 %v1758
    %5579 = vmatpush1.bf16.msra.mxu0 %v1757
    %5580 = vmatprep.subr.bf16.mxu0 %v1774
    %5581 = vmatpush1.bf16.msra.mxu0 %v1773
    %5582 = vmatprep.subr.bf16.mxu0 %v1790
    %5583 = vmatpush1.bf16.msra.mxu0 %v1789
    %5584 = vmatprep.subr.bf16.mxu0 %v1806
    %5585 = vmatpush1.bf16.msra.mxu0 %v1805
    %5586 = vmatprep.subr.bf16.mxu0 %v1822
    %5587 = vmatpush1.bf16.msra.mxu0 %v1821
    %5588 = vmatprep.subr.bf16.mxu0 %v1838
    %5589 = vmatpush1.bf16.msra.mxu0 %v1837
    %5590 = vmatprep.subr.bf16.mxu0 %v1854
    %5591 = vmatpush1.bf16.msra.mxu0 %v1853
    %5592 = vmatprep.subr.bf16.mxu0 %v1870
    %5593 = vmatpush1.bf16.msra.mxu0 %v1869
    %5594 = vmatprep.subr.bf16.mxu0 %v1886
    %5595 = vmatpush1.bf16.msra.mxu0 %v1885
    %5596 = vmatprep.subr.bf16.mxu0 %v1902
    %5597 = vmatpush1.bf16.msra.mxu0 %v1901
    %5598 = vmatprep.subr.bf16.mxu0 %v1918
    %5599 = vmatpush1.bf16.msra.mxu0 %v1917
    %5600 = vmatprep.mubr.bf16.mxu0 %v5567
    %5601 = vmatmul.mubr.bf16.gmra.mrb[0].mxu0 %v5566
    %v5602 = vpop.f32.mrb[0].mxu0
    %v5603 = vadd.f32 0.0, %v5602
    %v5604 = vpop.f32.mrb[0].mxu0
    %v5605 = vadd.f32 0.0, %v5604
    %v5606 = vpop.f32.mrb[0].mxu0
    %v5607 = vpop.f32.mrb[0].mxu0
    %5608 = vdwg.mxu0
    %5609 = vmatprep.subr.bf16.mxu0 %v1680
    %5610 = vmatpush1.bf16.msra.mxu0 %v1679
    %5611 = vmatprep.subr.bf16.mxu0 %v1696
    %5612 = vmatpush1.bf16.msra.mxu0 %v1695
    %5613 = vmatprep.subr.bf16.mxu0 %v1712
    %5614 = vmatpush1.bf16.msra.mxu0 %v1711
    %5615 = vmatprep.subr.bf16.mxu0 %v1728
    %5616 = vmatpush1.bf16.msra.mxu0 %v1727
    %5617 = vmatprep.subr.bf16.mxu0 %v1744
    %5618 = vmatpush1.bf16.msra.mxu0 %v1743
    %5619 = vmatprep.subr.bf16.mxu0 %v1760
    %5620 = vmatpush1.bf16.msra.mxu0 %v1759
    %5621 = vmatprep.subr.bf16.mxu0 %v1776
    %5622 = vmatpush1.bf16.msra.mxu0 %v1775
    %5623 = vmatprep.subr.bf16.mxu0 %v1792
    %5624 = vmatpush1.bf16.msra.mxu0 %v1791
    %5625 = vmatprep.subr.bf16.mxu0 %v1808
    %5626 = vmatpush1.bf16.msra.mxu0 %v1807
    %5627 = vmatprep.subr.bf16.mxu0 %v1824
    %5628 = vmatpush1.bf16.msra.mxu0 %v1823
    %5629 = vmatprep.subr.bf16.mxu0 %v1840
    %5630 = vmatpush1.bf16.msra.mxu0 %v1839
    %5631 = vmatprep.subr.bf16.mxu0 %v1856
    %5632 = vmatpush1.bf16.msra.mxu0 %v1855
    %5633 = vmatprep.subr.bf16.mxu0 %v1872
    %5634 = vmatpush1.bf16.msra.mxu0 %v1871
    %5635 = vmatprep.subr.bf16.mxu0 %v1888
    %5636 = vmatpush1.bf16.msra.mxu0 %v1887
    %5637 = vmatprep.subr.bf16.mxu0 %v1904
    %5638 = vmatpush1.bf16.msra.mxu0 %v1903
    %5639 = vmatprep.subr.bf16.mxu0 %v1920
    %5640 = vmatpush1.bf16.msra.mxu0 %v1919
    %5641 = vmatprep.mubr.bf16.mxu0 %v5567
    %5642 = vmatmul.mubr.bf16.gmra.mrb[0].mxu0 %v5566
    %v5643 = vpop.f32.mrb[0].mxu0
    %v5644 = vadd.f32 0.0, %v5643
    %v5645 = vpop.f32.mrb[0].mxu0
    %v5646 = vadd.f32 0.0, %v5645
    %v5647 = vpop.f32.mrb[0].mxu0
    %v5648 = vpop.f32.mrb[0].mxu0
    %5649 = vdwg.mxu0
    %5650 = vmatprep.subr.bf16.mxu0 %v1682
    %5651 = vmatpush1.bf16.msra.mxu0 %v1681
    %5652 = vmatprep.subr.bf16.mxu0 %v1698
    %5653 = vmatpush1.bf16.msra.mxu0 %v1697
    %5654 = vmatprep.subr.bf16.mxu0 %v1714
    %5655 = vmatpush1.bf16.msra.mxu0 %v1713
    %5656 = vmatprep.subr.bf16.mxu0 %v1730
    %5657 = vmatpush1.bf16.msra.mxu0 %v1729
    %5658 = vmatprep.subr.bf16.mxu0 %v1746
    %5659 = vmatpush1.bf16.msra.mxu0 %v1745
    %5660 = vmatprep.subr.bf16.mxu0 %v1762
    %5661 = vmatpush1.bf16.msra.mxu0 %v1761
    %5662 = vmatprep.subr.bf16.mxu0 %v1778
    %5663 = vmatpush1.bf16.msra.mxu0 %v1777
    %5664 = vmatprep.subr.bf16.mxu0 %v1794
    %5665 = vmatpush1.bf16.msra.mxu0 %v1793
    %5666 = vmatprep.subr.bf16.mxu0 %v1810
    %5667 = vmatpush1.bf16.msra.mxu0 %v1809
    %5668 = vmatprep.subr.bf16.mxu0 %v1826
    %5669 = vmatpush1.bf16.msra.mxu0 %v1825
    %5670 = vmatprep.subr.bf16.mxu0 %v1842
    %5671 = vmatpush1.bf16.msra.mxu0 %v1841
    %5672 = vmatprep.subr.bf16.mxu0 %v1858
    %5673 = vmatpush1.bf16.msra.mxu0 %v1857
    %5674 = vmatprep.subr.bf16.mxu0 %v1874
    %5675 = vmatpush1.bf16.msra.mxu0 %v1873
    %5676 = vmatprep.subr.bf16.mxu0 %v1890
    %5677 = vmatpush1.bf16.msra.mxu0 %v1889
    %5678 = vmatprep.subr.bf16.mxu0 %v1906
    %5679 = vmatpush1.bf16.msra.mxu0 %v1905
    %5680 = vmatprep.subr.bf16.mxu0 %v1922
    %5681 = vmatpush1.bf16.msra.mxu0 %v1921
    %5682 = vmatprep.mubr.bf16.mxu0 %v5567
    %5683 = vmatmul.mubr.bf16.gmra.mrb[0].mxu0 %v5566
    %v5684 = vpop.f32.mrb[0].mxu0
    %v5685 = vadd.f32 0.0, %v5684
    %v5686 = vpop.f32.mrb[0].mxu0
    %v5687 = vadd.f32 0.0, %v5686
    %v5688 = vpop.f32.mrb[0].mxu0
    %v5689 = vpop.f32.mrb[0].mxu0
    %5690 = vdwg.mxu0
    %5691 = vmatprep.subr.bf16.mxu0 %v1684
    %5692 = vmatpush1.bf16.msra.mxu0 %v1683
    %5693 = vmatprep.subr.bf16.mxu0 %v1700
    %5694 = vmatpush1.bf16.msra.mxu0 %v1699
    %5695 = vmatprep.subr.bf16.mxu0 %v1716
    %5696 = vmatpush1.bf16.msra.mxu0 %v1715
    %5697 = vmatprep.subr.bf16.mxu0 %v1732
    %5698 = vmatpush1.bf16.msra.mxu0 %v1731
    %5699 = vmatprep.subr.bf16.mxu0 %v1748
    %5700 = vmatpush1.bf16.msra.mxu0 %v1747
    %5701 = vmatprep.subr.bf16.mxu0 %v1764
    %5702 = vmatpush1.bf16.msra.mxu0 %v1763
    %5703 = vmatprep.subr.bf16.mxu0 %v1780
    %5704 = vmatpush1.bf16.msra.mxu0 %v1779
    %5705 = vmatprep.subr.bf16.mxu0 %v1796
    %5706 = vmatpush1.bf16.msra.mxu0 %v1795
    %5707 = vmatprep.subr.bf16.mxu0 %v1812
    %5708 = vmatpush1.bf16.msra.mxu0 %v1811
    %5709 = vmatprep.subr.bf16.mxu0 %v1828
    %5710 = vmatpush1.bf16.msra.mxu0 %v1827
    %5711 = vmatprep.subr.bf16.mxu0 %v1844
    %5712 = vmatpush1.bf16.msra.mxu0 %v1843
    %5713 = vmatprep.subr.bf16.mxu0 %v1860
    %5714 = vmatpush1.bf16.msra.mxu0 %v1859
    %5715 = vmatprep.subr.bf16.mxu0 %v1876
    %5716 = vmatpush1.bf16.msra.mxu0 %v1875
    %5717 = vmatprep.subr.bf16.mxu0 %v1892
    %5718 = vmatpush1.bf16.msra.mxu0 %v1891
    %5719 = vmatprep.subr.bf16.mxu0 %v1908
    %5720 = vmatpush1.bf16.msra.mxu0 %v1907
    %5721 = vmatprep.subr.bf16.mxu0 %v1924
    %5722 = vmatpush1.bf16.msra.mxu0 %v1923
    %5723 = vmatprep.mubr.bf16.mxu0 %v5567
    %5724 = vmatmul.mubr.bf16.gmra.mrb[0].mxu0 %v5566
    %v5725 = vpop.f32.mrb[0].mxu0
    %v5726 = vadd.f32 0.0, %v5725
    %v5727 = vpop.f32.mrb[0].mxu0
    %v5728 = vadd.f32 0.0, %v5727
    %v5729 = vpop.f32.mrb[0].mxu0
    %v5730 = vpop.f32.mrb[0].mxu0
    %5731 = vdwg.mxu0
    %5732 = vmatprep.subr.bf16.mxu0 %v1686
    %5733 = vmatpush1.bf16.msra.mxu0 %v1685
    %5734 = vmatprep.subr.bf16.mxu0 %v1702
    %5735 = vmatpush1.bf16.msra.mxu0 %v1701
    %5736 = vmatprep.subr.bf16.mxu0 %v1718
    %5737 = vmatpush1.bf16.msra.mxu0 %v1717
    %5738 = vmatprep.subr.bf16.mxu0 %v1734
    %5739 = vmatpush1.bf16.msra.mxu0 %v1733
    %5740 = vmatprep.subr.bf16.mxu0 %v1750
    %5741 = vmatpush1.bf16.msra.mxu0 %v1749
    %5742 = vmatprep.subr.bf16.mxu0 %v1766
    %5743 = vmatpush1.bf16.msra.mxu0 %v1765
    %5744 = vmatprep.subr.bf16.mxu0 %v1782
    %5745 = vmatpush1.bf16.msra.mxu0 %v1781
    %5746 = vmatprep.subr.bf16.mxu0 %v1798
    %5747 = vmatpush1.bf16.msra.mxu0 %v1797
    %5748 = vmatprep.subr.bf16.mxu0 %v1814
    %5749 = vmatpush1.bf16.msra.mxu0 %v1813
    %5750 = vmatprep.subr.bf16.mxu0 %v1830
    %5751 = vmatpush1.bf16.msra.mxu0 %v1829
    %5752 = vmatprep.subr.bf16.mxu0 %v1846
    %5753 = vmatpush1.bf16.msra.mxu0 %v1845
    %5754 = vmatprep.subr.bf16.mxu0 %v1862
    %5755 = vmatpush1.bf16.msra.mxu0 %v1861
    %5756 = vmatprep.subr.bf16.mxu0 %v1878
    %5757 = vmatpush1.bf16.msra.mxu0 %v1877
    %5758 = vmatprep.subr.bf16.mxu0 %v1894
    %5759 = vmatpush1.bf16.msra.mxu0 %v1893
    %5760 = vmatprep.subr.bf16.mxu0 %v1910
    %5761 = vmatpush1.bf16.msra.mxu0 %v1909
    %5762 = vmatprep.subr.bf16.mxu0 %v1926
    %5763 = vmatpush1.bf16.msra.mxu0 %v1925
    %5764 = vmatprep.mubr.bf16.mxu0 %v5567
    %5765 = vmatmul.mubr.bf16.gmra.mrb[0].mxu0 %v5566
    %v5766 = vpop.f32.mrb[0].mxu0
    %v5767 = vadd.f32 0.0, %v5766
    %v5768 = vpop.f32.mrb[0].mxu0
    %v5769 = vadd.f32 0.0, %v5768
    %v5770 = vpop.f32.mrb[0].mxu0
    %v5771 = vpop.f32.mrb[0].mxu0
    %5772 = vdwg.mxu0
    %5773 = vmatprep.subr.bf16.mxu0 %v1688
    %5774 = vmatpush1.bf16.msra.mxu0 %v1687
    %5775 = vmatprep.subr.bf16.mxu0 %v1704
    %5776 = vmatpush1.bf16.msra.mxu0 %v1703
    %5777 = vmatprep.subr.bf16.mxu0 %v1720
    %5778 = vmatpush1.bf16.msra.mxu0 %v1719
    %5779 = vmatprep.subr.bf16.mxu0 %v1736
    %5780 = vmatpush1.bf16.msra.mxu0 %v1735
    %5781 = vmatprep.subr.bf16.mxu0 %v1752
    %5782 = vmatpush1.bf16.msra.mxu0 %v1751
    %5783 = vmatprep.subr.bf16.mxu0 %v1768
    %5784 = vmatpush1.bf16.msra.mxu0 %v1767
    %5785 = vmatprep.subr.bf16.mxu0 %v1784
    %5786 = vmatpush1.bf16.msra.mxu0 %v1783
    %5787 = vmatprep.subr.bf16.mxu0 %v1800
    %5788 = vmatpush1.bf16.msra.mxu0 %v1799
    %5789 = vmatprep.subr.bf16.mxu0 %v1816
    %5790 = vmatpush1.bf16.msra.mxu0 %v1815
    %5791 = vmatprep.subr.bf16.mxu0 %v1832
    %5792 = vmatpush1.bf16.msra.mxu0 %v1831
    %5793 = vmatprep.subr.bf16.mxu0 %v1848
    %5794 = vmatpush1.bf16.msra.mxu0 %v1847
    %5795 = vmatprep.subr.bf16.mxu0 %v1864
    %5796 = vmatpush1.bf16.msra.mxu0 %v1863
    %5797 = vmatprep.subr.bf16.mxu0 %v1880
    %5798 = vmatpush1.bf16.msra.mxu0 %v1879
    %5799 = vmatprep.subr.bf16.mxu0 %v1896
    %5800 = vmatpush1.bf16.msra.mxu0 %v1895
    %5801 = vmatprep.subr.bf16.mxu0 %v1912
    %5802 = vmatpush1.bf16.msra.mxu0 %v1911
    %5803 = vmatprep.subr.bf16.mxu0 %v1928
    %5804 = vmatpush1.bf16.msra.mxu0 %v1927
    %5805 = vmatprep.mubr.bf16.mxu0 %v5567
    %5806 = vmatmul.mubr.bf16.gmra.mrb[0].mxu0 %v5566
    %v5807 = vpop.f32.mrb[0].mxu0
    %v5808 = vadd.f32 0.0, %v5807
    %v5809 = vpop.f32.mrb[0].mxu0
    %v5810 = vadd.f32 0.0, %v5809
    %v5811 = vpop.f32.mrb[0].mxu0
    %v5812 = vpop.f32.mrb[0].mxu0
    %5813 = vdwg.mxu0
    %5814 = vmatprep.subr.bf16.mxu0 %v1690
    %5815 = vmatpush1.bf16.msra.mxu0 %v1689
    %5816 = vmatprep.subr.bf16.mxu0 %v1706
    %5817 = vmatpush1.bf16.msra.mxu0 %v1705
    %5818 = vmatprep.subr.bf16.mxu0 %v1722
    %5819 = vmatpush1.bf16.msra.mxu0 %v1721
    %5820 = vmatprep.subr.bf16.mxu0 %v1738
    %5821 = vmatpush1.bf16.msra.mxu0 %v1737
    %5822 = vmatprep.subr.bf16.mxu0 %v1754
    %5823 = vmatpush1.bf16.msra.mxu0 %v1753
    %5824 = vmatprep.subr.bf16.mxu0 %v1770
    %5825 = vmatpush1.bf16.msra.mxu0 %v1769
    %5826 = vmatprep.subr.bf16.mxu0 %v1786
    %5827 = vmatpush1.bf16.msra.mxu0 %v1785
    %5828 = vmatprep.subr.bf16.mxu0 %v1802
    %5829 = vmatpush1.bf16.msra.mxu0 %v1801
    %5830 = vmatprep.subr.bf16.mxu0 %v1818
    %5831 = vmatpush1.bf16.msra.mxu0 %v1817
    %5832 = vmatprep.subr.bf16.mxu0 %v1834
    %5833 = vmatpush1.bf16.msra.mxu0 %v1833
    %5834 = vmatprep.subr.bf16.mxu0 %v1850
    %5835 = vmatpush1.bf16.msra.mxu0 %v1849
    %5836 = vmatprep.subr.bf16.mxu0 %v1866
    %5837 = vmatpush1.bf16.msra.mxu0 %v1865
    %5838 = vmatprep.subr.bf16.mxu0 %v1882
    %5839 = vmatpush1.bf16.msra.mxu0 %v1881
    %5840 = vmatprep.subr.bf16.mxu0 %v1898
    %5841 = vmatpush1.bf16.msra.mxu0 %v1897
    %5842 = vmatprep.subr.bf16.mxu0 %v1914
    %5843 = vmatpush1.bf16.msra.mxu0 %v1913
    %5844 = vmatprep.subr.bf16.mxu0 %v1930
    %5845 = vmatpush1.bf16.msra.mxu0 %v1929
    %5846 = vmatprep.mubr.bf16.mxu0 %v5567
    %5847 = vmatmul.mubr.bf16.gmra.mrb[0].mxu0 %v5566
    %v5848 = vpop.f32.mrb[0].mxu0
    %v5849 = vadd.f32 0.0, %v5848
    %v5850 = vpop.f32.mrb[0].mxu0
    %v5851 = vadd.f32 0.0, %v5850
    %v5852 = vpop.f32.mrb[0].mxu0
    %v5853 = vpop.f32.mrb[0].mxu0
    %5854 = vdwg.mxu0
    %5855 = vmatprep.subr.bf16.mxu0 %v1692
    %5856 = vmatpush1.bf16.msra.mxu0 %v1691
    %5857 = vmatprep.subr.bf16.mxu0 %v1708
    %5858 = vmatpush1.bf16.msra.mxu0 %v1707
    %5859 = vmatprep.subr.bf16.mxu0 %v1724
    %5860 = vmatpush1.bf16.msra.mxu0 %v1723
    %5861 = vmatprep.subr.bf16.mxu0 %v1740
    %5862 = vmatpush1.bf16.msra.mxu0 %v1739
    %5863 = vmatprep.subr.bf16.mxu0 %v1756
    %5864 = vmatpush1.bf16.msra.mxu0 %v1755
    %5865 = vmatprep.subr.bf16.mxu0 %v1772
    %5866 = vmatpush1.bf16.msra.mxu0 %v1771
    %5867 = vmatprep.subr.bf16.mxu0 %v1788
    %5868 = vmatpush1.bf16.msra.mxu0 %v1787
    %5869 = vmatprep.subr.bf16.mxu0 %v1804
    %5870 = vmatpush1.bf16.msra.mxu0 %v1803
    %5871 = vmatprep.subr.bf16.mxu0 %v1820
    %5872 = vmatpush1.bf16.msra.mxu0 %v1819
    %5873 = vmatprep.subr.bf16.mxu0 %v1836
    %5874 = vmatpush1.bf16.msra.mxu0 %v1835
    %5875 = vmatprep.subr.bf16.mxu0 %v1852
    %5876 = vmatpush1.bf16.msra.mxu0 %v1851
    %5877 = vmatprep.subr.bf16.mxu0 %v1868
    %5878 = vmatpush1.bf16.msra.mxu0 %v1867
    %5879 = vmatprep.subr.bf16.mxu0 %v1884
    %5880 = vmatpush1.bf16.msra.mxu0 %v1883
    %5881 = vmatprep.subr.bf16.mxu0 %v1900
    %5882 = vmatpush1.bf16.msra.mxu0 %v1899
    %5883 = vmatprep.subr.bf16.mxu0 %v1916
    %5884 = vmatpush1.bf16.msra.mxu0 %v1915
    %5885 = vmatprep.subr.bf16.mxu0 %v1932
    %5886 = vmatpush1.bf16.msra.mxu0 %v1931
    %5887 = vmatprep.mubr.bf16.mxu0 %v5567
    %5888 = vmatmul.mubr.bf16.gmra.mrb[0].mxu0 %v5566
    %v5889 = vpop.f32.mrb[0].mxu0
    %v5890 = vadd.f32 0.0, %v5889
    %v5891 = vpop.f32.mrb[0].mxu0
    %v5892 = vadd.f32 0.0, %v5891
    %v5893 = vpop.f32.mrb[0].mxu0
    %v5894 = vpop.f32.mrb[0].mxu0
    %5895 = vdwg.mxu0
    %v5896 = vadd.f32 %v2521, %v5767
    %v5897 = vadd.f32 %v2525, %v5769
    %v5898 = vadd.f32 %v2529, %v5808
    %v5899 = vadd.f32 %v2533, %v5810
    %v5900 = vadd.f32 %v2537, %v5849
    %v5901 = vadd.f32 %v2541, %v5851
    %v5902 = vadd.f32 %v2545, %v5890
    %v5903 = vadd.f32 %v2549, %v5892
    %v5904 = vpack.c.bf16 %v5433, %v5433
    %v5905 = vpack.c.bf16 %v5434, %v5434
    %5906 = vmatprep.subr.bf16.mxu0 %v3592
    %5907 = vmatpush1.bf16.msra.mxu0 %v3591
    %5908 = vmatprep.subr.bf16.mxu0 %v3600
    %5909 = vmatpush1.bf16.msra.mxu0 %v3599
    %5910 = vmatprep.subr.bf16.mxu0 %v3608
    %5911 = vmatpush1.bf16.msra.mxu0 %v3607
    %5912 = vmatprep.subr.bf16.mxu0 %v3616
    %5913 = vmatpush1.bf16.msra.mxu0 %v3615
    %5914 = vmatprep.subr.bf16.mxu0 %v3624
    %5915 = vmatpush1.bf16.msra.mxu0 %v3623
    %5916 = vmatprep.subr.bf16.mxu0 %v3632
    %5917 = vmatpush1.bf16.msra.mxu0 %v3631
    %5918 = vmatprep.subr.bf16.mxu0 %v3640
    %5919 = vmatpush1.bf16.msra.mxu0 %v3639
    %5920 = vmatprep.subr.bf16.mxu0 %v3648
    %5921 = vmatpush1.bf16.msra.mxu0 %v3647
    %5922 = vmatprep.subr.bf16.mxu0 %v3656
    %5923 = vmatpush1.bf16.msra.mxu0 %v3655
    %5924 = vmatprep.subr.bf16.mxu0 %v3664
    %5925 = vmatpush1.bf16.msra.mxu0 %v3663
    %5926 = vmatprep.subr.bf16.mxu0 %v3672
    %5927 = vmatpush1.bf16.msra.mxu0 %v3671
    %5928 = vmatprep.subr.bf16.mxu0 %v3680
    %5929 = vmatpush1.bf16.msra.mxu0 %v3679
    %5930 = vmatprep.subr.bf16.mxu0 %v3688
    %5931 = vmatpush1.bf16.msra.mxu0 %v3687
    %5932 = vmatprep.subr.bf16.mxu0 %v3696
    %5933 = vmatpush1.bf16.msra.mxu0 %v3695
    %5934 = vmatprep.subr.bf16.mxu0 %v3704
    %5935 = vmatpush1.bf16.msra.mxu0 %v3703
    %5936 = vmatprep.subr.bf16.mxu0 %v3712
    %5937 = vmatpush1.bf16.msra.mxu0 %v3711
    %5938 = vmatprep.mubr.bf16.mxu0 %v5905
    %5939 = vmatmul.mubr.bf16.gmra.mrb[0].mxu0 %v5904
    %v5940 = vpop.f32.mrb[0].mxu0
    %v5941 = vadd.f32 0.0, %v5940
    %v5942 = vpop.f32.mrb[0].mxu0
    %v5943 = vadd.f32 0.0, %v5942
    %v5944 = vpop.f32.mrb[0].mxu0
    %v5945 = vpop.f32.mrb[0].mxu0
    %5946 = vdwg.mxu0
    %5947 = vmatprep.subr.bf16.mxu0 %v3594
    %5948 = vmatpush1.bf16.msra.mxu0 %v3593
    %5949 = vmatprep.subr.bf16.mxu0 %v3602
    %5950 = vmatpush1.bf16.msra.mxu0 %v3601
    %5951 = vmatprep.subr.bf16.mxu0 %v3610
    %5952 = vmatpush1.bf16.msra.mxu0 %v3609
    %5953 = vmatprep.subr.bf16.mxu0 %v3618
    %5954 = vmatpush1.bf16.msra.mxu0 %v3617
    %5955 = vmatprep.subr.bf16.mxu0 %v3626
    %5956 = vmatpush1.bf16.msra.mxu0 %v3625
    %5957 = vmatprep.subr.bf16.mxu0 %v3634
    %5958 = vmatpush1.bf16.msra.mxu0 %v3633
    %5959 = vmatprep.subr.bf16.mxu0 %v3642
    %5960 = vmatpush1.bf16.msra.mxu0 %v3641
    %5961 = vmatprep.subr.bf16.mxu0 %v3650
    %5962 = vmatpush1.bf16.msra.mxu0 %v3649
    %5963 = vmatprep.subr.bf16.mxu0 %v3658
    %5964 = vmatpush1.bf16.msra.mxu0 %v3657
    %5965 = vmatprep.subr.bf16.mxu0 %v3666
    %5966 = vmatpush1.bf16.msra.mxu0 %v3665
    %5967 = vmatprep.subr.bf16.mxu0 %v3674
    %5968 = vmatpush1.bf16.msra.mxu0 %v3673
    %5969 = vmatprep.subr.bf16.mxu0 %v3682
    %5970 = vmatpush1.bf16.msra.mxu0 %v3681
    %5971 = vmatprep.subr.bf16.mxu0 %v3690
    %5972 = vmatpush1.bf16.msra.mxu0 %v3689
    %5973 = vmatprep.subr.bf16.mxu0 %v3698
    %5974 = vmatpush1.bf16.msra.mxu0 %v3697
    %5975 = vmatprep.subr.bf16.mxu0 %v3706
    %5976 = vmatpush1.bf16.msra.mxu0 %v3705
    %5977 = vmatprep.subr.bf16.mxu0 %v3714
    %5978 = vmatpush1.bf16.msra.mxu0 %v3713
    %5979 = vmatprep.mubr.bf16.mxu0 %v5905
    %5980 = vmatmul.mubr.bf16.gmra.mrb[0].mxu0 %v5904
    %v5981 = vpop.f32.mrb[0].mxu0
    %v5982 = vadd.f32 0.0, %v5981
    %v5983 = vpop.f32.mrb[0].mxu0
    %v5984 = vadd.f32 0.0, %v5983
    %v5985 = vpop.f32.mrb[0].mxu0
    %v5986 = vpop.f32.mrb[0].mxu0
    %5987 = vdwg.mxu0
    %5988 = vmatprep.subr.bf16.mxu0 %v3596
    %5989 = vmatpush1.bf16.msra.mxu0 %v3595
    %5990 = vmatprep.subr.bf16.mxu0 %v3604
    %5991 = vmatpush1.bf16.msra.mxu0 %v3603
    %5992 = vmatprep.subr.bf16.mxu0 %v3612
    %5993 = vmatpush1.bf16.msra.mxu0 %v3611
    %5994 = vmatprep.subr.bf16.mxu0 %v3620
    %5995 = vmatpush1.bf16.msra.mxu0 %v3619
    %5996 = vmatprep.subr.bf16.mxu0 %v3628
    %5997 = vmatpush1.bf16.msra.mxu0 %v3627
    %5998 = vmatprep.subr.bf16.mxu0 %v3636
    %5999 = vmatpush1.bf16.msra.mxu0 %v3635
    %6000 = vmatprep.subr.bf16.mxu0 %v3644
    %6001 = vmatpush1.bf16.msra.mxu0 %v3643
    %6002 = vmatprep.subr.bf16.mxu0 %v3652
    %6003 = vmatpush1.bf16.msra.mxu0 %v3651
    %6004 = vmatprep.subr.bf16.mxu0 %v3660
    %6005 = vmatpush1.bf16.msra.mxu0 %v3659
    %6006 = vmatprep.subr.bf16.mxu0 %v3668
    %6007 = vmatpush1.bf16.msra.mxu0 %v3667
    %6008 = vmatprep.subr.bf16.mxu0 %v3676
    %6009 = vmatpush1.bf16.msra.mxu0 %v3675
    %6010 = vmatprep.subr.bf16.mxu0 %v3684
    %6011 = vmatpush1.bf16.msra.mxu0 %v3683
    %6012 = vmatprep.subr.bf16.mxu0 %v3692
    %6013 = vmatpush1.bf16.msra.mxu0 %v3691
    %6014 = vmatprep.subr.bf16.mxu0 %v3700
    %6015 = vmatpush1.bf16.msra.mxu0 %v3699
    %6016 = vmatprep.subr.bf16.mxu0 %v3708
    %6017 = vmatpush1.bf16.msra.mxu0 %v3707
    %6018 = vmatprep.subr.bf16.mxu0 %v3716
    %6019 = vmatpush1.bf16.msra.mxu0 %v3715
    %6020 = vmatprep.mubr.bf16.mxu0 %v5905
    %6021 = vmatmul.mubr.bf16.gmra.mrb[0].mxu0 %v5904
    %v6022 = vpop.f32.mrb[0].mxu0
    %v6023 = vadd.f32 0.0, %v6022
    %v6024 = vpop.f32.mrb[0].mxu0
    %v6025 = vadd.f32 0.0, %v6024
    %v6026 = vpop.f32.mrb[0].mxu0
    %v6027 = vpop.f32.mrb[0].mxu0
    %6028 = vdwg.mxu0
    %6029 = vmatprep.subr.bf16.mxu0 %v3598
    %6030 = vmatpush1.bf16.msra.mxu0 %v3597
    %6031 = vmatprep.subr.bf16.mxu0 %v3606
    %6032 = vmatpush1.bf16.msra.mxu0 %v3605
    %6033 = vmatprep.subr.bf16.mxu0 %v3614
    %6034 = vmatpush1.bf16.msra.mxu0 %v3613
    %6035 = vmatprep.subr.bf16.mxu0 %v3622
    %6036 = vmatpush1.bf16.msra.mxu0 %v3621
    %6037 = vmatprep.subr.bf16.mxu0 %v3630
    %6038 = vmatpush1.bf16.msra.mxu0 %v3629
    %6039 = vmatprep.subr.bf16.mxu0 %v3638
    %6040 = vmatpush1.bf16.msra.mxu0 %v3637
    %6041 = vmatprep.subr.bf16.mxu0 %v3646
    %6042 = vmatpush1.bf16.msra.mxu0 %v3645
    %6043 = vmatprep.subr.bf16.mxu0 %v3654
    %6044 = vmatpush1.bf16.msra.mxu0 %v3653
    %6045 = vmatprep.subr.bf16.mxu0 %v3662
    %6046 = vmatpush1.bf16.msra.mxu0 %v3661
    %6047 = vmatprep.subr.bf16.mxu0 %v3670
    %6048 = vmatpush1.bf16.msra.mxu0 %v3669
    %6049 = vmatprep.subr.bf16.mxu0 %v3678
    %6050 = vmatpush1.bf16.msra.mxu0 %v3677
    %6051 = vmatprep.subr.bf16.mxu0 %v3686
    %6052 = vmatpush1.bf16.msra.mxu0 %v3685
    %6053 = vmatprep.subr.bf16.mxu0 %v3694
    %6054 = vmatpush1.bf16.msra.mxu0 %v3693
    %6055 = vmatprep.subr.bf16.mxu0 %v3702
    %6056 = vmatpush1.bf16.msra.mxu0 %v3701
    %6057 = vmatprep.subr.bf16.mxu0 %v3710
    %6058 = vmatpush1.bf16.msra.mxu0 %v3709
    %6059 = vmatprep.subr.bf16.mxu0 %v3718
    %6060 = vmatpush1.bf16.msra.mxu0 %v3717
    %6061 = vmatprep.mubr.bf16.mxu0 %v5905
    %6062 = vmatmul.mubr.bf16.gmra.mrb[0].mxu0 %v5904
    %v6063 = vpop.f32.mrb[0].mxu0
    %v6064 = vadd.f32 0.0, %v6063
    %v6065 = vpop.f32.mrb[0].mxu0
    %v6066 = vadd.f32 0.0, %v6065
    %v6067 = vpop.f32.mrb[0].mxu0
    %v6068 = vpop.f32.mrb[0].mxu0
    %6069 = vdwg.mxu0
    %v6070 = vadd.f32 %v5896, %v5941
    %v6071 = vadd.f32 %v5897, %v5943
    %v6072 = vadd.f32 %v5898, %v5982
    %v6073 = vadd.f32 %v5899, %v5984
    %v6074 = vadd.f32 %v5900, %v6023
    %v6075 = vadd.f32 %v5901, %v6025
    %v6076 = vadd.f32 %v5902, %v6064
    %v6077 = vadd.f32 %v5903, %v6066
    %v6078 = vxor.u32 %v6070, 2147483648
    %v6079 = vxor.u32 %v6071, 2147483648
    %v6080 = vmul.f32 %v6078, 1.442695
    %v6081 = vpow.pop %v6080
    %v6082 = vmul.f32 %v6079, 1.442695
    %v6083 = vpow.pop %v6082
    %v6084 = vadd.f32 %v6081, 1.0
    %v6085 = vadd.f32 %v6083, 1.0
    %v6086 = vrcp.pop %v6084
    %v6087 = vmul.f32 1.0, %v6086
    %v6088 = vrcp.pop %v6085
    %v6089 = vmul.f32 1.0, %v6088
    %v6090 = vxor.u32 %v6072, 2147483648
    %v6091 = vxor.u32 %v6073, 2147483648
    %v6092 = vmul.f32 %v6090, 1.442695
    %v6093 = vpow.pop %v6092
    %v6094 = vmul.f32 %v6091, 1.442695
    %v6095 = vpow.pop %v6094
    %v6096 = vadd.f32 %v6093, 1.0
    %v6097 = vadd.f32 %v6095, 1.0
    %v6098 = vrcp.pop %v6096
    %v6099 = vmul.f32 1.0, %v6098
    %v6100 = vrcp.pop %v6097
    %v6101 = vmul.f32 1.0, %v6100
    %v6102 = vtanh.pop %v6074
    %v6103 = vtanh.pop %v6075
    %v6104 = vxor.u32 %v6076, 2147483648
    %v6105 = vxor.u32 %v6077, 2147483648
    %v6106 = vmul.f32 %v6104, 1.442695
    %v6107 = vpow.pop %v6106
    %v6108 = vmul.f32 %v6105, 1.442695
    %v6109 = vpow.pop %v6108
    %v6110 = vadd.f32 %v6107, 1.0
    %v6111 = vadd.f32 %v6109, 1.0
    %v6112 = vrcp.pop %v6110
    %v6113 = vmul.f32 1.0, %v6112
    %v6114 = vrcp.pop %v6111
    %v6115 = vmul.f32 1.0, %v6114
    %v6116 = vmul.f32 %v6099, %v5429
    %v6117 = vmul.f32 %v6101, %v5430
    %v6118 = vmul.f32 %v6087, %v6102
    %v6119 = vmul.f32 %v6089, %v6103
    %v6120 = vadd.f32 %v6116, %v6118
    %v6121 = vadd.f32 %v6117, %v6119
    %v6122 = vtanh.pop %v6120
    %v6123 = vtanh.pop %v6121
    %v6124 = vmul.f32 %v6113, %v6122
    %v6125 = vmul.f32 %v6115, %v6123
    %6126 = vset.pattern.permute.xlu0 4
    %6127 = vperm.xlu0 %6126, %v368
    %v6128 = vpop.permute.xlu0 %6127
    %v6130 = vmul.f32 %v6124, %v6128
    %v6131 = vmul.f32 %v6125, %v6128
    %v6132 = vadd.f32 %v5441, %v6130
    %v6133 = vadd.f32 %v5442, %v6131
    %6134 = vset.pattern.permute.xlu0 6
    %6135 = vperm.xlu0 %6134, %v5448
    %v6136 = vpop.permute.xlu0 %6135
    %v6138 = vmul.f32 %v6136, %v387
    %v6139 = vmul.f32 %v6136, %v391
    %v6140 = vmul.f32 %v6136, %v395
    %v6141 = vmul.f32 %v6136, %v399
    %v6142 = vmul.f32 %v6136, %v403
    %v6143 = vmul.f32 %v6136, %v407
    %v6144 = vmul.f32 %v6136, %v411
    %v6145 = vmul.f32 %v6136, %v415
    %v6146 = vadd.f32 %v436, %v6138
    %v6147 = vadd.f32 %v440, %v6139
    %v6148 = vadd.f32 %v444, %v6140
    %v6149 = vadd.f32 %v448, %v6141
    %v6150 = vadd.f32 %v452, %v6142
    %v6151 = vadd.f32 %v456, %v6143
    %v6152 = vadd.f32 %v460, %v6144
    %v6153 = vadd.f32 %v464, %v6145
    %6154 = vset.pattern.permute.xlu0 7
    %6155 = vperm.xlu0 %6154, %v5448
    %v6156 = vpop.permute.xlu0 %6155
    %v6158 = vmul.f32 %v6156, %v489
    %v6159 = vmul.f32 %v6156, %v493
    %v6160 = vmul.f32 %v6156, %v497
    %v6161 = vmul.f32 %v6156, %v501
    %v6162 = vmul.f32 %v6156, %v505
    %v6163 = vmul.f32 %v6156, %v509
    %v6164 = vmul.f32 %v6156, %v513
    %v6165 = vmul.f32 %v6156, %v517
    %v6166 = vadd.f32 %v6146, %v6158
    %v6167 = vadd.f32 %v6147, %v6159
    %v6168 = vadd.f32 %v6148, %v6160
    %v6169 = vadd.f32 %v6149, %v6161
    %v6170 = vadd.f32 %v6150, %v6162
    %v6171 = vadd.f32 %v6151, %v6163
    %v6172 = vadd.f32 %v6152, %v6164
    %v6173 = vadd.f32 %v6153, %v6165
    %6174 = vset.pattern.permute.xlu0 8
    %6175 = vperm.xlu0 %6174, %v5448
    %v6176 = vpop.permute.xlu0 %6175
    %v6178 = vmul.f32 %v6176, %v550
    %v6179 = vmul.f32 %v6176, %v554
    %v6180 = vmul.f32 %v6176, %v558
    %v6181 = vmul.f32 %v6176, %v562
    %v6182 = vmul.f32 %v6176, %v566
    %v6183 = vmul.f32 %v6176, %v570
    %v6184 = vmul.f32 %v6176, %v574
    %v6185 = vmul.f32 %v6176, %v578
    %v6186 = vadd.f32 %v6166, %v6178
    %v6187 = vadd.f32 %v6167, %v6179
    %v6188 = vadd.f32 %v6168, %v6180
    %v6189 = vadd.f32 %v6169, %v6181
    %v6190 = vadd.f32 %v6170, %v6182
    %v6191 = vadd.f32 %v6171, %v6183
    %v6192 = vadd.f32 %v6172, %v6184
    %v6193 = vadd.f32 %v6173, %v6185
    %v6194 = vadd.f32 %v6186, %v5603
    %v6195 = vadd.f32 %v6187, %v5605
    %v6196 = vadd.f32 %v6188, %v5644
    %v6197 = vadd.f32 %v6189, %v5646
    %v6198 = vadd.f32 %v6190, %v5685
    %v6199 = vadd.f32 %v6191, %v5687
    %v6200 = vadd.f32 %v6192, %v5726
    %v6201 = vadd.f32 %v6193, %v5728
    %v6202 = vxor.u32 %v6194, 2147483648
    %v6203 = vxor.u32 %v6195, 2147483648
    %v6204 = vmul.f32 %v6202, 1.442695
    %v6205 = vpow.pop %v6204
    %v6206 = vmul.f32 %v6203, 1.442695
    %v6207 = vpow.pop %v6206
    %v6208 = vadd.f32 %v6205, 1.0
    %v6209 = vadd.f32 %v6207, 1.0
    %v6210 = vrcp.pop %v6208
    %v6211 = vmul.f32 1.0, %v6210
    %v6212 = vrcp.pop %v6209
    %v6213 = vmul.f32 1.0, %v6212
    %v6214 = vxor.u32 %v6196, 2147483648
    %v6215 = vxor.u32 %v6197, 2147483648
    %v6216 = vmul.f32 %v6214, 1.442695
    %v6217 = vpow.pop %v6216
    %v6218 = vmul.f32 %v6215, 1.442695
    %v6219 = vpow.pop %v6218
    %v6220 = vadd.f32 %v6217, 1.0
    %v6221 = vadd.f32 %v6219, 1.0
    %v6222 = vrcp.pop %v6220
    %v6223 = vmul.f32 1.0, %v6222
    %v6224 = vrcp.pop %v6221
    %v6225 = vmul.f32 1.0, %v6224
    %v6226 = vtanh.pop %v6198
    %v6227 = vtanh.pop %v6199
    %v6228 = vxor.u32 %v6200, 2147483648
    %v6229 = vxor.u32 %v6201, 2147483648
    %v6230 = vmul.f32 %v6228, 1.442695
    %v6231 = vpow.pop %v6230
    %v6232 = vmul.f32 %v6229, 1.442695
    %v6233 = vpow.pop %v6232
    %v6234 = vadd.f32 %v6231, 1.0
    %v6235 = vadd.f32 %v6233, 1.0
    %v6236 = vrcp.pop %v6234
    %v6237 = vmul.f32 1.0, %v6236
    %v6238 = vrcp.pop %v6235
    %v6239 = vmul.f32 1.0, %v6238
    %v6240 = vmul.f32 %v6223, %v5560
    %v6241 = vmul.f32 %v6225, %v5561
    %v6242 = vmul.f32 %v6211, %v6226
    %v6243 = vmul.f32 %v6213, %v6227
    %v6244 = vadd.f32 %v6240, %v6242
    %v6245 = vadd.f32 %v6241, %v6243
    %v6246 = vtanh.pop %v6244
    %v6247 = vtanh.pop %v6245
    %v6248 = vmul.f32 %v6237, %v6246
    %v6249 = vmul.f32 %v6239, %v6247
    %v6250 = vpack.c.bf16 %v6248, %v6248
    %v6251 = vpack.c.bf16 %v6249, %v6249
    %6252 = vmatprep.subr.bf16.mxu0 %v1678
    %6253 = vmatpush1.bf16.msra.mxu0 %v1677
    %6254 = vmatprep.subr.bf16.mxu0 %v1694
    %6255 = vmatpush1.bf16.msra.mxu0 %v1693
    %6256 = vmatprep.subr.bf16.mxu0 %v1710
    %6257 = vmatpush1.bf16.msra.mxu0 %v1709
    %6258 = vmatprep.subr.bf16.mxu0 %v1726
    %6259 = vmatpush1.bf16.msra.mxu0 %v1725
    %6260 = vmatprep.subr.bf16.mxu0 %v1742
    %6261 = vmatpush1.bf16.msra.mxu0 %v1741
    %6262 = vmatprep.subr.bf16.mxu0 %v1758
    %6263 = vmatpush1.bf16.msra.mxu0 %v1757
    %6264 = vmatprep.subr.bf16.mxu0 %v1774
    %6265 = vmatpush1.bf16.msra.mxu0 %v1773
    %6266 = vmatprep.subr.bf16.mxu0 %v1790
    %6267 = vmatpush1.bf16.msra.mxu0 %v1789
    %6268 = vmatprep.subr.bf16.mxu0 %v1806
    %6269 = vmatpush1.bf16.msra.mxu0 %v1805
    %6270 = vmatprep.subr.bf16.mxu0 %v1822
    %6271 = vmatpush1.bf16.msra.mxu0 %v1821
    %6272 = vmatprep.subr.bf16.mxu0 %v1838
    %6273 = vmatpush1.bf16.msra.mxu0 %v1837
    %6274 = vmatprep.subr.bf16.mxu0 %v1854
    %6275 = vmatpush1.bf16.msra.mxu0 %v1853
    %6276 = vmatprep.subr.bf16.mxu0 %v1870
    %6277 = vmatpush1.bf16.msra.mxu0 %v1869
    %6278 = vmatprep.subr.bf16.mxu0 %v1886
    %6279 = vmatpush1.bf16.msra.mxu0 %v1885
    %6280 = vmatprep.subr.bf16.mxu0 %v1902
    %6281 = vmatpush1.bf16.msra.mxu0 %v1901
    %6282 = vmatprep.subr.bf16.mxu0 %v1918
    %6283 = vmatpush1.bf16.msra.mxu0 %v1917
    %6284 = vmatprep.mubr.bf16.mxu0 %v6251
    %6285 = vmatmul.mubr.bf16.gmra.mrb[0].mxu0 %v6250
    %v6286 = vpop.f32.mrb[0].mxu0
    %v6287 = vadd.f32 0.0, %v6286
    %v6288 = vpop.f32.mrb[0].mxu0
    %v6289 = vadd.f32 0.0, %v6288
    %v6290 = vpop.f32.mrb[0].mxu0
    %v6291 = vpop.f32.mrb[0].mxu0
    %6292 = vdwg.mxu0
    %6293 = vmatprep.subr.bf16.mxu0 %v1680
    %6294 = vmatpush1.bf16.msra.mxu0 %v1679
    %6295 = vmatprep.subr.bf16.mxu0 %v1696
    %6296 = vmatpush1.bf16.msra.mxu0 %v1695
    %6297 = vmatprep.subr.bf16.mxu0 %v1712
    %6298 = vmatpush1.bf16.msra.mxu0 %v1711
    %6299 = vmatprep.subr.bf16.mxu0 %v1728
    %6300 = vmatpush1.bf16.msra.mxu0 %v1727
    %6301 = vmatprep.subr.bf16.mxu0 %v1744
    %6302 = vmatpush1.bf16.msra.mxu0 %v1743
    %6303 = vmatprep.subr.bf16.mxu0 %v1760
    %6304 = vmatpush1.bf16.msra.mxu0 %v1759
    %6305 = vmatprep.subr.bf16.mxu0 %v1776
    %6306 = vmatpush1.bf16.msra.mxu0 %v1775
    %6307 = vmatprep.subr.bf16.mxu0 %v1792
    %6308 = vmatpush1.bf16.msra.mxu0 %v1791
    %6309 = vmatprep.subr.bf16.mxu0 %v1808
    %6310 = vmatpush1.bf16.msra.mxu0 %v1807
    %6311 = vmatprep.subr.bf16.mxu0 %v1824
    %6312 = vmatpush1.bf16.msra.mxu0 %v1823
    %6313 = vmatprep.subr.bf16.mxu0 %v1840
    %6314 = vmatpush1.bf16.msra.mxu0 %v1839
    %6315 = vmatprep.subr.bf16.mxu0 %v1856
    %6316 = vmatpush1.bf16.msra.mxu0 %v1855
    %6317 = vmatprep.subr.bf16.mxu0 %v1872
    %6318 = vmatpush1.bf16.msra.mxu0 %v1871
    %6319 = vmatprep.subr.bf16.mxu0 %v1888
    %6320 = vmatpush1.bf16.msra.mxu0 %v1887
    %6321 = vmatprep.subr.bf16.mxu0 %v1904
    %6322 = vmatpush1.bf16.msra.mxu0 %v1903
    %6323 = vmatprep.subr.bf16.mxu0 %v1920
    %6324 = vmatpush1.bf16.msra.mxu0 %v1919
    %6325 = vmatprep.mubr.bf16.mxu0 %v6251
    %6326 = vmatmul.mubr.bf16.gmra.mrb[0].mxu0 %v6250
    %v6327 = vpop.f32.mrb[0].mxu0
    %v6328 = vadd.f32 0.0, %v6327
    %v6329 = vpop.f32.mrb[0].mxu0
    %v6330 = vadd.f32 0.0, %v6329
    %v6331 = vpop.f32.mrb[0].mxu0
    %v6332 = vpop.f32.mrb[0].mxu0
    %6333 = vdwg.mxu0
    %6334 = vmatprep.subr.bf16.mxu0 %v1682
    %6335 = vmatpush1.bf16.msra.mxu0 %v1681
    %6336 = vmatprep.subr.bf16.mxu0 %v1698
    %6337 = vmatpush1.bf16.msra.mxu0 %v1697
    %6338 = vmatprep.subr.bf16.mxu0 %v1714
    %6339 = vmatpush1.bf16.msra.mxu0 %v1713
    %6340 = vmatprep.subr.bf16.mxu0 %v1730
    %6341 = vmatpush1.bf16.msra.mxu0 %v1729
    %6342 = vmatprep.subr.bf16.mxu0 %v1746
    %6343 = vmatpush1.bf16.msra.mxu0 %v1745
    %6344 = vmatprep.subr.bf16.mxu0 %v1762
    %6345 = vmatpush1.bf16.msra.mxu0 %v1761
    %6346 = vmatprep.subr.bf16.mxu0 %v1778
    %6347 = vmatpush1.bf16.msra.mxu0 %v1777
    %6348 = vmatprep.subr.bf16.mxu0 %v1794
    %6349 = vmatpush1.bf16.msra.mxu0 %v1793
    %6350 = vmatprep.subr.bf16.mxu0 %v1810
    %6351 = vmatpush1.bf16.msra.mxu0 %v1809
    %6352 = vmatprep.subr.bf16.mxu0 %v1826
    %6353 = vmatpush1.bf16.msra.mxu0 %v1825
    %6354 = vmatprep.subr.bf16.mxu0 %v1842
    %6355 = vmatpush1.bf16.msra.mxu0 %v1841
    %6356 = vmatprep.subr.bf16.mxu0 %v1858
    %6357 = vmatpush1.bf16.msra.mxu0 %v1857
    %6358 = vmatprep.subr.bf16.mxu0 %v1874
    %6359 = vmatpush1.bf16.msra.mxu0 %v1873
    %6360 = vmatprep.subr.bf16.mxu0 %v1890
    %6361 = vmatpush1.bf16.msra.mxu0 %v1889
    %6362 = vmatprep.subr.bf16.mxu0 %v1906
    %6363 = vmatpush1.bf16.msra.mxu0 %v1905
    %6364 = vmatprep.subr.bf16.mxu0 %v1922
    %6365 = vmatpush1.bf16.msra.mxu0 %v1921
    %6366 = vmatprep.mubr.bf16.mxu0 %v6251
    %6367 = vmatmul.mubr.bf16.gmra.mrb[0].mxu0 %v6250
    %v6368 = vpop.f32.mrb[0].mxu0
    %v6369 = vadd.f32 0.0, %v6368
    %v6370 = vpop.f32.mrb[0].mxu0
    %v6371 = vadd.f32 0.0, %v6370
    %v6372 = vpop.f32.mrb[0].mxu0
    %v6373 = vpop.f32.mrb[0].mxu0
    %6374 = vdwg.mxu0
    %6375 = vmatprep.subr.bf16.mxu0 %v1684
    %6376 = vmatpush1.bf16.msra.mxu0 %v1683
    %6377 = vmatprep.subr.bf16.mxu0 %v1700
    %6378 = vmatpush1.bf16.msra.mxu0 %v1699
    %6379 = vmatprep.subr.bf16.mxu0 %v1716
    %6380 = vmatpush1.bf16.msra.mxu0 %v1715
    %6381 = vmatprep.subr.bf16.mxu0 %v1732
    %6382 = vmatpush1.bf16.msra.mxu0 %v1731
    %6383 = vmatprep.subr.bf16.mxu0 %v1748
    %6384 = vmatpush1.bf16.msra.mxu0 %v1747
    %6385 = vmatprep.subr.bf16.mxu0 %v1764
    %6386 = vmatpush1.bf16.msra.mxu0 %v1763
    %6387 = vmatprep.subr.bf16.mxu0 %v1780
    %6388 = vmatpush1.bf16.msra.mxu0 %v1779
    %6389 = vmatprep.subr.bf16.mxu0 %v1796
    %6390 = vmatpush1.bf16.msra.mxu0 %v1795
    %6391 = vmatprep.subr.bf16.mxu0 %v1812
    %6392 = vmatpush1.bf16.msra.mxu0 %v1811
    %6393 = vmatprep.subr.bf16.mxu0 %v1828
    %6394 = vmatpush1.bf16.msra.mxu0 %v1827
    %6395 = vmatprep.subr.bf16.mxu0 %v1844
    %6396 = vmatpush1.bf16.msra.mxu0 %v1843
    %6397 = vmatprep.subr.bf16.mxu0 %v1860
    %6398 = vmatpush1.bf16.msra.mxu0 %v1859
    %6399 = vmatprep.subr.bf16.mxu0 %v1876
    %6400 = vmatpush1.bf16.msra.mxu0 %v1875
    %6401 = vmatprep.subr.bf16.mxu0 %v1892
    %6402 = vmatpush1.bf16.msra.mxu0 %v1891
    %6403 = vmatprep.subr.bf16.mxu0 %v1908
    %6404 = vmatpush1.bf16.msra.mxu0 %v1907
    %6405 = vmatprep.subr.bf16.mxu0 %v1924
    %6406 = vmatpush1.bf16.msra.mxu0 %v1923
    %6407 = vmatprep.mubr.bf16.mxu0 %v6251
    %6408 = vmatmul.mubr.bf16.gmra.mrb[0].mxu0 %v6250
    %v6409 = vpop.f32.mrb[0].mxu0
    %v6410 = vadd.f32 0.0, %v6409
    %v6411 = vpop.f32.mrb[0].mxu0
    %v6412 = vadd.f32 0.0, %v6411
    %v6413 = vpop.f32.mrb[0].mxu0
    %v6414 = vpop.f32.mrb[0].mxu0
    %6415 = vdwg.mxu0
    %6416 = vmatprep.subr.bf16.mxu0 %v1686
    %6417 = vmatpush1.bf16.msra.mxu0 %v1685
    %6418 = vmatprep.subr.bf16.mxu0 %v1702
    %6419 = vmatpush1.bf16.msra.mxu0 %v1701
    %6420 = vmatprep.subr.bf16.mxu0 %v1718
    %6421 = vmatpush1.bf16.msra.mxu0 %v1717
    %6422 = vmatprep.subr.bf16.mxu0 %v1734
    %6423 = vmatpush1.bf16.msra.mxu0 %v1733
    %6424 = vmatprep.subr.bf16.mxu0 %v1750
    %6425 = vmatpush1.bf16.msra.mxu0 %v1749
    %6426 = vmatprep.subr.bf16.mxu0 %v1766
    %6427 = vmatpush1.bf16.msra.mxu0 %v1765
    %6428 = vmatprep.subr.bf16.mxu0 %v1782
    %6429 = vmatpush1.bf16.msra.mxu0 %v1781
    %6430 = vmatprep.subr.bf16.mxu0 %v1798
    %6431 = vmatpush1.bf16.msra.mxu0 %v1797
    %6432 = vmatprep.subr.bf16.mxu0 %v1814
    %6433 = vmatpush1.bf16.msra.mxu0 %v1813
    %6434 = vmatprep.subr.bf16.mxu0 %v1830
    %6435 = vmatpush1.bf16.msra.mxu0 %v1829
    %6436 = vmatprep.subr.bf16.mxu0 %v1846
    %6437 = vmatpush1.bf16.msra.mxu0 %v1845
    %6438 = vmatprep.subr.bf16.mxu0 %v1862
    %6439 = vmatpush1.bf16.msra.mxu0 %v1861
    %6440 = vmatprep.subr.bf16.mxu0 %v1878
    %6441 = vmatpush1.bf16.msra.mxu0 %v1877
    %6442 = vmatprep.subr.bf16.mxu0 %v1894
    %6443 = vmatpush1.bf16.msra.mxu0 %v1893
    %6444 = vmatprep.subr.bf16.mxu0 %v1910
    %6445 = vmatpush1.bf16.msra.mxu0 %v1909
    %6446 = vmatprep.subr.bf16.mxu0 %v1926
    %6447 = vmatpush1.bf16.msra.mxu0 %v1925
    %6448 = vmatprep.mubr.bf16.mxu0 %v6251
    %6449 = vmatmul.mubr.bf16.gmra.mrb[0].mxu0 %v6250
    %v6450 = vpop.f32.mrb[0].mxu0
    %v6451 = vadd.f32 0.0, %v6450
    %v6452 = vpop.f32.mrb[0].mxu0
    %v6453 = vadd.f32 0.0, %v6452
    %v6454 = vpop.f32.mrb[0].mxu0
    %v6455 = vpop.f32.mrb[0].mxu0
    %6456 = vdwg.mxu0
    %6457 = vmatprep.subr.bf16.mxu0 %v1688
    %6458 = vmatpush1.bf16.msra.mxu0 %v1687
    %6459 = vmatprep.subr.bf16.mxu0 %v1704
    %6460 = vmatpush1.bf16.msra.mxu0 %v1703
    %6461 = vmatprep.subr.bf16.mxu0 %v1720
    %6462 = vmatpush1.bf16.msra.mxu0 %v1719
    %6463 = vmatprep.subr.bf16.mxu0 %v1736
    %6464 = vmatpush1.bf16.msra.mxu0 %v1735
    %6465 = vmatprep.subr.bf16.mxu0 %v1752
    %6466 = vmatpush1.bf16.msra.mxu0 %v1751
    %6467 = vmatprep.subr.bf16.mxu0 %v1768
    %6468 = vmatpush1.bf16.msra.mxu0 %v1767
    %6469 = vmatprep.subr.bf16.mxu0 %v1784
    %6470 = vmatpush1.bf16.msra.mxu0 %v1783
    %6471 = vmatprep.subr.bf16.mxu0 %v1800
    %6472 = vmatpush1.bf16.msra.mxu0 %v1799
    %6473 = vmatprep.subr.bf16.mxu0 %v1816
    %6474 = vmatpush1.bf16.msra.mxu0 %v1815
    %6475 = vmatprep.subr.bf16.mxu0 %v1832
    %6476 = vmatpush1.bf16.msra.mxu0 %v1831
    %6477 = vmatprep.subr.bf16.mxu0 %v1848
    %6478 = vmatpush1.bf16.msra.mxu0 %v1847
    %6479 = vmatprep.subr.bf16.mxu0 %v1864
    %6480 = vmatpush1.bf16.msra.mxu0 %v1863
    %6481 = vmatprep.subr.bf16.mxu0 %v1880
    %6482 = vmatpush1.bf16.msra.mxu0 %v1879
    %6483 = vmatprep.subr.bf16.mxu0 %v1896
    %6484 = vmatpush1.bf16.msra.mxu0 %v1895
    %6485 = vmatprep.subr.bf16.mxu0 %v1912
    %6486 = vmatpush1.bf16.msra.mxu0 %v1911
    %6487 = vmatprep.subr.bf16.mxu0 %v1928
    %6488 = vmatpush1.bf16.msra.mxu0 %v1927
    %6489 = vmatprep.mubr.bf16.mxu0 %v6251
    %6490 = vmatmul.mubr.bf16.gmra.mrb[0].mxu0 %v6250
    %v6491 = vpop.f32.mrb[0].mxu0
    %v6492 = vadd.f32 0.0, %v6491
    %v6493 = vpop.f32.mrb[0].mxu0
    %v6494 = vadd.f32 0.0, %v6493
    %v6495 = vpop.f32.mrb[0].mxu0
    %v6496 = vpop.f32.mrb[0].mxu0
    %6497 = vdwg.mxu0
    %6498 = vmatprep.subr.bf16.mxu0 %v1690
    %6499 = vmatpush1.bf16.msra.mxu0 %v1689
    %6500 = vmatprep.subr.bf16.mxu0 %v1706
    %6501 = vmatpush1.bf16.msra.mxu0 %v1705
    %6502 = vmatprep.subr.bf16.mxu0 %v1722
    %6503 = vmatpush1.bf16.msra.mxu0 %v1721
    %6504 = vmatprep.subr.bf16.mxu0 %v1738
    %6505 = vmatpush1.bf16.msra.mxu0 %v1737
    %6506 = vmatprep.subr.bf16.mxu0 %v1754
    %6507 = vmatpush1.bf16.msra.mxu0 %v1753
    %6508 = vmatprep.subr.bf16.mxu0 %v1770
    %6509 = vmatpush1.bf16.msra.mxu0 %v1769
    %6510 = vmatprep.subr.bf16.mxu0 %v1786
    %6511 = vmatpush1.bf16.msra.mxu0 %v1785
    %6512 = vmatprep.subr.bf16.mxu0 %v1802
    %6513 = vmatpush1.bf16.msra.mxu0 %v1801
    %6514 = vmatprep.subr.bf16.mxu0 %v1818
    %6515 = vmatpush1.bf16.msra.mxu0 %v1817
    %6516 = vmatprep.subr.bf16.mxu0 %v1834
    %6517 = vmatpush1.bf16.msra.mxu0 %v1833
    %6518 = vmatprep.subr.bf16.mxu0 %v1850
    %6519 = vmatpush1.bf16.msra.mxu0 %v1849
    %6520 = vmatprep.subr.bf16.mxu0 %v1866
    %6521 = vmatpush1.bf16.msra.mxu0 %v1865
    %6522 = vmatprep.subr.bf16.mxu0 %v1882
    %6523 = vmatpush1.bf16.msra.mxu0 %v1881
    %6524 = vmatprep.subr.bf16.mxu0 %v1898
    %6525 = vmatpush1.bf16.msra.mxu0 %v1897
    %6526 = vmatprep.subr.bf16.mxu0 %v1914
    %6527 = vmatpush1.bf16.msra.mxu0 %v1913
    %6528 = vmatprep.subr.bf16.mxu0 %v1930
    %6529 = vmatpush1.bf16.msra.mxu0 %v1929
    %6530 = vmatprep.mubr.bf16.mxu0 %v6251
    %6531 = vmatmul.mubr.bf16.gmra.mrb[0].mxu0 %v6250
    %v6532 = vpop.f32.mrb[0].mxu0
    %v6533 = vadd.f32 0.0, %v6532
    %v6534 = vpop.f32.mrb[0].mxu0
    %v6535 = vadd.f32 0.0, %v6534
    %v6536 = vpop.f32.mrb[0].mxu0
    %v6537 = vpop.f32.mrb[0].mxu0
    %6538 = vdwg.mxu0
    %6539 = vmatprep.subr.bf16.mxu0 %v1692
    %6540 = vmatpush1.bf16.msra.mxu0 %v1691
    %6541 = vmatprep.subr.bf16.mxu0 %v1708
    %6542 = vmatpush1.bf16.msra.mxu0 %v1707
    %6543 = vmatprep.subr.bf16.mxu0 %v1724
    %6544 = vmatpush1.bf16.msra.mxu0 %v1723
    %6545 = vmatprep.subr.bf16.mxu0 %v1740
    %6546 = vmatpush1.bf16.msra.mxu0 %v1739
    %6547 = vmatprep.subr.bf16.mxu0 %v1756
    %6548 = vmatpush1.bf16.msra.mxu0 %v1755
    %6549 = vmatprep.subr.bf16.mxu0 %v1772
    %6550 = vmatpush1.bf16.msra.mxu0 %v1771
    %6551 = vmatprep.subr.bf16.mxu0 %v1788
    %6552 = vmatpush1.bf16.msra.mxu0 %v1787
    %6553 = vmatprep.subr.bf16.mxu0 %v1804
    %6554 = vmatpush1.bf16.msra.mxu0 %v1803
    %6555 = vmatprep.subr.bf16.mxu0 %v1820
    %6556 = vmatpush1.bf16.msra.mxu0 %v1819
    %6557 = vmatprep.subr.bf16.mxu0 %v1836
    %6558 = vmatpush1.bf16.msra.mxu0 %v1835
    %6559 = vmatprep.subr.bf16.mxu0 %v1852
    %6560 = vmatpush1.bf16.msra.mxu0 %v1851
    %6561 = vmatprep.subr.bf16.mxu0 %v1868
    %6562 = vmatpush1.bf16.msra.mxu0 %v1867
    %6563 = vmatprep.subr.bf16.mxu0 %v1884
    %6564 = vmatpush1.bf16.msra.mxu0 %v1883
    %6565 = vmatprep.subr.bf16.mxu0 %v1900
    %6566 = vmatpush1.bf16.msra.mxu0 %v1899
    %6567 = vmatprep.subr.bf16.mxu0 %v1916
    %6568 = vmatpush1.bf16.msra.mxu0 %v1915
    %6569 = vmatprep.subr.bf16.mxu0 %v1932
    %6570 = vmatpush1.bf16.msra.mxu0 %v1931
    %6571 = vmatprep.mubr.bf16.mxu0 %v6251
    %6572 = vmatmul.mubr.bf16.gmra.mrb[0].mxu0 %v6250
    %v6573 = vpop.f32.mrb[0].mxu0
    %v6574 = vadd.f32 0.0, %v6573
    %v6575 = vpop.f32.mrb[0].mxu0
    %v6576 = vadd.f32 0.0, %v6575
    %v6577 = vpop.f32.mrb[0].mxu0
    %v6578 = vpop.f32.mrb[0].mxu0
    %6579 = vdwg.mxu0
    %v6580 = vadd.f32 %v2521, %v6451
    %v6581 = vadd.f32 %v2525, %v6453
    %v6582 = vadd.f32 %v2529, %v6492
    %v6583 = vadd.f32 %v2533, %v6494
    %v6584 = vadd.f32 %v2537, %v6533
    %v6585 = vadd.f32 %v2541, %v6535
    %v6586 = vadd.f32 %v2545, %v6574
    %v6587 = vadd.f32 %v2549, %v6576
    %v6588 = vpack.c.bf16 %v6124, %v6124
    %v6589 = vpack.c.bf16 %v6125, %v6125
    %6590 = vmatprep.subr.bf16.mxu0 %v3592
    %6591 = vmatpush1.bf16.msra.mxu0 %v3591
    %6592 = vmatprep.subr.bf16.mxu0 %v3600
    %6593 = vmatpush1.bf16.msra.mxu0 %v3599
    %6594 = vmatprep.subr.bf16.mxu0 %v3608
    %6595 = vmatpush1.bf16.msra.mxu0 %v3607
    %6596 = vmatprep.subr.bf16.mxu0 %v3616
    %6597 = vmatpush1.bf16.msra.mxu0 %v3615
    %6598 = vmatprep.subr.bf16.mxu0 %v3624
    %6599 = vmatpush1.bf16.msra.mxu0 %v3623
    %6600 = vmatprep.subr.bf16.mxu0 %v3632
    %6601 = vmatpush1.bf16.msra.mxu0 %v3631
    %6602 = vmatprep.subr.bf16.mxu0 %v3640
    %6603 = vmatpush1.bf16.msra.mxu0 %v3639
    %6604 = vmatprep.subr.bf16.mxu0 %v3648
    %6605 = vmatpush1.bf16.msra.mxu0 %v3647
    %6606 = vmatprep.subr.bf16.mxu0 %v3656
    %6607 = vmatpush1.bf16.msra.mxu0 %v3655
    %6608 = vmatprep.subr.bf16.mxu0 %v3664
    %6609 = vmatpush1.bf16.msra.mxu0 %v3663
    %6610 = vmatprep.subr.bf16.mxu0 %v3672
    %6611 = vmatpush1.bf16.msra.mxu0 %v3671
    %6612 = vmatprep.subr.bf16.mxu0 %v3680
    %6613 = vmatpush1.bf16.msra.mxu0 %v3679
    %6614 = vmatprep.subr.bf16.mxu0 %v3688
    %6615 = vmatpush1.bf16.msra.mxu0 %v3687
    %6616 = vmatprep.subr.bf16.mxu0 %v3696
    %6617 = vmatpush1.bf16.msra.mxu0 %v3695
    %6618 = vmatprep.subr.bf16.mxu0 %v3704
    %6619 = vmatpush1.bf16.msra.mxu0 %v3703
    %6620 = vmatprep.subr.bf16.mxu0 %v3712
    %6621 = vmatpush1.bf16.msra.mxu0 %v3711
    %6622 = vmatprep.mubr.bf16.mxu0 %v6589
    %6623 = vmatmul.mubr.bf16.gmra.mrb[0].mxu0 %v6588
    %v6624 = vpop.f32.mrb[0].mxu0
    %v6625 = vadd.f32 0.0, %v6624
    %v6626 = vpop.f32.mrb[0].mxu0
    %v6627 = vadd.f32 0.0, %v6626
    %v6628 = vpop.f32.mrb[0].mxu0
    %v6629 = vpop.f32.mrb[0].mxu0
    %6630 = vdwg.mxu0
    %6631 = vmatprep.subr.bf16.mxu0 %v3594
    %6632 = vmatpush1.bf16.msra.mxu0 %v3593
    %6633 = vmatprep.subr.bf16.mxu0 %v3602
    %6634 = vmatpush1.bf16.msra.mxu0 %v3601
    %6635 = vmatprep.subr.bf16.mxu0 %v3610
    %6636 = vmatpush1.bf16.msra.mxu0 %v3609
    %6637 = vmatprep.subr.bf16.mxu0 %v3618
    %6638 = vmatpush1.bf16.msra.mxu0 %v3617
    %6639 = vmatprep.subr.bf16.mxu0 %v3626
    %6640 = vmatpush1.bf16.msra.mxu0 %v3625
    %6641 = vmatprep.subr.bf16.mxu0 %v3634
    %6642 = vmatpush1.bf16.msra.mxu0 %v3633
    %6643 = vmatprep.subr.bf16.mxu0 %v3642
    %6644 = vmatpush1.bf16.msra.mxu0 %v3641
    %6645 = vmatprep.subr.bf16.mxu0 %v3650
    %6646 = vmatpush1.bf16.msra.mxu0 %v3649
    %6647 = vmatprep.subr.bf16.mxu0 %v3658
    %6648 = vmatpush1.bf16.msra.mxu0 %v3657
    %6649 = vmatprep.subr.bf16.mxu0 %v3666
    %6650 = vmatpush1.bf16.msra.mxu0 %v3665
    %6651 = vmatprep.subr.bf16.mxu0 %v3674
    %6652 = vmatpush1.bf16.msra.mxu0 %v3673
    %6653 = vmatprep.subr.bf16.mxu0 %v3682
    %6654 = vmatpush1.bf16.msra.mxu0 %v3681
    %6655 = vmatprep.subr.bf16.mxu0 %v3690
    %6656 = vmatpush1.bf16.msra.mxu0 %v3689
    %6657 = vmatprep.subr.bf16.mxu0 %v3698
    %6658 = vmatpush1.bf16.msra.mxu0 %v3697
    %6659 = vmatprep.subr.bf16.mxu0 %v3706
    %6660 = vmatpush1.bf16.msra.mxu0 %v3705
    %6661 = vmatprep.subr.bf16.mxu0 %v3714
    %6662 = vmatpush1.bf16.msra.mxu0 %v3713
    %6663 = vmatprep.mubr.bf16.mxu0 %v6589
    %6664 = vmatmul.mubr.bf16.gmra.mrb[0].mxu0 %v6588
    %v6665 = vpop.f32.mrb[0].mxu0
    %v6666 = vadd.f32 0.0, %v6665
    %v6667 = vpop.f32.mrb[0].mxu0
    %v6668 = vadd.f32 0.0, %v6667
    %v6669 = vpop.f32.mrb[0].mxu0
    %v6670 = vpop.f32.mrb[0].mxu0
    %6671 = vdwg.mxu0
    %6672 = vmatprep.subr.bf16.mxu0 %v3596
    %6673 = vmatpush1.bf16.msra.mxu0 %v3595
    %6674 = vmatprep.subr.bf16.mxu0 %v3604
    %6675 = vmatpush1.bf16.msra.mxu0 %v3603
    %6676 = vmatprep.subr.bf16.mxu0 %v3612
    %6677 = vmatpush1.bf16.msra.mxu0 %v3611
    %6678 = vmatprep.subr.bf16.mxu0 %v3620
    %6679 = vmatpush1.bf16.msra.mxu0 %v3619
    %6680 = vmatprep.subr.bf16.mxu0 %v3628
    %6681 = vmatpush1.bf16.msra.mxu0 %v3627
    %6682 = vmatprep.subr.bf16.mxu0 %v3636
    %6683 = vmatpush1.bf16.msra.mxu0 %v3635
    %6684 = vmatprep.subr.bf16.mxu0 %v3644
    %6685 = vmatpush1.bf16.msra.mxu0 %v3643
    %6686 = vmatprep.subr.bf16.mxu0 %v3652
    %6687 = vmatpush1.bf16.msra.mxu0 %v3651
    %6688 = vmatprep.subr.bf16.mxu0 %v3660
    %6689 = vmatpush1.bf16.msra.mxu0 %v3659
    %6690 = vmatprep.subr.bf16.mxu0 %v3668
    %6691 = vmatpush1.bf16.msra.mxu0 %v3667
    %6692 = vmatprep.subr.bf16.mxu0 %v3676
    %6693 = vmatpush1.bf16.msra.mxu0 %v3675
    %6694 = vmatprep.subr.bf16.mxu0 %v3684
    %6695 = vmatpush1.bf16.msra.mxu0 %v3683
    %6696 = vmatprep.subr.bf16.mxu0 %v3692
    %6697 = vmatpush1.bf16.msra.mxu0 %v3691
    %6698 = vmatprep.subr.bf16.mxu0 %v3700
    %6699 = vmatpush1.bf16.msra.mxu0 %v3699
    %6700 = vmatprep.subr.bf16.mxu0 %v3708
    %6701 = vmatpush1.bf16.msra.mxu0 %v3707
    %6702 = vmatprep.subr.bf16.mxu0 %v3716
    %6703 = vmatpush1.bf16.msra.mxu0 %v3715
    %6704 = vmatprep.mubr.bf16.mxu0 %v6589
    %6705 = vmatmul.mubr.bf16.gmra.mrb[0].mxu0 %v6588
    %v6706 = vpop.f32.mrb[0].mxu0
    %v6707 = vadd.f32 0.0, %v6706
    %v6708 = vpop.f32.mrb[0].mxu0
    %v6709 = vadd.f32 0.0, %v6708
    %v6710 = vpop.f32.mrb[0].mxu0
    %v6711 = vpop.f32.mrb[0].mxu0
    %6712 = vdwg.mxu0
    %6713 = vmatprep.subr.bf16.mxu0 %v3598
    %6714 = vmatpush1.bf16.msra.mxu0 %v3597
    %6715 = vmatprep.subr.bf16.mxu0 %v3606
    %6716 = vmatpush1.bf16.msra.mxu0 %v3605
    %6717 = vmatprep.subr.bf16.mxu0 %v3614
    %6718 = vmatpush1.bf16.msra.mxu0 %v3613
    %6719 = vmatprep.subr.bf16.mxu0 %v3622
    %6720 = vmatpush1.bf16.msra.mxu0 %v3621
    %6721 = vmatprep.subr.bf16.mxu0 %v3630
    %6722 = vmatpush1.bf16.msra.mxu0 %v3629
    %6723 = vmatprep.subr.bf16.mxu0 %v3638
    %6724 = vmatpush1.bf16.msra.mxu0 %v3637
    %6725 = vmatprep.subr.bf16.mxu0 %v3646
    %6726 = vmatpush1.bf16.msra.mxu0 %v3645
    %6727 = vmatprep.subr.bf16.mxu0 %v3654
    %6728 = vmatpush1.bf16.msra.mxu0 %v3653
    %6729 = vmatprep.subr.bf16.mxu0 %v3662
    %6730 = vmatpush1.bf16.msra.mxu0 %v3661
    %6731 = vmatprep.subr.bf16.mxu0 %v3670
    %6732 = vmatpush1.bf16.msra.mxu0 %v3669
    %6733 = vmatprep.subr.bf16.mxu0 %v3678
    %6734 = vmatpush1.bf16.msra.mxu0 %v3677
    %6735 = vmatprep.subr.bf16.mxu0 %v3686
    %6736 = vmatpush1.bf16.msra.mxu0 %v3685
    %6737 = vmatprep.subr.bf16.mxu0 %v3694
    %6738 = vmatpush1.bf16.msra.mxu0 %v3693
    %6739 = vmatprep.subr.bf16.mxu0 %v3702
    %6740 = vmatpush1.bf16.msra.mxu0 %v3701
    %6741 = vmatprep.subr.bf16.mxu0 %v3710
    %6742 = vmatpush1.bf16.msra.mxu0 %v3709
    %6743 = vmatprep.subr.bf16.mxu0 %v3718
    %6744 = vmatpush1.bf16.msra.mxu0 %v3717
    %6745 = vmatprep.mubr.bf16.mxu0 %v6589
    %6746 = vmatmul.mubr.bf16.gmra.mrb[0].mxu0 %v6588
    %v6747 = vpop.f32.mrb[0].mxu0
    %v6748 = vadd.f32 0.0, %v6747
    %v6749 = vpop.f32.mrb[0].mxu0
    %v6750 = vadd.f32 0.0, %v6749
    %v6751 = vpop.f32.mrb[0].mxu0
    %v6752 = vpop.f32.mrb[0].mxu0
    %6753 = vdwg.mxu0
    %v6754 = vadd.f32 %v6580, %v6625
    %v6755 = vadd.f32 %v6581, %v6627
    %v6756 = vadd.f32 %v6582, %v6666
    %v6757 = vadd.f32 %v6583, %v6668
    %v6758 = vadd.f32 %v6584, %v6707
    %v6759 = vadd.f32 %v6585, %v6709
    %v6760 = vadd.f32 %v6586, %v6748
    %v6761 = vadd.f32 %v6587, %v6750
    %v6762 = vxor.u32 %v6754, 2147483648
    %v6763 = vxor.u32 %v6755, 2147483648
    %v6764 = vmul.f32 %v6762, 1.442695
    %v6765 = vpow.pop %v6764
    %v6766 = vmul.f32 %v6763, 1.442695
    %v6767 = vpow.pop %v6766
    %v6768 = vadd.f32 %v6765, 1.0
    %v6769 = vadd.f32 %v6767, 1.0
    %v6770 = vrcp.pop %v6768
    %v6771 = vmul.f32 1.0, %v6770
    %v6772 = vrcp.pop %v6769
    %v6773 = vmul.f32 1.0, %v6772
    %v6774 = vxor.u32 %v6756, 2147483648
    %v6775 = vxor.u32 %v6757, 2147483648
    %v6776 = vmul.f32 %v6774, 1.442695
    %v6777 = vpow.pop %v6776
    %v6778 = vmul.f32 %v6775, 1.442695
    %v6779 = vpow.pop %v6778
    %v6780 = vadd.f32 %v6777, 1.0
    %v6781 = vadd.f32 %v6779, 1.0
    %v6782 = vrcp.pop %v6780
    %v6783 = vmul.f32 1.0, %v6782
    %v6784 = vrcp.pop %v6781
    %v6785 = vmul.f32 1.0, %v6784
    %v6786 = vtanh.pop %v6758
    %v6787 = vtanh.pop %v6759
    %v6788 = vxor.u32 %v6760, 2147483648
    %v6789 = vxor.u32 %v6761, 2147483648
    %v6790 = vmul.f32 %v6788, 1.442695
    %v6791 = vpow.pop %v6790
    %v6792 = vmul.f32 %v6789, 1.442695
    %v6793 = vpow.pop %v6792
    %v6794 = vadd.f32 %v6791, 1.0
    %v6795 = vadd.f32 %v6793, 1.0
    %v6796 = vrcp.pop %v6794
    %v6797 = vmul.f32 1.0, %v6796
    %v6798 = vrcp.pop %v6795
    %v6799 = vmul.f32 1.0, %v6798
    %v6800 = vmul.f32 %v6783, %v6120
    %v6801 = vmul.f32 %v6785, %v6121
    %v6802 = vmul.f32 %v6771, %v6786
    %v6803 = vmul.f32 %v6773, %v6787
    %v6804 = vadd.f32 %v6800, %v6802
    %v6805 = vadd.f32 %v6801, %v6803
    %v6806 = vtanh.pop %v6804
    %v6807 = vtanh.pop %v6805
    %v6808 = vmul.f32 %v6797, %v6806
    %v6809 = vmul.f32 %v6799, %v6807
    %6810 = vset.pattern.permute.xlu0 5
    %6811 = vperm.xlu0 %6810, %v368
    %v6812 = vpop.permute.xlu0 %6811
    %v6814 = vmul.f32 %v6808, %v6812
    %v6815 = vmul.f32 %v6809, %v6812
    %v6816 = vadd.f32 %v6132, %v6814
    %v6817 = vadd.f32 %v6133, %v6815
    %6818 = vset.pattern.permute.xlu0 12
    %6819 = vperm.xlu0 %6818, %v5448
    %v6820 = vpop.permute.xlu0 %6819
    %v6822 = vmul.f32 %v6820, %v387
    %v6823 = vmul.f32 %v6820, %v391
    %v6824 = vmul.f32 %v6820, %v395
    %v6825 = vmul.f32 %v6820, %v399
    %v6826 = vmul.f32 %v6820, %v403
    %v6827 = vmul.f32 %v6820, %v407
    %v6828 = vmul.f32 %v6820, %v411
    %v6829 = vmul.f32 %v6820, %v415
    %v6830 = vadd.f32 %v436, %v6822
    %v6831 = vadd.f32 %v440, %v6823
    %v6832 = vadd.f32 %v444, %v6824
    %v6833 = vadd.f32 %v448, %v6825
    %v6834 = vadd.f32 %v452, %v6826
    %v6835 = vadd.f32 %v456, %v6827
    %v6836 = vadd.f32 %v460, %v6828
    %v6837 = vadd.f32 %v464, %v6829
    %6838 = vset.pattern.permute.xlu0 13
    %6839 = vperm.xlu0 %6838, %v5448
    %v6840 = vpop.permute.xlu0 %6839
    %v6842 = vmul.f32 %v6840, %v489
    %v6843 = vmul.f32 %v6840, %v493
    %v6844 = vmul.f32 %v6840, %v497
    %v6845 = vmul.f32 %v6840, %v501
    %v6846 = vmul.f32 %v6840, %v505
    %v6847 = vmul.f32 %v6840, %v509
    %v6848 = vmul.f32 %v6840, %v513
    %v6849 = vmul.f32 %v6840, %v517
    %v6850 = vadd.f32 %v6830, %v6842
    %v6851 = vadd.f32 %v6831, %v6843
    %v6852 = vadd.f32 %v6832, %v6844
    %v6853 = vadd.f32 %v6833, %v6845
    %v6854 = vadd.f32 %v6834, %v6846
    %v6855 = vadd.f32 %v6835, %v6847
    %v6856 = vadd.f32 %v6836, %v6848
    %v6857 = vadd.f32 %v6837, %v6849
    %6858 = vset.pattern.permute.xlu0 14
    %6859 = vperm.xlu0 %6858, %v5448
    %v6860 = vpop.permute.xlu0 %6859
    %v6862 = vmul.f32 %v6860, %v550
    %v6863 = vmul.f32 %v6860, %v554
    %v6864 = vmul.f32 %v6860, %v558
    %v6865 = vmul.f32 %v6860, %v562
    %v6866 = vmul.f32 %v6860, %v566
    %v6867 = vmul.f32 %v6860, %v570
    %v6868 = vmul.f32 %v6860, %v574
    %v6869 = vmul.f32 %v6860, %v578
    %v6870 = vadd.f32 %v6850, %v6862
    %v6871 = vadd.f32 %v6851, %v6863
    %v6872 = vadd.f32 %v6852, %v6864
    %v6873 = vadd.f32 %v6853, %v6865
    %v6874 = vadd.f32 %v6854, %v6866
    %v6875 = vadd.f32 %v6855, %v6867
    %v6876 = vadd.f32 %v6856, %v6868
    %v6877 = vadd.f32 %v6857, %v6869
    %v6878 = vadd.f32 %v6870, %v6287
    %v6879 = vadd.f32 %v6871, %v6289
    %v6880 = vadd.f32 %v6872, %v6328
    %v6881 = vadd.f32 %v6873, %v6330
    %v6882 = vadd.f32 %v6874, %v6369
    %v6883 = vadd.f32 %v6875, %v6371
    %v6884 = vadd.f32 %v6876, %v6410
    %v6885 = vadd.f32 %v6877, %v6412
    %v6886 = vxor.u32 %v6878, 2147483648
    %v6887 = vxor.u32 %v6879, 2147483648
    %v6888 = vmul.f32 %v6886, 1.442695
    %v6889 = vpow.pop %v6888
    %v6890 = vmul.f32 %v6887, 1.442695
    %v6891 = vpow.pop %v6890
    %v6892 = vadd.f32 %v6889, 1.0
    %v6893 = vadd.f32 %v6891, 1.0
    %v6894 = vrcp.pop %v6892
    %v6895 = vmul.f32 1.0, %v6894
    %v6896 = vrcp.pop %v6893
    %v6897 = vmul.f32 1.0, %v6896
    %v6898 = vxor.u32 %v6880, 2147483648
    %v6899 = vxor.u32 %v6881, 2147483648
    %v6900 = vmul.f32 %v6898, 1.442695
    %v6901 = vpow.pop %v6900
    %v6902 = vmul.f32 %v6899, 1.442695
    %v6903 = vpow.pop %v6902
    %v6904 = vadd.f32 %v6901, 1.0
    %v6905 = vadd.f32 %v6903, 1.0
    %v6906 = vrcp.pop %v6904
    %v6907 = vmul.f32 1.0, %v6906
    %v6908 = vrcp.pop %v6905
    %v6909 = vmul.f32 1.0, %v6908
    %v6910 = vtanh.pop %v6882
    %v6911 = vtanh.pop %v6883
    %v6912 = vxor.u32 %v6884, 2147483648
    %v6913 = vxor.u32 %v6885, 2147483648
    %v6914 = vmul.f32 %v6912, 1.442695
    %v6915 = vpow.pop %v6914
    %v6916 = vmul.f32 %v6913, 1.442695
    %v6917 = vpow.pop %v6916
    %v6918 = vadd.f32 %v6915, 1.0
    %v6919 = vadd.f32 %v6917, 1.0
    %v6920 = vrcp.pop %v6918
    %v6921 = vmul.f32 1.0, %v6920
    %v6922 = vrcp.pop %v6919
    %v6923 = vmul.f32 1.0, %v6922
    %v6924 = vmul.f32 %v6907, %v6244
    %v6925 = vmul.f32 %v6909, %v6245
    %v6926 = vmul.f32 %v6895, %v6910
    %v6927 = vmul.f32 %v6897, %v6911
    %v6928 = vadd.f32 %v6924, %v6926
    %v6929 = vadd.f32 %v6925, %v6927
    %v6930 = vtanh.pop %v6928
    %v6931 = vtanh.pop %v6929
    %v6932 = vmul.f32 %v6921, %v6930
    %v6933 = vmul.f32 %v6923, %v6931
    %v6934 = vpack.c.bf16 %v6932, %v6932
    %v6935 = vpack.c.bf16 %v6933, %v6933
    %6936 = vmatprep.subr.bf16.mxu0 %v1678
    %6937 = vmatpush1.bf16.msra.mxu0 %v1677
    %6938 = vmatprep.subr.bf16.mxu0 %v1694
    %6939 = vmatpush1.bf16.msra.mxu0 %v1693
    %6940 = vmatprep.subr.bf16.mxu0 %v1710
    %6941 = vmatpush1.bf16.msra.mxu0 %v1709
    %6942 = vmatprep.subr.bf16.mxu0 %v1726
    %6943 = vmatpush1.bf16.msra.mxu0 %v1725
    %6944 = vmatprep.subr.bf16.mxu0 %v1742
    %6945 = vmatpush1.bf16.msra.mxu0 %v1741
    %6946 = vmatprep.subr.bf16.mxu0 %v1758
    %6947 = vmatpush1.bf16.msra.mxu0 %v1757
    %6948 = vmatprep.subr.bf16.mxu0 %v1774
    %6949 = vmatpush1.bf16.msra.mxu0 %v1773
    %6950 = vmatprep.subr.bf16.mxu0 %v1790
    %6951 = vmatpush1.bf16.msra.mxu0 %v1789
    %6952 = vmatprep.subr.bf16.mxu0 %v1806
    %6953 = vmatpush1.bf16.msra.mxu0 %v1805
    %6954 = vmatprep.subr.bf16.mxu0 %v1822
    %6955 = vmatpush1.bf16.msra.mxu0 %v1821
    %6956 = vmatprep.subr.bf16.mxu0 %v1838
    %6957 = vmatpush1.bf16.msra.mxu0 %v1837
    %6958 = vmatprep.subr.bf16.mxu0 %v1854
    %6959 = vmatpush1.bf16.msra.mxu0 %v1853
    %6960 = vmatprep.subr.bf16.mxu0 %v1870
    %6961 = vmatpush1.bf16.msra.mxu0 %v1869
    %6962 = vmatprep.subr.bf16.mxu0 %v1886
    %6963 = vmatpush1.bf16.msra.mxu0 %v1885
    %6964 = vmatprep.subr.bf16.mxu0 %v1902
    %6965 = vmatpush1.bf16.msra.mxu0 %v1901
    %6966 = vmatprep.subr.bf16.mxu0 %v1918
    %6967 = vmatpush1.bf16.msra.mxu0 %v1917
    %6968 = vmatprep.mubr.bf16.mxu0 %v6935
    %6969 = vmatmul.mubr.bf16.gmra.mrb[0].mxu0 %v6934
    %v6970 = vpop.f32.mrb[0].mxu0
    %v6971 = vadd.f32 0.0, %v6970
    %v6972 = vpop.f32.mrb[0].mxu0
    %v6973 = vadd.f32 0.0, %v6972
    %v6974 = vpop.f32.mrb[0].mxu0
    %v6975 = vpop.f32.mrb[0].mxu0
    %6976 = vdwg.mxu0
    %6977 = vmatprep.subr.bf16.mxu0 %v1680
    %6978 = vmatpush1.bf16.msra.mxu0 %v1679
    %6979 = vmatprep.subr.bf16.mxu0 %v1696
    %6980 = vmatpush1.bf16.msra.mxu0 %v1695
    %6981 = vmatprep.subr.bf16.mxu0 %v1712
    %6982 = vmatpush1.bf16.msra.mxu0 %v1711
    %6983 = vmatprep.subr.bf16.mxu0 %v1728
    %6984 = vmatpush1.bf16.msra.mxu0 %v1727
    %6985 = vmatprep.subr.bf16.mxu0 %v1744
    %6986 = vmatpush1.bf16.msra.mxu0 %v1743
    %6987 = vmatprep.subr.bf16.mxu0 %v1760
    %6988 = vmatpush1.bf16.msra.mxu0 %v1759
    %6989 = vmatprep.subr.bf16.mxu0 %v1776
    %6990 = vmatpush1.bf16.msra.mxu0 %v1775
    %6991 = vmatprep.subr.bf16.mxu0 %v1792
    %6992 = vmatpush1.bf16.msra.mxu0 %v1791
    %6993 = vmatprep.subr.bf16.mxu0 %v1808
    %6994 = vmatpush1.bf16.msra.mxu0 %v1807
    %6995 = vmatprep.subr.bf16.mxu0 %v1824
    %6996 = vmatpush1.bf16.msra.mxu0 %v1823
    %6997 = vmatprep.subr.bf16.mxu0 %v1840
    %6998 = vmatpush1.bf16.msra.mxu0 %v1839
    %6999 = vmatprep.subr.bf16.mxu0 %v1856
    %7000 = vmatpush1.bf16.msra.mxu0 %v1855
    %7001 = vmatprep.subr.bf16.mxu0 %v1872
    %7002 = vmatpush1.bf16.msra.mxu0 %v1871
    %7003 = vmatprep.subr.bf16.mxu0 %v1888
    %7004 = vmatpush1.bf16.msra.mxu0 %v1887
    %7005 = vmatprep.subr.bf16.mxu0 %v1904
    %7006 = vmatpush1.bf16.msra.mxu0 %v1903
    %7007 = vmatprep.subr.bf16.mxu0 %v1920
    %7008 = vmatpush1.bf16.msra.mxu0 %v1919
    %7009 = vmatprep.mubr.bf16.mxu0 %v6935
    %7010 = vmatmul.mubr.bf16.gmra.mrb[0].mxu0 %v6934
    %v7011 = vpop.f32.mrb[0].mxu0
    %v7012 = vadd.f32 0.0, %v7011
    %v7013 = vpop.f32.mrb[0].mxu0
    %v7014 = vadd.f32 0.0, %v7013
    %v7015 = vpop.f32.mrb[0].mxu0
    %v7016 = vpop.f32.mrb[0].mxu0
    %7017 = vdwg.mxu0
    %7018 = vmatprep.subr.bf16.mxu0 %v1682
    %7019 = vmatpush1.bf16.msra.mxu0 %v1681
    %7020 = vmatprep.subr.bf16.mxu0 %v1698
    %7021 = vmatpush1.bf16.msra.mxu0 %v1697
    %7022 = vmatprep.subr.bf16.mxu0 %v1714
    %7023 = vmatpush1.bf16.msra.mxu0 %v1713
    %7024 = vmatprep.subr.bf16.mxu0 %v1730
    %7025 = vmatpush1.bf16.msra.mxu0 %v1729
    %7026 = vmatprep.subr.bf16.mxu0 %v1746
    %7027 = vmatpush1.bf16.msra.mxu0 %v1745
    %7028 = vmatprep.subr.bf16.mxu0 %v1762
    %7029 = vmatpush1.bf16.msra.mxu0 %v1761
    %7030 = vmatprep.subr.bf16.mxu0 %v1778
    %7031 = vmatpush1.bf16.msra.mxu0 %v1777
    %7032 = vmatprep.subr.bf16.mxu0 %v1794
    %7033 = vmatpush1.bf16.msra.mxu0 %v1793
    %7034 = vmatprep.subr.bf16.mxu0 %v1810
    %7035 = vmatpush1.bf16.msra.mxu0 %v1809
    %7036 = vmatprep.subr.bf16.mxu0 %v1826
    %7037 = vmatpush1.bf16.msra.mxu0 %v1825
    %7038 = vmatprep.subr.bf16.mxu0 %v1842
    %7039 = vmatpush1.bf16.msra.mxu0 %v1841
    %7040 = vmatprep.subr.bf16.mxu0 %v1858
    %7041 = vmatpush1.bf16.msra.mxu0 %v1857
    %7042 = vmatprep.subr.bf16.mxu0 %v1874
    %7043 = vmatpush1.bf16.msra.mxu0 %v1873
    %7044 = vmatprep.subr.bf16.mxu0 %v1890
    %7045 = vmatpush1.bf16.msra.mxu0 %v1889
    %7046 = vmatprep.subr.bf16.mxu0 %v1906
    %7047 = vmatpush1.bf16.msra.mxu0 %v1905
    %7048 = vmatprep.subr.bf16.mxu0 %v1922
    %7049 = vmatpush1.bf16.msra.mxu0 %v1921
    %7050 = vmatprep.mubr.bf16.mxu0 %v6935
    %7051 = vmatmul.mubr.bf16.gmra.mrb[0].mxu0 %v6934
    %v7052 = vpop.f32.mrb[0].mxu0
    %v7053 = vadd.f32 0.0, %v7052
    %v7054 = vpop.f32.mrb[0].mxu0
    %v7055 = vadd.f32 0.0, %v7054
    %v7056 = vpop.f32.mrb[0].mxu0
    %v7057 = vpop.f32.mrb[0].mxu0
    %7058 = vdwg.mxu0
    %7059 = vmatprep.subr.bf16.mxu0 %v1684
    %7060 = vmatpush1.bf16.msra.mxu0 %v1683
    %7061 = vmatprep.subr.bf16.mxu0 %v1700
    %7062 = vmatpush1.bf16.msra.mxu0 %v1699
    %7063 = vmatprep.subr.bf16.mxu0 %v1716
    %7064 = vmatpush1.bf16.msra.mxu0 %v1715
    %7065 = vmatprep.subr.bf16.mxu0 %v1732
    %7066 = vmatpush1.bf16.msra.mxu0 %v1731
    %7067 = vmatprep.subr.bf16.mxu0 %v1748
    %7068 = vmatpush1.bf16.msra.mxu0 %v1747
    %7069 = vmatprep.subr.bf16.mxu0 %v1764
    %7070 = vmatpush1.bf16.msra.mxu0 %v1763
    %7071 = vmatprep.subr.bf16.mxu0 %v1780
    %7072 = vmatpush1.bf16.msra.mxu0 %v1779
    %7073 = vmatprep.subr.bf16.mxu0 %v1796
    %7074 = vmatpush1.bf16.msra.mxu0 %v1795
    %7075 = vmatprep.subr.bf16.mxu0 %v1812
    %7076 = vmatpush1.bf16.msra.mxu0 %v1811
    %7077 = vmatprep.subr.bf16.mxu0 %v1828
    %7078 = vmatpush1.bf16.msra.mxu0 %v1827
    %7079 = vmatprep.subr.bf16.mxu0 %v1844
    %7080 = vmatpush1.bf16.msra.mxu0 %v1843
    %7081 = vmatprep.subr.bf16.mxu0 %v1860
    %7082 = vmatpush1.bf16.msra.mxu0 %v1859
    %7083 = vmatprep.subr.bf16.mxu0 %v1876
    %7084 = vmatpush1.bf16.msra.mxu0 %v1875
    %7085 = vmatprep.subr.bf16.mxu0 %v1892
    %7086 = vmatpush1.bf16.msra.mxu0 %v1891
    %7087 = vmatprep.subr.bf16.mxu0 %v1908
    %7088 = vmatpush1.bf16.msra.mxu0 %v1907
    %7089 = vmatprep.subr.bf16.mxu0 %v1924
    %7090 = vmatpush1.bf16.msra.mxu0 %v1923
    %7091 = vmatprep.mubr.bf16.mxu0 %v6935
    %7092 = vmatmul.mubr.bf16.gmra.mrb[0].mxu0 %v6934
    %v7093 = vpop.f32.mrb[0].mxu0
    %v7094 = vadd.f32 0.0, %v7093
    %v7095 = vpop.f32.mrb[0].mxu0
    %v7096 = vadd.f32 0.0, %v7095
    %v7097 = vpop.f32.mrb[0].mxu0
    %v7098 = vpop.f32.mrb[0].mxu0
    %7099 = vdwg.mxu0
    %7100 = vmatprep.subr.bf16.mxu0 %v1686
    %7101 = vmatpush1.bf16.msra.mxu0 %v1685
    %7102 = vmatprep.subr.bf16.mxu0 %v1702
    %7103 = vmatpush1.bf16.msra.mxu0 %v1701
    %7104 = vmatprep.subr.bf16.mxu0 %v1718
    %7105 = vmatpush1.bf16.msra.mxu0 %v1717
    %7106 = vmatprep.subr.bf16.mxu0 %v1734
    %7107 = vmatpush1.bf16.msra.mxu0 %v1733
    %7108 = vmatprep.subr.bf16.mxu0 %v1750
    %7109 = vmatpush1.bf16.msra.mxu0 %v1749
    %7110 = vmatprep.subr.bf16.mxu0 %v1766
    %7111 = vmatpush1.bf16.msra.mxu0 %v1765
    %7112 = vmatprep.subr.bf16.mxu0 %v1782
    %7113 = vmatpush1.bf16.msra.mxu0 %v1781
    %7114 = vmatprep.subr.bf16.mxu0 %v1798
    %7115 = vmatpush1.bf16.msra.mxu0 %v1797
    %7116 = vmatprep.subr.bf16.mxu0 %v1814
    %7117 = vmatpush1.bf16.msra.mxu0 %v1813
    %7118 = vmatprep.subr.bf16.mxu0 %v1830
    %7119 = vmatpush1.bf16.msra.mxu0 %v1829
    %7120 = vmatprep.subr.bf16.mxu0 %v1846
    %7121 = vmatpush1.bf16.msra.mxu0 %v1845
    %7122 = vmatprep.subr.bf16.mxu0 %v1862
    %7123 = vmatpush1.bf16.msra.mxu0 %v1861
    %7124 = vmatprep.subr.bf16.mxu0 %v1878
    %7125 = vmatpush1.bf16.msra.mxu0 %v1877
    %7126 = vmatprep.subr.bf16.mxu0 %v1894
    %7127 = vmatpush1.bf16.msra.mxu0 %v1893
    %7128 = vmatprep.subr.bf16.mxu0 %v1910
    %7129 = vmatpush1.bf16.msra.mxu0 %v1909
    %7130 = vmatprep.subr.bf16.mxu0 %v1926
    %7131 = vmatpush1.bf16.msra.mxu0 %v1925
    %7132 = vmatprep.mubr.bf16.mxu0 %v6935
    %7133 = vmatmul.mubr.bf16.gmra.mrb[0].mxu0 %v6934
    %v7134 = vpop.f32.mrb[0].mxu0
    %v7135 = vadd.f32 0.0, %v7134
    %v7136 = vpop.f32.mrb[0].mxu0
    %v7137 = vadd.f32 0.0, %v7136
    %v7138 = vpop.f32.mrb[0].mxu0
    %v7139 = vpop.f32.mrb[0].mxu0
    %7140 = vdwg.mxu0
    %7141 = vmatprep.subr.bf16.mxu0 %v1688
    %7142 = vmatpush1.bf16.msra.mxu0 %v1687
    %7143 = vmatprep.subr.bf16.mxu0 %v1704
    %7144 = vmatpush1.bf16.msra.mxu0 %v1703
    %7145 = vmatprep.subr.bf16.mxu0 %v1720
    %7146 = vmatpush1.bf16.msra.mxu0 %v1719
    %7147 = vmatprep.subr.bf16.mxu0 %v1736
    %7148 = vmatpush1.bf16.msra.mxu0 %v1735
    %7149 = vmatprep.subr.bf16.mxu0 %v1752
    %7150 = vmatpush1.bf16.msra.mxu0 %v1751
    %7151 = vmatprep.subr.bf16.mxu0 %v1768
    %7152 = vmatpush1.bf16.msra.mxu0 %v1767
    %7153 = vmatprep.subr.bf16.mxu0 %v1784
    %7154 = vmatpush1.bf16.msra.mxu0 %v1783
    %7155 = vmatprep.subr.bf16.mxu0 %v1800
    %7156 = vmatpush1.bf16.msra.mxu0 %v1799
    %7157 = vmatprep.subr.bf16.mxu0 %v1816
    %7158 = vmatpush1.bf16.msra.mxu0 %v1815
    %7159 = vmatprep.subr.bf16.mxu0 %v1832
    %7160 = vmatpush1.bf16.msra.mxu0 %v1831
    %7161 = vmatprep.subr.bf16.mxu0 %v1848
    %7162 = vmatpush1.bf16.msra.mxu0 %v1847
    %7163 = vmatprep.subr.bf16.mxu0 %v1864
    %7164 = vmatpush1.bf16.msra.mxu0 %v1863
    %7165 = vmatprep.subr.bf16.mxu0 %v1880
    %7166 = vmatpush1.bf16.msra.mxu0 %v1879
    %7167 = vmatprep.subr.bf16.mxu0 %v1896
    %7168 = vmatpush1.bf16.msra.mxu0 %v1895
    %7169 = vmatprep.subr.bf16.mxu0 %v1912
    %7170 = vmatpush1.bf16.msra.mxu0 %v1911
    %7171 = vmatprep.subr.bf16.mxu0 %v1928
    %7172 = vmatpush1.bf16.msra.mxu0 %v1927
    %7173 = vmatprep.mubr.bf16.mxu0 %v6935
    %7174 = vmatmul.mubr.bf16.gmra.mrb[0].mxu0 %v6934
    %v7175 = vpop.f32.mrb[0].mxu0
    %v7176 = vadd.f32 0.0, %v7175
    %v7177 = vpop.f32.mrb[0].mxu0
    %v7178 = vadd.f32 0.0, %v7177
    %v7179 = vpop.f32.mrb[0].mxu0
    %v7180 = vpop.f32.mrb[0].mxu0
    %7181 = vdwg.mxu0
    %7182 = vmatprep.subr.bf16.mxu0 %v1690
    %7183 = vmatpush1.bf16.msra.mxu0 %v1689
    %7184 = vmatprep.subr.bf16.mxu0 %v1706
    %7185 = vmatpush1.bf16.msra.mxu0 %v1705
    %7186 = vmatprep.subr.bf16.mxu0 %v1722
    %7187 = vmatpush1.bf16.msra.mxu0 %v1721
    %7188 = vmatprep.subr.bf16.mxu0 %v1738
    %7189 = vmatpush1.bf16.msra.mxu0 %v1737
    %7190 = vmatprep.subr.bf16.mxu0 %v1754
    %7191 = vmatpush1.bf16.msra.mxu0 %v1753
    %7192 = vmatprep.subr.bf16.mxu0 %v1770
    %7193 = vmatpush1.bf16.msra.mxu0 %v1769
    %7194 = vmatprep.subr.bf16.mxu0 %v1786
    %7195 = vmatpush1.bf16.msra.mxu0 %v1785
    %7196 = vmatprep.subr.bf16.mxu0 %v1802
    %7197 = vmatpush1.bf16.msra.mxu0 %v1801
    %7198 = vmatprep.subr.bf16.mxu0 %v1818
    %7199 = vmatpush1.bf16.msra.mxu0 %v1817
    %7200 = vmatprep.subr.bf16.mxu0 %v1834
    %7201 = vmatpush1.bf16.msra.mxu0 %v1833
    %7202 = vmatprep.subr.bf16.mxu0 %v1850
    %7203 = vmatpush1.bf16.msra.mxu0 %v1849
    %7204 = vmatprep.subr.bf16.mxu0 %v1866
    %7205 = vmatpush1.bf16.msra.mxu0 %v1865
    %7206 = vmatprep.subr.bf16.mxu0 %v1882
    %7207 = vmatpush1.bf16.msra.mxu0 %v1881
    %7208 = vmatprep.subr.bf16.mxu0 %v1898
    %7209 = vmatpush1.bf16.msra.mxu0 %v1897
    %7210 = vmatprep.subr.bf16.mxu0 %v1914
    %7211 = vmatpush1.bf16.msra.mxu0 %v1913
    %7212 = vmatprep.subr.bf16.mxu0 %v1930
    %7213 = vmatpush1.bf16.msra.mxu0 %v1929
    %7214 = vmatprep.mubr.bf16.mxu0 %v6935
    %7215 = vmatmul.mubr.bf16.gmra.mrb[0].mxu0 %v6934
    %v7216 = vpop.f32.mrb[0].mxu0
    %v7217 = vadd.f32 0.0, %v7216
    %v7218 = vpop.f32.mrb[0].mxu0
    %v7219 = vadd.f32 0.0, %v7218
    %v7220 = vpop.f32.mrb[0].mxu0
    %v7221 = vpop.f32.mrb[0].mxu0
    %7222 = vdwg.mxu0
    %7223 = vmatprep.subr.bf16.mxu0 %v1692
    %7224 = vmatpush1.bf16.msra.mxu0 %v1691
    %7225 = vmatprep.subr.bf16.mxu0 %v1708
    %7226 = vmatpush1.bf16.msra.mxu0 %v1707
    %7227 = vmatprep.subr.bf16.mxu0 %v1724
    %7228 = vmatpush1.bf16.msra.mxu0 %v1723
    %7229 = vmatprep.subr.bf16.mxu0 %v1740
    %7230 = vmatpush1.bf16.msra.mxu0 %v1739
    %7231 = vmatprep.subr.bf16.mxu0 %v1756
    %7232 = vmatpush1.bf16.msra.mxu0 %v1755
    %7233 = vmatprep.subr.bf16.mxu0 %v1772
    %7234 = vmatpush1.bf16.msra.mxu0 %v1771
    %7235 = vmatprep.subr.bf16.mxu0 %v1788
    %7236 = vmatpush1.bf16.msra.mxu0 %v1787
    %7237 = vmatprep.subr.bf16.mxu0 %v1804
    %7238 = vmatpush1.bf16.msra.mxu0 %v1803
    %7239 = vmatprep.subr.bf16.mxu0 %v1820
    %7240 = vmatpush1.bf16.msra.mxu0 %v1819
    %7241 = vmatprep.subr.bf16.mxu0 %v1836
    %7242 = vmatpush1.bf16.msra.mxu0 %v1835
    %7243 = vmatprep.subr.bf16.mxu0 %v1852
    %7244 = vmatpush1.bf16.msra.mxu0 %v1851
    %7245 = vmatprep.subr.bf16.mxu0 %v1868
    %7246 = vmatpush1.bf16.msra.mxu0 %v1867
    %7247 = vmatprep.subr.bf16.mxu0 %v1884
    %7248 = vmatpush1.bf16.msra.mxu0 %v1883
    %7249 = vmatprep.subr.bf16.mxu0 %v1900
    %7250 = vmatpush1.bf16.msra.mxu0 %v1899
    %7251 = vmatprep.subr.bf16.mxu0 %v1916
    %7252 = vmatpush1.bf16.msra.mxu0 %v1915
    %7253 = vmatprep.subr.bf16.mxu0 %v1932
    %7254 = vmatpush1.bf16.msra.mxu0 %v1931
    %7255 = vmatprep.mubr.bf16.mxu0 %v6935
    %7256 = vmatmul.mubr.bf16.gmra.mrb[0].mxu0 %v6934
    %v7257 = vpop.f32.mrb[0].mxu0
    %v7258 = vadd.f32 0.0, %v7257
    %v7259 = vpop.f32.mrb[0].mxu0
    %v7260 = vadd.f32 0.0, %v7259
    %v7261 = vpop.f32.mrb[0].mxu0
    %v7262 = vpop.f32.mrb[0].mxu0
    %7263 = vdwg.mxu0
    %v7264 = vadd.f32 %v2521, %v7135
    %v7265 = vadd.f32 %v2525, %v7137
    %v7266 = vadd.f32 %v2529, %v7176
    %v7267 = vadd.f32 %v2533, %v7178
    %v7268 = vadd.f32 %v2537, %v7217
    %v7269 = vadd.f32 %v2541, %v7219
    %v7270 = vadd.f32 %v2545, %v7258
    %v7271 = vadd.f32 %v2549, %v7260
    %v7272 = vpack.c.bf16 %v6808, %v6808
    %v7273 = vpack.c.bf16 %v6809, %v6809
    %7274 = vmatprep.subr.bf16.mxu0 %v3592
    %7275 = vmatpush1.bf16.msra.mxu0 %v3591
    %7276 = vmatprep.subr.bf16.mxu0 %v3600
    %7277 = vmatpush1.bf16.msra.mxu0 %v3599
    %7278 = vmatprep.subr.bf16.mxu0 %v3608
    %7279 = vmatpush1.bf16.msra.mxu0 %v3607
    %7280 = vmatprep.subr.bf16.mxu0 %v3616
    %7281 = vmatpush1.bf16.msra.mxu0 %v3615
    %7282 = vmatprep.subr.bf16.mxu0 %v3624
    %7283 = vmatpush1.bf16.msra.mxu0 %v3623
    %7284 = vmatprep.subr.bf16.mxu0 %v3632
    %7285 = vmatpush1.bf16.msra.mxu0 %v3631
    %7286 = vmatprep.subr.bf16.mxu0 %v3640
    %7287 = vmatpush1.bf16.msra.mxu0 %v3639
    %7288 = vmatprep.subr.bf16.mxu0 %v3648
    %7289 = vmatpush1.bf16.msra.mxu0 %v3647
    %7290 = vmatprep.subr.bf16.mxu0 %v3656
    %7291 = vmatpush1.bf16.msra.mxu0 %v3655
    %7292 = vmatprep.subr.bf16.mxu0 %v3664
    %7293 = vmatpush1.bf16.msra.mxu0 %v3663
    %7294 = vmatprep.subr.bf16.mxu0 %v3672
    %7295 = vmatpush1.bf16.msra.mxu0 %v3671
    %7296 = vmatprep.subr.bf16.mxu0 %v3680
    %7297 = vmatpush1.bf16.msra.mxu0 %v3679
    %7298 = vmatprep.subr.bf16.mxu0 %v3688
    %7299 = vmatpush1.bf16.msra.mxu0 %v3687
    %7300 = vmatprep.subr.bf16.mxu0 %v3696
    %7301 = vmatpush1.bf16.msra.mxu0 %v3695
    %7302 = vmatprep.subr.bf16.mxu0 %v3704
    %7303 = vmatpush1.bf16.msra.mxu0 %v3703
    %7304 = vmatprep.subr.bf16.mxu0 %v3712
    %7305 = vmatpush1.bf16.msra.mxu0 %v3711
    %7306 = vmatprep.mubr.bf16.mxu0 %v7273
    %7307 = vmatmul.mubr.bf16.gmra.mrb[0].mxu0 %v7272
    %v7308 = vpop.f32.mrb[0].mxu0
    %v7309 = vadd.f32 0.0, %v7308
    %v7310 = vpop.f32.mrb[0].mxu0
    %v7311 = vadd.f32 0.0, %v7310
    %v7312 = vpop.f32.mrb[0].mxu0
    %v7313 = vpop.f32.mrb[0].mxu0
    %7314 = vdwg.mxu0
    %7315 = vmatprep.subr.bf16.mxu0 %v3594
    %7316 = vmatpush1.bf16.msra.mxu0 %v3593
    %7317 = vmatprep.subr.bf16.mxu0 %v3602
    %7318 = vmatpush1.bf16.msra.mxu0 %v3601
    %7319 = vmatprep.subr.bf16.mxu0 %v3610
    %7320 = vmatpush1.bf16.msra.mxu0 %v3609
    %7321 = vmatprep.subr.bf16.mxu0 %v3618
    %7322 = vmatpush1.bf16.msra.mxu0 %v3617
    %7323 = vmatprep.subr.bf16.mxu0 %v3626
    %7324 = vmatpush1.bf16.msra.mxu0 %v3625
    %7325 = vmatprep.subr.bf16.mxu0 %v3634
    %7326 = vmatpush1.bf16.msra.mxu0 %v3633
    %7327 = vmatprep.subr.bf16.mxu0 %v3642
    %7328 = vmatpush1.bf16.msra.mxu0 %v3641
    %7329 = vmatprep.subr.bf16.mxu0 %v3650
    %7330 = vmatpush1.bf16.msra.mxu0 %v3649
    %7331 = vmatprep.subr.bf16.mxu0 %v3658
    %7332 = vmatpush1.bf16.msra.mxu0 %v3657
    %7333 = vmatprep.subr.bf16.mxu0 %v3666
    %7334 = vmatpush1.bf16.msra.mxu0 %v3665
    %7335 = vmatprep.subr.bf16.mxu0 %v3674
    %7336 = vmatpush1.bf16.msra.mxu0 %v3673
    %7337 = vmatprep.subr.bf16.mxu0 %v3682
    %7338 = vmatpush1.bf16.msra.mxu0 %v3681
    %7339 = vmatprep.subr.bf16.mxu0 %v3690
    %7340 = vmatpush1.bf16.msra.mxu0 %v3689
    %7341 = vmatprep.subr.bf16.mxu0 %v3698
    %7342 = vmatpush1.bf16.msra.mxu0 %v3697
    %7343 = vmatprep.subr.bf16.mxu0 %v3706
    %7344 = vmatpush1.bf16.msra.mxu0 %v3705
    %7345 = vmatprep.subr.bf16.mxu0 %v3714
    %7346 = vmatpush1.bf16.msra.mxu0 %v3713
    %7347 = vmatprep.mubr.bf16.mxu0 %v7273
    %7348 = vmatmul.mubr.bf16.gmra.mrb[0].mxu0 %v7272
    %v7349 = vpop.f32.mrb[0].mxu0
    %v7350 = vadd.f32 0.0, %v7349
    %v7351 = vpop.f32.mrb[0].mxu0
    %v7352 = vadd.f32 0.0, %v7351
    %v7353 = vpop.f32.mrb[0].mxu0
    %v7354 = vpop.f32.mrb[0].mxu0
    %7355 = vdwg.mxu0
    %7356 = vmatprep.subr.bf16.mxu0 %v3596
    %7357 = vmatpush1.bf16.msra.mxu0 %v3595
    %7358 = vmatprep.subr.bf16.mxu0 %v3604
    %7359 = vmatpush1.bf16.msra.mxu0 %v3603
    %7360 = vmatprep.subr.bf16.mxu0 %v3612
    %7361 = vmatpush1.bf16.msra.mxu0 %v3611
    %7362 = vmatprep.subr.bf16.mxu0 %v3620
    %7363 = vmatpush1.bf16.msra.mxu0 %v3619
    %7364 = vmatprep.subr.bf16.mxu0 %v3628
    %7365 = vmatpush1.bf16.msra.mxu0 %v3627
    %7366 = vmatprep.subr.bf16.mxu0 %v3636
    %7367 = vmatpush1.bf16.msra.mxu0 %v3635
    %7368 = vmatprep.subr.bf16.mxu0 %v3644
    %7369 = vmatpush1.bf16.msra.mxu0 %v3643
    %7370 = vmatprep.subr.bf16.mxu0 %v3652
    %7371 = vmatpush1.bf16.msra.mxu0 %v3651
    %7372 = vmatprep.subr.bf16.mxu0 %v3660
    %7373 = vmatpush1.bf16.msra.mxu0 %v3659
    %7374 = vmatprep.subr.bf16.mxu0 %v3668
    %7375 = vmatpush1.bf16.msra.mxu0 %v3667
    %7376 = vmatprep.subr.bf16.mxu0 %v3676
    %7377 = vmatpush1.bf16.msra.mxu0 %v3675
    %7378 = vmatprep.subr.bf16.mxu0 %v3684
    %7379 = vmatpush1.bf16.msra.mxu0 %v3683
    %7380 = vmatprep.subr.bf16.mxu0 %v3692
    %7381 = vmatpush1.bf16.msra.mxu0 %v3691
    %7382 = vmatprep.subr.bf16.mxu0 %v3700
    %7383 = vmatpush1.bf16.msra.mxu0 %v3699
    %7384 = vmatprep.subr.bf16.mxu0 %v3708
    %7385 = vmatpush1.bf16.msra.mxu0 %v3707
    %7386 = vmatprep.subr.bf16.mxu0 %v3716
    %7387 = vmatpush1.bf16.msra.mxu0 %v3715
    %7388 = vmatprep.mubr.bf16.mxu0 %v7273
    %7389 = vmatmul.mubr.bf16.gmra.mrb[0].mxu0 %v7272
    %v7390 = vpop.f32.mrb[0].mxu0
    %v7391 = vadd.f32 0.0, %v7390
    %v7392 = vpop.f32.mrb[0].mxu0
    %v7393 = vadd.f32 0.0, %v7392
    %v7394 = vpop.f32.mrb[0].mxu0
    %v7395 = vpop.f32.mrb[0].mxu0
    %7396 = vdwg.mxu0
    %7397 = vmatprep.subr.bf16.mxu0 %v3598
    %7398 = vmatpush1.bf16.msra.mxu0 %v3597
    %7399 = vmatprep.subr.bf16.mxu0 %v3606
    %7400 = vmatpush1.bf16.msra.mxu0 %v3605
    %7401 = vmatprep.subr.bf16.mxu0 %v3614
    %7402 = vmatpush1.bf16.msra.mxu0 %v3613
    %7403 = vmatprep.subr.bf16.mxu0 %v3622
    %7404 = vmatpush1.bf16.msra.mxu0 %v3621
    %7405 = vmatprep.subr.bf16.mxu0 %v3630
    %7406 = vmatpush1.bf16.msra.mxu0 %v3629
    %7407 = vmatprep.subr.bf16.mxu0 %v3638
    %7408 = vmatpush1.bf16.msra.mxu0 %v3637
    %7409 = vmatprep.subr.bf16.mxu0 %v3646
    %7410 = vmatpush1.bf16.msra.mxu0 %v3645
    %7411 = vmatprep.subr.bf16.mxu0 %v3654
    %7412 = vmatpush1.bf16.msra.mxu0 %v3653
    %7413 = vmatprep.subr.bf16.mxu0 %v3662
    %7414 = vmatpush1.bf16.msra.mxu0 %v3661
    %7415 = vmatprep.subr.bf16.mxu0 %v3670
    %7416 = vmatpush1.bf16.msra.mxu0 %v3669
    %7417 = vmatprep.subr.bf16.mxu0 %v3678
    %7418 = vmatpush1.bf16.msra.mxu0 %v3677
    %7419 = vmatprep.subr.bf16.mxu0 %v3686
    %7420 = vmatpush1.bf16.msra.mxu0 %v3685
    %7421 = vmatprep.subr.bf16.mxu0 %v3694
    %7422 = vmatpush1.bf16.msra.mxu0 %v3693
    %7423 = vmatprep.subr.bf16.mxu0 %v3702
    %7424 = vmatpush1.bf16.msra.mxu0 %v3701
    %7425 = vmatprep.subr.bf16.mxu0 %v3710
    %7426 = vmatpush1.bf16.msra.mxu0 %v3709
    %7427 = vmatprep.subr.bf16.mxu0 %v3718
    %7428 = vmatpush1.bf16.msra.mxu0 %v3717
    %7429 = vmatprep.mubr.bf16.mxu0 %v7273
    %7430 = vmatmul.mubr.bf16.gmra.mrb[0].mxu0 %v7272
    %v7431 = vpop.f32.mrb[0].mxu0
    %v7432 = vadd.f32 0.0, %v7431
    %v7433 = vpop.f32.mrb[0].mxu0
    %v7434 = vadd.f32 0.0, %v7433
    %v7435 = vpop.f32.mrb[0].mxu0
    %v7436 = vpop.f32.mrb[0].mxu0
    %7437 = vdwg.mxu0
    %v7438 = vadd.f32 %v7264, %v7309
    %v7439 = vadd.f32 %v7265, %v7311
    %v7440 = vadd.f32 %v7266, %v7350
    %v7441 = vadd.f32 %v7267, %v7352
    %v7442 = vadd.f32 %v7268, %v7391
    %v7443 = vadd.f32 %v7269, %v7393
    %v7444 = vadd.f32 %v7270, %v7432
    %v7445 = vadd.f32 %v7271, %v7434
    %v7446 = vxor.u32 %v7438, 2147483648
    %v7447 = vxor.u32 %v7439, 2147483648
    %v7448 = vmul.f32 %v7446, 1.442695
    %v7449 = vpow.pop %v7448
    %v7450 = vmul.f32 %v7447, 1.442695
    %v7451 = vpow.pop %v7450
    %v7452 = vadd.f32 %v7449, 1.0
    %v7453 = vadd.f32 %v7451, 1.0
    %v7454 = vrcp.pop %v7452
    %v7455 = vmul.f32 1.0, %v7454
    %v7456 = vrcp.pop %v7453
    %v7457 = vmul.f32 1.0, %v7456
    %v7458 = vxor.u32 %v7440, 2147483648
    %v7459 = vxor.u32 %v7441, 2147483648
    %v7460 = vmul.f32 %v7458, 1.442695
    %v7461 = vpow.pop %v7460
    %v7462 = vmul.f32 %v7459, 1.442695
    %v7463 = vpow.pop %v7462
    %v7464 = vadd.f32 %v7461, 1.0
    %v7465 = vadd.f32 %v7463, 1.0
    %v7466 = vrcp.pop %v7464
    %v7467 = vmul.f32 1.0, %v7466
    %v7468 = vrcp.pop %v7465
    %v7469 = vmul.f32 1.0, %v7468
    %v7470 = vtanh.pop %v7442
    %v7471 = vtanh.pop %v7443
    %v7472 = vxor.u32 %v7444, 2147483648
    %v7473 = vxor.u32 %v7445, 2147483648
    %v7474 = vmul.f32 %v7472, 1.442695
    %v7475 = vpow.pop %v7474
    %v7476 = vmul.f32 %v7473, 1.442695
    %v7477 = vpow.pop %v7476
    %v7478 = vadd.f32 %v7475, 1.0
    %v7479 = vadd.f32 %v7477, 1.0
    %v7480 = vrcp.pop %v7478
    %v7481 = vmul.f32 1.0, %v7480
    %v7482 = vrcp.pop %v7479
    %v7483 = vmul.f32 1.0, %v7482
    %v7484 = vmul.f32 %v7467, %v6804
    %v7485 = vmul.f32 %v7469, %v6805
    %v7486 = vmul.f32 %v7455, %v7470
    %v7487 = vmul.f32 %v7457, %v7471
    %v7488 = vadd.f32 %v7484, %v7486
    %v7489 = vadd.f32 %v7485, %v7487
    %v7490 = vtanh.pop %v7488
    %v7491 = vtanh.pop %v7489
    %v7492 = vmul.f32 %v7481, %v7490
    %v7493 = vmul.f32 %v7483, %v7491
    %7494 = vset.pattern.permute.xlu0 6
    %7495 = vperm.xlu0 %7494, %v368
    %v7496 = vpop.permute.xlu0 %7495
    %v7498 = vmul.f32 %v7492, %v7496
    %v7499 = vmul.f32 %v7493, %v7496
    %v7500 = vadd.f32 %v6816, %v7498
    %v7501 = vadd.f32 %v6817, %v7499
    %7502 = vset.pattern.permute.xlu0 18
    %7503 = vperm.xlu0 %7502, %v5448
    %v7504 = vpop.permute.xlu0 %7503
    %v7506 = vmul.f32 %v7504, %v387
    %v7507 = vmul.f32 %v7504, %v391
    %v7508 = vmul.f32 %v7504, %v395
    %v7509 = vmul.f32 %v7504, %v399
    %v7510 = vmul.f32 %v7504, %v403
    %v7511 = vmul.f32 %v7504, %v407
    %v7512 = vmul.f32 %v7504, %v411
    %v7513 = vmul.f32 %v7504, %v415
    %v7514 = vadd.f32 %v436, %v7506
    %v7515 = vadd.f32 %v440, %v7507
    %v7516 = vadd.f32 %v444, %v7508
    %v7517 = vadd.f32 %v448, %v7509
    %v7518 = vadd.f32 %v452, %v7510
    %v7519 = vadd.f32 %v456, %v7511
    %v7520 = vadd.f32 %v460, %v7512
    %v7521 = vadd.f32 %v464, %v7513
    %7522 = vset.pattern.permute.xlu0 19
    %7523 = vperm.xlu0 %7522, %v5448
    %v7524 = vpop.permute.xlu0 %7523
    %v7526 = vmul.f32 %v7524, %v489
    %v7527 = vmul.f32 %v7524, %v493
    %v7528 = vmul.f32 %v7524, %v497
    %v7529 = vmul.f32 %v7524, %v501
    %v7530 = vmul.f32 %v7524, %v505
    %v7531 = vmul.f32 %v7524, %v509
    %v7532 = vmul.f32 %v7524, %v513
    %v7533 = vmul.f32 %v7524, %v517
    %v7534 = vadd.f32 %v7514, %v7526
    %v7535 = vadd.f32 %v7515, %v7527
    %v7536 = vadd.f32 %v7516, %v7528
    %v7537 = vadd.f32 %v7517, %v7529
    %v7538 = vadd.f32 %v7518, %v7530
    %v7539 = vadd.f32 %v7519, %v7531
    %v7540 = vadd.f32 %v7520, %v7532
    %v7541 = vadd.f32 %v7521, %v7533
    %7542 = vset.pattern.permute.xlu0 20
    %7543 = vperm.xlu0 %7542, %v5448
    %v7544 = vpop.permute.xlu0 %7543
    %v7546 = vmul.f32 %v7544, %v550
    %v7547 = vmul.f32 %v7544, %v554
    %v7548 = vmul.f32 %v7544, %v558
    %v7549 = vmul.f32 %v7544, %v562
    %v7550 = vmul.f32 %v7544, %v566
    %v7551 = vmul.f32 %v7544, %v570
    %v7552 = vmul.f32 %v7544, %v574
    %v7553 = vmul.f32 %v7544, %v578
    %v7554 = vadd.f32 %v7534, %v7546
    %v7555 = vadd.f32 %v7535, %v7547
    %v7556 = vadd.f32 %v7536, %v7548
    %v7557 = vadd.f32 %v7537, %v7549
    %v7558 = vadd.f32 %v7538, %v7550
    %v7559 = vadd.f32 %v7539, %v7551
    %v7560 = vadd.f32 %v7540, %v7552
    %v7561 = vadd.f32 %v7541, %v7553
    %v7562 = vadd.f32 %v7554, %v6971
    %v7563 = vadd.f32 %v7555, %v6973
    %v7564 = vadd.f32 %v7556, %v7012
    %v7565 = vadd.f32 %v7557, %v7014
    %v7566 = vadd.f32 %v7558, %v7053
    %v7567 = vadd.f32 %v7559, %v7055
    %v7568 = vadd.f32 %v7560, %v7094
    %v7569 = vadd.f32 %v7561, %v7096
    %v7570 = vxor.u32 %v7562, 2147483648
    %v7571 = vxor.u32 %v7563, 2147483648
    %v7572 = vmul.f32 %v7570, 1.442695
    %v7573 = vpow.pop %v7572
    %v7574 = vmul.f32 %v7571, 1.442695
    %v7575 = vpow.pop %v7574
    %v7576 = vadd.f32 %v7573, 1.0
    %v7577 = vadd.f32 %v7575, 1.0
    %v7578 = vrcp.pop %v7576
    %v7579 = vmul.f32 1.0, %v7578
    %v7580 = vrcp.pop %v7577
    %v7581 = vmul.f32 1.0, %v7580
    %v7582 = vxor.u32 %v7564, 2147483648
    %v7583 = vxor.u32 %v7565, 2147483648
    %v7584 = vmul.f32 %v7582, 1.442695
    %v7585 = vpow.pop %v7584
    %v7586 = vmul.f32 %v7583, 1.442695
    %v7587 = vpow.pop %v7586
    %v7588 = vadd.f32 %v7585, 1.0
    %v7589 = vadd.f32 %v7587, 1.0
    %v7590 = vrcp.pop %v7588
    %v7591 = vmul.f32 1.0, %v7590
    %v7592 = vrcp.pop %v7589
    %v7593 = vmul.f32 1.0, %v7592
    %v7594 = vtanh.pop %v7566
    %v7595 = vtanh.pop %v7567
    %v7596 = vxor.u32 %v7568, 2147483648
    %v7597 = vxor.u32 %v7569, 2147483648
    %v7598 = vmul.f32 %v7596, 1.442695
    %v7599 = vpow.pop %v7598
    %v7600 = vmul.f32 %v7597, 1.442695
    %v7601 = vpow.pop %v7600
    %v7602 = vadd.f32 %v7599, 1.0
    %v7603 = vadd.f32 %v7601, 1.0
    %v7604 = vrcp.pop %v7602
    %v7605 = vmul.f32 1.0, %v7604
    %v7606 = vrcp.pop %v7603
    %v7607 = vmul.f32 1.0, %v7606
    %v7608 = vmul.f32 %v7591, %v6928
    %v7609 = vmul.f32 %v7593, %v6929
    %v7610 = vmul.f32 %v7579, %v7594
    %v7611 = vmul.f32 %v7581, %v7595
    %v7612 = vadd.f32 %v7608, %v7610
    %v7613 = vadd.f32 %v7609, %v7611
    %v7614 = vtanh.pop %v7612
    %v7615 = vtanh.pop %v7613
    %v7616 = vmul.f32 %v7605, %v7614
    %v7617 = vmul.f32 %v7607, %v7615
    %v7618 = vpack.c.bf16 %v7616, %v7616
    %v7619 = vpack.c.bf16 %v7617, %v7617
    %7620 = vmatprep.subr.bf16.mxu0 %v1686
    %7621 = vmatpush1.bf16.msra.mxu0 %v1685
    %7622 = vmatprep.subr.bf16.mxu0 %v1702
    %7623 = vmatpush1.bf16.msra.mxu0 %v1701
    %7624 = vmatprep.subr.bf16.mxu0 %v1718
    %7625 = vmatpush1.bf16.msra.mxu0 %v1717
    %7626 = vmatprep.subr.bf16.mxu0 %v1734
    %7627 = vmatpush1.bf16.msra.mxu0 %v1733
    %7628 = vmatprep.subr.bf16.mxu0 %v1750
    %7629 = vmatpush1.bf16.msra.mxu0 %v1749
    %7630 = vmatprep.subr.bf16.mxu0 %v1766
    %7631 = vmatpush1.bf16.msra.mxu0 %v1765
    %7632 = vmatprep.subr.bf16.mxu0 %v1782
    %7633 = vmatpush1.bf16.msra.mxu0 %v1781
    %7634 = vmatprep.subr.bf16.mxu0 %v1798
    %7635 = vmatpush1.bf16.msra.mxu0 %v1797
    %7636 = vmatprep.subr.bf16.mxu0 %v1814
    %7637 = vmatpush1.bf16.msra.mxu0 %v1813
    %7638 = vmatprep.subr.bf16.mxu0 %v1830
    %7639 = vmatpush1.bf16.msra.mxu0 %v1829
    %7640 = vmatprep.subr.bf16.mxu0 %v1846
    %7641 = vmatpush1.bf16.msra.mxu0 %v1845
    %7642 = vmatprep.subr.bf16.mxu0 %v1862
    %7643 = vmatpush1.bf16.msra.mxu0 %v1861
    %7644 = vmatprep.subr.bf16.mxu0 %v1878
    %7645 = vmatpush1.bf16.msra.mxu0 %v1877
    %7646 = vmatprep.subr.bf16.mxu0 %v1894
    %7647 = vmatpush1.bf16.msra.mxu0 %v1893
    %7648 = vmatprep.subr.bf16.mxu0 %v1910
    %7649 = vmatpush1.bf16.msra.mxu0 %v1909
    %7650 = vmatprep.subr.bf16.mxu0 %v1926
    %7651 = vmatpush1.bf16.msra.mxu0 %v1925
    %7652 = vmatprep.mubr.bf16.mxu0 %v7619
    %7653 = vmatmul.mubr.bf16.gmra.mrb[0].mxu0 %v7618
    %v7654 = vpop.f32.mrb[0].mxu0
    %v7655 = vadd.f32 0.0, %v7654
    %v7656 = vpop.f32.mrb[0].mxu0
    %v7657 = vadd.f32 0.0, %v7656
    %v7658 = vpop.f32.mrb[0].mxu0
    %v7659 = vpop.f32.mrb[0].mxu0
    %7660 = vdwg.mxu0
    %7661 = vmatprep.subr.bf16.mxu0 %v1688
    %7662 = vmatpush1.bf16.msra.mxu0 %v1687
    %7663 = vmatprep.subr.bf16.mxu0 %v1704
    %7664 = vmatpush1.bf16.msra.mxu0 %v1703
    %7665 = vmatprep.subr.bf16.mxu0 %v1720
    %7666 = vmatpush1.bf16.msra.mxu0 %v1719
    %7667 = vmatprep.subr.bf16.mxu0 %v1736
    %7668 = vmatpush1.bf16.msra.mxu0 %v1735
    %7669 = vmatprep.subr.bf16.mxu0 %v1752
    %7670 = vmatpush1.bf16.msra.mxu0 %v1751
    %7671 = vmatprep.subr.bf16.mxu0 %v1768
    %7672 = vmatpush1.bf16.msra.mxu0 %v1767
    %7673 = vmatprep.subr.bf16.mxu0 %v1784
    %7674 = vmatpush1.bf16.msra.mxu0 %v1783
    %7675 = vmatprep.subr.bf16.mxu0 %v1800
    %7676 = vmatpush1.bf16.msra.mxu0 %v1799
    %7677 = vmatprep.subr.bf16.mxu0 %v1816
    %7678 = vmatpush1.bf16.msra.mxu0 %v1815
    %7679 = vmatprep.subr.bf16.mxu0 %v1832
    %7680 = vmatpush1.bf16.msra.mxu0 %v1831
    %7681 = vmatprep.subr.bf16.mxu0 %v1848
    %7682 = vmatpush1.bf16.msra.mxu0 %v1847
    %7683 = vmatprep.subr.bf16.mxu0 %v1864
    %7684 = vmatpush1.bf16.msra.mxu0 %v1863
    %7685 = vmatprep.subr.bf16.mxu0 %v1880
    %7686 = vmatpush1.bf16.msra.mxu0 %v1879
    %7687 = vmatprep.subr.bf16.mxu0 %v1896
    %7688 = vmatpush1.bf16.msra.mxu0 %v1895
    %7689 = vmatprep.subr.bf16.mxu0 %v1912
    %7690 = vmatpush1.bf16.msra.mxu0 %v1911
    %7691 = vmatprep.subr.bf16.mxu0 %v1928
    %7692 = vmatpush1.bf16.msra.mxu0 %v1927
    %7693 = vmatprep.mubr.bf16.mxu0 %v7619
    %7694 = vmatmul.mubr.bf16.gmra.mrb[0].mxu0 %v7618
    %v7695 = vpop.f32.mrb[0].mxu0
    %v7696 = vadd.f32 0.0, %v7695
    %v7697 = vpop.f32.mrb[0].mxu0
    %v7698 = vadd.f32 0.0, %v7697
    %v7699 = vpop.f32.mrb[0].mxu0
    %v7700 = vpop.f32.mrb[0].mxu0
    %7701 = vdwg.mxu0
    %7702 = vmatprep.subr.bf16.mxu0 %v1690
    %7703 = vmatpush1.bf16.msra.mxu0 %v1689
    %7704 = vmatprep.subr.bf16.mxu0 %v1706
    %7705 = vmatpush1.bf16.msra.mxu0 %v1705
    %7706 = vmatprep.subr.bf16.mxu0 %v1722
    %7707 = vmatpush1.bf16.msra.mxu0 %v1721
    %7708 = vmatprep.subr.bf16.mxu0 %v1738
    %7709 = vmatpush1.bf16.msra.mxu0 %v1737
    %7710 = vmatprep.subr.bf16.mxu0 %v1754
    %7711 = vmatpush1.bf16.msra.mxu0 %v1753
    %7712 = vmatprep.subr.bf16.mxu0 %v1770
    %7713 = vmatpush1.bf16.msra.mxu0 %v1769
    %7714 = vmatprep.subr.bf16.mxu0 %v1786
    %7715 = vmatpush1.bf16.msra.mxu0 %v1785
    %7716 = vmatprep.subr.bf16.mxu0 %v1802
    %7717 = vmatpush1.bf16.msra.mxu0 %v1801
    %7718 = vmatprep.subr.bf16.mxu0 %v1818
    %7719 = vmatpush1.bf16.msra.mxu0 %v1817
    %7720 = vmatprep.subr.bf16.mxu0 %v1834
    %7721 = vmatpush1.bf16.msra.mxu0 %v1833
    %7722 = vmatprep.subr.bf16.mxu0 %v1850
    %7723 = vmatpush1.bf16.msra.mxu0 %v1849
    %7724 = vmatprep.subr.bf16.mxu0 %v1866
    %7725 = vmatpush1.bf16.msra.mxu0 %v1865
    %7726 = vmatprep.subr.bf16.mxu0 %v1882
    %7727 = vmatpush1.bf16.msra.mxu0 %v1881
    %7728 = vmatprep.subr.bf16.mxu0 %v1898
    %7729 = vmatpush1.bf16.msra.mxu0 %v1897
    %7730 = vmatprep.subr.bf16.mxu0 %v1914
    %7731 = vmatpush1.bf16.msra.mxu0 %v1913
    %7732 = vmatprep.subr.bf16.mxu0 %v1930
    %7733 = vmatpush1.bf16.msra.mxu0 %v1929
    %7734 = vmatprep.mubr.bf16.mxu0 %v7619
    %7735 = vmatmul.mubr.bf16.gmra.mrb[0].mxu0 %v7618
    %v7736 = vpop.f32.mrb[0].mxu0
    %v7737 = vadd.f32 0.0, %v7736
    %v7738 = vpop.f32.mrb[0].mxu0
    %v7739 = vadd.f32 0.0, %v7738
    %v7740 = vpop.f32.mrb[0].mxu0
    %v7741 = vpop.f32.mrb[0].mxu0
    %7742 = vdwg.mxu0
    %7743 = vmatprep.subr.bf16.mxu0 %v1692
    %7744 = vmatpush1.bf16.msra.mxu0 %v1691
    %7745 = vmatprep.subr.bf16.mxu0 %v1708
    %7746 = vmatpush1.bf16.msra.mxu0 %v1707
    %7747 = vmatprep.subr.bf16.mxu0 %v1724
    %7748 = vmatpush1.bf16.msra.mxu0 %v1723
    %7749 = vmatprep.subr.bf16.mxu0 %v1740
    %7750 = vmatpush1.bf16.msra.mxu0 %v1739
    %7751 = vmatprep.subr.bf16.mxu0 %v1756
    %7752 = vmatpush1.bf16.msra.mxu0 %v1755
    %7753 = vmatprep.subr.bf16.mxu0 %v1772
    %7754 = vmatpush1.bf16.msra.mxu0 %v1771
    %7755 = vmatprep.subr.bf16.mxu0 %v1788
    %7756 = vmatpush1.bf16.msra.mxu0 %v1787
    %7757 = vmatprep.subr.bf16.mxu0 %v1804
    %7758 = vmatpush1.bf16.msra.mxu0 %v1803
    %7759 = vmatprep.subr.bf16.mxu0 %v1820
    %7760 = vmatpush1.bf16.msra.mxu0 %v1819
    %7761 = vmatprep.subr.bf16.mxu0 %v1836
    %7762 = vmatpush1.bf16.msra.mxu0 %v1835
    %7763 = vmatprep.subr.bf16.mxu0 %v1852
    %7764 = vmatpush1.bf16.msra.mxu0 %v1851
    %7765 = vmatprep.subr.bf16.mxu0 %v1868
    %7766 = vmatpush1.bf16.msra.mxu0 %v1867
    %7767 = vmatprep.subr.bf16.mxu0 %v1884
    %7768 = vmatpush1.bf16.msra.mxu0 %v1883
    %7769 = vmatprep.subr.bf16.mxu0 %v1900
    %7770 = vmatpush1.bf16.msra.mxu0 %v1899
    %7771 = vmatprep.subr.bf16.mxu0 %v1916
    %7772 = vmatpush1.bf16.msra.mxu0 %v1915
    %7773 = vmatprep.subr.bf16.mxu0 %v1932
    %7774 = vmatpush1.bf16.msra.mxu0 %v1931
    %7775 = vmatprep.mubr.bf16.mxu0 %v7619
    %7776 = vmatmul.mubr.bf16.gmra.mrb[0].mxu0 %v7618
    %v7777 = vpop.f32.mrb[0].mxu0
    %v7778 = vadd.f32 0.0, %v7777
    %v7779 = vpop.f32.mrb[0].mxu0
    %v7780 = vadd.f32 0.0, %v7779
    %v7781 = vpop.f32.mrb[0].mxu0
    %v7782 = vpop.f32.mrb[0].mxu0
    %7783 = vdwg.mxu0
    %v7784 = vadd.f32 %v2521, %v7655
    %v7785 = vadd.f32 %v2525, %v7657
    %v7786 = vadd.f32 %v2529, %v7696
    %v7787 = vadd.f32 %v2533, %v7698
    %v7788 = vadd.f32 %v2537, %v7737
    %v7789 = vadd.f32 %v2541, %v7739
    %v7790 = vadd.f32 %v2545, %v7778
    %v7791 = vadd.f32 %v2549, %v7780
    %v7792 = vpack.c.bf16 %v7492, %v7492
    %v7793 = vpack.c.bf16 %v7493, %v7493
    %7794 = vmatprep.subr.bf16.mxu0 %v3592
    %7795 = vmatpush1.bf16.msra.mxu0 %v3591
    %7796 = vmatprep.subr.bf16.mxu0 %v3600
    %7797 = vmatpush1.bf16.msra.mxu0 %v3599
    %7798 = vmatprep.subr.bf16.mxu0 %v3608
    %7799 = vmatpush1.bf16.msra.mxu0 %v3607
    %7800 = vmatprep.subr.bf16.mxu0 %v3616
    %7801 = vmatpush1.bf16.msra.mxu0 %v3615
    %7802 = vmatprep.subr.bf16.mxu0 %v3624
    %7803 = vmatpush1.bf16.msra.mxu0 %v3623
    %7804 = vmatprep.subr.bf16.mxu0 %v3632
    %7805 = vmatpush1.bf16.msra.mxu0 %v3631
    %7806 = vmatprep.subr.bf16.mxu0 %v3640
    %7807 = vmatpush1.bf16.msra.mxu0 %v3639
    %7808 = vmatprep.subr.bf16.mxu0 %v3648
    %7809 = vmatpush1.bf16.msra.mxu0 %v3647
    %7810 = vmatprep.subr.bf16.mxu0 %v3656
    %7811 = vmatpush1.bf16.msra.mxu0 %v3655
    %7812 = vmatprep.subr.bf16.mxu0 %v3664
    %7813 = vmatpush1.bf16.msra.mxu0 %v3663
    %7814 = vmatprep.subr.bf16.mxu0 %v3672
    %7815 = vmatpush1.bf16.msra.mxu0 %v3671
    %7816 = vmatprep.subr.bf16.mxu0 %v3680
    %7817 = vmatpush1.bf16.msra.mxu0 %v3679
    %7818 = vmatprep.subr.bf16.mxu0 %v3688
    %7819 = vmatpush1.bf16.msra.mxu0 %v3687
    %7820 = vmatprep.subr.bf16.mxu0 %v3696
    %7821 = vmatpush1.bf16.msra.mxu0 %v3695
    %7822 = vmatprep.subr.bf16.mxu0 %v3704
    %7823 = vmatpush1.bf16.msra.mxu0 %v3703
    %7824 = vmatprep.subr.bf16.mxu0 %v3712
    %7825 = vmatpush1.bf16.msra.mxu0 %v3711
    %7826 = vmatprep.mubr.bf16.mxu0 %v7793
    %7827 = vmatmul.mubr.bf16.gmra.mrb[0].mxu0 %v7792
    %v7828 = vpop.f32.mrb[0].mxu0
    %v7829 = vadd.f32 0.0, %v7828
    %v7830 = vpop.f32.mrb[0].mxu0
    %v7831 = vadd.f32 0.0, %v7830
    %v7832 = vpop.f32.mrb[0].mxu0
    %v7833 = vpop.f32.mrb[0].mxu0
    %7834 = vdwg.mxu0
    %7835 = vmatprep.subr.bf16.mxu0 %v3594
    %7836 = vmatpush1.bf16.msra.mxu0 %v3593
    %7837 = vmatprep.subr.bf16.mxu0 %v3602
    %7838 = vmatpush1.bf16.msra.mxu0 %v3601
    %7839 = vmatprep.subr.bf16.mxu0 %v3610
    %7840 = vmatpush1.bf16.msra.mxu0 %v3609
    %7841 = vmatprep.subr.bf16.mxu0 %v3618
    %7842 = vmatpush1.bf16.msra.mxu0 %v3617
    %7843 = vmatprep.subr.bf16.mxu0 %v3626
    %7844 = vmatpush1.bf16.msra.mxu0 %v3625
    %7845 = vmatprep.subr.bf16.mxu0 %v3634
    %7846 = vmatpush1.bf16.msra.mxu0 %v3633
    %7847 = vmatprep.subr.bf16.mxu0 %v3642
    %7848 = vmatpush1.bf16.msra.mxu0 %v3641
    %7849 = vmatprep.subr.bf16.mxu0 %v3650
    %7850 = vmatpush1.bf16.msra.mxu0 %v3649
    %7851 = vmatprep.subr.bf16.mxu0 %v3658
    %7852 = vmatpush1.bf16.msra.mxu0 %v3657
    %7853 = vmatprep.subr.bf16.mxu0 %v3666
    %7854 = vmatpush1.bf16.msra.mxu0 %v3665
    %7855 = vmatprep.subr.bf16.mxu0 %v3674
    %7856 = vmatpush1.bf16.msra.mxu0 %v3673
    %7857 = vmatprep.subr.bf16.mxu0 %v3682
    %7858 = vmatpush1.bf16.msra.mxu0 %v3681
    %7859 = vmatprep.subr.bf16.mxu0 %v3690
    %7860 = vmatpush1.bf16.msra.mxu0 %v3689
    %7861 = vmatprep.subr.bf16.mxu0 %v3698
    %7862 = vmatpush1.bf16.msra.mxu0 %v3697
    %7863 = vmatprep.subr.bf16.mxu0 %v3706
    %7864 = vmatpush1.bf16.msra.mxu0 %v3705
    %7865 = vmatprep.subr.bf16.mxu0 %v3714
    %7866 = vmatpush1.bf16.msra.mxu0 %v3713
    %7867 = vmatprep.mubr.bf16.mxu0 %v7793
    %7868 = vmatmul.mubr.bf16.gmra.mrb[0].mxu0 %v7792
    %v7869 = vpop.f32.mrb[0].mxu0
    %v7870 = vadd.f32 0.0, %v7869
    %v7871 = vpop.f32.mrb[0].mxu0
    %v7872 = vadd.f32 0.0, %v7871
    %v7873 = vpop.f32.mrb[0].mxu0
    %v7874 = vpop.f32.mrb[0].mxu0
    %7875 = vdwg.mxu0
    %7876 = vmatprep.subr.bf16.mxu0 %v3596
    %7877 = vmatpush1.bf16.msra.mxu0 %v3595
    %7878 = vmatprep.subr.bf16.mxu0 %v3604
    %7879 = vmatpush1.bf16.msra.mxu0 %v3603
    %7880 = vmatprep.subr.bf16.mxu0 %v3612
    %7881 = vmatpush1.bf16.msra.mxu0 %v3611
    %7882 = vmatprep.subr.bf16.mxu0 %v3620
    %7883 = vmatpush1.bf16.msra.mxu0 %v3619
    %7884 = vmatprep.subr.bf16.mxu0 %v3628
    %7885 = vmatpush1.bf16.msra.mxu0 %v3627
    %7886 = vmatprep.subr.bf16.mxu0 %v3636
    %7887 = vmatpush1.bf16.msra.mxu0 %v3635
    %7888 = vmatprep.subr.bf16.mxu0 %v3644
    %7889 = vmatpush1.bf16.msra.mxu0 %v3643
    %7890 = vmatprep.subr.bf16.mxu0 %v3652
    %7891 = vmatpush1.bf16.msra.mxu0 %v3651
    %7892 = vmatprep.subr.bf16.mxu0 %v3660
    %7893 = vmatpush1.bf16.msra.mxu0 %v3659
    %7894 = vmatprep.subr.bf16.mxu0 %v3668
    %7895 = vmatpush1.bf16.msra.mxu0 %v3667
    %7896 = vmatprep.subr.bf16.mxu0 %v3676
    %7897 = vmatpush1.bf16.msra.mxu0 %v3675
    %7898 = vmatprep.subr.bf16.mxu0 %v3684
    %7899 = vmatpush1.bf16.msra.mxu0 %v3683
    %7900 = vmatprep.subr.bf16.mxu0 %v3692
    %7901 = vmatpush1.bf16.msra.mxu0 %v3691
    %7902 = vmatprep.subr.bf16.mxu0 %v3700
    %7903 = vmatpush1.bf16.msra.mxu0 %v3699
    %7904 = vmatprep.subr.bf16.mxu0 %v3708
    %7905 = vmatpush1.bf16.msra.mxu0 %v3707
    %7906 = vmatprep.subr.bf16.mxu0 %v3716
    %7907 = vmatpush1.bf16.msra.mxu0 %v3715
    %7908 = vmatprep.mubr.bf16.mxu0 %v7793
    %7909 = vmatmul.mubr.bf16.gmra.mrb[0].mxu0 %v7792
    %v7910 = vpop.f32.mrb[0].mxu0
    %v7911 = vadd.f32 0.0, %v7910
    %v7912 = vpop.f32.mrb[0].mxu0
    %v7913 = vadd.f32 0.0, %v7912
    %v7914 = vpop.f32.mrb[0].mxu0
    %v7915 = vpop.f32.mrb[0].mxu0
    %7916 = vdwg.mxu0
    %7917 = vmatprep.subr.bf16.mxu0 %v3598
    %7918 = vmatpush1.bf16.msra.mxu0 %v3597
    %7919 = vmatprep.subr.bf16.mxu0 %v3606
    %7920 = vmatpush1.bf16.msra.mxu0 %v3605
    %7921 = vmatprep.subr.bf16.mxu0 %v3614
    %7922 = vmatpush1.bf16.msra.mxu0 %v3613
    %7923 = vmatprep.subr.bf16.mxu0 %v3622
    %7924 = vmatpush1.bf16.msra.mxu0 %v3621
    %7925 = vmatprep.subr.bf16.mxu0 %v3630
    %7926 = vmatpush1.bf16.msra.mxu0 %v3629
    %7927 = vmatprep.subr.bf16.mxu0 %v3638
    %7928 = vmatpush1.bf16.msra.mxu0 %v3637
    %7929 = vmatprep.subr.bf16.mxu0 %v3646
    %7930 = vmatpush1.bf16.msra.mxu0 %v3645
    %7931 = vmatprep.subr.bf16.mxu0 %v3654
    %7932 = vmatpush1.bf16.msra.mxu0 %v3653
    %7933 = vmatprep.subr.bf16.mxu0 %v3662
    %7934 = vmatpush1.bf16.msra.mxu0 %v3661
    %7935 = vmatprep.subr.bf16.mxu0 %v3670
    %7936 = vmatpush1.bf16.msra.mxu0 %v3669
    %7937 = vmatprep.subr.bf16.mxu0 %v3678
    %7938 = vmatpush1.bf16.msra.mxu0 %v3677
    %7939 = vmatprep.subr.bf16.mxu0 %v3686
    %7940 = vmatpush1.bf16.msra.mxu0 %v3685
    %7941 = vmatprep.subr.bf16.mxu0 %v3694
    %7942 = vmatpush1.bf16.msra.mxu0 %v3693
    %7943 = vmatprep.subr.bf16.mxu0 %v3702
    %7944 = vmatpush1.bf16.msra.mxu0 %v3701
    %7945 = vmatprep.subr.bf16.mxu0 %v3710
    %7946 = vmatpush1.bf16.msra.mxu0 %v3709
    %7947 = vmatprep.subr.bf16.mxu0 %v3718
    %7948 = vmatpush1.bf16.msra.mxu0 %v3717
    %7949 = vmatprep.mubr.bf16.mxu0 %v7793
    %7950 = vmatmul.mubr.bf16.gmra.mrb[0].mxu0 %v7792
    %v7951 = vpop.f32.mrb[0].mxu0
    %v7952 = vadd.f32 0.0, %v7951
    %v7953 = vpop.f32.mrb[0].mxu0
    %v7954 = vadd.f32 0.0, %v7953
    %v7955 = vpop.f32.mrb[0].mxu0
    %v7956 = vpop.f32.mrb[0].mxu0
    %7957 = vdwg.mxu0
    %v7958 = vadd.f32 %v7784, %v7829
    %v7959 = vadd.f32 %v7785, %v7831
    %v7960 = vadd.f32 %v7786, %v7870
    %v7961 = vadd.f32 %v7787, %v7872
    %v7962 = vadd.f32 %v7788, %v7911
    %v7963 = vadd.f32 %v7789, %v7913
    %v7964 = vadd.f32 %v7790, %v7952
    %v7965 = vadd.f32 %v7791, %v7954
    %v7966 = vxor.u32 %v7958, 2147483648
    %v7967 = vxor.u32 %v7959, 2147483648
    %v7968 = vmul.f32 %v7966, 1.442695
    %v7969 = vpow.pop %v7968
    %v7970 = vmul.f32 %v7967, 1.442695
    %v7971 = vpow.pop %v7970
    %v7972 = vadd.f32 %v7969, 1.0
    %v7973 = vadd.f32 %v7971, 1.0
    %v7974 = vrcp.pop %v7972
    %v7975 = vmul.f32 1.0, %v7974
    %v7976 = vrcp.pop %v7973
    %v7977 = vmul.f32 1.0, %v7976
    %v7978 = vxor.u32 %v7960, 2147483648
    %v7979 = vxor.u32 %v7961, 2147483648
    %v7980 = vmul.f32 %v7978, 1.442695
    %v7981 = vpow.pop %v7980
    %v7982 = vmul.f32 %v7979, 1.442695
    %v7983 = vpow.pop %v7982
    %v7984 = vadd.f32 %v7981, 1.0
    %v7985 = vadd.f32 %v7983, 1.0
    %v7986 = vrcp.pop %v7984
    %v7987 = vmul.f32 1.0, %v7986
    %v7988 = vrcp.pop %v7985
    %v7989 = vmul.f32 1.0, %v7988
    %v7990 = vtanh.pop %v7962
    %v7991 = vtanh.pop %v7963
    %v7992 = vxor.u32 %v7964, 2147483648
    %v7993 = vxor.u32 %v7965, 2147483648
    %v7994 = vmul.f32 %v7992, 1.442695
    %v7995 = vpow.pop %v7994
    %v7996 = vmul.f32 %v7993, 1.442695
    %v7997 = vpow.pop %v7996
    %v7998 = vadd.f32 %v7995, 1.0
    %v7999 = vadd.f32 %v7997, 1.0
    %v8000 = vrcp.pop %v7998
    %v8001 = vmul.f32 1.0, %v8000
    %v8002 = vrcp.pop %v7999
    %v8003 = vmul.f32 1.0, %v8002
    %v8004 = vmul.f32 %v7987, %v7488
    %v8005 = vmul.f32 %v7989, %v7489
    %v8006 = vmul.f32 %v7975, %v7990
    %v8007 = vmul.f32 %v7977, %v7991
    %v8008 = vadd.f32 %v8004, %v8006
    %v8009 = vadd.f32 %v8005, %v8007
    %v8010 = vtanh.pop %v8008
    %v8011 = vtanh.pop %v8009
    %v8012 = vmul.f32 %v8001, %v8010
    %v8013 = vmul.f32 %v8003, %v8011
    %8014 = vset.pattern.permute.xlu0 7
    %8015 = vperm.xlu0 %8014, %v368
    %v8016 = vpop.permute.xlu0 %8015
    %v8018 = vmul.f32 %v8012, %v8016
    %v8019 = vmul.f32 %v8013, %v8016
    %v8020 = vadd.f32 %v7500, %v8018
    %v8021 = vadd.f32 %v7501, %v8019
    %vm8022 = vcmask 1024
    %v8023 = vsel %vm8022, %v357, -inf
    %8024 = vmax.xlane.f32.xlu0 %v8023
    %v8025 = vpop.xlane.xlu0 %8024
    %v8026 = vrot.slane %v8025, 4
    %v8027 = vmax.f32 %v8025, %v8026
    %v8028 = vrot.slane %v8027, 2
    %v8029 = vmax.f32 %v8027, %v8028
    %v8030 = vrot.slane %v8029, 1
    %v8031 = vmax.f32 %v8029, %v8030
    %s8032 = vtos %v8031
    %v8033 = vstv %s8032
    %v8034 = vrcp.pop %v8033
    %v8035 = vmul.f32 %v8020, %v8034
    %v8036 = vmul.f32 %v8021, %v8034
    %v8037 = vpack.c.bf16 %v8035, %v8035
    %v8038 = vpack.c.bf16 %v8036, %v8036
    %v8039 = vld [vmem:[#allocation15] sm:$0xff]
    %v8040 = vld [vmem:[#allocation15 + $0x8] sm:$0xff]
    %v8041 = vld [vmem:[#allocation15 + $0x10] sm:$0xff]
    %v8042 = vld [vmem:[#allocation15 + $0x18] sm:$0xff]
    %v8043 = vld [vmem:[#allocation15 + $0x20] sm:$0xff]
    %v8044 = vld [vmem:[#allocation15 + $0x28] sm:$0xff]
    %v8045 = vld [vmem:[#allocation15 + $0x30] sm:$0xff]
    %v8046 = vld [vmem:[#allocation15 + $0x38] sm:$0xff]
    %v8047 = vld [vmem:[#allocation15 + $0x40] sm:$0xff]
    %v8048 = vld [vmem:[#allocation15 + $0x48] sm:$0xff]
    %v8049 = vld [vmem:[#allocation15 + $0x50] sm:$0xff]
    %v8050 = vld [vmem:[#allocation15 + $0x58] sm:$0xff]
    %v8051 = vld [vmem:[#allocation15 + $0x60] sm:$0xff]
    %v8052 = vld [vmem:[#allocation15 + $0x68] sm:$0xff]
    %v8053 = vld [vmem:[#allocation15 + $0x70] sm:$0xff]
    %v8054 = vld [vmem:[#allocation15 + $0x78] sm:$0xff]
    %v8055 = vld [vmem:[#allocation15 + $0x80] sm:$0xff]
    %v8056 = vld [vmem:[#allocation15 + $0x88] sm:$0xff]
    %v8057 = vld [vmem:[#allocation15 + $0x90] sm:$0xff]
    %v8058 = vld [vmem:[#allocation15 + $0x98] sm:$0xff]
    %v8059 = vld [vmem:[#allocation15 + $0xa0] sm:$0xff]
    %v8060 = vld [vmem:[#allocation15 + $0xa8] sm:$0xff]
    %v8061 = vld [vmem:[#allocation15 + $0xb0] sm:$0xff]
    %v8062 = vld [vmem:[#allocation15 + $0xb8] sm:$0xff]
    %v8063 = vld [vmem:[#allocation15 + $0xc0] sm:$0xff]
    %v8064 = vld [vmem:[#allocation15 + $0xc8] sm:$0xff]
    %v8065 = vld [vmem:[#allocation15 + $0xd0] sm:$0xff]
    %v8066 = vld [vmem:[#allocation15 + $0xd8] sm:$0xff]
    %v8067 = vld [vmem:[#allocation15 + $0xe0] sm:$0xff]
    %v8068 = vld [vmem:[#allocation15 + $0xe8] sm:$0xff]
    %v8069 = vld [vmem:[#allocation15 + $0xf0] sm:$0xff]
    %v8070 = vld [vmem:[#allocation15 + $0xf8] sm:$0xff]
    %v8071 = vld [vmem:[#allocation17] sm:$0x3]
    %v8073 = vlaneseq
    %v8074 = vshrl.u32 %v8073, 7
    %v8075 = vsub.s32 0, %v8074
    %v8076 = vrot.slane %v8071, %v8075
    %v8077 = vlaneseq
    %v8078 = vshrl.u32 %v8077, 7
    %v8079 = vsub.s32 1, %v8078
    %v8080 = vrot.slane %v8071, %v8079
    %v8115 = vunpack.c.l.b16 %v8039
    %v8116 = vunpack.c.h.b16 %v8039
    %v8117 = vunpack.c.l.b16 %v8040
    %v8118 = vunpack.c.h.b16 %v8040
    %v8119 = vunpack.c.l.b16 %v8041
    %v8120 = vunpack.c.h.b16 %v8041
    %v8121 = vunpack.c.l.b16 %v8042
    %v8122 = vunpack.c.h.b16 %v8042
    %v8123 = vunpack.c.l.b16 %v8043
    %v8124 = vunpack.c.h.b16 %v8043
    %v8125 = vunpack.c.l.b16 %v8044
    %v8126 = vunpack.c.h.b16 %v8044
    %v8127 = vunpack.c.l.b16 %v8045
    %v8128 = vunpack.c.h.b16 %v8045
    %v8129 = vunpack.c.l.b16 %v8046
    %v8130 = vunpack.c.h.b16 %v8046
    %v8131 = vunpack.c.l.b16 %v8047
    %v8132 = vunpack.c.h.b16 %v8047
    %v8133 = vunpack.c.l.b16 %v8048
    %v8134 = vunpack.c.h.b16 %v8048
    %v8135 = vunpack.c.l.b16 %v8049
    %v8136 = vunpack.c.h.b16 %v8049
    %v8137 = vunpack.c.l.b16 %v8050
    %v8138 = vunpack.c.h.b16 %v8050
    %v8139 = vunpack.c.l.b16 %v8051
    %v8140 = vunpack.c.h.b16 %v8051
    %v8141 = vunpack.c.l.b16 %v8052
    %v8142 = vunpack.c.h.b16 %v8052
    %v8143 = vunpack.c.l.b16 %v8053
    %v8144 = vunpack.c.h.b16 %v8053
    %v8145 = vunpack.c.l.b16 %v8054
    %v8146 = vunpack.c.h.b16 %v8054
    %v8147 = vunpack.c.l.b16 %v8055
    %v8148 = vunpack.c.h.b16 %v8055
    %v8149 = vunpack.c.l.b16 %v8056
    %v8150 = vunpack.c.h.b16 %v8056
    %v8151 = vunpack.c.l.b16 %v8057
    %v8152 = vunpack.c.h.b16 %v8057
    %v8153 = vunpack.c.l.b16 %v8058
    %v8154 = vunpack.c.h.b16 %v8058
    %v8155 = vunpack.c.l.b16 %v8059
    %v8156 = vunpack.c.h.b16 %v8059
    %v8157 = vunpack.c.l.b16 %v8060
    %v8158 = vunpack.c.h.b16 %v8060
    %v8159 = vunpack.c.l.b16 %v8061
    %v8160 = vunpack.c.h.b16 %v8061
    %v8161 = vunpack.c.l.b16 %v8062
    %v8162 = vunpack.c.h.b16 %v8062
    %v8163 = vunpack.c.l.b16 %v8063
    %v8164 = vunpack.c.h.b16 %v8063
    %v8165 = vunpack.c.l.b16 %v8064
    %v8166 = vunpack.c.h.b16 %v8064
    %v8167 = vunpack.c.l.b16 %v8065
    %v8168 = vunpack.c.h.b16 %v8065
    %v8169 = vunpack.c.l.b16 %v8066
    %v8170 = vunpack.c.h.b16 %v8066
    %v8171 = vunpack.c.l.b16 %v8067
    %v8172 = vunpack.c.h.b16 %v8067
    %v8173 = vunpack.c.l.b16 %v8068
    %v8174 = vunpack.c.h.b16 %v8068
    %v8175 = vunpack.c.l.b16 %v8069
    %v8176 = vunpack.c.h.b16 %v8069
    %v8177 = vunpack.c.l.b16 %v8070
    %v8178 = vunpack.c.h.b16 %v8070
    %v8179 = vpack.c.b16 %v8117, %v8115
    %v8180 = vpack.c.b16 %v8118, %v8116
    %v8181 = vpack.c.b16 %v8121, %v8119
    %v8182 = vpack.c.b16 %v8122, %v8120
    %v8183 = vpack.c.b16 %v8125, %v8123
    %v8184 = vpack.c.b16 %v8126, %v8124
    %v8185 = vpack.c.b16 %v8129, %v8127
    %v8186 = vpack.c.b16 %v8130, %v8128
    %v8187 = vpack.c.b16 %v8133, %v8131
    %v8188 = vpack.c.b16 %v8134, %v8132
    %v8189 = vpack.c.b16 %v8137, %v8135
    %v8190 = vpack.c.b16 %v8138, %v8136
    %v8191 = vpack.c.b16 %v8141, %v8139
    %v8192 = vpack.c.b16 %v8142, %v8140
    %v8193 = vpack.c.b16 %v8145, %v8143
    %v8194 = vpack.c.b16 %v8146, %v8144
    %v8195 = vpack.c.b16 %v8149, %v8147
    %v8196 = vpack.c.b16 %v8150, %v8148
    %v8197 = vpack.c.b16 %v8153, %v8151
    %v8198 = vpack.c.b16 %v8154, %v8152
    %v8199 = vpack.c.b16 %v8157, %v8155
    %v8200 = vpack.c.b16 %v8158, %v8156
    %v8201 = vpack.c.b16 %v8161, %v8159
    %v8202 = vpack.c.b16 %v8162, %v8160
    %v8203 = vpack.c.b16 %v8165, %v8163
    %v8204 = vpack.c.b16 %v8166, %v8164
    %v8205 = vpack.c.b16 %v8169, %v8167
    %v8206 = vpack.c.b16 %v8170, %v8168
    %v8207 = vpack.c.b16 %v8173, %v8171
    %v8208 = vpack.c.b16 %v8174, %v8172
    %v8209 = vpack.c.b16 %v8177, %v8175
    %v8210 = vpack.c.b16 %v8178, %v8176
    %8243 = vmatprep.subr.bf16.mxu0 %v8180
    %8244 = vmatpush1.bf16.msra.mxu0 %v8179
    %8245 = vmatprep.subr.bf16.mxu0 %v8182
    %8246 = vmatpush1.bf16.msra.mxu0 %v8181
    %8247 = vmatprep.subr.bf16.mxu0 %v8184
    %8248 = vmatpush1.bf16.msra.mxu0 %v8183
    %8249 = vmatprep.subr.bf16.mxu0 %v8186
    %8250 = vmatpush1.bf16.msra.mxu0 %v8185
    %8251 = vmatprep.subr.bf16.mxu0 %v8188
    %8252 = vmatpush1.bf16.msra.mxu0 %v8187
    %8253 = vmatprep.subr.bf16.mxu0 %v8190
    %8254 = vmatpush1.bf16.msra.mxu0 %v8189
    %8255 = vmatprep.subr.bf16.mxu0 %v8192
    %8256 = vmatpush1.bf16.msra.mxu0 %v8191
    %8257 = vmatprep.subr.bf16.mxu0 %v8194
    %8258 = vmatpush1.bf16.msra.mxu0 %v8193
    %8259 = vmatprep.subr.bf16.mxu0 %v8196
    %8260 = vmatpush1.bf16.msra.mxu0 %v8195
    %8261 = vmatprep.subr.bf16.mxu0 %v8198
    %8262 = vmatpush1.bf16.msra.mxu0 %v8197
    %8263 = vmatprep.subr.bf16.mxu0 %v8200
    %8264 = vmatpush1.bf16.msra.mxu0 %v8199
    %8265 = vmatprep.subr.bf16.mxu0 %v8202
    %8266 = vmatpush1.bf16.msra.mxu0 %v8201
    %8267 = vmatprep.subr.bf16.mxu0 %v8204
    %8268 = vmatpush1.bf16.msra.mxu0 %v8203
    %8269 = vmatprep.subr.bf16.mxu0 %v8206
    %8270 = vmatpush1.bf16.msra.mxu0 %v8205
    %8271 = vmatprep.subr.bf16.mxu0 %v8208
    %8272 = vmatpush1.bf16.msra.mxu0 %v8207
    %8273 = vmatprep.subr.bf16.mxu0 %v8210
    %8274 = vmatpush1.bf16.msra.mxu0 %v8209
    %8275 = vmatprep.mubr.bf16.mxu0 %v8038
    %8276 = vmatmul.mubr.bf16.gmra.mrb[0].mxu0 %v8037
    %v8277 = vpop.f32.mrb[0].mxu0
    %v8278 = vadd.f32 %v8076, %v8277
    %v8279 = vpop.f32.mrb[0].mxu0
    %v8280 = vadd.f32 %v8080, %v8279
    %v8281 = vpop.f32.mrb[0].mxu0
    %v8282 = vpop.f32.mrb[0].mxu0
    %8283 = vdwg.mxu0
    %v8284 = vmax.f32 %v8278, 0.0
    %v8285 = vmax.f32 %v8280, 0.0
    %v8286 = vld [vmem:[%s1] sm:$0x3]
    %v8287 = vld [vmem:[#allocation20] sm:$0xff]
    %v8288 = vld [vmem:[#allocation20 + $0x8] sm:$0xff]
    %v8289 = vld [vmem:[#allocation20 + $0x10] sm:$0xf]
    %v8290 = vld [vmem:[#allocation18] ss:$4 sm:$0xff]
    %s8291 = scalar_lea.vmem [#allocation18], 32
    %v8292 = vld [vmem:[%s8291] ss:$4 sm:$0xff]
    %s8293 = scalar_lea.vmem [#allocation18], 64
    %v8294 = vld [vmem:[%s8293] ss:$4 sm:$0xf]
    %8296 = vset.pattern.permute.xlu0 0
    %8297 = vperm.xlu0 %8296, %v8286
    %v8298 = vpop.permute.xlu0 %8297
    %v8303 = vlaneseq
    %v8304 = vshrl.u32 %v8303, 7
    %v8305 = vsub.s32 0, %v8304
    %v8306 = vrot.slane %v8290, %v8305
    %v8307 = vlaneseq
    %v8308 = vshrl.u32 %v8307, 7
    %v8309 = vsub.s32 1, %v8308
    %v8310 = vrot.slane %v8290, %v8309
    %v8311 = vlaneseq
    %v8312 = vshrl.u32 %v8311, 7
    %v8313 = vsub.s32 2, %v8312
    %v8314 = vrot.slane %v8290, %v8313
    %v8315 = vlaneseq
    %v8316 = vshrl.u32 %v8315, 7
    %v8317 = vsub.s32 3, %v8316
    %v8318 = vrot.slane %v8290, %v8317
    %v8319 = vlaneseq
    %v8320 = vshrl.u32 %v8319, 7
    %v8321 = vsub.s32 4, %v8320
    %v8322 = vrot.slane %v8290, %v8321
    %v8323 = vlaneseq
    %v8324 = vshrl.u32 %v8323, 7
    %v8325 = vsub.s32 5, %v8324
    %v8326 = vrot.slane %v8290, %v8325
    %v8327 = vlaneseq
    %v8328 = vshrl.u32 %v8327, 7
    %v8329 = vsub.s32 6, %v8328
    %v8330 = vrot.slane %v8290, %v8329
    %v8331 = vlaneseq
    %v8332 = vshrl.u32 %v8331, 7
    %v8333 = vsub.s32 7, %v8332
    %v8334 = vrot.slane %v8290, %v8333
    %v8335 = vlaneseq
    %v8336 = vshrl.u32 %v8335, 7
    %v8337 = vsub.s32 0, %v8336
    %v8338 = vrot.slane %v8292, %v8337
    %v8339 = vlaneseq
    %v8340 = vshrl.u32 %v8339, 7
    %v8341 = vsub.s32 1, %v8340
    %v8342 = vrot.slane %v8292, %v8341
    %v8343 = vlaneseq
    %v8344 = vshrl.u32 %v8343, 7
    %v8345 = vsub.s32 2, %v8344
    %v8346 = vrot.slane %v8292, %v8345
    %v8347 = vlaneseq
    %v8348 = vshrl.u32 %v8347, 7
    %v8349 = vsub.s32 3, %v8348
    %v8350 = vrot.slane %v8292, %v8349
    %v8351 = vlaneseq
    %v8352 = vshrl.u32 %v8351, 7
    %v8353 = vsub.s32 4, %v8352
    %v8354 = vrot.slane %v8292, %v8353
    %v8355 = vlaneseq
    %v8356 = vshrl.u32 %v8355, 7
    %v8357 = vsub.s32 5, %v8356
    %v8358 = vrot.slane %v8292, %v8357
    %v8359 = vlaneseq
    %v8360 = vshrl.u32 %v8359, 7
    %v8361 = vsub.s32 6, %v8360
    %v8362 = vrot.slane %v8292, %v8361
    %v8363 = vlaneseq
    %v8364 = vshrl.u32 %v8363, 7
    %v8365 = vsub.s32 7, %v8364
    %v8366 = vrot.slane %v8292, %v8365
    %v8367 = vlaneseq
    %v8368 = vshrl.u32 %v8367, 7
    %v8369 = vsub.s32 0, %v8368
    %v8370 = vrot.slane %v8294, %v8369
    %v8371 = vlaneseq
    %v8372 = vshrl.u32 %v8371, 7
    %v8373 = vsub.s32 1, %v8372
    %v8374 = vrot.slane %v8294, %v8373
    %v8375 = vlaneseq
    %v8376 = vshrl.u32 %v8375, 7
    %v8377 = vsub.s32 2, %v8376
    %v8378 = vrot.slane %v8294, %v8377
    %v8379 = vlaneseq
    %v8380 = vshrl.u32 %v8379, 7
    %v8381 = vsub.s32 3, %v8380
    %v8382 = vrot.slane %v8294, %v8381
    %v8403 = vmul.f32 %v8298, %v8306
    %v8404 = vmul.f32 %v8298, %v8310
    %v8405 = vmul.f32 %v8298, %v8314
    %v8406 = vmul.f32 %v8298, %v8318
    %v8407 = vmul.f32 %v8298, %v8322
    %v8408 = vmul.f32 %v8298, %v8326
    %v8409 = vmul.f32 %v8298, %v8330
    %v8410 = vmul.f32 %v8298, %v8334
    %v8411 = vmul.f32 %v8298, %v8338
    %v8412 = vmul.f32 %v8298, %v8342
    %v8413 = vmul.f32 %v8298, %v8346
    %v8414 = vmul.f32 %v8298, %v8350
    %v8415 = vmul.f32 %v8298, %v8354
    %v8416 = vmul.f32 %v8298, %v8358
    %v8417 = vmul.f32 %v8298, %v8362
    %v8418 = vmul.f32 %v8298, %v8366
    %v8419 = vmul.f32 %v8298, %v8370
    %v8420 = vmul.f32 %v8298, %v8374
    %v8421 = vmul.f32 %v8298, %v8378
    %v8422 = vmul.f32 %v8298, %v8382
    %v8426 = vlaneseq
    %v8427 = vshrl.u32 %v8426, 7
    %v8428 = vsub.s32 0, %v8427
    %v8429 = vrot.slane %v8287, %v8428
    %v8430 = vlaneseq
    %v8431 = vshrl.u32 %v8430, 7
    %v8432 = vsub.s32 1, %v8431
    %v8433 = vrot.slane %v8287, %v8432
    %v8434 = vlaneseq
    %v8435 = vshrl.u32 %v8434, 7
    %v8436 = vsub.s32 2, %v8435
    %v8437 = vrot.slane %v8287, %v8436
    %v8438 = vlaneseq
    %v8439 = vshrl.u32 %v8438, 7
    %v8440 = vsub.s32 3, %v8439
    %v8441 = vrot.slane %v8287, %v8440
    %v8442 = vlaneseq
    %v8443 = vshrl.u32 %v8442, 7
    %v8444 = vsub.s32 4, %v8443
    %v8445 = vrot.slane %v8287, %v8444
    %v8446 = vlaneseq
    %v8447 = vshrl.u32 %v8446, 7
    %v8448 = vsub.s32 5, %v8447
    %v8449 = vrot.slane %v8287, %v8448
    %v8450 = vlaneseq
    %v8451 = vshrl.u32 %v8450, 7
    %v8452 = vsub.s32 6, %v8451
    %v8453 = vrot.slane %v8287, %v8452
    %v8454 = vlaneseq
    %v8455 = vshrl.u32 %v8454, 7
    %v8456 = vsub.s32 7, %v8455
    %v8457 = vrot.slane %v8287, %v8456
    %v8458 = vlaneseq
    %v8459 = vshrl.u32 %v8458, 7
    %v8460 = vsub.s32 0, %v8459
    %v8461 = vrot.slane %v8288, %v8460
    %v8462 = vlaneseq
    %v8463 = vshrl.u32 %v8462, 7
    %v8464 = vsub.s32 1, %v8463
    %v8465 = vrot.slane %v8288, %v8464
    %v8466 = vlaneseq
    %v8467 = vshrl.u32 %v8466, 7
    %v8468 = vsub.s32 2, %v8467
    %v8469 = vrot.slane %v8288, %v8468
    %v8470 = vlaneseq
    %v8471 = vshrl.u32 %v8470, 7
    %v8472 = vsub.s32 3, %v8471
    %v8473 = vrot.slane %v8288, %v8472
    %v8474 = vlaneseq
    %v8475 = vshrl.u32 %v8474, 7
    %v8476 = vsub.s32 4, %v8475
    %v8477 = vrot.slane %v8288, %v8476
    %v8478 = vlaneseq
    %v8479 = vshrl.u32 %v8478, 7
    %v8480 = vsub.s32 5, %v8479
    %v8481 = vrot.slane %v8288, %v8480
    %v8482 = vlaneseq
    %v8483 = vshrl.u32 %v8482, 7
    %v8484 = vsub.s32 6, %v8483
    %v8485 = vrot.slane %v8288, %v8484
    %v8486 = vlaneseq
    %v8487 = vshrl.u32 %v8486, 7
    %v8488 = vsub.s32 7, %v8487
    %v8489 = vrot.slane %v8288, %v8488
    %v8490 = vlaneseq
    %v8491 = vshrl.u32 %v8490, 7
    %v8492 = vsub.s32 0, %v8491
    %v8493 = vrot.slane %v8289, %v8492
    %v8494 = vlaneseq
    %v8495 = vshrl.u32 %v8494, 7
    %v8496 = vsub.s32 1, %v8495
    %v8497 = vrot.slane %v8289, %v8496
    %v8498 = vlaneseq
    %v8499 = vshrl.u32 %v8498, 7
    %v8500 = vsub.s32 2, %v8499
    %v8501 = vrot.slane %v8289, %v8500
    %v8502 = vlaneseq
    %v8503 = vshrl.u32 %v8502, 7
    %v8504 = vsub.s32 3, %v8503
    %v8505 = vrot.slane %v8289, %v8504
    %v8526 = vadd.f32 %v8429, %v8403
    %v8527 = vadd.f32 %v8433, %v8404
    %v8528 = vadd.f32 %v8437, %v8405
    %v8529 = vadd.f32 %v8441, %v8406
    %v8530 = vadd.f32 %v8445, %v8407
    %v8531 = vadd.f32 %v8449, %v8408
    %v8532 = vadd.f32 %v8453, %v8409
    %v8533 = vadd.f32 %v8457, %v8410
    %v8534 = vadd.f32 %v8461, %v8411
    %v8535 = vadd.f32 %v8465, %v8412
    %v8536 = vadd.f32 %v8469, %v8413
    %v8537 = vadd.f32 %v8473, %v8414
    %v8538 = vadd.f32 %v8477, %v8415
    %v8539 = vadd.f32 %v8481, %v8416
    %v8540 = vadd.f32 %v8485, %v8417
    %v8541 = vadd.f32 %v8489, %v8418
    %v8542 = vadd.f32 %v8493, %v8419
    %v8543 = vadd.f32 %v8497, %v8420
    %v8544 = vadd.f32 %v8501, %v8421
    %v8545 = vadd.f32 %v8505, %v8422
    %s8546 = scalar_lea.vmem [#allocation18], 1
    %v8547 = vld [vmem:[%s8546] ss:$4 sm:$0xff]
    %s8548 = scalar_lea.vmem [#allocation18], 33
    %v8549 = vld [vmem:[%s8548] ss:$4 sm:$0xff]
    %s8550 = scalar_lea.vmem [#allocation18], 65
    %v8551 = vld [vmem:[%s8550] ss:$4 sm:$0xf]
    %8552 = vset.pattern.permute.xlu0 1
    %8553 = vperm.xlu0 %8552, %v8286
    %v8554 = vpop.permute.xlu0 %8553
    %v8559 = vlaneseq
    %v8560 = vshrl.u32 %v8559, 7
    %v8561 = vsub.s32 0, %v8560
    %v8562 = vrot.slane %v8547, %v8561
    %v8563 = vlaneseq
    %v8564 = vshrl.u32 %v8563, 7
    %v8565 = vsub.s32 1, %v8564
    %v8566 = vrot.slane %v8547, %v8565
    %v8567 = vlaneseq
    %v8568 = vshrl.u32 %v8567, 7
    %v8569 = vsub.s32 2, %v8568
    %v8570 = vrot.slane %v8547, %v8569
    %v8571 = vlaneseq
    %v8572 = vshrl.u32 %v8571, 7
    %v8573 = vsub.s32 3, %v8572
    %v8574 = vrot.slane %v8547, %v8573
    %v8575 = vlaneseq
    %v8576 = vshrl.u32 %v8575, 7
    %v8577 = vsub.s32 4, %v8576
    %v8578 = vrot.slane %v8547, %v8577
    %v8579 = vlaneseq
    %v8580 = vshrl.u32 %v8579, 7
    %v8581 = vsub.s32 5, %v8580
    %v8582 = vrot.slane %v8547, %v8581
    %v8583 = vlaneseq
    %v8584 = vshrl.u32 %v8583, 7
    %v8585 = vsub.s32 6, %v8584
    %v8586 = vrot.slane %v8547, %v8585
    %v8587 = vlaneseq
    %v8588 = vshrl.u32 %v8587, 7
    %v8589 = vsub.s32 7, %v8588
    %v8590 = vrot.slane %v8547, %v8589
    %v8591 = vlaneseq
    %v8592 = vshrl.u32 %v8591, 7
    %v8593 = vsub.s32 0, %v8592
    %v8594 = vrot.slane %v8549, %v8593
    %v8595 = vlaneseq
    %v8596 = vshrl.u32 %v8595, 7
    %v8597 = vsub.s32 1, %v8596
    %v8598 = vrot.slane %v8549, %v8597
    %v8599 = vlaneseq
    %v8600 = vshrl.u32 %v8599, 7
    %v8601 = vsub.s32 2, %v8600
    %v8602 = vrot.slane %v8549, %v8601
    %v8603 = vlaneseq
    %v8604 = vshrl.u32 %v8603, 7
    %v8605 = vsub.s32 3, %v8604
    %v8606 = vrot.slane %v8549, %v8605
    %v8607 = vlaneseq
    %v8608 = vshrl.u32 %v8607, 7
    %v8609 = vsub.s32 4, %v8608
    %v8610 = vrot.slane %v8549, %v8609
    %v8611 = vlaneseq
    %v8612 = vshrl.u32 %v8611, 7
    %v8613 = vsub.s32 5, %v8612
    %v8614 = vrot.slane %v8549, %v8613
    %v8615 = vlaneseq
    %v8616 = vshrl.u32 %v8615, 7
    %v8617 = vsub.s32 6, %v8616
    %v8618 = vrot.slane %v8549, %v8617
    %v8619 = vlaneseq
    %v8620 = vshrl.u32 %v8619, 7
    %v8621 = vsub.s32 7, %v8620
    %v8622 = vrot.slane %v8549, %v8621
    %v8623 = vlaneseq
    %v8624 = vshrl.u32 %v8623, 7
    %v8625 = vsub.s32 0, %v8624
    %v8626 = vrot.slane %v8551, %v8625
    %v8627 = vlaneseq
    %v8628 = vshrl.u32 %v8627, 7
    %v8629 = vsub.s32 1, %v8628
    %v8630 = vrot.slane %v8551, %v8629
    %v8631 = vlaneseq
    %v8632 = vshrl.u32 %v8631, 7
    %v8633 = vsub.s32 2, %v8632
    %v8634 = vrot.slane %v8551, %v8633
    %v8635 = vlaneseq
    %v8636 = vshrl.u32 %v8635, 7
    %v8637 = vsub.s32 3, %v8636
    %v8638 = vrot.slane %v8551, %v8637
    %v8659 = vmul.f32 %v8554, %v8562
    %v8660 = vmul.f32 %v8554, %v8566
    %v8661 = vmul.f32 %v8554, %v8570
    %v8662 = vmul.f32 %v8554, %v8574
    %v8663 = vmul.f32 %v8554, %v8578
    %v8664 = vmul.f32 %v8554, %v8582
    %v8665 = vmul.f32 %v8554, %v8586
    %v8666 = vmul.f32 %v8554, %v8590
    %v8667 = vmul.f32 %v8554, %v8594
    %v8668 = vmul.f32 %v8554, %v8598
    %v8669 = vmul.f32 %v8554, %v8602
    %v8670 = vmul.f32 %v8554, %v8606
    %v8671 = vmul.f32 %v8554, %v8610
    %v8672 = vmul.f32 %v8554, %v8614
    %v8673 = vmul.f32 %v8554, %v8618
    %v8674 = vmul.f32 %v8554, %v8622
    %v8675 = vmul.f32 %v8554, %v8626
    %v8676 = vmul.f32 %v8554, %v8630
    %v8677 = vmul.f32 %v8554, %v8634
    %v8678 = vmul.f32 %v8554, %v8638
    %v8679 = vadd.f32 %v8526, %v8659
    %v8680 = vadd.f32 %v8527, %v8660
    %v8681 = vadd.f32 %v8528, %v8661
    %v8682 = vadd.f32 %v8529, %v8662
    %v8683 = vadd.f32 %v8530, %v8663
    %v8684 = vadd.f32 %v8531, %v8664
    %v8685 = vadd.f32 %v8532, %v8665
    %v8686 = vadd.f32 %v8533, %v8666
    %v8687 = vadd.f32 %v8534, %v8667
    %v8688 = vadd.f32 %v8535, %v8668
    %v8689 = vadd.f32 %v8536, %v8669
    %v8690 = vadd.f32 %v8537, %v8670
    %v8691 = vadd.f32 %v8538, %v8671
    %v8692 = vadd.f32 %v8539, %v8672
    %v8693 = vadd.f32 %v8540, %v8673
    %v8694 = vadd.f32 %v8541, %v8674
    %v8695 = vadd.f32 %v8542, %v8675
    %v8696 = vadd.f32 %v8543, %v8676
    %v8697 = vadd.f32 %v8544, %v8677
    %v8698 = vadd.f32 %v8545, %v8678
    %s8699 = scalar_lea.vmem [#allocation18], 2
    %v8700 = vld [vmem:[%s8699] ss:$4 sm:$0xff]
    %s8701 = scalar_lea.vmem [#allocation18], 34
    %v8702 = vld [vmem:[%s8701] ss:$4 sm:$0xff]
    %s8703 = scalar_lea.vmem [#allocation18], 66
    %v8704 = vld [vmem:[%s8703] ss:$4 sm:$0xf]
    %8705 = vset.pattern.permute.xlu0 2
    %8706 = vperm.xlu0 %8705, %v8286
    %v8707 = vpop.permute.xlu0 %8706
    %v8712 = vlaneseq
    %v8713 = vshrl.u32 %v8712, 7
    %v8714 = vsub.s32 0, %v8713
    %v8715 = vrot.slane %v8700, %v8714
    %v8716 = vlaneseq
    %v8717 = vshrl.u32 %v8716, 7
    %v8718 = vsub.s32 1, %v8717
    %v8719 = vrot.slane %v8700, %v8718
    %v8720 = vlaneseq
    %v8721 = vshrl.u32 %v8720, 7
    %v8722 = vsub.s32 2, %v8721
    %v8723 = vrot.slane %v8700, %v8722
    %v8724 = vlaneseq
    %v8725 = vshrl.u32 %v8724, 7
    %v8726 = vsub.s32 3, %v8725
    %v8727 = vrot.slane %v8700, %v8726
    %v8728 = vlaneseq
    %v8729 = vshrl.u32 %v8728, 7
    %v8730 = vsub.s32 4, %v8729
    %v8731 = vrot.slane %v8700, %v8730
    %v8732 = vlaneseq
    %v8733 = vshrl.u32 %v8732, 7
    %v8734 = vsub.s32 5, %v8733
    %v8735 = vrot.slane %v8700, %v8734
    %v8736 = vlaneseq
    %v8737 = vshrl.u32 %v8736, 7
    %v8738 = vsub.s32 6, %v8737
    %v8739 = vrot.slane %v8700, %v8738
    %v8740 = vlaneseq
    %v8741 = vshrl.u32 %v8740, 7
    %v8742 = vsub.s32 7, %v8741
    %v8743 = vrot.slane %v8700, %v8742
    %v8744 = vlaneseq
    %v8745 = vshrl.u32 %v8744, 7
    %v8746 = vsub.s32 0, %v8745
    %v8747 = vrot.slane %v8702, %v8746
    %v8748 = vlaneseq
    %v8749 = vshrl.u32 %v8748, 7
    %v8750 = vsub.s32 1, %v8749
    %v8751 = vrot.slane %v8702, %v8750
    %v8752 = vlaneseq
    %v8753 = vshrl.u32 %v8752, 7
    %v8754 = vsub.s32 2, %v8753
    %v8755 = vrot.slane %v8702, %v8754
    %v8756 = vlaneseq
    %v8757 = vshrl.u32 %v8756, 7
    %v8758 = vsub.s32 3, %v8757
    %v8759 = vrot.slane %v8702, %v8758
    %v8760 = vlaneseq
    %v8761 = vshrl.u32 %v8760, 7
    %v8762 = vsub.s32 4, %v8761
    %v8763 = vrot.slane %v8702, %v8762
    %v8764 = vlaneseq
    %v8765 = vshrl.u32 %v8764, 7
    %v8766 = vsub.s32 5, %v8765
    %v8767 = vrot.slane %v8702, %v8766
    %v8768 = vlaneseq
    %v8769 = vshrl.u32 %v8768, 7
    %v8770 = vsub.s32 6, %v8769
    %v8771 = vrot.slane %v8702, %v8770
    %v8772 = vlaneseq
    %v8773 = vshrl.u32 %v8772, 7
    %v8774 = vsub.s32 7, %v8773
    %v8775 = vrot.slane %v8702, %v8774
    %v8776 = vlaneseq
    %v8777 = vshrl.u32 %v8776, 7
    %v8778 = vsub.s32 0, %v8777
    %v8779 = vrot.slane %v8704, %v8778
    %v8780 = vlaneseq
    %v8781 = vshrl.u32 %v8780, 7
    %v8782 = vsub.s32 1, %v8781
    %v8783 = vrot.slane %v8704, %v8782
    %v8784 = vlaneseq
    %v8785 = vshrl.u32 %v8784, 7
    %v8786 = vsub.s32 2, %v8785
    %v8787 = vrot.slane %v8704, %v8786
    %v8788 = vlaneseq
    %v8789 = vshrl.u32 %v8788, 7
    %v8790 = vsub.s32 3, %v8789
    %v8791 = vrot.slane %v8704, %v8790
    %v8812 = vmul.f32 %v8707, %v8715
    %v8813 = vmul.f32 %v8707, %v8719
    %v8814 = vmul.f32 %v8707, %v8723
    %v8815 = vmul.f32 %v8707, %v8727
    %v8816 = vmul.f32 %v8707, %v8731
    %v8817 = vmul.f32 %v8707, %v8735
    %v8818 = vmul.f32 %v8707, %v8739
    %v8819 = vmul.f32 %v8707, %v8743
    %v8820 = vmul.f32 %v8707, %v8747
    %v8821 = vmul.f32 %v8707, %v8751
    %v8822 = vmul.f32 %v8707, %v8755
    %v8823 = vmul.f32 %v8707, %v8759
    %v8824 = vmul.f32 %v8707, %v8763
    %v8825 = vmul.f32 %v8707, %v8767
    %v8826 = vmul.f32 %v8707, %v8771
    %v8827 = vmul.f32 %v8707, %v8775
    %v8828 = vmul.f32 %v8707, %v8779
    %v8829 = vmul.f32 %v8707, %v8783
    %v8830 = vmul.f32 %v8707, %v8787
    %v8831 = vmul.f32 %v8707, %v8791
    %v8832 = vadd.f32 %v8679, %v8812
    %v8833 = vadd.f32 %v8680, %v8813
    %v8834 = vadd.f32 %v8681, %v8814
    %v8835 = vadd.f32 %v8682, %v8815
    %v8836 = vadd.f32 %v8683, %v8816
    %v8837 = vadd.f32 %v8684, %v8817
    %v8838 = vadd.f32 %v8685, %v8818
    %v8839 = vadd.f32 %v8686, %v8819
    %v8840 = vadd.f32 %v8687, %v8820
    %v8841 = vadd.f32 %v8688, %v8821
    %v8842 = vadd.f32 %v8689, %v8822
    %v8843 = vadd.f32 %v8690, %v8823
    %v8844 = vadd.f32 %v8691, %v8824
    %v8845 = vadd.f32 %v8692, %v8825
    %v8846 = vadd.f32 %v8693, %v8826
    %v8847 = vadd.f32 %v8694, %v8827
    %v8848 = vadd.f32 %v8695, %v8828
    %v8849 = vadd.f32 %v8696, %v8829
    %v8850 = vadd.f32 %v8697, %v8830
    %v8851 = vadd.f32 %v8698, %v8831
    %v8852 = vpack.c.bf16 %v8832, %v8832
    %v8853 = vpack.c.bf16 %v8833, %v8833
    %v8854 = vpack.c.bf16 %v8834, %v8834
    %v8855 = vpack.c.bf16 %v8835, %v8835
    %v8856 = vpack.c.bf16 %v8836, %v8836
    %v8857 = vpack.c.bf16 %v8837, %v8837
    %v8858 = vpack.c.bf16 %v8838, %v8838
    %v8859 = vpack.c.bf16 %v8839, %v8839
    %v8860 = vpack.c.bf16 %v8840, %v8840
    %v8861 = vpack.c.bf16 %v8841, %v8841
    %v8862 = vpack.c.bf16 %v8842, %v8842
    %v8863 = vpack.c.bf16 %v8843, %v8843
    %v8864 = vpack.c.bf16 %v8844, %v8844
    %v8865 = vpack.c.bf16 %v8845, %v8845
    %v8866 = vpack.c.bf16 %v8846, %v8846
    %v8867 = vpack.c.bf16 %v8847, %v8847
    %v8868 = vpack.c.bf16 %v8848, %v8848
    %v8869 = vpack.c.bf16 %v8849, %v8849
    %v8870 = vpack.c.bf16 %v8850, %v8850
    %v8871 = vpack.c.bf16 %v8851, %v8851
    %v8872 = vld [vmem:[#allocation21] sm:$0xff]
    %v8873 = vld [vmem:[#allocation21 + $0x8] sm:$0xff]
    %v8874 = vld [vmem:[#allocation21 + $0x10] sm:$0xff]
    %v8875 = vld [vmem:[#allocation21 + $0x18] sm:$0xff]
    %v8876 = vld [vmem:[#allocation21 + $0x20] sm:$0xff]
    %v8877 = vld [vmem:[#allocation21 + $0x28] sm:$0xff]
    %v8878 = vld [vmem:[#allocation21 + $0x30] sm:$0xff]
    %v8879 = vld [vmem:[#allocation21 + $0x38] sm:$0xff]
    %v8880 = vld [vmem:[#allocation21 + $0x40] sm:$0xff]
    %v8881 = vld [vmem:[#allocation21 + $0x48] sm:$0xff]
    %v8882 = vld [vmem:[#allocation21 + $0x50] sm:$0xff]
    %v8883 = vld [vmem:[#allocation21 + $0x58] sm:$0xff]
    %v8884 = vld [vmem:[#allocation21 + $0x60] sm:$0xff]
    %v8885 = vld [vmem:[#allocation21 + $0x68] sm:$0xff]
    %v8886 = vld [vmem:[#allocation21 + $0x70] sm:$0xff]
    %v8887 = vld [vmem:[#allocation21 + $0x78] sm:$0xff]
    %v8888 = vld [vmem:[#allocation21 + $0x80] sm:$0xff]
    %v8889 = vld [vmem:[#allocation21 + $0x88] sm:$0xff]
    %v8890 = vld [vmem:[#allocation21 + $0x90] sm:$0xff]
    %v8891 = vld [vmem:[#allocation21 + $0x98] sm:$0xff]
    %v8892 = vld [vmem:[#allocation21 + $0xa0] sm:$0xff]
    %v8893 = vld [vmem:[#allocation21 + $0xa8] sm:$0xff]
    %v8894 = vld [vmem:[#allocation21 + $0xb0] sm:$0xff]
    %v8895 = vld [vmem:[#allocation21 + $0xb8] sm:$0xff]
    %v8896 = vld [vmem:[#allocation21 + $0xc0] sm:$0xff]
    %v8897 = vld [vmem:[#allocation21 + $0xc8] sm:$0xff]
    %v8898 = vld [vmem:[#allocation21 + $0xd0] sm:$0xff]
    %v8899 = vld [vmem:[#allocation21 + $0xd8] sm:$0xff]
    %v8900 = vld [vmem:[#allocation21 + $0xe0] sm:$0xff]
    %v8901 = vld [vmem:[#allocation21 + $0xe8] sm:$0xff]
    %v8902 = vld [vmem:[#allocation21 + $0xf0] sm:$0xff]
    %v8903 = vld [vmem:[#allocation21 + $0xf8] sm:$0xff]
    %v8904 = vld [vmem:[#allocation21 + $0x100] sm:$0xff]
    %v8905 = vld [vmem:[#allocation21 + $0x108] sm:$0xff]
    %v8906 = vld [vmem:[#allocation21 + $0x110] sm:$0xff]
    %v8907 = vld [vmem:[#allocation21 + $0x118] sm:$0xff]
    %v8908 = vld [vmem:[#allocation21 + $0x120] sm:$0xff]
    %v8909 = vld [vmem:[#allocation21 + $0x128] sm:$0xff]
    %v8910 = vld [vmem:[#allocation21 + $0x130] sm:$0xff]
    %v8911 = vld [vmem:[#allocation21 + $0x138] sm:$0xff]
    %v8912 = vld [vmem:[#allocation21 + $0x140] sm:$0xff]
    %v8913 = vld [vmem:[#allocation21 + $0x148] sm:$0xff]
    %v8914 = vld [vmem:[#allocation21 + $0x150] sm:$0xff]
    %v8915 = vld [vmem:[#allocation21 + $0x158] sm:$0xff]
    %v8916 = vld [vmem:[#allocation21 + $0x160] sm:$0xff]
    %v8917 = vld [vmem:[#allocation21 + $0x168] sm:$0xff]
    %v8918 = vld [vmem:[#allocation21 + $0x170] sm:$0xff]
    %v8919 = vld [vmem:[#allocation21 + $0x178] sm:$0xff]
    %v8920 = vld [vmem:[#allocation21 + $0x180] sm:$0xff]
    %v8921 = vld [vmem:[#allocation21 + $0x188] sm:$0xff]
    %v8922 = vld [vmem:[#allocation21 + $0x190] sm:$0xff]
    %v8923 = vld [vmem:[#allocation21 + $0x198] sm:$0xff]
    %v8924 = vld [vmem:[#allocation21 + $0x1a0] sm:$0xff]
    %v8925 = vld [vmem:[#allocation21 + $0x1a8] sm:$0xff]
    %v8926 = vld [vmem:[#allocation21 + $0x1b0] sm:$0xff]
    %v8927 = vld [vmem:[#allocation21 + $0x1b8] sm:$0xff]
    %v8928 = vld [vmem:[#allocation21 + $0x1c0] sm:$0xff]
    %v8929 = vld [vmem:[#allocation21 + $0x1c8] sm:$0xff]
    %v8930 = vld [vmem:[#allocation21 + $0x1d0] sm:$0xff]
    %v8931 = vld [vmem:[#allocation21 + $0x1d8] sm:$0xff]
    %v8932 = vld [vmem:[#allocation21 + $0x1e0] sm:$0xff]
    %v8933 = vld [vmem:[#allocation21 + $0x1e8] sm:$0xff]
    %v8934 = vld [vmem:[#allocation21 + $0x1f0] sm:$0xff]
    %v8935 = vld [vmem:[#allocation21 + $0x1f8] sm:$0xff]
    %v8936 = vld [vmem:[#allocation21 + $0x200] sm:$0xff]
    %v8937 = vld [vmem:[#allocation21 + $0x208] sm:$0xff]
    %v8938 = vld [vmem:[#allocation21 + $0x210] sm:$0xff]
    %v8939 = vld [vmem:[#allocation21 + $0x218] sm:$0xff]
    %v8940 = vld [vmem:[#allocation21 + $0x220] sm:$0xff]
    %v8941 = vld [vmem:[#allocation21 + $0x228] sm:$0xff]
    %v8942 = vld [vmem:[#allocation21 + $0x230] sm:$0xff]
    %v8943 = vld [vmem:[#allocation21 + $0x238] sm:$0xff]
    %v8944 = vld [vmem:[#allocation21 + $0x240] sm:$0xff]
    %v8945 = vld [vmem:[#allocation21 + $0x248] sm:$0xff]
    %v8946 = vld [vmem:[#allocation21 + $0x250] sm:$0xff]
    %v8947 = vld [vmem:[#allocation21 + $0x258] sm:$0xff]
    %v8948 = vld [vmem:[#allocation21 + $0x260] sm:$0xff]
    %v8949 = vld [vmem:[#allocation21 + $0x268] sm:$0xff]
    %v8950 = vld [vmem:[#allocation21 + $0x270] sm:$0xff]
    %v8951 = vld [vmem:[#allocation21 + $0x278] sm:$0xff]
    %v8952 = vld [vmem:[#allocation21 + $0x280] sm:$0xff]
    %v8953 = vld [vmem:[#allocation21 + $0x288] sm:$0xff]
    %v8954 = vld [vmem:[#allocation21 + $0x290] sm:$0xff]
    %v8955 = vld [vmem:[#allocation21 + $0x298] sm:$0xff]
    %v8956 = vld [vmem:[#allocation21 + $0x2a0] sm:$0xff]
    %v8957 = vld [vmem:[#allocation21 + $0x2a8] sm:$0xff]
    %v8958 = vld [vmem:[#allocation21 + $0x2b0] sm:$0xff]
    %v8959 = vld [vmem:[#allocation21 + $0x2b8] sm:$0xff]
    %v8960 = vld [vmem:[#allocation21 + $0x2c0] sm:$0xff]
    %v8961 = vld [vmem:[#allocation21 + $0x2c8] sm:$0xff]
    %v8962 = vld [vmem:[#allocation21 + $0x2d0] sm:$0xff]
    %v8963 = vld [vmem:[#allocation21 + $0x2d8] sm:$0xff]
    %v8964 = vld [vmem:[#allocation21 + $0x2e0] sm:$0xff]
    %v8965 = vld [vmem:[#allocation21 + $0x2e8] sm:$0xff]
    %v8966 = vld [vmem:[#allocation21 + $0x2f0] sm:$0xff]
    %v8967 = vld [vmem:[#allocation21 + $0x2f8] sm:$0xff]
    %v8968 = vld [vmem:[#allocation21 + $0x300] sm:$0xff]
    %v8969 = vld [vmem:[#allocation21 + $0x308] sm:$0xff]
    %v8970 = vld [vmem:[#allocation21 + $0x310] sm:$0xff]
    %v8971 = vld [vmem:[#allocation21 + $0x318] sm:$0xff]
    %v8972 = vld [vmem:[#allocation21 + $0x320] sm:$0xff]
    %v8973 = vld [vmem:[#allocation21 + $0x328] sm:$0xff]
    %v8974 = vld [vmem:[#allocation21 + $0x330] sm:$0xff]
    %v8975 = vld [vmem:[#allocation21 + $0x338] sm:$0xff]
    %v8976 = vld [vmem:[#allocation21 + $0x340] sm:$0xff]
    %v8977 = vld [vmem:[#allocation21 + $0x348] sm:$0xff]
    %v8978 = vld [vmem:[#allocation21 + $0x350] sm:$0xff]
    %v8979 = vld [vmem:[#allocation21 + $0x358] sm:$0xff]
    %v8980 = vld [vmem:[#allocation21 + $0x360] sm:$0xff]
    %v8981 = vld [vmem:[#allocation21 + $0x368] sm:$0xff]
    %v8982 = vld [vmem:[#allocation21 + $0x370] sm:$0xff]
    %v8983 = vld [vmem:[#allocation21 + $0x378] sm:$0xff]
    %v8984 = vld [vmem:[#allocation21 + $0x380] sm:$0xff]
    %v8985 = vld [vmem:[#allocation21 + $0x388] sm:$0xff]
    %v8986 = vld [vmem:[#allocation21 + $0x390] sm:$0xff]
    %v8987 = vld [vmem:[#allocation21 + $0x398] sm:$0xff]
    %v8988 = vld [vmem:[#allocation21 + $0x3a0] sm:$0xff]
    %v8989 = vld [vmem:[#allocation21 + $0x3a8] sm:$0xff]
    %v8990 = vld [vmem:[#allocation21 + $0x3b0] sm:$0xff]
    %v8991 = vld [vmem:[#allocation21 + $0x3b8] sm:$0xff]
    %v8992 = vld [vmem:[#allocation21 + $0x3c0] sm:$0xff]
    %v8993 = vld [vmem:[#allocation21 + $0x3c8] sm:$0xff]
    %v8994 = vld [vmem:[#allocation21 + $0x3d0] sm:$0xff]
    %v8995 = vld [vmem:[#allocation21 + $0x3d8] sm:$0xff]
    %v8996 = vld [vmem:[#allocation21 + $0x3e0] sm:$0xff]
    %v8997 = vld [vmem:[#allocation21 + $0x3e8] sm:$0xff]
    %v8998 = vld [vmem:[#allocation21 + $0x3f0] sm:$0xff]
    %v8999 = vld [vmem:[#allocation21 + $0x3f8] sm:$0xff]
    %v9000 = vld [vmem:[#allocation21 + $0x400] sm:$0xff]
    %v9001 = vld [vmem:[#allocation21 + $0x408] sm:$0xff]
    %v9002 = vld [vmem:[#allocation21 + $0x410] sm:$0xff]
    %v9003 = vld [vmem:[#allocation21 + $0x418] sm:$0xff]
    %v9004 = vld [vmem:[#allocation21 + $0x420] sm:$0xff]
    %v9005 = vld [vmem:[#allocation21 + $0x428] sm:$0xff]
    %v9006 = vld [vmem:[#allocation21 + $0x430] sm:$0xff]
    %v9007 = vld [vmem:[#allocation21 + $0x438] sm:$0xff]
    %v9008 = vld [vmem:[#allocation21 + $0x440] sm:$0xff]
    %v9009 = vld [vmem:[#allocation21 + $0x448] sm:$0xff]
    %v9010 = vld [vmem:[#allocation21 + $0x450] sm:$0xff]
    %v9011 = vld [vmem:[#allocation21 + $0x458] sm:$0xff]
    %v9012 = vld [vmem:[#allocation21 + $0x460] sm:$0xff]
    %v9013 = vld [vmem:[#allocation21 + $0x468] sm:$0xff]
    %v9014 = vld [vmem:[#allocation21 + $0x470] sm:$0xff]
    %v9015 = vld [vmem:[#allocation21 + $0x478] sm:$0xff]
    %v9016 = vld [vmem:[#allocation21 + $0x480] sm:$0xff]
    %v9017 = vld [vmem:[#allocation21 + $0x488] sm:$0xff]
    %v9018 = vld [vmem:[#allocation21 + $0x490] sm:$0xff]
    %v9019 = vld [vmem:[#allocation21 + $0x498] sm:$0xff]
    %v9020 = vld [vmem:[#allocation21 + $0x4a0] sm:$0xff]
    %v9021 = vld [vmem:[#allocation21 + $0x4a8] sm:$0xff]
    %v9022 = vld [vmem:[#allocation21 + $0x4b0] sm:$0xff]
    %v9023 = vld [vmem:[#allocation21 + $0x4b8] sm:$0xff]
    %v9024 = vld [vmem:[#allocation21 + $0x4c0] sm:$0xff]
    %v9025 = vld [vmem:[#allocation21 + $0x4c8] sm:$0xff]
    %v9026 = vld [vmem:[#allocation21 + $0x4d0] sm:$0xff]
    %v9027 = vld [vmem:[#allocation21 + $0x4d8] sm:$0xff]
    %v9028 = vld [vmem:[#allocation21 + $0x4e0] sm:$0xff]
    %v9029 = vld [vmem:[#allocation21 + $0x4e8] sm:$0xff]
    %v9030 = vld [vmem:[#allocation21 + $0x4f0] sm:$0xff]
    %v9031 = vld [vmem:[#allocation21 + $0x4f8] sm:$0xff]
    %v9032 = vld [vmem:[#allocation21 + $0x500] sm:$0xff]
    %v9033 = vld [vmem:[#allocation21 + $0x508] sm:$0xff]
    %v9034 = vld [vmem:[#allocation21 + $0x510] sm:$0xff]
    %v9035 = vld [vmem:[#allocation21 + $0x518] sm:$0xff]
    %v9036 = vld [vmem:[#allocation21 + $0x520] sm:$0xff]
    %v9037 = vld [vmem:[#allocation21 + $0x528] sm:$0xff]
    %v9038 = vld [vmem:[#allocation21 + $0x530] sm:$0xff]
    %v9039 = vld [vmem:[#allocation21 + $0x538] sm:$0xff]
    %v9040 = vld [vmem:[#allocation21 + $0x540] sm:$0xff]
    %v9041 = vld [vmem:[#allocation21 + $0x548] sm:$0xff]
    %v9042 = vld [vmem:[#allocation21 + $0x550] sm:$0xff]
    %v9043 = vld [vmem:[#allocation21 + $0x558] sm:$0xff]
    %v9044 = vld [vmem:[#allocation21 + $0x560] sm:$0xff]
    %v9045 = vld [vmem:[#allocation21 + $0x568] sm:$0xff]
    %v9046 = vld [vmem:[#allocation21 + $0x570] sm:$0xff]
    %v9047 = vld [vmem:[#allocation21 + $0x578] sm:$0xff]
    %v9048 = vld [vmem:[#allocation21 + $0x580] sm:$0xff]
    %v9049 = vld [vmem:[#allocation21 + $0x588] sm:$0xff]
    %v9050 = vld [vmem:[#allocation21 + $0x590] sm:$0xff]
    %v9051 = vld [vmem:[#allocation21 + $0x598] sm:$0xff]
    %v9052 = vld [vmem:[#allocation21 + $0x5a0] sm:$0xff]
    %v9053 = vld [vmem:[#allocation21 + $0x5a8] sm:$0xff]
    %v9054 = vld [vmem:[#allocation21 + $0x5b0] sm:$0xff]
    %v9055 = vld [vmem:[#allocation21 + $0x5b8] sm:$0xff]
    %v9056 = vld [vmem:[#allocation21 + $0x5c0] sm:$0xff]
    %v9057 = vld [vmem:[#allocation21 + $0x5c8] sm:$0xff]
    %v9058 = vld [vmem:[#allocation21 + $0x5d0] sm:$0xff]
    %v9059 = vld [vmem:[#allocation21 + $0x5d8] sm:$0xff]
    %v9060 = vld [vmem:[#allocation21 + $0x5e0] sm:$0xff]
    %v9061 = vld [vmem:[#allocation21 + $0x5e8] sm:$0xff]
    %v9062 = vld [vmem:[#allocation21 + $0x5f0] sm:$0xff]
    %v9063 = vld [vmem:[#allocation21 + $0x5f8] sm:$0xff]
    %v9064 = vld [vmem:[#allocation21 + $0x600] sm:$0xff]
    %v9065 = vld [vmem:[#allocation21 + $0x608] sm:$0xff]
    %v9066 = vld [vmem:[#allocation21 + $0x610] sm:$0xff]
    %v9067 = vld [vmem:[#allocation21 + $0x618] sm:$0xff]
    %v9068 = vld [vmem:[#allocation21 + $0x620] sm:$0xff]
    %v9069 = vld [vmem:[#allocation21 + $0x628] sm:$0xff]
    %v9070 = vld [vmem:[#allocation21 + $0x630] sm:$0xff]
    %v9071 = vld [vmem:[#allocation21 + $0x638] sm:$0xff]
    %v9072 = vld [vmem:[#allocation21 + $0x640] sm:$0xff]
    %v9073 = vld [vmem:[#allocation21 + $0x648] sm:$0xff]
    %v9074 = vld [vmem:[#allocation21 + $0x650] sm:$0xff]
    %v9075 = vld [vmem:[#allocation21 + $0x658] sm:$0xff]
    %v9076 = vld [vmem:[#allocation21 + $0x660] sm:$0xff]
    %v9077 = vld [vmem:[#allocation21 + $0x668] sm:$0xff]
    %v9078 = vld [vmem:[#allocation21 + $0x670] sm:$0xff]
    %v9079 = vld [vmem:[#allocation21 + $0x678] sm:$0xff]
    %v9080 = vld [vmem:[#allocation21 + $0x680] sm:$0xff]
    %v9081 = vld [vmem:[#allocation21 + $0x688] sm:$0xff]
    %v9082 = vld [vmem:[#allocation21 + $0x690] sm:$0xff]
    %v9083 = vld [vmem:[#allocation21 + $0x698] sm:$0xff]
    %v9084 = vld [vmem:[#allocation21 + $0x6a0] sm:$0xff]
    %v9085 = vld [vmem:[#allocation21 + $0x6a8] sm:$0xff]
    %v9086 = vld [vmem:[#allocation21 + $0x6b0] sm:$0xff]
    %v9087 = vld [vmem:[#allocation21 + $0x6b8] sm:$0xff]
    %v9088 = vld [vmem:[#allocation21 + $0x6c0] sm:$0xff]
    %v9089 = vld [vmem:[#allocation21 + $0x6c8] sm:$0xff]
    %v9090 = vld [vmem:[#allocation21 + $0x6d0] sm:$0xff]
    %v9091 = vld [vmem:[#allocation21 + $0x6d8] sm:$0xff]
    %v9092 = vld [vmem:[#allocation21 + $0x6e0] sm:$0xff]
    %v9093 = vld [vmem:[#allocation21 + $0x6e8] sm:$0xff]
    %v9094 = vld [vmem:[#allocation21 + $0x6f0] sm:$0xff]
    %v9095 = vld [vmem:[#allocation21 + $0x6f8] sm:$0xff]
    %v9096 = vld [vmem:[#allocation21 + $0x700] sm:$0xff]
    %v9097 = vld [vmem:[#allocation21 + $0x708] sm:$0xff]
    %v9098 = vld [vmem:[#allocation21 + $0x710] sm:$0xff]
    %v9099 = vld [vmem:[#allocation21 + $0x718] sm:$0xff]
    %v9100 = vld [vmem:[#allocation21 + $0x720] sm:$0xff]
    %v9101 = vld [vmem:[#allocation21 + $0x728] sm:$0xff]
    %v9102 = vld [vmem:[#allocation21 + $0x730] sm:$0xff]
    %v9103 = vld [vmem:[#allocation21 + $0x738] sm:$0xff]
    %v9104 = vld [vmem:[#allocation21 + $0x740] sm:$0xff]
    %v9105 = vld [vmem:[#allocation21 + $0x748] sm:$0xff]
    %v9106 = vld [vmem:[#allocation21 + $0x750] sm:$0xff]
    %v9107 = vld [vmem:[#allocation21 + $0x758] sm:$0xff]
    %v9108 = vld [vmem:[#allocation21 + $0x760] sm:$0xff]
    %v9109 = vld [vmem:[#allocation21 + $0x768] sm:$0xff]
    %v9110 = vld [vmem:[#allocation21 + $0x770] sm:$0xff]
    %v9111 = vld [vmem:[#allocation21 + $0x778] sm:$0xff]
    %v9112 = vld [vmem:[#allocation21 + $0x780] sm:$0xff]
    %v9113 = vld [vmem:[#allocation21 + $0x788] sm:$0xff]
    %v9114 = vld [vmem:[#allocation21 + $0x790] sm:$0xff]
    %v9115 = vld [vmem:[#allocation21 + $0x798] sm:$0xff]
    %v9116 = vld [vmem:[#allocation21 + $0x7a0] sm:$0xff]
    %v9117 = vld [vmem:[#allocation21 + $0x7a8] sm:$0xff]
    %v9118 = vld [vmem:[#allocation21 + $0x7b0] sm:$0xff]
    %v9119 = vld [vmem:[#allocation21 + $0x7b8] sm:$0xff]
    %v9120 = vld [vmem:[#allocation21 + $0x7c0] sm:$0xff]
    %v9121 = vld [vmem:[#allocation21 + $0x7c8] sm:$0xff]
    %v9122 = vld [vmem:[#allocation21 + $0x7d0] sm:$0xff]
    %v9123 = vld [vmem:[#allocation21 + $0x7d8] sm:$0xff]
    %v9124 = vld [vmem:[#allocation21 + $0x7e0] sm:$0xff]
    %v9125 = vld [vmem:[#allocation21 + $0x7e8] sm:$0xff]
    %v9126 = vld [vmem:[#allocation21 + $0x7f0] sm:$0xff]
    %v9127 = vld [vmem:[#allocation21 + $0x7f8] sm:$0xff]
    %v9128 = vld [vmem:[#allocation21 + $0x800] sm:$0xff]
    %v9129 = vld [vmem:[#allocation21 + $0x808] sm:$0xff]
    %v9130 = vld [vmem:[#allocation21 + $0x810] sm:$0xff]
    %v9131 = vld [vmem:[#allocation21 + $0x818] sm:$0xff]
    %v9132 = vld [vmem:[#allocation21 + $0x820] sm:$0xff]
    %v9133 = vld [vmem:[#allocation21 + $0x828] sm:$0xff]
    %v9134 = vld [vmem:[#allocation21 + $0x830] sm:$0xff]
    %v9135 = vld [vmem:[#allocation21 + $0x838] sm:$0xff]
    %v9136 = vld [vmem:[#allocation21 + $0x840] sm:$0xff]
    %v9137 = vld [vmem:[#allocation21 + $0x848] sm:$0xff]
    %v9138 = vld [vmem:[#allocation21 + $0x850] sm:$0xff]
    %v9139 = vld [vmem:[#allocation21 + $0x858] sm:$0xff]
    %v9140 = vld [vmem:[#allocation21 + $0x860] sm:$0xff]
    %v9141 = vld [vmem:[#allocation21 + $0x868] sm:$0xff]
    %v9142 = vld [vmem:[#allocation21 + $0x870] sm:$0xff]
    %v9143 = vld [vmem:[#allocation21 + $0x878] sm:$0xff]
    %v9144 = vld [vmem:[#allocation21 + $0x880] sm:$0xff]
    %v9145 = vld [vmem:[#allocation21 + $0x888] sm:$0xff]
    %v9146 = vld [vmem:[#allocation21 + $0x890] sm:$0xff]
    %v9147 = vld [vmem:[#allocation21 + $0x898] sm:$0xff]
    %v9148 = vld [vmem:[#allocation21 + $0x8a0] sm:$0xff]
    %v9149 = vld [vmem:[#allocation21 + $0x8a8] sm:$0xff]
    %v9150 = vld [vmem:[#allocation21 + $0x8b0] sm:$0xff]
    %v9151 = vld [vmem:[#allocation21 + $0x8b8] sm:$0xff]
    %v9152 = vld [vmem:[#allocation21 + $0x8c0] sm:$0xff]
    %v9153 = vld [vmem:[#allocation21 + $0x8c8] sm:$0xff]
    %v9154 = vld [vmem:[#allocation21 + $0x8d0] sm:$0xff]
    %v9155 = vld [vmem:[#allocation21 + $0x8d8] sm:$0xff]
    %v9156 = vld [vmem:[#allocation21 + $0x8e0] sm:$0xff]
    %v9157 = vld [vmem:[#allocation21 + $0x8e8] sm:$0xff]
    %v9158 = vld [vmem:[#allocation21 + $0x8f0] sm:$0xff]
    %v9159 = vld [vmem:[#allocation21 + $0x8f8] sm:$0xff]
    %v9160 = vld [vmem:[#allocation21 + $0x900] sm:$0xff]
    %v9161 = vld [vmem:[#allocation21 + $0x908] sm:$0xff]
    %v9162 = vld [vmem:[#allocation21 + $0x910] sm:$0xff]
    %v9163 = vld [vmem:[#allocation21 + $0x918] sm:$0xff]
    %v9164 = vld [vmem:[#allocation21 + $0x920] sm:$0xff]
    %v9165 = vld [vmem:[#allocation21 + $0x928] sm:$0xff]
    %v9166 = vld [vmem:[#allocation21 + $0x930] sm:$0xff]
    %v9167 = vld [vmem:[#allocation21 + $0x938] sm:$0xff]
    %v9168 = vld [vmem:[#allocation21 + $0x940] sm:$0xff]
    %v9169 = vld [vmem:[#allocation21 + $0x948] sm:$0xff]
    %v9170 = vld [vmem:[#allocation21 + $0x950] sm:$0xff]
    %v9171 = vld [vmem:[#allocation21 + $0x958] sm:$0xff]
    %v9172 = vld [vmem:[#allocation21 + $0x960] sm:$0xff]
    %v9173 = vld [vmem:[#allocation21 + $0x968] sm:$0xff]
    %v9174 = vld [vmem:[#allocation21 + $0x970] sm:$0xff]
    %v9175 = vld [vmem:[#allocation21 + $0x978] sm:$0xff]
    %v9176 = vld [vmem:[#allocation21 + $0x980] sm:$0xff]
    %v9177 = vld [vmem:[#allocation21 + $0x988] sm:$0xff]
    %v9178 = vld [vmem:[#allocation21 + $0x990] sm:$0xff]
    %v9179 = vld [vmem:[#allocation21 + $0x998] sm:$0xff]
    %v9180 = vld [vmem:[#allocation21 + $0x9a0] sm:$0xff]
    %v9181 = vld [vmem:[#allocation21 + $0x9a8] sm:$0xff]
    %v9182 = vld [vmem:[#allocation21 + $0x9b0] sm:$0xff]
    %v9183 = vld [vmem:[#allocation21 + $0x9b8] sm:$0xff]
    %v9184 = vld [vmem:[#allocation21 + $0x9c0] sm:$0xff]
    %v9185 = vld [vmem:[#allocation21 + $0x9c8] sm:$0xff]
    %v9186 = vld [vmem:[#allocation21 + $0x9d0] sm:$0xff]
    %v9187 = vld [vmem:[#allocation21 + $0x9d8] sm:$0xff]
    %v9188 = vld [vmem:[#allocation21 + $0x9e0] sm:$0xff]
    %v9189 = vld [vmem:[#allocation21 + $0x9e8] sm:$0xff]
    %v9190 = vld [vmem:[#allocation21 + $0x9f0] sm:$0xff]
    %v9191 = vld [vmem:[#allocation21 + $0x9f8] sm:$0xff]
    %v9192 = vpack.c.bf16 %v8284, %v8284
    %v9193 = vpack.c.bf16 %v8285, %v8285
    %v9194 = vld [vmem:[#allocation23] sm:$0xff]
    %v9195 = vld [vmem:[#allocation23 + $0x8] sm:$0xff]
    %v9196 = vld [vmem:[#allocation23 + $0x10] sm:$0xff]
    %v9197 = vld [vmem:[#allocation23 + $0x18] sm:$0xff]
    %v9198 = vld [vmem:[#allocation23 + $0x20] sm:$0xff]
    %v9199 = vld [vmem:[#allocation23 + $0x28] sm:$0xff]
    %v9200 = vld [vmem:[#allocation23 + $0x30] sm:$0xff]
    %v9201 = vld [vmem:[#allocation23 + $0x38] sm:$0xff]
    %v9202 = vld [vmem:[#allocation23 + $0x40] sm:$0xff]
    %v9203 = vld [vmem:[#allocation23 + $0x48] sm:$0xff]
    %v9204 = vld [vmem:[#allocation23 + $0x50] sm:$0xff]
    %v9205 = vld [vmem:[#allocation23 + $0x58] sm:$0xff]
    %v9206 = vld [vmem:[#allocation23 + $0x60] sm:$0xff]
    %v9207 = vld [vmem:[#allocation23 + $0x68] sm:$0xff]
    %v9208 = vld [vmem:[#allocation23 + $0x70] sm:$0xff]
    %v9209 = vld [vmem:[#allocation23 + $0x78] sm:$0xff]
    %v9210 = vld [vmem:[#allocation23 + $0x80] sm:$0xff]
    %v9211 = vld [vmem:[#allocation23 + $0x88] sm:$0xff]
    %v9212 = vld [vmem:[#allocation23 + $0x90] sm:$0xff]
    %v9213 = vld [vmem:[#allocation23 + $0x98] sm:$0xff]
    %v9214 = vld [vmem:[#allocation23 + $0xa0] sm:$0xff]
    %v9215 = vld [vmem:[#allocation23 + $0xa8] sm:$0xff]
    %v9216 = vld [vmem:[#allocation23 + $0xb0] sm:$0xff]
    %v9217 = vld [vmem:[#allocation23 + $0xb8] sm:$0xff]
    %v9218 = vld [vmem:[#allocation23 + $0xc0] sm:$0xff]
    %v9219 = vld [vmem:[#allocation23 + $0xc8] sm:$0xff]
    %v9220 = vld [vmem:[#allocation23 + $0xd0] sm:$0xff]
    %v9221 = vld [vmem:[#allocation23 + $0xd8] sm:$0xff]
    %v9222 = vld [vmem:[#allocation23 + $0xe0] sm:$0xff]
    %v9223 = vld [vmem:[#allocation23 + $0xe8] sm:$0xff]
    %v9224 = vld [vmem:[#allocation23 + $0xf0] sm:$0xff]
    %v9225 = vld [vmem:[#allocation23 + $0xf8] sm:$0xff]
    %v9258 = vunpack.c.l.b16 %v9194
    %v9259 = vunpack.c.h.b16 %v9194
    %v9260 = vunpack.c.l.b16 %v9195
    %v9261 = vunpack.c.h.b16 %v9195
    %v9262 = vunpack.c.l.b16 %v9196
    %v9263 = vunpack.c.h.b16 %v9196
    %v9264 = vunpack.c.l.b16 %v9197
    %v9265 = vunpack.c.h.b16 %v9197
    %v9266 = vunpack.c.l.b16 %v9198
    %v9267 = vunpack.c.h.b16 %v9198
    %v9268 = vunpack.c.l.b16 %v9199
    %v9269 = vunpack.c.h.b16 %v9199
    %v9270 = vunpack.c.l.b16 %v9200
    %v9271 = vunpack.c.h.b16 %v9200
    %v9272 = vunpack.c.l.b16 %v9201
    %v9273 = vunpack.c.h.b16 %v9201
    %v9274 = vunpack.c.l.b16 %v9202
    %v9275 = vunpack.c.h.b16 %v9202
    %v9276 = vunpack.c.l.b16 %v9203
    %v9277 = vunpack.c.h.b16 %v9203
    %v9278 = vunpack.c.l.b16 %v9204
    %v9279 = vunpack.c.h.b16 %v9204
    %v9280 = vunpack.c.l.b16 %v9205
    %v9281 = vunpack.c.h.b16 %v9205
    %v9282 = vunpack.c.l.b16 %v9206
    %v9283 = vunpack.c.h.b16 %v9206
    %v9284 = vunpack.c.l.b16 %v9207
    %v9285 = vunpack.c.h.b16 %v9207
    %v9286 = vunpack.c.l.b16 %v9208
    %v9287 = vunpack.c.h.b16 %v9208
    %v9288 = vunpack.c.l.b16 %v9209
    %v9289 = vunpack.c.h.b16 %v9209
    %v9290 = vunpack.c.l.b16 %v9210
    %v9291 = vunpack.c.h.b16 %v9210
    %v9292 = vunpack.c.l.b16 %v9211
    %v9293 = vunpack.c.h.b16 %v9211
    %v9294 = vunpack.c.l.b16 %v9212
    %v9295 = vunpack.c.h.b16 %v9212
    %v9296 = vunpack.c.l.b16 %v9213
    %v9297 = vunpack.c.h.b16 %v9213
    %v9298 = vunpack.c.l.b16 %v9214
    %v9299 = vunpack.c.h.b16 %v9214
    %v9300 = vunpack.c.l.b16 %v9215
    %v9301 = vunpack.c.h.b16 %v9215
    %v9302 = vunpack.c.l.b16 %v9216
    %v9303 = vunpack.c.h.b16 %v9216
    %v9304 = vunpack.c.l.b16 %v9217
    %v9305 = vunpack.c.h.b16 %v9217
    %v9306 = vunpack.c.l.b16 %v9218
    %v9307 = vunpack.c.h.b16 %v9218
    %v9308 = vunpack.c.l.b16 %v9219
    %v9309 = vunpack.c.h.b16 %v9219
    %v9310 = vunpack.c.l.b16 %v9220
    %v9311 = vunpack.c.h.b16 %v9220
    %v9312 = vunpack.c.l.b16 %v9221
    %v9313 = vunpack.c.h.b16 %v9221
    %v9314 = vunpack.c.l.b16 %v9222
    %v9315 = vunpack.c.h.b16 %v9222
    %v9316 = vunpack.c.l.b16 %v9223
    %v9317 = vunpack.c.h.b16 %v9223
    %v9318 = vunpack.c.l.b16 %v9224
    %v9319 = vunpack.c.h.b16 %v9224
    %v9320 = vunpack.c.l.b16 %v9225
    %v9321 = vunpack.c.h.b16 %v9225
    %v9322 = vpack.c.b16 %v9260, %v9258
    %v9323 = vpack.c.b16 %v9261, %v9259
    %v9324 = vpack.c.b16 %v9264, %v9262
    %v9325 = vpack.c.b16 %v9265, %v9263
    %v9326 = vpack.c.b16 %v9268, %v9266
    %v9327 = vpack.c.b16 %v9269, %v9267
    %v9328 = vpack.c.b16 %v9272, %v9270
    %v9329 = vpack.c.b16 %v9273, %v9271
    %v9330 = vpack.c.b16 %v9276, %v9274
    %v9331 = vpack.c.b16 %v9277, %v9275
    %v9332 = vpack.c.b16 %v9280, %v9278
    %v9333 = vpack.c.b16 %v9281, %v9279
    %v9334 = vpack.c.b16 %v9284, %v9282
    %v9335 = vpack.c.b16 %v9285, %v9283
    %v9336 = vpack.c.b16 %v9288, %v9286
    %v9337 = vpack.c.b16 %v9289, %v9287
    %v9338 = vpack.c.b16 %v9292, %v9290
    %v9339 = vpack.c.b16 %v9293, %v9291
    %v9340 = vpack.c.b16 %v9296, %v9294
    %v9341 = vpack.c.b16 %v9297, %v9295
    %v9342 = vpack.c.b16 %v9300, %v9298
    %v9343 = vpack.c.b16 %v9301, %v9299
    %v9344 = vpack.c.b16 %v9304, %v9302
    %v9345 = vpack.c.b16 %v9305, %v9303
    %v9346 = vpack.c.b16 %v9308, %v9306
    %v9347 = vpack.c.b16 %v9309, %v9307
    %v9348 = vpack.c.b16 %v9312, %v9310
    %v9349 = vpack.c.b16 %v9313, %v9311
    %v9350 = vpack.c.b16 %v9316, %v9314
    %v9351 = vpack.c.b16 %v9317, %v9315
    %v9352 = vpack.c.b16 %v9320, %v9318
    %v9353 = vpack.c.b16 %v9321, %v9319
    %9386 = vmatprep.subr.bf16.mxu0 %v9323
    %9387 = vmatpush1.bf16.msra.mxu0 %v9322
    %9388 = vmatprep.subr.bf16.mxu0 %v9325
    %9389 = vmatpush1.bf16.msra.mxu0 %v9324
    %9390 = vmatprep.subr.bf16.mxu0 %v9327
    %9391 = vmatpush1.bf16.msra.mxu0 %v9326
    %9392 = vmatprep.subr.bf16.mxu0 %v9329
    %9393 = vmatpush1.bf16.msra.mxu0 %v9328
    %9394 = vmatprep.subr.bf16.mxu0 %v9331
    %9395 = vmatpush1.bf16.msra.mxu0 %v9330
    %9396 = vmatprep.subr.bf16.mxu0 %v9333
    %9397 = vmatpush1.bf16.msra.mxu0 %v9332
    %9398 = vmatprep.subr.bf16.mxu0 %v9335
    %9399 = vmatpush1.bf16.msra.mxu0 %v9334
    %9400 = vmatprep.subr.bf16.mxu0 %v9337
    %9401 = vmatpush1.bf16.msra.mxu0 %v9336
    %9402 = vmatprep.subr.bf16.mxu0 %v9339
    %9403 = vmatpush1.bf16.msra.mxu0 %v9338
    %9404 = vmatprep.subr.bf16.mxu0 %v9341
    %9405 = vmatpush1.bf16.msra.mxu0 %v9340
    %9406 = vmatprep.subr.bf16.mxu0 %v9343
    %9407 = vmatpush1.bf16.msra.mxu0 %v9342
    %9408 = vmatprep.subr.bf16.mxu0 %v9345
    %9409 = vmatpush1.bf16.msra.mxu0 %v9344
    %9410 = vmatprep.subr.bf16.mxu0 %v9347
    %9411 = vmatpush1.bf16.msra.mxu0 %v9346
    %9412 = vmatprep.subr.bf16.mxu0 %v9349
    %9413 = vmatpush1.bf16.msra.mxu0 %v9348
    %9414 = vmatprep.subr.bf16.mxu0 %v9351
    %9415 = vmatpush1.bf16.msra.mxu0 %v9350
    %9416 = vmatprep.subr.bf16.mxu0 %v9353
    %9417 = vmatpush1.bf16.msra.mxu0 %v9352
    %9418 = vmatprep.mubr.bf16.mxu0 %v9193
    %9419 = vmatmul.mubr.bf16.gmra.mrb[0].mxu0 %v9192
    %v9420 = vpop.f32.mrb[0].mxu0
    %v9421 = vadd.f32 0.0, %v9420
    %v9422 = vpop.f32.mrb[0].mxu0
    %v9423 = vadd.f32 0.0, %v9422
    %v9424 = vpop.f32.mrb[0].mxu0
    %v9425 = vpop.f32.mrb[0].mxu0
    %9426 = vdwg.mxu0
    %v9747 = vunpack.c.l.b16 %v8872
    %v9748 = vunpack.c.h.b16 %v8872
    %v9749 = vunpack.c.l.b16 %v8873
    %v9750 = vunpack.c.h.b16 %v8873
    %v9751 = vunpack.c.l.b16 %v8874
    %v9752 = vunpack.c.h.b16 %v8874
    %v9753 = vunpack.c.l.b16 %v8875
    %v9754 = vunpack.c.h.b16 %v8875
    %v9755 = vunpack.c.l.b16 %v8876
    %v9756 = vunpack.c.h.b16 %v8876
    %v9757 = vunpack.c.l.b16 %v8877
    %v9758 = vunpack.c.h.b16 %v8877
    %v9759 = vunpack.c.l.b16 %v8878
    %v9760 = vunpack.c.h.b16 %v8878
    %v9761 = vunpack.c.l.b16 %v8879
    %v9762 = vunpack.c.h.b16 %v8879
    %v9763 = vunpack.c.l.b16 %v8880
    %v9764 = vunpack.c.h.b16 %v8880
    %v9765 = vunpack.c.l.b16 %v8881
    %v9766 = vunpack.c.h.b16 %v8881
    %v9767 = vunpack.c.l.b16 %v8882
    %v9768 = vunpack.c.h.b16 %v8882
    %v9769 = vunpack.c.l.b16 %v8883
    %v9770 = vunpack.c.h.b16 %v8883
    %v9771 = vunpack.c.l.b16 %v8884
    %v9772 = vunpack.c.h.b16 %v8884
    %v9773 = vunpack.c.l.b16 %v8885
    %v9774 = vunpack.c.h.b16 %v8885
    %v9775 = vunpack.c.l.b16 %v8886
    %v9776 = vunpack.c.h.b16 %v8886
    %v9777 = vunpack.c.l.b16 %v8887
    %v9778 = vunpack.c.h.b16 %v8887
    %v9779 = vunpack.c.l.b16 %v8888
    %v9780 = vunpack.c.h.b16 %v8888
    %v9781 = vunpack.c.l.b16 %v8889
    %v9782 = vunpack.c.h.b16 %v8889
    %v9783 = vunpack.c.l.b16 %v8890
    %v9784 = vunpack.c.h.b16 %v8890
    %v9785 = vunpack.c.l.b16 %v8891
    %v9786 = vunpack.c.h.b16 %v8891
    %v9787 = vunpack.c.l.b16 %v8892
    %v9788 = vunpack.c.h.b16 %v8892
    %v9789 = vunpack.c.l.b16 %v8893
    %v9790 = vunpack.c.h.b16 %v8893
    %v9791 = vunpack.c.l.b16 %v8894
    %v9792 = vunpack.c.h.b16 %v8894
    %v9793 = vunpack.c.l.b16 %v8895
    %v9794 = vunpack.c.h.b16 %v8895
    %v9795 = vunpack.c.l.b16 %v8896
    %v9796 = vunpack.c.h.b16 %v8896
    %v9797 = vunpack.c.l.b16 %v8897
    %v9798 = vunpack.c.h.b16 %v8897
    %v9799 = vunpack.c.l.b16 %v8898
    %v9800 = vunpack.c.h.b16 %v8898
    %v9801 = vunpack.c.l.b16 %v8899
    %v9802 = vunpack.c.h.b16 %v8899
    %v9803 = vunpack.c.l.b16 %v8900
    %v9804 = vunpack.c.h.b16 %v8900
    %v9805 = vunpack.c.l.b16 %v8901
    %v9806 = vunpack.c.h.b16 %v8901
    %v9807 = vunpack.c.l.b16 %v8902
    %v9808 = vunpack.c.h.b16 %v8902
    %v9809 = vunpack.c.l.b16 %v8903
    %v9810 = vunpack.c.h.b16 %v8903
    %v9811 = vunpack.c.l.b16 %v8904
    %v9812 = vunpack.c.h.b16 %v8904
    %v9813 = vunpack.c.l.b16 %v8905
    %v9814 = vunpack.c.h.b16 %v8905
    %v9815 = vunpack.c.l.b16 %v8906
    %v9816 = vunpack.c.h.b16 %v8906
    %v9817 = vunpack.c.l.b16 %v8907
    %v9818 = vunpack.c.h.b16 %v8907
    %v9819 = vunpack.c.l.b16 %v8908
    %v9820 = vunpack.c.h.b16 %v8908
    %v9821 = vunpack.c.l.b16 %v8909
    %v9822 = vunpack.c.h.b16 %v8909
    %v9823 = vunpack.c.l.b16 %v8910
    %v9824 = vunpack.c.h.b16 %v8910
    %v9825 = vunpack.c.l.b16 %v8911
    %v9826 = vunpack.c.h.b16 %v8911
    %v9827 = vunpack.c.l.b16 %v8912
    %v9828 = vunpack.c.h.b16 %v8912
    %v9829 = vunpack.c.l.b16 %v8913
    %v9830 = vunpack.c.h.b16 %v8913
    %v9831 = vunpack.c.l.b16 %v8914
    %v9832 = vunpack.c.h.b16 %v8914
    %v9833 = vunpack.c.l.b16 %v8915
    %v9834 = vunpack.c.h.b16 %v8915
    %v9835 = vunpack.c.l.b16 %v8916
    %v9836 = vunpack.c.h.b16 %v8916
    %v9837 = vunpack.c.l.b16 %v8917
    %v9838 = vunpack.c.h.b16 %v8917
    %v9839 = vunpack.c.l.b16 %v8918
    %v9840 = vunpack.c.h.b16 %v8918
    %v9841 = vunpack.c.l.b16 %v8919
    %v9842 = vunpack.c.h.b16 %v8919
    %v9843 = vunpack.c.l.b16 %v8920
    %v9844 = vunpack.c.h.b16 %v8920
    %v9845 = vunpack.c.l.b16 %v8921
    %v9846 = vunpack.c.h.b16 %v8921
    %v9847 = vunpack.c.l.b16 %v8922
    %v9848 = vunpack.c.h.b16 %v8922
    %v9849 = vunpack.c.l.b16 %v8923
    %v9850 = vunpack.c.h.b16 %v8923
    %v9851 = vunpack.c.l.b16 %v8924
    %v9852 = vunpack.c.h.b16 %v8924
    %v9853 = vunpack.c.l.b16 %v8925
    %v9854 = vunpack.c.h.b16 %v8925
    %v9855 = vunpack.c.l.b16 %v8926
    %v9856 = vunpack.c.h.b16 %v8926
    %v9857 = vunpack.c.l.b16 %v8927
    %v9858 = vunpack.c.h.b16 %v8927
    %v9859 = vunpack.c.l.b16 %v8928
    %v9860 = vunpack.c.h.b16 %v8928
    %v9861 = vunpack.c.l.b16 %v8929
    %v9862 = vunpack.c.h.b16 %v8929
    %v9863 = vunpack.c.l.b16 %v8930
    %v9864 = vunpack.c.h.b16 %v8930
    %v9865 = vunpack.c.l.b16 %v8931
    %v9866 = vunpack.c.h.b16 %v8931
    %v9867 = vunpack.c.l.b16 %v8932
    %v9868 = vunpack.c.h.b16 %v8932
    %v9869 = vunpack.c.l.b16 %v8933
    %v9870 = vunpack.c.h.b16 %v8933
    %v9871 = vunpack.c.l.b16 %v8934
    %v9872 = vunpack.c.h.b16 %v8934
    %v9873 = vunpack.c.l.b16 %v8935
    %v9874 = vunpack.c.h.b16 %v8935
    %v9875 = vunpack.c.l.b16 %v8936
    %v9876 = vunpack.c.h.b16 %v8936
    %v9877 = vunpack.c.l.b16 %v8937
    %v9878 = vunpack.c.h.b16 %v8937
    %v9879 = vunpack.c.l.b16 %v8938
    %v9880 = vunpack.c.h.b16 %v8938
    %v9881 = vunpack.c.l.b16 %v8939
    %v9882 = vunpack.c.h.b16 %v8939
    %v9883 = vunpack.c.l.b16 %v8940
    %v9884 = vunpack.c.h.b16 %v8940
    %v9885 = vunpack.c.l.b16 %v8941
    %v9886 = vunpack.c.h.b16 %v8941
    %v9887 = vunpack.c.l.b16 %v8942
    %v9888 = vunpack.c.h.b16 %v8942
    %v9889 = vunpack.c.l.b16 %v8943
    %v9890 = vunpack.c.h.b16 %v8943
    %v9891 = vunpack.c.l.b16 %v8944
    %v9892 = vunpack.c.h.b16 %v8944
    %v9893 = vunpack.c.l.b16 %v8945
    %v9894 = vunpack.c.h.b16 %v8945
    %v9895 = vunpack.c.l.b16 %v8946
    %v9896 = vunpack.c.h.b16 %v8946
    %v9897 = vunpack.c.l.b16 %v8947
    %v9898 = vunpack.c.h.b16 %v8947
    %v9899 = vunpack.c.l.b16 %v8948
    %v9900 = vunpack.c.h.b16 %v8948
    %v9901 = vunpack.c.l.b16 %v8949
    %v9902 = vunpack.c.h.b16 %v8949
    %v9903 = vunpack.c.l.b16 %v8950
    %v9904 = vunpack.c.h.b16 %v8950
    %v9905 = vunpack.c.l.b16 %v8951
    %v9906 = vunpack.c.h.b16 %v8951
    %v9907 = vunpack.c.l.b16 %v8952
    %v9908 = vunpack.c.h.b16 %v8952
    %v9909 = vunpack.c.l.b16 %v8953
    %v9910 = vunpack.c.h.b16 %v8953
    %v9911 = vunpack.c.l.b16 %v8954
    %v9912 = vunpack.c.h.b16 %v8954
    %v9913 = vunpack.c.l.b16 %v8955
    %v9914 = vunpack.c.h.b16 %v8955
    %v9915 = vunpack.c.l.b16 %v8956
    %v9916 = vunpack.c.h.b16 %v8956
    %v9917 = vunpack.c.l.b16 %v8957
    %v9918 = vunpack.c.h.b16 %v8957
    %v9919 = vunpack.c.l.b16 %v8958
    %v9920 = vunpack.c.h.b16 %v8958
    %v9921 = vunpack.c.l.b16 %v8959
    %v9922 = vunpack.c.h.b16 %v8959
    %v9923 = vunpack.c.l.b16 %v8960
    %v9924 = vunpack.c.h.b16 %v8960
    %v9925 = vunpack.c.l.b16 %v8961
    %v9926 = vunpack.c.h.b16 %v8961
    %v9927 = vunpack.c.l.b16 %v8962
    %v9928 = vunpack.c.h.b16 %v8962
    %v9929 = vunpack.c.l.b16 %v8963
    %v9930 = vunpack.c.h.b16 %v8963
    %v9931 = vunpack.c.l.b16 %v8964
    %v9932 = vunpack.c.h.b16 %v8964
    %v9933 = vunpack.c.l.b16 %v8965
    %v9934 = vunpack.c.h.b16 %v8965
    %v9935 = vunpack.c.l.b16 %v8966
    %v9936 = vunpack.c.h.b16 %v8966
    %v9937 = vunpack.c.l.b16 %v8967
    %v9938 = vunpack.c.h.b16 %v8967
    %v9939 = vunpack.c.l.b16 %v8968
    %v9940 = vunpack.c.h.b16 %v8968
    %v9941 = vunpack.c.l.b16 %v8969
    %v9942 = vunpack.c.h.b16 %v8969
    %v9943 = vunpack.c.l.b16 %v8970
    %v9944 = vunpack.c.h.b16 %v8970
    %v9945 = vunpack.c.l.b16 %v8971
    %v9946 = vunpack.c.h.b16 %v8971
    %v9947 = vunpack.c.l.b16 %v8972
    %v9948 = vunpack.c.h.b16 %v8972
    %v9949 = vunpack.c.l.b16 %v8973
    %v9950 = vunpack.c.h.b16 %v8973
    %v9951 = vunpack.c.l.b16 %v8974
    %v9952 = vunpack.c.h.b16 %v8974
    %v9953 = vunpack.c.l.b16 %v8975
    %v9954 = vunpack.c.h.b16 %v8975
    %v9955 = vunpack.c.l.b16 %v8976
    %v9956 = vunpack.c.h.b16 %v8976
    %v9957 = vunpack.c.l.b16 %v8977
    %v9958 = vunpack.c.h.b16 %v8977
    %v9959 = vunpack.c.l.b16 %v8978
    %v9960 = vunpack.c.h.b16 %v8978
    %v9961 = vunpack.c.l.b16 %v8979
    %v9962 = vunpack.c.h.b16 %v8979
    %v9963 = vunpack.c.l.b16 %v8980
    %v9964 = vunpack.c.h.b16 %v8980
    %v9965 = vunpack.c.l.b16 %v8981
    %v9966 = vunpack.c.h.b16 %v8981
    %v9967 = vunpack.c.l.b16 %v8982
    %v9968 = vunpack.c.h.b16 %v8982
    %v9969 = vunpack.c.l.b16 %v8983
    %v9970 = vunpack.c.h.b16 %v8983
    %v9971 = vunpack.c.l.b16 %v8984
    %v9972 = vunpack.c.h.b16 %v8984
    %v9973 = vunpack.c.l.b16 %v8985
    %v9974 = vunpack.c.h.b16 %v8985
    %v9975 = vunpack.c.l.b16 %v8986
    %v9976 = vunpack.c.h.b16 %v8986
    %v9977 = vunpack.c.l.b16 %v8987
    %v9978 = vunpack.c.h.b16 %v8987
    %v9979 = vunpack.c.l.b16 %v8988
    %v9980 = vunpack.c.h.b16 %v8988
    %v9981 = vunpack.c.l.b16 %v8989
    %v9982 = vunpack.c.h.b16 %v8989
    %v9983 = vunpack.c.l.b16 %v8990
    %v9984 = vunpack.c.h.b16 %v8990
    %v9985 = vunpack.c.l.b16 %v8991
    %v9986 = vunpack.c.h.b16 %v8991
    %v9987 = vunpack.c.l.b16 %v8992
    %v9988 = vunpack.c.h.b16 %v8992
    %v9989 = vunpack.c.l.b16 %v8993
    %v9990 = vunpack.c.h.b16 %v8993
    %v9991 = vunpack.c.l.b16 %v8994
    %v9992 = vunpack.c.h.b16 %v8994
    %v9993 = vunpack.c.l.b16 %v8995
    %v9994 = vunpack.c.h.b16 %v8995
    %v9995 = vunpack.c.l.b16 %v8996
    %v9996 = vunpack.c.h.b16 %v8996
    %v9997 = vunpack.c.l.b16 %v8997
    %v9998 = vunpack.c.h.b16 %v8997
    %v9999 = vunpack.c.l.b16 %v8998
    %v10000 = vunpack.c.h.b16 %v8998
    %v10001 = vunpack.c.l.b16 %v8999
    %v10002 = vunpack.c.h.b16 %v8999
    %v10003 = vunpack.c.l.b16 %v9000
    %v10004 = vunpack.c.h.b16 %v9000
    %v10005 = vunpack.c.l.b16 %v9001
    %v10006 = vunpack.c.h.b16 %v9001
    %v10007 = vunpack.c.l.b16 %v9002
    %v10008 = vunpack.c.h.b16 %v9002
    %v10009 = vunpack.c.l.b16 %v9003
    %v10010 = vunpack.c.h.b16 %v9003
    %v10011 = vunpack.c.l.b16 %v9004
    %v10012 = vunpack.c.h.b16 %v9004
    %v10013 = vunpack.c.l.b16 %v9005
    %v10014 = vunpack.c.h.b16 %v9005
    %v10015 = vunpack.c.l.b16 %v9006
    %v10016 = vunpack.c.h.b16 %v9006
    %v10017 = vunpack.c.l.b16 %v9007
    %v10018 = vunpack.c.h.b16 %v9007
    %v10019 = vunpack.c.l.b16 %v9008
    %v10020 = vunpack.c.h.b16 %v9008
    %v10021 = vunpack.c.l.b16 %v9009
    %v10022 = vunpack.c.h.b16 %v9009
    %v10023 = vunpack.c.l.b16 %v9010
    %v10024 = vunpack.c.h.b16 %v9010
    %v10025 = vunpack.c.l.b16 %v9011
    %v10026 = vunpack.c.h.b16 %v9011
    %v10027 = vunpack.c.l.b16 %v9012
    %v10028 = vunpack.c.h.b16 %v9012
    %v10029 = vunpack.c.l.b16 %v9013
    %v10030 = vunpack.c.h.b16 %v9013
    %v10031 = vunpack.c.l.b16 %v9014
    %v10032 = vunpack.c.h.b16 %v9014
    %v10033 = vunpack.c.l.b16 %v9015
    %v10034 = vunpack.c.h.b16 %v9015
    %v10035 = vunpack.c.l.b16 %v9016
    %v10036 = vunpack.c.h.b16 %v9016
    %v10037 = vunpack.c.l.b16 %v9017
    %v10038 = vunpack.c.h.b16 %v9017
    %v10039 = vunpack.c.l.b16 %v9018
    %v10040 = vunpack.c.h.b16 %v9018
    %v10041 = vunpack.c.l.b16 %v9019
    %v10042 = vunpack.c.h.b16 %v9019
    %v10043 = vunpack.c.l.b16 %v9020
    %v10044 = vunpack.c.h.b16 %v9020
    %v10045 = vunpack.c.l.b16 %v9021
    %v10046 = vunpack.c.h.b16 %v9021
    %v10047 = vunpack.c.l.b16 %v9022
    %v10048 = vunpack.c.h.b16 %v9022
    %v10049 = vunpack.c.l.b16 %v9023
    %v10050 = vunpack.c.h.b16 %v9023
    %v10051 = vunpack.c.l.b16 %v9024
    %v10052 = vunpack.c.h.b16 %v9024
    %v10053 = vunpack.c.l.b16 %v9025
    %v10054 = vunpack.c.h.b16 %v9025
    %v10055 = vunpack.c.l.b16 %v9026
    %v10056 = vunpack.c.h.b16 %v9026
    %v10057 = vunpack.c.l.b16 %v9027
    %v10058 = vunpack.c.h.b16 %v9027
    %v10059 = vunpack.c.l.b16 %v9028
    %v10060 = vunpack.c.h.b16 %v9028
    %v10061 = vunpack.c.l.b16 %v9029
    %v10062 = vunpack.c.h.b16 %v9029
    %v10063 = vunpack.c.l.b16 %v9030
    %v10064 = vunpack.c.h.b16 %v9030
    %v10065 = vunpack.c.l.b16 %v9031
    %v10066 = vunpack.c.h.b16 %v9031
    %v10067 = vunpack.c.l.b16 %v9032
    %v10068 = vunpack.c.h.b16 %v9032
    %v10069 = vunpack.c.l.b16 %v9033
    %v10070 = vunpack.c.h.b16 %v9033
    %v10071 = vunpack.c.l.b16 %v9034
    %v10072 = vunpack.c.h.b16 %v9034
    %v10073 = vunpack.c.l.b16 %v9035
    %v10074 = vunpack.c.h.b16 %v9035
    %v10075 = vunpack.c.l.b16 %v9036
    %v10076 = vunpack.c.h.b16 %v9036
    %v10077 = vunpack.c.l.b16 %v9037
    %v10078 = vunpack.c.h.b16 %v9037
    %v10079 = vunpack.c.l.b16 %v9038
    %v10080 = vunpack.c.h.b16 %v9038
    %v10081 = vunpack.c.l.b16 %v9039
    %v10082 = vunpack.c.h.b16 %v9039
    %v10083 = vunpack.c.l.b16 %v9040
    %v10084 = vunpack.c.h.b16 %v9040
    %v10085 = vunpack.c.l.b16 %v9041
    %v10086 = vunpack.c.h.b16 %v9041
    %v10087 = vunpack.c.l.b16 %v9042
    %v10088 = vunpack.c.h.b16 %v9042
    %v10089 = vunpack.c.l.b16 %v9043
    %v10090 = vunpack.c.h.b16 %v9043
    %v10091 = vunpack.c.l.b16 %v9044
    %v10092 = vunpack.c.h.b16 %v9044
    %v10093 = vunpack.c.l.b16 %v9045
    %v10094 = vunpack.c.h.b16 %v9045
    %v10095 = vunpack.c.l.b16 %v9046
    %v10096 = vunpack.c.h.b16 %v9046
    %v10097 = vunpack.c.l.b16 %v9047
    %v10098 = vunpack.c.h.b16 %v9047
    %v10099 = vunpack.c.l.b16 %v9048
    %v10100 = vunpack.c.h.b16 %v9048
    %v10101 = vunpack.c.l.b16 %v9049
    %v10102 = vunpack.c.h.b16 %v9049
    %v10103 = vunpack.c.l.b16 %v9050
    %v10104 = vunpack.c.h.b16 %v9050
    %v10105 = vunpack.c.l.b16 %v9051
    %v10106 = vunpack.c.h.b16 %v9051
    %v10107 = vunpack.c.l.b16 %v9052
    %v10108 = vunpack.c.h.b16 %v9052
    %v10109 = vunpack.c.l.b16 %v9053
    %v10110 = vunpack.c.h.b16 %v9053
    %v10111 = vunpack.c.l.b16 %v9054
    %v10112 = vunpack.c.h.b16 %v9054
    %v10113 = vunpack.c.l.b16 %v9055
    %v10114 = vunpack.c.h.b16 %v9055
    %v10115 = vunpack.c.l.b16 %v9056
    %v10116 = vunpack.c.h.b16 %v9056
    %v10117 = vunpack.c.l.b16 %v9057
    %v10118 = vunpack.c.h.b16 %v9057
    %v10119 = vunpack.c.l.b16 %v9058
    %v10120 = vunpack.c.h.b16 %v9058
    %v10121 = vunpack.c.l.b16 %v9059
    %v10122 = vunpack.c.h.b16 %v9059
    %v10123 = vunpack.c.l.b16 %v9060
    %v10124 = vunpack.c.h.b16 %v9060
    %v10125 = vunpack.c.l.b16 %v9061
    %v10126 = vunpack.c.h.b16 %v9061
    %v10127 = vunpack.c.l.b16 %v9062
    %v10128 = vunpack.c.h.b16 %v9062
    %v10129 = vunpack.c.l.b16 %v9063
    %v10130 = vunpack.c.h.b16 %v9063
    %v10131 = vunpack.c.l.b16 %v9064
    %v10132 = vunpack.c.h.b16 %v9064
    %v10133 = vunpack.c.l.b16 %v9065
    %v10134 = vunpack.c.h.b16 %v9065
    %v10135 = vunpack.c.l.b16 %v9066
    %v10136 = vunpack.c.h.b16 %v9066
    %v10137 = vunpack.c.l.b16 %v9067
    %v10138 = vunpack.c.h.b16 %v9067
    %v10139 = vunpack.c.l.b16 %v9068
    %v10140 = vunpack.c.h.b16 %v9068
    %v10141 = vunpack.c.l.b16 %v9069
    %v10142 = vunpack.c.h.b16 %v9069
    %v10143 = vunpack.c.l.b16 %v9070
    %v10144 = vunpack.c.h.b16 %v9070
    %v10145 = vunpack.c.l.b16 %v9071
    %v10146 = vunpack.c.h.b16 %v9071
    %v10147 = vunpack.c.l.b16 %v9072
    %v10148 = vunpack.c.h.b16 %v9072
    %v10149 = vunpack.c.l.b16 %v9073
    %v10150 = vunpack.c.h.b16 %v9073
    %v10151 = vunpack.c.l.b16 %v9074
    %v10152 = vunpack.c.h.b16 %v9074
    %v10153 = vunpack.c.l.b16 %v9075
    %v10154 = vunpack.c.h.b16 %v9075
    %v10155 = vunpack.c.l.b16 %v9076
    %v10156 = vunpack.c.h.b16 %v9076
    %v10157 = vunpack.c.l.b16 %v9077
    %v10158 = vunpack.c.h.b16 %v9077
    %v10159 = vunpack.c.l.b16 %v9078
    %v10160 = vunpack.c.h.b16 %v9078
    %v10161 = vunpack.c.l.b16 %v9079
    %v10162 = vunpack.c.h.b16 %v9079
    %v10163 = vunpack.c.l.b16 %v9080
    %v10164 = vunpack.c.h.b16 %v9080
    %v10165 = vunpack.c.l.b16 %v9081
    %v10166 = vunpack.c.h.b16 %v9081
    %v10167 = vunpack.c.l.b16 %v9082
    %v10168 = vunpack.c.h.b16 %v9082
    %v10169 = vunpack.c.l.b16 %v9083
    %v10170 = vunpack.c.h.b16 %v9083
    %v10171 = vunpack.c.l.b16 %v9084
    %v10172 = vunpack.c.h.b16 %v9084
    %v10173 = vunpack.c.l.b16 %v9085
    %v10174 = vunpack.c.h.b16 %v9085
    %v10175 = vunpack.c.l.b16 %v9086
    %v10176 = vunpack.c.h.b16 %v9086
    %v10177 = vunpack.c.l.b16 %v9087
    %v10178 = vunpack.c.h.b16 %v9087
    %v10179 = vunpack.c.l.b16 %v9088
    %v10180 = vunpack.c.h.b16 %v9088
    %v10181 = vunpack.c.l.b16 %v9089
    %v10182 = vunpack.c.h.b16 %v9089
    %v10183 = vunpack.c.l.b16 %v9090
    %v10184 = vunpack.c.h.b16 %v9090
    %v10185 = vunpack.c.l.b16 %v9091
    %v10186 = vunpack.c.h.b16 %v9091
    %v10187 = vunpack.c.l.b16 %v9092
    %v10188 = vunpack.c.h.b16 %v9092
    %v10189 = vunpack.c.l.b16 %v9093
    %v10190 = vunpack.c.h.b16 %v9093
    %v10191 = vunpack.c.l.b16 %v9094
    %v10192 = vunpack.c.h.b16 %v9094
    %v10193 = vunpack.c.l.b16 %v9095
    %v10194 = vunpack.c.h.b16 %v9095
    %v10195 = vunpack.c.l.b16 %v9096
    %v10196 = vunpack.c.h.b16 %v9096
    %v10197 = vunpack.c.l.b16 %v9097
    %v10198 = vunpack.c.h.b16 %v9097
    %v10199 = vunpack.c.l.b16 %v9098
    %v10200 = vunpack.c.h.b16 %v9098
    %v10201 = vunpack.c.l.b16 %v9099
    %v10202 = vunpack.c.h.b16 %v9099
    %v10203 = vunpack.c.l.b16 %v9100
    %v10204 = vunpack.c.h.b16 %v9100
    %v10205 = vunpack.c.l.b16 %v9101
    %v10206 = vunpack.c.h.b16 %v9101
    %v10207 = vunpack.c.l.b16 %v9102
    %v10208 = vunpack.c.h.b16 %v9102
    %v10209 = vunpack.c.l.b16 %v9103
    %v10210 = vunpack.c.h.b16 %v9103
    %v10211 = vunpack.c.l.b16 %v9104
    %v10212 = vunpack.c.h.b16 %v9104
    %v10213 = vunpack.c.l.b16 %v9105
    %v10214 = vunpack.c.h.b16 %v9105
    %v10215 = vunpack.c.l.b16 %v9106
    %v10216 = vunpack.c.h.b16 %v9106
    %v10217 = vunpack.c.l.b16 %v9107
    %v10218 = vunpack.c.h.b16 %v9107
    %v10219 = vunpack.c.l.b16 %v9108
    %v10220 = vunpack.c.h.b16 %v9108
    %v10221 = vunpack.c.l.b16 %v9109
    %v10222 = vunpack.c.h.b16 %v9109
    %v10223 = vunpack.c.l.b16 %v9110
    %v10224 = vunpack.c.h.b16 %v9110
    %v10225 = vunpack.c.l.b16 %v9111
    %v10226 = vunpack.c.h.b16 %v9111
    %v10227 = vunpack.c.l.b16 %v9112
    %v10228 = vunpack.c.h.b16 %v9112
    %v10229 = vunpack.c.l.b16 %v9113
    %v10230 = vunpack.c.h.b16 %v9113
    %v10231 = vunpack.c.l.b16 %v9114
    %v10232 = vunpack.c.h.b16 %v9114
    %v10233 = vunpack.c.l.b16 %v9115
    %v10234 = vunpack.c.h.b16 %v9115
    %v10235 = vunpack.c.l.b16 %v9116
    %v10236 = vunpack.c.h.b16 %v9116
    %v10237 = vunpack.c.l.b16 %v9117
    %v10238 = vunpack.c.h.b16 %v9117
    %v10239 = vunpack.c.l.b16 %v9118
    %v10240 = vunpack.c.h.b16 %v9118
    %v10241 = vunpack.c.l.b16 %v9119
    %v10242 = vunpack.c.h.b16 %v9119
    %v10243 = vunpack.c.l.b16 %v9120
    %v10244 = vunpack.c.h.b16 %v9120
    %v10245 = vunpack.c.l.b16 %v9121
    %v10246 = vunpack.c.h.b16 %v9121
    %v10247 = vunpack.c.l.b16 %v9122
    %v10248 = vunpack.c.h.b16 %v9122
    %v10249 = vunpack.c.l.b16 %v9123
    %v10250 = vunpack.c.h.b16 %v9123
    %v10251 = vunpack.c.l.b16 %v9124
    %v10252 = vunpack.c.h.b16 %v9124
    %v10253 = vunpack.c.l.b16 %v9125
    %v10254 = vunpack.c.h.b16 %v9125
    %v10255 = vunpack.c.l.b16 %v9126
    %v10256 = vunpack.c.h.b16 %v9126
    %v10257 = vunpack.c.l.b16 %v9127
    %v10258 = vunpack.c.h.b16 %v9127
    %v10259 = vunpack.c.l.b16 %v9128
    %v10260 = vunpack.c.h.b16 %v9128
    %v10261 = vunpack.c.l.b16 %v9129
    %v10262 = vunpack.c.h.b16 %v9129
    %v10263 = vunpack.c.l.b16 %v9130
    %v10264 = vunpack.c.h.b16 %v9130
    %v10265 = vunpack.c.l.b16 %v9131
    %v10266 = vunpack.c.h.b16 %v9131
    %v10267 = vunpack.c.l.b16 %v9132
    %v10268 = vunpack.c.h.b16 %v9132
    %v10269 = vunpack.c.l.b16 %v9133
    %v10270 = vunpack.c.h.b16 %v9133
    %v10271 = vunpack.c.l.b16 %v9134
    %v10272 = vunpack.c.h.b16 %v9134
    %v10273 = vunpack.c.l.b16 %v9135
    %v10274 = vunpack.c.h.b16 %v9135
    %v10275 = vunpack.c.l.b16 %v9136
    %v10276 = vunpack.c.h.b16 %v9136
    %v10277 = vunpack.c.l.b16 %v9137
    %v10278 = vunpack.c.h.b16 %v9137
    %v10279 = vunpack.c.l.b16 %v9138
    %v10280 = vunpack.c.h.b16 %v9138
    %v10281 = vunpack.c.l.b16 %v9139
    %v10282 = vunpack.c.h.b16 %v9139
    %v10283 = vunpack.c.l.b16 %v9140
    %v10284 = vunpack.c.h.b16 %v9140
    %v10285 = vunpack.c.l.b16 %v9141
    %v10286 = vunpack.c.h.b16 %v9141
    %v10287 = vunpack.c.l.b16 %v9142
    %v10288 = vunpack.c.h.b16 %v9142
    %v10289 = vunpack.c.l.b16 %v9143
    %v10290 = vunpack.c.h.b16 %v9143
    %v10291 = vunpack.c.l.b16 %v9144
    %v10292 = vunpack.c.h.b16 %v9144
    %v10293 = vunpack.c.l.b16 %v9145
    %v10294 = vunpack.c.h.b16 %v9145
    %v10295 = vunpack.c.l.b16 %v9146
    %v10296 = vunpack.c.h.b16 %v9146
    %v10297 = vunpack.c.l.b16 %v9147
    %v10298 = vunpack.c.h.b16 %v9147
    %v10299 = vunpack.c.l.b16 %v9148
    %v10300 = vunpack.c.h.b16 %v9148
    %v10301 = vunpack.c.l.b16 %v9149
    %v10302 = vunpack.c.h.b16 %v9149
    %v10303 = vunpack.c.l.b16 %v9150
    %v10304 = vunpack.c.h.b16 %v9150
    %v10305 = vunpack.c.l.b16 %v9151
    %v10306 = vunpack.c.h.b16 %v9151
    %v10307 = vunpack.c.l.b16 %v9152
    %v10308 = vunpack.c.h.b16 %v9152
    %v10309 = vunpack.c.l.b16 %v9153
    %v10310 = vunpack.c.h.b16 %v9153
    %v10311 = vunpack.c.l.b16 %v9154
    %v10312 = vunpack.c.h.b16 %v9154
    %v10313 = vunpack.c.l.b16 %v9155
    %v10314 = vunpack.c.h.b16 %v9155
    %v10315 = vunpack.c.l.b16 %v9156
    %v10316 = vunpack.c.h.b16 %v9156
    %v10317 = vunpack.c.l.b16 %v9157
    %v10318 = vunpack.c.h.b16 %v9157
    %v10319 = vunpack.c.l.b16 %v9158
    %v10320 = vunpack.c.h.b16 %v9158
    %v10321 = vunpack.c.l.b16 %v9159
    %v10322 = vunpack.c.h.b16 %v9159
    %v10323 = vunpack.c.l.b16 %v9160
    %v10324 = vunpack.c.h.b16 %v9160
    %v10325 = vunpack.c.l.b16 %v9161
    %v10326 = vunpack.c.h.b16 %v9161
    %v10327 = vunpack.c.l.b16 %v9162
    %v10328 = vunpack.c.h.b16 %v9162
    %v10329 = vunpack.c.l.b16 %v9163
    %v10330 = vunpack.c.h.b16 %v9163
    %v10331 = vunpack.c.l.b16 %v9164
    %v10332 = vunpack.c.h.b16 %v9164
    %v10333 = vunpack.c.l.b16 %v9165
    %v10334 = vunpack.c.h.b16 %v9165
    %v10335 = vunpack.c.l.b16 %v9166
    %v10336 = vunpack.c.h.b16 %v9166
    %v10337 = vunpack.c.l.b16 %v9167
    %v10338 = vunpack.c.h.b16 %v9167
    %v10339 = vunpack.c.l.b16 %v9168
    %v10340 = vunpack.c.h.b16 %v9168
    %v10341 = vunpack.c.l.b16 %v9169
    %v10342 = vunpack.c.h.b16 %v9169
    %v10343 = vunpack.c.l.b16 %v9170
    %v10344 = vunpack.c.h.b16 %v9170
    %v10345 = vunpack.c.l.b16 %v9171
    %v10346 = vunpack.c.h.b16 %v9171
    %v10347 = vunpack.c.l.b16 %v9172
    %v10348 = vunpack.c.h.b16 %v9172
    %v10349 = vunpack.c.l.b16 %v9173
    %v10350 = vunpack.c.h.b16 %v9173
    %v10351 = vunpack.c.l.b16 %v9174
    %v10352 = vunpack.c.h.b16 %v9174
    %v10353 = vunpack.c.l.b16 %v9175
    %v10354 = vunpack.c.h.b16 %v9175
    %v10355 = vunpack.c.l.b16 %v9176
    %v10356 = vunpack.c.h.b16 %v9176
    %v10357 = vunpack.c.l.b16 %v9177
    %v10358 = vunpack.c.h.b16 %v9177
    %v10359 = vunpack.c.l.b16 %v9178
    %v10360 = vunpack.c.h.b16 %v9178
    %v10361 = vunpack.c.l.b16 %v9179
    %v10362 = vunpack.c.h.b16 %v9179
    %v10363 = vunpack.c.l.b16 %v9180
    %v10364 = vunpack.c.h.b16 %v9180
    %v10365 = vunpack.c.l.b16 %v9181
    %v10366 = vunpack.c.h.b16 %v9181
    %v10367 = vunpack.c.l.b16 %v9182
    %v10368 = vunpack.c.h.b16 %v9182
    %v10369 = vunpack.c.l.b16 %v9183
    %v10370 = vunpack.c.h.b16 %v9183
    %v10371 = vunpack.c.l.b16 %v9184
    %v10372 = vunpack.c.h.b16 %v9184
    %v10373 = vunpack.c.l.b16 %v9185
    %v10374 = vunpack.c.h.b16 %v9185
    %v10375 = vunpack.c.l.b16 %v9186
    %v10376 = vunpack.c.h.b16 %v9186
    %v10377 = vunpack.c.l.b16 %v9187
    %v10378 = vunpack.c.h.b16 %v9187
    %v10379 = vunpack.c.l.b16 %v9188
    %v10380 = vunpack.c.h.b16 %v9188
    %v10381 = vunpack.c.l.b16 %v9189
    %v10382 = vunpack.c.h.b16 %v9189
    %v10383 = vunpack.c.l.b16 %v9190
    %v10384 = vunpack.c.h.b16 %v9190
    %v10385 = vunpack.c.l.b16 %v9191
    %v10386 = vunpack.c.h.b16 %v9191
    %v10387 = vpack.c.b16 %v9749, %v9747
    %v10388 = vpack.c.b16 %v9750, %v9748
    %v10389 = vpack.c.b16 %v9753, %v9751
    %v10390 = vpack.c.b16 %v9754, %v9752
    %v10391 = vpack.c.b16 %v9757, %v9755
    %v10392 = vpack.c.b16 %v9758, %v9756
    %v10393 = vpack.c.b16 %v9761, %v9759
    %v10394 = vpack.c.b16 %v9762, %v9760
    %v10395 = vpack.c.b16 %v9765, %v9763
    %v10396 = vpack.c.b16 %v9766, %v9764
    %v10397 = vpack.c.b16 %v9769, %v9767
    %v10398 = vpack.c.b16 %v9770, %v9768
    %v10399 = vpack.c.b16 %v9773, %v9771
    %v10400 = vpack.c.b16 %v9774, %v9772
    %v10401 = vpack.c.b16 %v9777, %v9775
    %v10402 = vpack.c.b16 %v9778, %v9776
    %v10403 = vpack.c.b16 %v9781, %v9779
    %v10404 = vpack.c.b16 %v9782, %v9780
    %v10405 = vpack.c.b16 %v9785, %v9783
    %v10406 = vpack.c.b16 %v9786, %v9784
    %v10407 = vpack.c.b16 %v9789, %v9787
    %v10408 = vpack.c.b16 %v9790, %v9788
    %v10409 = vpack.c.b16 %v9793, %v9791
    %v10410 = vpack.c.b16 %v9794, %v9792
    %v10411 = vpack.c.b16 %v9797, %v9795
    %v10412 = vpack.c.b16 %v9798, %v9796
    %v10413 = vpack.c.b16 %v9801, %v9799
    %v10414 = vpack.c.b16 %v9802, %v9800
    %v10415 = vpack.c.b16 %v9805, %v9803
    %v10416 = vpack.c.b16 %v9806, %v9804
    %v10417 = vpack.c.b16 %v9809, %v9807
    %v10418 = vpack.c.b16 %v9810, %v9808
    %v10419 = vpack.c.b16 %v9813, %v9811
    %v10420 = vpack.c.b16 %v9814, %v9812
    %v10421 = vpack.c.b16 %v9817, %v9815
    %v10422 = vpack.c.b16 %v9818, %v9816
    %v10423 = vpack.c.b16 %v9821, %v9819
    %v10424 = vpack.c.b16 %v9822, %v9820
    %v10425 = vpack.c.b16 %v9825, %v9823
    %v10426 = vpack.c.b16 %v9826, %v9824
    %v10427 = vpack.c.b16 %v9829, %v9827
    %v10428 = vpack.c.b16 %v9830, %v9828
    %v10429 = vpack.c.b16 %v9833, %v9831
    %v10430 = vpack.c.b16 %v9834, %v9832
    %v10431 = vpack.c.b16 %v9837, %v9835
    %v10432 = vpack.c.b16 %v9838, %v9836
    %v10433 = vpack.c.b16 %v9841, %v9839
    %v10434 = vpack.c.b16 %v9842, %v9840
    %v10435 = vpack.c.b16 %v9845, %v9843
    %v10436 = vpack.c.b16 %v9846, %v9844
    %v10437 = vpack.c.b16 %v9849, %v9847
    %v10438 = vpack.c.b16 %v9850, %v9848
    %v10439 = vpack.c.b16 %v9853, %v9851
    %v10440 = vpack.c.b16 %v9854, %v9852
    %v10441 = vpack.c.b16 %v9857, %v9855
    %v10442 = vpack.c.b16 %v9858, %v9856
    %v10443 = vpack.c.b16 %v9861, %v9859
    %v10444 = vpack.c.b16 %v9862, %v9860
    %v10445 = vpack.c.b16 %v9865, %v9863
    %v10446 = vpack.c.b16 %v9866, %v9864
    %v10447 = vpack.c.b16 %v9869, %v9867
    %v10448 = vpack.c.b16 %v9870, %v9868
    %v10449 = vpack.c.b16 %v9873, %v9871
    %v10450 = vpack.c.b16 %v9874, %v9872
    %v10451 = vpack.c.b16 %v9877, %v9875
    %v10452 = vpack.c.b16 %v9878, %v9876
    %v10453 = vpack.c.b16 %v9881, %v9879
    %v10454 = vpack.c.b16 %v9882, %v9880
    %v10455 = vpack.c.b16 %v9885, %v9883
    %v10456 = vpack.c.b16 %v9886, %v9884
    %v10457 = vpack.c.b16 %v9889, %v9887
    %v10458 = vpack.c.b16 %v9890, %v9888
    %v10459 = vpack.c.b16 %v9893, %v9891
    %v10460 = vpack.c.b16 %v9894, %v9892
    %v10461 = vpack.c.b16 %v9897, %v9895
    %v10462 = vpack.c.b16 %v9898, %v9896
    %v10463 = vpack.c.b16 %v9901, %v9899
    %v10464 = vpack.c.b16 %v9902, %v9900
    %v10465 = vpack.c.b16 %v9905, %v9903
    %v10466 = vpack.c.b16 %v9906, %v9904
    %v10467 = vpack.c.b16 %v9909, %v9907
    %v10468 = vpack.c.b16 %v9910, %v9908
    %v10469 = vpack.c.b16 %v9913, %v9911
    %v10470 = vpack.c.b16 %v9914, %v9912
    %v10471 = vpack.c.b16 %v9917, %v9915
    %v10472 = vpack.c.b16 %v9918, %v9916
    %v10473 = vpack.c.b16 %v9921, %v9919
    %v10474 = vpack.c.b16 %v9922, %v9920
    %v10475 = vpack.c.b16 %v9925, %v9923
    %v10476 = vpack.c.b16 %v9926, %v9924
    %v10477 = vpack.c.b16 %v9929, %v9927
    %v10478 = vpack.c.b16 %v9930, %v9928
    %v10479 = vpack.c.b16 %v9933, %v9931
    %v10480 = vpack.c.b16 %v9934, %v9932
    %v10481 = vpack.c.b16 %v9937, %v9935
    %v10482 = vpack.c.b16 %v9938, %v9936
    %v10483 = vpack.c.b16 %v9941, %v9939
    %v10484 = vpack.c.b16 %v9942, %v9940
    %v10485 = vpack.c.b16 %v9945, %v9943
    %v10486 = vpack.c.b16 %v9946, %v9944
    %v10487 = vpack.c.b16 %v9949, %v9947
    %v10488 = vpack.c.b16 %v9950, %v9948
    %v10489 = vpack.c.b16 %v9953, %v9951
    %v10490 = vpack.c.b16 %v9954, %v9952
    %v10491 = vpack.c.b16 %v9957, %v9955
    %v10492 = vpack.c.b16 %v9958, %v9956
    %v10493 = vpack.c.b16 %v9961, %v9959
    %v10494 = vpack.c.b16 %v9962, %v9960
    %v10495 = vpack.c.b16 %v9965, %v9963
    %v10496 = vpack.c.b16 %v9966, %v9964
    %v10497 = vpack.c.b16 %v9969, %v9967
    %v10498 = vpack.c.b16 %v9970, %v9968
    %v10499 = vpack.c.b16 %v9973, %v9971
    %v10500 = vpack.c.b16 %v9974, %v9972
    %v10501 = vpack.c.b16 %v9977, %v9975
    %v10502 = vpack.c.b16 %v9978, %v9976
    %v10503 = vpack.c.b16 %v9981, %v9979
    %v10504 = vpack.c.b16 %v9982, %v9980
    %v10505 = vpack.c.b16 %v9985, %v9983
    %v10506 = vpack.c.b16 %v9986, %v9984
    %v10507 = vpack.c.b16 %v9989, %v9987
    %v10508 = vpack.c.b16 %v9990, %v9988
    %v10509 = vpack.c.b16 %v9993, %v9991
    %v10510 = vpack.c.b16 %v9994, %v9992
    %v10511 = vpack.c.b16 %v9997, %v9995
    %v10512 = vpack.c.b16 %v9998, %v9996
    %v10513 = vpack.c.b16 %v10001, %v9999
    %v10514 = vpack.c.b16 %v10002, %v10000
    %v10515 = vpack.c.b16 %v10005, %v10003
    %v10516 = vpack.c.b16 %v10006, %v10004
    %v10517 = vpack.c.b16 %v10009, %v10007
    %v10518 = vpack.c.b16 %v10010, %v10008
    %v10519 = vpack.c.b16 %v10013, %v10011
    %v10520 = vpack.c.b16 %v10014, %v10012
    %v10521 = vpack.c.b16 %v10017, %v10015
    %v10522 = vpack.c.b16 %v10018, %v10016
    %v10523 = vpack.c.b16 %v10021, %v10019
    %v10524 = vpack.c.b16 %v10022, %v10020
    %v10525 = vpack.c.b16 %v10025, %v10023
    %v10526 = vpack.c.b16 %v10026, %v10024
    %v10527 = vpack.c.b16 %v10029, %v10027
    %v10528 = vpack.c.b16 %v10030, %v10028
    %v10529 = vpack.c.b16 %v10033, %v10031
    %v10530 = vpack.c.b16 %v10034, %v10032
    %v10531 = vpack.c.b16 %v10037, %v10035
    %v10532 = vpack.c.b16 %v10038, %v10036
    %v10533 = vpack.c.b16 %v10041, %v10039
    %v10534 = vpack.c.b16 %v10042, %v10040
    %v10535 = vpack.c.b16 %v10045, %v10043
    %v10536 = vpack.c.b16 %v10046, %v10044
    %v10537 = vpack.c.b16 %v10049, %v10047
    %v10538 = vpack.c.b16 %v10050, %v10048
    %v10539 = vpack.c.b16 %v10053, %v10051
    %v10540 = vpack.c.b16 %v10054, %v10052
    %v10541 = vpack.c.b16 %v10057, %v10055
    %v10542 = vpack.c.b16 %v10058, %v10056
    %v10543 = vpack.c.b16 %v10061, %v10059
    %v10544 = vpack.c.b16 %v10062, %v10060
    %v10545 = vpack.c.b16 %v10065, %v10063
    %v10546 = vpack.c.b16 %v10066, %v10064
    %v10547 = vpack.c.b16 %v10069, %v10067
    %v10548 = vpack.c.b16 %v10070, %v10068
    %v10549 = vpack.c.b16 %v10073, %v10071
    %v10550 = vpack.c.b16 %v10074, %v10072
    %v10551 = vpack.c.b16 %v10077, %v10075
    %v10552 = vpack.c.b16 %v10078, %v10076
    %v10553 = vpack.c.b16 %v10081, %v10079
    %v10554 = vpack.c.b16 %v10082, %v10080
    %v10555 = vpack.c.b16 %v10085, %v10083
    %v10556 = vpack.c.b16 %v10086, %v10084
    %v10557 = vpack.c.b16 %v10089, %v10087
    %v10558 = vpack.c.b16 %v10090, %v10088
    %v10559 = vpack.c.b16 %v10093, %v10091
    %v10560 = vpack.c.b16 %v10094, %v10092
    %v10561 = vpack.c.b16 %v10097, %v10095
    %v10562 = vpack.c.b16 %v10098, %v10096
    %v10563 = vpack.c.b16 %v10101, %v10099
    %v10564 = vpack.c.b16 %v10102, %v10100
    %v10565 = vpack.c.b16 %v10105, %v10103
    %v10566 = vpack.c.b16 %v10106, %v10104
    %v10567 = vpack.c.b16 %v10109, %v10107
    %v10568 = vpack.c.b16 %v10110, %v10108
    %v10569 = vpack.c.b16 %v10113, %v10111
    %v10570 = vpack.c.b16 %v10114, %v10112
    %v10571 = vpack.c.b16 %v10117, %v10115
    %v10572 = vpack.c.b16 %v10118, %v10116
    %v10573 = vpack.c.b16 %v10121, %v10119
    %v10574 = vpack.c.b16 %v10122, %v10120
    %v10575 = vpack.c.b16 %v10125, %v10123
    %v10576 = vpack.c.b16 %v10126, %v10124
    %v10577 = vpack.c.b16 %v10129, %v10127
    %v10578 = vpack.c.b16 %v10130, %v10128
    %v10579 = vpack.c.b16 %v10133, %v10131
    %v10580 = vpack.c.b16 %v10134, %v10132
    %v10581 = vpack.c.b16 %v10137, %v10135
    %v10582 = vpack.c.b16 %v10138, %v10136
    %v10583 = vpack.c.b16 %v10141, %v10139
    %v10584 = vpack.c.b16 %v10142, %v10140
    %v10585 = vpack.c.b16 %v10145, %v10143
    %v10586 = vpack.c.b16 %v10146, %v10144
    %v10587 = vpack.c.b16 %v10149, %v10147
    %v10588 = vpack.c.b16 %v10150, %v10148
    %v10589 = vpack.c.b16 %v10153, %v10151
    %v10590 = vpack.c.b16 %v10154, %v10152
    %v10591 = vpack.c.b16 %v10157, %v10155
    %v10592 = vpack.c.b16 %v10158, %v10156
    %v10593 = vpack.c.b16 %v10161, %v10159
    %v10594 = vpack.c.b16 %v10162, %v10160
    %v10595 = vpack.c.b16 %v10165, %v10163
    %v10596 = vpack.c.b16 %v10166, %v10164
    %v10597 = vpack.c.b16 %v10169, %v10167
    %v10598 = vpack.c.b16 %v10170, %v10168
    %v10599 = vpack.c.b16 %v10173, %v10171
    %v10600 = vpack.c.b16 %v10174, %v10172
    %v10601 = vpack.c.b16 %v10177, %v10175
    %v10602 = vpack.c.b16 %v10178, %v10176
    %v10603 = vpack.c.b16 %v10181, %v10179
    %v10604 = vpack.c.b16 %v10182, %v10180
    %v10605 = vpack.c.b16 %v10185, %v10183
    %v10606 = vpack.c.b16 %v10186, %v10184
    %v10607 = vpack.c.b16 %v10189, %v10187
    %v10608 = vpack.c.b16 %v10190, %v10188
    %v10609 = vpack.c.b16 %v10193, %v10191
    %v10610 = vpack.c.b16 %v10194, %v10192
    %v10611 = vpack.c.b16 %v10197, %v10195
    %v10612 = vpack.c.b16 %v10198, %v10196
    %v10613 = vpack.c.b16 %v10201, %v10199
    %v10614 = vpack.c.b16 %v10202, %v10200
    %v10615 = vpack.c.b16 %v10205, %v10203
    %v10616 = vpack.c.b16 %v10206, %v10204
    %v10617 = vpack.c.b16 %v10209, %v10207
    %v10618 = vpack.c.b16 %v10210, %v10208
    %v10619 = vpack.c.b16 %v10213, %v10211
    %v10620 = vpack.c.b16 %v10214, %v10212
    %v10621 = vpack.c.b16 %v10217, %v10215
    %v10622 = vpack.c.b16 %v10218, %v10216
    %v10623 = vpack.c.b16 %v10221, %v10219
    %v10624 = vpack.c.b16 %v10222, %v10220
    %v10625 = vpack.c.b16 %v10225, %v10223
    %v10626 = vpack.c.b16 %v10226, %v10224
    %v10627 = vpack.c.b16 %v10229, %v10227
    %v10628 = vpack.c.b16 %v10230, %v10228
    %v10629 = vpack.c.b16 %v10233, %v10231
    %v10630 = vpack.c.b16 %v10234, %v10232
    %v10631 = vpack.c.b16 %v10237, %v10235
    %v10632 = vpack.c.b16 %v10238, %v10236
    %v10633 = vpack.c.b16 %v10241, %v10239
    %v10634 = vpack.c.b16 %v10242, %v10240
    %v10635 = vpack.c.b16 %v10245, %v10243
    %v10636 = vpack.c.b16 %v10246, %v10244
    %v10637 = vpack.c.b16 %v10249, %v10247
    %v10638 = vpack.c.b16 %v10250, %v10248
    %v10639 = vpack.c.b16 %v10253, %v10251
    %v10640 = vpack.c.b16 %v10254, %v10252
    %v10641 = vpack.c.b16 %v10257, %v10255
    %v10642 = vpack.c.b16 %v10258, %v10256
    %v10643 = vpack.c.b16 %v10261, %v10259
    %v10644 = vpack.c.b16 %v10262, %v10260
    %v10645 = vpack.c.b16 %v10265, %v10263
    %v10646 = vpack.c.b16 %v10266, %v10264
    %v10647 = vpack.c.b16 %v10269, %v10267
    %v10648 = vpack.c.b16 %v10270, %v10268
    %v10649 = vpack.c.b16 %v10273, %v10271
    %v10650 = vpack.c.b16 %v10274, %v10272
    %v10651 = vpack.c.b16 %v10277, %v10275
    %v10652 = vpack.c.b16 %v10278, %v10276
    %v10653 = vpack.c.b16 %v10281, %v10279
    %v10654 = vpack.c.b16 %v10282, %v10280
    %v10655 = vpack.c.b16 %v10285, %v10283
    %v10656 = vpack.c.b16 %v10286, %v10284
    %v10657 = vpack.c.b16 %v10289, %v10287
    %v10658 = vpack.c.b16 %v10290, %v10288
    %v10659 = vpack.c.b16 %v10293, %v10291
    %v10660 = vpack.c.b16 %v10294, %v10292
    %v10661 = vpack.c.b16 %v10297, %v10295
    %v10662 = vpack.c.b16 %v10298, %v10296
    %v10663 = vpack.c.b16 %v10301, %v10299
    %v10664 = vpack.c.b16 %v10302, %v10300
    %v10665 = vpack.c.b16 %v10305, %v10303
    %v10666 = vpack.c.b16 %v10306, %v10304
    %v10667 = vpack.c.b16 %v10309, %v10307
    %v10668 = vpack.c.b16 %v10310, %v10308
    %v10669 = vpack.c.b16 %v10313, %v10311
    %v10670 = vpack.c.b16 %v10314, %v10312
    %v10671 = vpack.c.b16 %v10317, %v10315
    %v10672 = vpack.c.b16 %v10318, %v10316
    %v10673 = vpack.c.b16 %v10321, %v10319
    %v10674 = vpack.c.b16 %v10322, %v10320
    %v10675 = vpack.c.b16 %v10325, %v10323
    %v10676 = vpack.c.b16 %v10326, %v10324
    %v10677 = vpack.c.b16 %v10329, %v10327
    %v10678 = vpack.c.b16 %v10330, %v10328
    %v10679 = vpack.c.b16 %v10333, %v10331
    %v10680 = vpack.c.b16 %v10334, %v10332
    %v10681 = vpack.c.b16 %v10337, %v10335
    %v10682 = vpack.c.b16 %v10338, %v10336
    %v10683 = vpack.c.b16 %v10341, %v10339
    %v10684 = vpack.c.b16 %v10342, %v10340
    %v10685 = vpack.c.b16 %v10345, %v10343
    %v10686 = vpack.c.b16 %v10346, %v10344
    %v10687 = vpack.c.b16 %v10349, %v10347
    %v10688 = vpack.c.b16 %v10350, %v10348
    %v10689 = vpack.c.b16 %v10353, %v10351
    %v10690 = vpack.c.b16 %v10354, %v10352
    %v10691 = vpack.c.b16 %v10357, %v10355
    %v10692 = vpack.c.b16 %v10358, %v10356
    %v10693 = vpack.c.b16 %v10361, %v10359
    %v10694 = vpack.c.b16 %v10362, %v10360
    %v10695 = vpack.c.b16 %v10365, %v10363
    %v10696 = vpack.c.b16 %v10366, %v10364
    %v10697 = vpack.c.b16 %v10369, %v10367
    %v10698 = vpack.c.b16 %v10370, %v10368
    %v10699 = vpack.c.b16 %v10373, %v10371
    %v10700 = vpack.c.b16 %v10374, %v10372
    %v10701 = vpack.c.b16 %v10377, %v10375
    %v10702 = vpack.c.b16 %v10378, %v10376
    %v10703 = vpack.c.b16 %v10381, %v10379
    %v10704 = vpack.c.b16 %v10382, %v10380
    %v10705 = vpack.c.b16 %v10385, %v10383
    %v10706 = vpack.c.b16 %v10386, %v10384
    %11027 = vmatprep.subr.bf16.mxu0 %v10388
    %11028 = vmatpush1.bf16.msra.mxu0 %v10387
    %11029 = vmatprep.subr.bf16.mxu0 %v10390
    %11030 = vmatpush1.bf16.msra.mxu0 %v10389
    %11031 = vmatprep.subr.bf16.mxu0 %v10392
    %11032 = vmatpush1.bf16.msra.mxu0 %v10391
    %11033 = vmatprep.subr.bf16.mxu0 %v10394
    %11034 = vmatpush1.bf16.msra.mxu0 %v10393
    %11035 = vmatprep.subr.bf16.mxu0 %v10396
    %11036 = vmatpush1.bf16.msra.mxu0 %v10395
    %11037 = vmatprep.subr.bf16.mxu0 %v10398
    %11038 = vmatpush1.bf16.msra.mxu0 %v10397
    %11039 = vmatprep.subr.bf16.mxu0 %v10400
    %11040 = vmatpush1.bf16.msra.mxu0 %v10399
    %11041 = vmatprep.subr.bf16.mxu0 %v10402
    %11042 = vmatpush1.bf16.msra.mxu0 %v10401
    %11043 = vmatprep.subr.bf16.mxu0 %v10404
    %11044 = vmatpush1.bf16.msra.mxu0 %v10403
    %11045 = vmatprep.subr.bf16.mxu0 %v10406
    %11046 = vmatpush1.bf16.msra.mxu0 %v10405
    %11047 = vmatprep.subr.bf16.mxu0 %v10408
    %11048 = vmatpush1.bf16.msra.mxu0 %v10407
    %11049 = vmatprep.subr.bf16.mxu0 %v10410
    %11050 = vmatpush1.bf16.msra.mxu0 %v10409
    %11051 = vmatprep.subr.bf16.mxu0 %v10412
    %11052 = vmatpush1.bf16.msra.mxu0 %v10411
    %11053 = vmatprep.subr.bf16.mxu0 %v10414
    %11054 = vmatpush1.bf16.msra.mxu0 %v10413
    %11055 = vmatprep.subr.bf16.mxu0 %v10416
    %11056 = vmatpush1.bf16.msra.mxu0 %v10415
    %11057 = vmatprep.subr.bf16.mxu0 %v10418
    %11058 = vmatpush1.bf16.msra.mxu0 %v10417
    %11059 = vmatprep.mubr.bf16.mxu0 %v8853
    %11060 = vmatmul.mubr.bf16.gmra.mrb[0].mxu0 %v8852
    %v11061 = vpop.f32.mrb[0].mxu0
    %v11062 = vadd.f32 %v9421, %v11061
    %v11063 = vpop.f32.mrb[0].mxu0
    %v11064 = vadd.f32 %v9423, %v11063
    %v11065 = vpop.f32.mrb[0].mxu0
    %v11066 = vpop.f32.mrb[0].mxu0
    %11067 = vdwg.mxu0
    %11068 = vmatprep.subr.bf16.mxu0 %v10420
    %11069 = vmatpush1.bf16.msra.mxu0 %v10419
    %11070 = vmatprep.subr.bf16.mxu0 %v10422
    %11071 = vmatpush1.bf16.msra.mxu0 %v10421
    %11072 = vmatprep.subr.bf16.mxu0 %v10424
    %11073 = vmatpush1.bf16.msra.mxu0 %v10423
    %11074 = vmatprep.subr.bf16.mxu0 %v10426
    %11075 = vmatpush1.bf16.msra.mxu0 %v10425
    %11076 = vmatprep.subr.bf16.mxu0 %v10428
    %11077 = vmatpush1.bf16.msra.mxu0 %v10427
    %11078 = vmatprep.subr.bf16.mxu0 %v10430
    %11079 = vmatpush1.bf16.msra.mxu0 %v10429
    %11080 = vmatprep.subr.bf16.mxu0 %v10432
    %11081 = vmatpush1.bf16.msra.mxu0 %v10431
    %11082 = vmatprep.subr.bf16.mxu0 %v10434
    %11083 = vmatpush1.bf16.msra.mxu0 %v10433
    %11084 = vmatprep.subr.bf16.mxu0 %v10436
    %11085 = vmatpush1.bf16.msra.mxu0 %v10435
    %11086 = vmatprep.subr.bf16.mxu0 %v10438
    %11087 = vmatpush1.bf16.msra.mxu0 %v10437
    %11088 = vmatprep.subr.bf16.mxu0 %v10440
    %11089 = vmatpush1.bf16.msra.mxu0 %v10439
    %11090 = vmatprep.subr.bf16.mxu0 %v10442
    %11091 = vmatpush1.bf16.msra.mxu0 %v10441
    %11092 = vmatprep.subr.bf16.mxu0 %v10444
    %11093 = vmatpush1.bf16.msra.mxu0 %v10443
    %11094 = vmatprep.subr.bf16.mxu0 %v10446
    %11095 = vmatpush1.bf16.msra.mxu0 %v10445
    %11096 = vmatprep.subr.bf16.mxu0 %v10448
    %11097 = vmatpush1.bf16.msra.mxu0 %v10447
    %11098 = vmatprep.subr.bf16.mxu0 %v10450
    %11099 = vmatpush1.bf16.msra.mxu0 %v10449
    %11100 = vmatprep.mubr.bf16.mxu0 %v8855
    %11101 = vmatmul.mubr.bf16.gmra.mrb[0].mxu0 %v8854
    %v11102 = vpop.f32.mrb[0].mxu0
    %v11103 = vadd.f32 %v11062, %v11102
    %v11104 = vpop.f32.mrb[0].mxu0
    %v11105 = vadd.f32 %v11064, %v11104
    %v11106 = vpop.f32.mrb[0].mxu0
    %v11107 = vpop.f32.mrb[0].mxu0
    %11108 = vdwg.mxu0
    %11109 = vmatprep.subr.bf16.mxu0 %v10452
    %11110 = vmatpush1.bf16.msra.mxu0 %v10451
    %11111 = vmatprep.subr.bf16.mxu0 %v10454
    %11112 = vmatpush1.bf16.msra.mxu0 %v10453
    %11113 = vmatprep.subr.bf16.mxu0 %v10456
    %11114 = vmatpush1.bf16.msra.mxu0 %v10455
    %11115 = vmatprep.subr.bf16.mxu0 %v10458
    %11116 = vmatpush1.bf16.msra.mxu0 %v10457
    %11117 = vmatprep.subr.bf16.mxu0 %v10460
    %11118 = vmatpush1.bf16.msra.mxu0 %v10459
    %11119 = vmatprep.subr.bf16.mxu0 %v10462
    %11120 = vmatpush1.bf16.msra.mxu0 %v10461
    %11121 = vmatprep.subr.bf16.mxu0 %v10464
    %11122 = vmatpush1.bf16.msra.mxu0 %v10463
    %11123 = vmatprep.subr.bf16.mxu0 %v10466
    %11124 = vmatpush1.bf16.msra.mxu0 %v10465
    %11125 = vmatprep.subr.bf16.mxu0 %v10468
    %11126 = vmatpush1.bf16.msra.mxu0 %v10467
    %11127 = vmatprep.subr.bf16.mxu0 %v10470
    %11128 = vmatpush1.bf16.msra.mxu0 %v10469
    %11129 = vmatprep.subr.bf16.mxu0 %v10472
    %11130 = vmatpush1.bf16.msra.mxu0 %v10471
    %11131 = vmatprep.subr.bf16.mxu0 %v10474
    %11132 = vmatpush1.bf16.msra.mxu0 %v10473
    %11133 = vmatprep.subr.bf16.mxu0 %v10476
    %11134 = vmatpush1.bf16.msra.mxu0 %v10475
    %11135 = vmatprep.subr.bf16.mxu0 %v10478
    %11136 = vmatpush1.bf16.msra.mxu0 %v10477
    %11137 = vmatprep.subr.bf16.mxu0 %v10480
    %11138 = vmatpush1.bf16.msra.mxu0 %v10479
    %11139 = vmatprep.subr.bf16.mxu0 %v10482
    %11140 = vmatpush1.bf16.msra.mxu0 %v10481
    %11141 = vmatprep.mubr.bf16.mxu0 %v8857
    %11142 = vmatmul.mubr.bf16.gmra.mrb[0].mxu0 %v8856
    %v11143 = vpop.f32.mrb[0].mxu0
    %v11144 = vadd.f32 %v11103, %v11143
    %v11145 = vpop.f32.mrb[0].mxu0
    %v11146 = vadd.f32 %v11105, %v11145
    %v11147 = vpop.f32.mrb[0].mxu0
    %v11148 = vpop.f32.mrb[0].mxu0
    %11149 = vdwg.mxu0
    %11150 = vmatprep.subr.bf16.mxu0 %v10484
    %11151 = vmatpush1.bf16.msra.mxu0 %v10483
    %11152 = vmatprep.subr.bf16.mxu0 %v10486
    %11153 = vmatpush1.bf16.msra.mxu0 %v10485
    %11154 = vmatprep.subr.bf16.mxu0 %v10488
    %11155 = vmatpush1.bf16.msra.mxu0 %v10487
    %11156 = vmatprep.subr.bf16.mxu0 %v10490
    %11157 = vmatpush1.bf16.msra.mxu0 %v10489
    %11158 = vmatprep.subr.bf16.mxu0 %v10492
    %11159 = vmatpush1.bf16.msra.mxu0 %v10491
    %11160 = vmatprep.subr.bf16.mxu0 %v10494
    %11161 = vmatpush1.bf16.msra.mxu0 %v10493
    %11162 = vmatprep.subr.bf16.mxu0 %v10496
    %11163 = vmatpush1.bf16.msra.mxu0 %v10495
    %11164 = vmatprep.subr.bf16.mxu0 %v10498
    %11165 = vmatpush1.bf16.msra.mxu0 %v10497
    %11166 = vmatprep.subr.bf16.mxu0 %v10500
    %11167 = vmatpush1.bf16.msra.mxu0 %v10499
    %11168 = vmatprep.subr.bf16.mxu0 %v10502
    %11169 = vmatpush1.bf16.msra.mxu0 %v10501
    %11170 = vmatprep.subr.bf16.mxu0 %v10504
    %11171 = vmatpush1.bf16.msra.mxu0 %v10503
    %11172 = vmatprep.subr.bf16.mxu0 %v10506
    %11173 = vmatpush1.bf16.msra.mxu0 %v10505
    %11174 = vmatprep.subr.bf16.mxu0 %v10508
    %11175 = vmatpush1.bf16.msra.mxu0 %v10507
    %11176 = vmatprep.subr.bf16.mxu0 %v10510
    %11177 = vmatpush1.bf16.msra.mxu0 %v10509
    %11178 = vmatprep.subr.bf16.mxu0 %v10512
    %11179 = vmatpush1.bf16.msra.mxu0 %v10511
    %11180 = vmatprep.subr.bf16.mxu0 %v10514
    %11181 = vmatpush1.bf16.msra.mxu0 %v10513
    %11182 = vmatprep.mubr.bf16.mxu0 %v8859
    %11183 = vmatmul.mubr.bf16.gmra.mrb[0].mxu0 %v8858
    %v11184 = vpop.f32.mrb[0].mxu0
    %v11185 = vadd.f32 %v11144, %v11184
    %v11186 = vpop.f32.mrb[0].mxu0
    %v11187 = vadd.f32 %v11146, %v11186
    %v11188 = vpop.f32.mrb[0].mxu0
    %v11189 = vpop.f32.mrb[0].mxu0
    %11190 = vdwg.mxu0
    %11191 = vmatprep.subr.bf16.mxu0 %v10516
    %11192 = vmatpush1.bf16.msra.mxu0 %v10515
    %11193 = vmatprep.subr.bf16.mxu0 %v10518
    %11194 = vmatpush1.bf16.msra.mxu0 %v10517
    %11195 = vmatprep.subr.bf16.mxu0 %v10520
    %11196 = vmatpush1.bf16.msra.mxu0 %v10519
    %11197 = vmatprep.subr.bf16.mxu0 %v10522
    %11198 = vmatpush1.bf16.msra.mxu0 %v10521
    %11199 = vmatprep.subr.bf16.mxu0 %v10524
    %11200 = vmatpush1.bf16.msra.mxu0 %v10523
    %11201 = vmatprep.subr.bf16.mxu0 %v10526
    %11202 = vmatpush1.bf16.msra.mxu0 %v10525
    %11203 = vmatprep.subr.bf16.mxu0 %v10528
    %11204 = vmatpush1.bf16.msra.mxu0 %v10527
    %11205 = vmatprep.subr.bf16.mxu0 %v10530
    %11206 = vmatpush1.bf16.msra.mxu0 %v10529
    %11207 = vmatprep.subr.bf16.mxu0 %v10532
    %11208 = vmatpush1.bf16.msra.mxu0 %v10531
    %11209 = vmatprep.subr.bf16.mxu0 %v10534
    %11210 = vmatpush1.bf16.msra.mxu0 %v10533
    %11211 = vmatprep.subr.bf16.mxu0 %v10536
    %11212 = vmatpush1.bf16.msra.mxu0 %v10535
    %11213 = vmatprep.subr.bf16.mxu0 %v10538
    %11214 = vmatpush1.bf16.msra.mxu0 %v10537
    %11215 = vmatprep.subr.bf16.mxu0 %v10540
    %11216 = vmatpush1.bf16.msra.mxu0 %v10539
    %11217 = vmatprep.subr.bf16.mxu0 %v10542
    %11218 = vmatpush1.bf16.msra.mxu0 %v10541
    %11219 = vmatprep.subr.bf16.mxu0 %v10544
    %11220 = vmatpush1.bf16.msra.mxu0 %v10543
    %11221 = vmatprep.subr.bf16.mxu0 %v10546
    %11222 = vmatpush1.bf16.msra.mxu0 %v10545
    %11223 = vmatprep.mubr.bf16.mxu0 %v8861
    %11224 = vmatmul.mubr.bf16.gmra.mrb[0].mxu0 %v8860
    %v11225 = vpop.f32.mrb[0].mxu0
    %v11226 = vadd.f32 %v11185, %v11225
    %v11227 = vpop.f32.mrb[0].mxu0
    %v11228 = vadd.f32 %v11187, %v11227
    %v11229 = vpop.f32.mrb[0].mxu0
    %v11230 = vpop.f32.mrb[0].mxu0
    %11231 = vdwg.mxu0
    %11232 = vmatprep.subr.bf16.mxu0 %v10548
    %11233 = vmatpush1.bf16.msra.mxu0 %v10547
    %11234 = vmatprep.subr.bf16.mxu0 %v10550
    %11235 = vmatpush1.bf16.msra.mxu0 %v10549
    %11236 = vmatprep.subr.bf16.mxu0 %v10552
    %11237 = vmatpush1.bf16.msra.mxu0 %v10551
    %11238 = vmatprep.subr.bf16.mxu0 %v10554
    %11239 = vmatpush1.bf16.msra.mxu0 %v10553
    %11240 = vmatprep.subr.bf16.mxu0 %v10556
    %11241 = vmatpush1.bf16.msra.mxu0 %v10555
    %11242 = vmatprep.subr.bf16.mxu0 %v10558
    %11243 = vmatpush1.bf16.msra.mxu0 %v10557
    %11244 = vmatprep.subr.bf16.mxu0 %v10560
    %11245 = vmatpush1.bf16.msra.mxu0 %v10559
    %11246 = vmatprep.subr.bf16.mxu0 %v10562
    %11247 = vmatpush1.bf16.msra.mxu0 %v10561
    %11248 = vmatprep.subr.bf16.mxu0 %v10564
    %11249 = vmatpush1.bf16.msra.mxu0 %v10563
    %11250 = vmatprep.subr.bf16.mxu0 %v10566
    %11251 = vmatpush1.bf16.msra.mxu0 %v10565
    %11252 = vmatprep.subr.bf16.mxu0 %v10568
    %11253 = vmatpush1.bf16.msra.mxu0 %v10567
    %11254 = vmatprep.subr.bf16.mxu0 %v10570
    %11255 = vmatpush1.bf16.msra.mxu0 %v10569
    %11256 = vmatprep.subr.bf16.mxu0 %v10572
    %11257 = vmatpush1.bf16.msra.mxu0 %v10571
    %11258 = vmatprep.subr.bf16.mxu0 %v10574
    %11259 = vmatpush1.bf16.msra.mxu0 %v10573
    %11260 = vmatprep.subr.bf16.mxu0 %v10576
    %11261 = vmatpush1.bf16.msra.mxu0 %v10575
    %11262 = vmatprep.subr.bf16.mxu0 %v10578
    %11263 = vmatpush1.bf16.msra.mxu0 %v10577
    %11264 = vmatprep.mubr.bf16.mxu0 %v8863
    %11265 = vmatmul.mubr.bf16.gmra.mrb[0].mxu0 %v8862
    %v11266 = vpop.f32.mrb[0].mxu0
    %v11267 = vadd.f32 %v11226, %v11266
    %v11268 = vpop.f32.mrb[0].mxu0
    %v11269 = vadd.f32 %v11228, %v11268
    %v11270 = vpop.f32.mrb[0].mxu0
    %v11271 = vpop.f32.mrb[0].mxu0
    %11272 = vdwg.mxu0
    %11273 = vmatprep.subr.bf16.mxu0 %v10580
    %11274 = vmatpush1.bf16.msra.mxu0 %v10579
    %11275 = vmatprep.subr.bf16.mxu0 %v10582
    %11276 = vmatpush1.bf16.msra.mxu0 %v10581
    %11277 = vmatprep.subr.bf16.mxu0 %v10584
    %11278 = vmatpush1.bf16.msra.mxu0 %v10583
    %11279 = vmatprep.subr.bf16.mxu0 %v10586
    %11280 = vmatpush1.bf16.msra.mxu0 %v10585
    %11281 = vmatprep.subr.bf16.mxu0 %v10588
    %11282 = vmatpush1.bf16.msra.mxu0 %v10587
    %11283 = vmatprep.subr.bf16.mxu0 %v10590
    %11284 = vmatpush1.bf16.msra.mxu0 %v10589
    %11285 = vmatprep.subr.bf16.mxu0 %v10592
    %11286 = vmatpush1.bf16.msra.mxu0 %v10591
    %11287 = vmatprep.subr.bf16.mxu0 %v10594
    %11288 = vmatpush1.bf16.msra.mxu0 %v10593
    %11289 = vmatprep.subr.bf16.mxu0 %v10596
    %11290 = vmatpush1.bf16.msra.mxu0 %v10595
    %11291 = vmatprep.subr.bf16.mxu0 %v10598
    %11292 = vmatpush1.bf16.msra.mxu0 %v10597
    %11293 = vmatprep.subr.bf16.mxu0 %v10600
    %11294 = vmatpush1.bf16.msra.mxu0 %v10599
    %11295 = vmatprep.subr.bf16.mxu0 %v10602
    %11296 = vmatpush1.bf16.msra.mxu0 %v10601
    %11297 = vmatprep.subr.bf16.mxu0 %v10604
    %11298 = vmatpush1.bf16.msra.mxu0 %v10603
    %11299 = vmatprep.subr.bf16.mxu0 %v10606
    %11300 = vmatpush1.bf16.msra.mxu0 %v10605
    %11301 = vmatprep.subr.bf16.mxu0 %v10608
    %11302 = vmatpush1.bf16.msra.mxu0 %v10607
    %11303 = vmatprep.subr.bf16.mxu0 %v10610
    %11304 = vmatpush1.bf16.msra.mxu0 %v10609
    %11305 = vmatprep.mubr.bf16.mxu0 %v8865
    %11306 = vmatmul.mubr.bf16.gmra.mrb[0].mxu0 %v8864
    %v11307 = vpop.f32.mrb[0].mxu0
    %v11308 = vadd.f32 %v11267, %v11307
    %v11309 = vpop.f32.mrb[0].mxu0
    %v11310 = vadd.f32 %v11269, %v11309
    %v11311 = vpop.f32.mrb[0].mxu0
    %v11312 = vpop.f32.mrb[0].mxu0
    %11313 = vdwg.mxu0
    %11314 = vmatprep.subr.bf16.mxu0 %v10612
    %11315 = vmatpush1.bf16.msra.mxu0 %v10611
    %11316 = vmatprep.subr.bf16.mxu0 %v10614
    %11317 = vmatpush1.bf16.msra.mxu0 %v10613
    %11318 = vmatprep.subr.bf16.mxu0 %v10616
    %11319 = vmatpush1.bf16.msra.mxu0 %v10615
    %11320 = vmatprep.subr.bf16.mxu0 %v10618
    %11321 = vmatpush1.bf16.msra.mxu0 %v10617
    %11322 = vmatprep.subr.bf16.mxu0 %v10620
    %11323 = vmatpush1.bf16.msra.mxu0 %v10619
    %11324 = vmatprep.subr.bf16.mxu0 %v10622
    %11325 = vmatpush1.bf16.msra.mxu0 %v10621
    %11326 = vmatprep.subr.bf16.mxu0 %v10624
    %11327 = vmatpush1.bf16.msra.mxu0 %v10623
    %11328 = vmatprep.subr.bf16.mxu0 %v10626
    %11329 = vmatpush1.bf16.msra.mxu0 %v10625
    %11330 = vmatprep.subr.bf16.mxu0 %v10628
    %11331 = vmatpush1.bf16.msra.mxu0 %v10627
    %11332 = vmatprep.subr.bf16.mxu0 %v10630
    %11333 = vmatpush1.bf16.msra.mxu0 %v10629
    %11334 = vmatprep.subr.bf16.mxu0 %v10632
    %11335 = vmatpush1.bf16.msra.mxu0 %v10631
    %11336 = vmatprep.subr.bf16.mxu0 %v10634
    %11337 = vmatpush1.bf16.msra.mxu0 %v10633
    %11338 = vmatprep.subr.bf16.mxu0 %v10636
    %11339 = vmatpush1.bf16.msra.mxu0 %v10635
    %11340 = vmatprep.subr.bf16.mxu0 %v10638
    %11341 = vmatpush1.bf16.msra.mxu0 %v10637
    %11342 = vmatprep.subr.bf16.mxu0 %v10640
    %11343 = vmatpush1.bf16.msra.mxu0 %v10639
    %11344 = vmatprep.subr.bf16.mxu0 %v10642
    %11345 = vmatpush1.bf16.msra.mxu0 %v10641
    %11346 = vmatprep.mubr.bf16.mxu0 %v8867
    %11347 = vmatmul.mubr.bf16.gmra.mrb[0].mxu0 %v8866
    %v11348 = vpop.f32.mrb[0].mxu0
    %v11349 = vadd.f32 %v11308, %v11348
    %v11350 = vpop.f32.mrb[0].mxu0
    %v11351 = vadd.f32 %v11310, %v11350
    %v11352 = vpop.f32.mrb[0].mxu0
    %v11353 = vpop.f32.mrb[0].mxu0
    %11354 = vdwg.mxu0
    %11355 = vmatprep.subr.bf16.mxu0 %v10644
    %11356 = vmatpush1.bf16.msra.mxu0 %v10643
    %11357 = vmatprep.subr.bf16.mxu0 %v10646
    %11358 = vmatpush1.bf16.msra.mxu0 %v10645
    %11359 = vmatprep.subr.bf16.mxu0 %v10648
    %11360 = vmatpush1.bf16.msra.mxu0 %v10647
    %11361 = vmatprep.subr.bf16.mxu0 %v10650
    %11362 = vmatpush1.bf16.msra.mxu0 %v10649
    %11363 = vmatprep.subr.bf16.mxu0 %v10652
    %11364 = vmatpush1.bf16.msra.mxu0 %v10651
    %11365 = vmatprep.subr.bf16.mxu0 %v10654
    %11366 = vmatpush1.bf16.msra.mxu0 %v10653
    %11367 = vmatprep.subr.bf16.mxu0 %v10656
    %11368 = vmatpush1.bf16.msra.mxu0 %v10655
    %11369 = vmatprep.subr.bf16.mxu0 %v10658
    %11370 = vmatpush1.bf16.msra.mxu0 %v10657
    %11371 = vmatprep.subr.bf16.mxu0 %v10660
    %11372 = vmatpush1.bf16.msra.mxu0 %v10659
    %11373 = vmatprep.subr.bf16.mxu0 %v10662
    %11374 = vmatpush1.bf16.msra.mxu0 %v10661
    %11375 = vmatprep.subr.bf16.mxu0 %v10664
    %11376 = vmatpush1.bf16.msra.mxu0 %v10663
    %11377 = vmatprep.subr.bf16.mxu0 %v10666
    %11378 = vmatpush1.bf16.msra.mxu0 %v10665
    %11379 = vmatprep.subr.bf16.mxu0 %v10668
    %11380 = vmatpush1.bf16.msra.mxu0 %v10667
    %11381 = vmatprep.subr.bf16.mxu0 %v10670
    %11382 = vmatpush1.bf16.msra.mxu0 %v10669
    %11383 = vmatprep.subr.bf16.mxu0 %v10672
    %11384 = vmatpush1.bf16.msra.mxu0 %v10671
    %11385 = vmatprep.subr.bf16.mxu0 %v10674
    %11386 = vmatpush1.bf16.msra.mxu0 %v10673
    %11387 = vmatprep.mubr.bf16.mxu0 %v8869
    %11388 = vmatmul.mubr.bf16.gmra.mrb[0].mxu0 %v8868
    %v11389 = vpop.f32.mrb[0].mxu0
    %v11390 = vadd.f32 %v11349, %v11389
    %v11391 = vpop.f32.mrb[0].mxu0
    %v11392 = vadd.f32 %v11351, %v11391
    %v11393 = vpop.f32.mrb[0].mxu0
    %v11394 = vpop.f32.mrb[0].mxu0
    %11395 = vdwg.mxu0
    %11396 = vmatprep.subr.bf16.mxu0 %v10676
    %11397 = vmatpush1.bf16.msra.mxu0 %v10675
    %11398 = vmatprep.subr.bf16.mxu0 %v10678
    %11399 = vmatpush1.bf16.msra.mxu0 %v10677
    %11400 = vmatprep.subr.bf16.mxu0 %v10680
    %11401 = vmatpush1.bf16.msra.mxu0 %v10679
    %11402 = vmatprep.subr.bf16.mxu0 %v10682
    %11403 = vmatpush1.bf16.msra.mxu0 %v10681
    %11404 = vmatprep.subr.bf16.mxu0 %v10684
    %11405 = vmatpush1.bf16.msra.mxu0 %v10683
    %11406 = vmatprep.subr.bf16.mxu0 %v10686
    %11407 = vmatpush1.bf16.msra.mxu0 %v10685
    %11408 = vmatprep.subr.bf16.mxu0 %v10688
    %11409 = vmatpush1.bf16.msra.mxu0 %v10687
    %11410 = vmatprep.subr.bf16.mxu0 %v10690
    %11411 = vmatpush1.bf16.msra.mxu0 %v10689
    %11412 = vmatprep.subr.bf16.mxu0 %v10692
    %11413 = vmatpush1.bf16.msra.mxu0 %v10691
    %11414 = vmatprep.subr.bf16.mxu0 %v10694
    %11415 = vmatpush1.bf16.msra.mxu0 %v10693
    %11416 = vmatprep.subr.bf16.mxu0 %v10696
    %11417 = vmatpush1.bf16.msra.mxu0 %v10695
    %11418 = vmatprep.subr.bf16.mxu0 %v10698
    %11419 = vmatpush1.bf16.msra.mxu0 %v10697
    %11420 = vmatprep.subr.bf16.mxu0 %v10700
    %11421 = vmatpush1.bf16.msra.mxu0 %v10699
    %11422 = vmatprep.subr.bf16.mxu0 %v10702
    %11423 = vmatpush1.bf16.msra.mxu0 %v10701
    %11424 = vmatprep.subr.bf16.mxu0 %v10704
    %11425 = vmatpush1.bf16.msra.mxu0 %v10703
    %11426 = vmatprep.subr.bf16.mxu0 %v10706
    %11427 = vmatpush1.bf16.msra.mxu0 %v10705
    %11428 = vmatprep.mubr.bf16.mxu0 %v8871
    %11429 = vmatmul.mubr.bf16.gmra.mrb[0].mxu0 %v8870
    %v11430 = vpop.f32.mrb[0].mxu0
    %v11431 = vadd.f32 %v11390, %v11430
    %v11432 = vpop.f32.mrb[0].mxu0
    %v11433 = vadd.f32 %v11392, %v11432
    %v11434 = vpop.f32.mrb[0].mxu0
    %v11435 = vpop.f32.mrb[0].mxu0
    %11436 = vdwg.mxu0
    %v11437 = vld [vmem:[#allocation24] sm:$0x3]
    %v11439 = vlaneseq
    %v11440 = vshrl.u32 %v11439, 7
    %v11441 = vsub.s32 0, %v11440
    %v11442 = vrot.slane %v11437, %v11441
    %v11443 = vlaneseq
    %v11444 = vshrl.u32 %v11443, 7
    %v11445 = vsub.s32 1, %v11444
    %v11446 = vrot.slane %v11437, %v11445
    %v11449 = vadd.f32 %v11431, %v11442
    %v11450 = vadd.f32 %v11433, %v11446
    %v11451 = vmax.f32 %v11449, 0.0
    %v11452 = vmax.f32 %v11450, 0.0
    %v11453 = vpack.c.bf16 %v11451, %v11451
    %v11454 = vpack.c.bf16 %v11452, %v11452
    %v11455 = vld [vmem:[#allocation26] sm:$0xf]
    %v11456 = vld [vmem:[#allocation26 + $0x4] sm:$0xf]
    %v11457 = vld [vmem:[#allocation26 + $0x8] sm:$0xf]
    %v11458 = vld [vmem:[#allocation26 + $0xc] sm:$0xf]
    %v11459 = vld [vmem:[#allocation26 + $0x10] sm:$0xf]
    %v11460 = vld [vmem:[#allocation26 + $0x14] sm:$0xf]
    %v11461 = vld [vmem:[#allocation26 + $0x18] sm:$0xf]
    %v11462 = vld [vmem:[#allocation26 + $0x1c] sm:$0xf]
    %v11463 = vld [vmem:[#allocation26 + $0x20] sm:$0xf]
    %v11464 = vld [vmem:[#allocation26 + $0x24] sm:$0xf]
    %v11465 = vld [vmem:[#allocation26 + $0x28] sm:$0xf]
    %v11466 = vld [vmem:[#allocation26 + $0x2c] sm:$0xf]
    %v11467 = vld [vmem:[#allocation26 + $0x30] sm:$0xf]
    %v11468 = vld [vmem:[#allocation26 + $0x34] sm:$0xf]
    %v11469 = vld [vmem:[#allocation26 + $0x38] sm:$0xf]
    %v11470 = vld [vmem:[#allocation26 + $0x3c] sm:$0xf]
    %v11471 = vld [vmem:[#allocation26 + $0x40] sm:$0xf]
    %v11472 = vld [vmem:[#allocation26 + $0x44] sm:$0xf]
    %v11473 = vld [vmem:[#allocation26 + $0x48] sm:$0xf]
    %v11474 = vld [vmem:[#allocation26 + $0x4c] sm:$0xf]
    %v11475 = vld [vmem:[#allocation26 + $0x50] sm:$0xf]
    %v11476 = vld [vmem:[#allocation26 + $0x54] sm:$0xf]
    %v11477 = vld [vmem:[#allocation26 + $0x58] sm:$0xf]
    %v11478 = vld [vmem:[#allocation26 + $0x5c] sm:$0xf]
    %v11479 = vld [vmem:[#allocation26 + $0x60] sm:$0xf]
    %v11480 = vld [vmem:[#allocation26 + $0x64] sm:$0xf]
    %v11481 = vld [vmem:[#allocation26 + $0x68] sm:$0xf]
    %v11482 = vld [vmem:[#allocation26 + $0x6c] sm:$0xf]
    %v11483 = vld [vmem:[#allocation26 + $0x70] sm:$0xf]
    %v11484 = vld [vmem:[#allocation26 + $0x74] sm:$0xf]
    %v11485 = vld [vmem:[#allocation26 + $0x78] sm:$0xf]
    %v11486 = vld [vmem:[#allocation26 + $0x7c] sm:$0xf]
    %v11487 = vld [vmem:[#allocation27] sm:$0x1]
    %v11489 = vlaneseq
    %v11490 = vshrl.u32 %v11489, 7
    %v11491 = vsub.s32 0, %v11490
    %v11492 = vrot.slane %v11487, %v11491
    %v11526 = vunpack.c.l.b16 %v11455
    %v11527 = vunpack.c.l.b16 %v11456
    %v11528 = vunpack.c.l.b16 %v11457
    %v11529 = vunpack.c.l.b16 %v11458
    %v11530 = vunpack.c.l.b16 %v11459
    %v11531 = vunpack.c.l.b16 %v11460
    %v11532 = vunpack.c.l.b16 %v11461
    %v11533 = vunpack.c.l.b16 %v11462
    %v11534 = vunpack.c.l.b16 %v11463
    %v11535 = vunpack.c.l.b16 %v11464
    %v11536 = vunpack.c.l.b16 %v11465
    %v11537 = vunpack.c.l.b16 %v11466
    %v11538 = vunpack.c.l.b16 %v11467
    %v11539 = vunpack.c.l.b16 %v11468
    %v11540 = vunpack.c.l.b16 %v11469
    %v11541 = vunpack.c.l.b16 %v11470
    %v11542 = vunpack.c.l.b16 %v11471
    %v11543 = vunpack.c.l.b16 %v11472
    %v11544 = vunpack.c.l.b16 %v11473
    %v11545 = vunpack.c.l.b16 %v11474
    %v11546 = vunpack.c.l.b16 %v11475
    %v11547 = vunpack.c.l.b16 %v11476
    %v11548 = vunpack.c.l.b16 %v11477
    %v11549 = vunpack.c.l.b16 %v11478
    %v11550 = vunpack.c.l.b16 %v11479
    %v11551 = vunpack.c.l.b16 %v11480
    %v11552 = vunpack.c.l.b16 %v11481
    %v11553 = vunpack.c.l.b16 %v11482
    %v11554 = vunpack.c.l.b16 %v11483
    %v11555 = vunpack.c.l.b16 %v11484
    %v11556 = vunpack.c.l.b16 %v11485
    %v11557 = vunpack.c.l.b16 %v11486
    %v11558 = vpack.c.b16 %v11527, %v11526
    %v11559 = vpack.c.b16 %v11529, %v11528
    %v11560 = vpack.c.b16 %v11531, %v11530
    %v11561 = vpack.c.b16 %v11533, %v11532
    %v11562 = vpack.c.b16 %v11535, %v11534
    %v11563 = vpack.c.b16 %v11537, %v11536
    %v11564 = vpack.c.b16 %v11539, %v11538
    %v11565 = vpack.c.b16 %v11541, %v11540
    %v11566 = vpack.c.b16 %v11543, %v11542
    %v11567 = vpack.c.b16 %v11545, %v11544
    %v11568 = vpack.c.b16 %v11547, %v11546
    %v11569 = vpack.c.b16 %v11549, %v11548
    %v11570 = vpack.c.b16 %v11551, %v11550
    %v11571 = vpack.c.b16 %v11553, %v11552
    %v11572 = vpack.c.b16 %v11555, %v11554
    %v11573 = vpack.c.b16 %v11557, %v11556
    %11590 = vmatprep.subr.bf16.mxu0 0
    %11591 = vmatpush1.bf16.msra.mxu0 %v11558
    %11592 = vmatprep.subr.bf16.mxu0 0
    %11593 = vmatpush1.bf16.msra.mxu0 %v11559
    %11594 = vmatprep.subr.bf16.mxu0 0
    %11595 = vmatpush1.bf16.msra.mxu0 %v11560
    %11596 = vmatprep.subr.bf16.mxu0 0
    %11597 = vmatpush1.bf16.msra.mxu0 %v11561
    %11598 = vmatprep.subr.bf16.mxu0 0
    %11599 = vmatpush1.bf16.msra.mxu0 %v11562
    %11600 = vmatprep.subr.bf16.mxu0 0
    %11601 = vmatpush1.bf16.msra.mxu0 %v11563
    %11602 = vmatprep.subr.bf16.mxu0 0
    %11603 = vmatpush1.bf16.msra.mxu0 %v11564
    %11604 = vmatprep.subr.bf16.mxu0 0
    %11605 = vmatpush1.bf16.msra.mxu0 %v11565
    %11606 = vmatprep.subr.bf16.mxu0 0
    %11607 = vmatpush1.bf16.msra.mxu0 %v11566
    %11608 = vmatprep.subr.bf16.mxu0 0
    %11609 = vmatpush1.bf16.msra.mxu0 %v11567
    %11610 = vmatprep.subr.bf16.mxu0 0
    %11611 = vmatpush1.bf16.msra.mxu0 %v11568
    %11612 = vmatprep.subr.bf16.mxu0 0
    %11613 = vmatpush1.bf16.msra.mxu0 %v11569
    %11614 = vmatprep.subr.bf16.mxu0 0
    %11615 = vmatpush1.bf16.msra.mxu0 %v11570
    %11616 = vmatprep.subr.bf16.mxu0 0
    %11617 = vmatpush1.bf16.msra.mxu0 %v11571
    %11618 = vmatprep.subr.bf16.mxu0 0
    %11619 = vmatpush1.bf16.msra.mxu0 %v11572
    %11620 = vmatprep.subr.bf16.mxu0 0
    %11621 = vmatpush1.bf16.msra.mxu0 %v11573
    %11622 = vmatprep.mubr.bf16.mxu0 %v11454
    %11623 = vmatmul.mubr.bf16.gmra.mrb[0].mxu0 %v11453
    %v11624 = vpop.f32.mrb[0].mxu0
    %v11625 = vadd.f32 %v11492, %v11624
    %v11626 = vpop.f32.mrb[0].mxu0
    %v11627 = vpop.f32.mrb[0].mxu0
    %v11628 = vpop.f32.mrb[0].mxu0
    %11629 = vdwg.mxu0
    %v11630 = vxor.u32 %v11625, 2147483648
    %v11631 = vmul.f32 %v11630, 1.442695
    %v11632 = vpow.pop %v11631
    %v11633 = vadd.f32 %v11632, 1.0
    %v11634 = vrcp.pop %v11633
    %v11635 = vmul.f32 1.0, %v11634
    %11636 = vst [vmem:[#allocation29] sm:$0x3] %v11635
    // Predicated region
    $region142: #{model_forward.1} parent=1 // pred_check
      _
    $region143: #{model_forward.1} parent=1 // pred_check_branch
      %11638 = sbr.rel (0) target = $region145
    $region144: #{model_forward.1} parent=1 // pred_region
      %s11640 = ssub.s32 32, 32
      %11641 = vsyncadd [#allocation5], %s11640
      %s11643 = sshll.u32 [#allocation29], 4
      %s11644 = int_to_ptr.vmem [resolvable:$true] %s11643
      %11646 = dma.vmem_to_hbm [thread:$0]  %s11644, 32, %s19, [#allocation5]
    $region145: #{model_forward.1} parent=1 // pred_fallthru
      _
    // Predicated region
    $region146: #{model_forward.1} parent=1 // pred_check
      _
    $region147: #{model_forward.1} parent=1 // pred_check_branch
      %11648 = sbr.rel (0) target = $region149
    $region148: #{model_forward.1} parent=1 // pred_region
      %11649 = dma.done [#allocation5], 32
    $region149: #{model_forward.1} parent=1 // pred_fallthru
      _
    %11650 = vsyncpa [#allocation4], 1
    %11651 = vsyncpa [#allocation7], 1
    %11652 = vsyncpa [#allocation10], 1
    %11653 = vsyncpa [#allocation13], 1
    %11654 = vsyncpa [#allocation16], 1
    %11655 = vsyncpa [#allocation19], 1
    %11656 = vsyncpa [#allocation22], 1
    %11657 = vsyncpa [#allocation25], 1
    %11658 = vsyncpa [#allocation28], 1
    %11659 = vsyncpa [#allocation5], 1

</llo_original>
